<compile_context>
chip_gen: v5e
topology: v5e:2x2
jax: 0.10.0
libtpu: 0.0.40
codegen_flags: <defaults>
</compile_context>

<pallas_src>
import jax
import jax.numpy as jnp
from jax import lax
from jax.experimental import pallas as pl
from jax.experimental.pallas import tpu as pltpu

# ----------------------- synthetic config (small shapes) -----------------------
B = 2            # batch
T = 32           # input video frames
DV = 16          # visual feature dim
K = 2            # clip avg-pool kernel/stride
NC = T // K      # number of clips (scale-0 map size)
H = 32           # hidden size
S = 8            # text sequence length
DT = 16          # word embedding dim
HL = 32          # LSTM hidden size
NUM_SCALES = 2
NUM_MAP_LAYERS = 2


# ================================ Pallas kernels ================================

def clip_kernel(vis_ref, wc_ref, bc_ref, out_ref):
    """FrameAvgPool: ReLU(Conv1d k=1) then AvgPool1d(K, K).  vis_ref (1,T,DV) -> out (1,NC,H)."""
    x = vis_ref[0]                                                      # (T, DV)
    z = jnp.dot(x, wc_ref[...], preferred_element_type=jnp.float32) + bc_ref[...]
    z = jnp.maximum(z, 0.0)                                             # (T, H)
    nc = out_ref.shape[1]
    k = z.shape[0] // nc
    # average pooling as reshape + mean (VPU add, no pooling matrix / iota per step)
    out_ref[0] = jnp.mean(z.reshape(nc, k, z.shape[-1]), axis=1)        # (NC, H)


def text_kernel(txt_ref, mask_ref, wih_ref, whh_ref, b_ref, wtex_ref, btex_ref, out_ref):
    """BaseFusion textual branch: LSTM over padded sequence, pick h at (sum(mask)-1), Linear.
    txt_ref (S,B,DT), mask_ref (S,B,1)  ->  out_ref (B,1,H)."""
    s_len, b, dt = txt_ref.shape
    hl = whh_ref.shape[0]
    mask = mask_ref[...]                                                # (S, B, 1)
    last_idx = (jnp.sum(mask, axis=0) - 1.0).astype(jnp.int32)          # (B, 1)
    # NOTE: an all-zero textual_mask row keeps sel == 0 (PyTorch pack_padded would error).

    # Input projections for every timestep in a single matmul.
    xg = (jnp.dot(txt_ref[...].reshape(s_len * b, dt), wih_ref[...],
                  preferred_element_type=jnp.float32)
          + b_ref[...]).reshape(s_len, b, 4 * hl)                       # (S, B, 4*HL)

    h = jnp.zeros((b, hl), jnp.float32)
    c = jnp.zeros((b, hl), jnp.float32)
    sel = jnp.zeros((b, hl), jnp.float32)
    for t in range(s_len):                                              # static unroll (S is tiny)
        gates = xg[t] + jnp.dot(h, whh_ref[...], preferred_element_type=jnp.float32)
        i_g = jax.nn.sigmoid(gates[:, 0 * hl:1 * hl])
        f_g = jax.nn.sigmoid(gates[:, 1 * hl:2 * hl])
        g_g = jnp.tanh(gates[:, 2 * hl:3 * hl])
        o_g = jax.nn.sigmoid(gates[:, 3 * hl:4 * hl])
        c = f_g * c + i_g * g_g
        h = o_g * jnp.tanh(c)
        sel = jnp.where(last_idx == t, h, sel)                          # hidden at last valid step
    txt_h = jnp.dot(sel, wtex_ref[...], preferred_element_type=jnp.float32) + btex_ref[...]
    out_ref[...] = txt_h[:, None, :]                                    # (B, 1, H)


def fused_scale_kernel(clips_ref, mask_ref, txt_ref, wv_ref, bv_ref,
                       wmap_ref, bmap_ref, wp_ref, bp_ref,
                       out_ref, xpad_ref):
    """One scale, one batch element: prop -> fusion -> NUM_MAP_LAYERS masked conv3x3+ReLU -> pred.

    clips_ref (1,N,H), mask_ref (1,N,N,1), txt_ref (1,1,H), wv (H,H), bv (1,H),
    wmap (L,9H,H), bmap (L,1,H), wp (1,H), bp (1,1) -> out (1,N,N,1).
    xpad_ref: VMEM scratch (N+2,N+2,H) for the conv halo; the map stays VMEM-resident.
    """
    n = clips_ref.shape[1]
    h = clips_ref.shape[2]
    clips = clips_ref[0]                                                # (N, H)
    mask3 = mask_ref[0]                                                 # (N, N, 1)

    # ---- prop: map[i,j] = max(clips[i..j]) via doubling running-max, O(N^2 H log N) ----
    NEG = -1e30
    ii3 = lax.broadcasted_iota(jnp.int32, (n, n, 1), 0)
    jj3 = lax.broadcasted_iota(jnp.int32, (n, n, 1), 1)
    upper3 = jj3 >= ii3                                                 # (N, N, 1)
    m = jnp.where(upper3, jnp.broadcast_to(clips[None, :, :], (n, n, h)),
                  jnp.float32(NEG))                                     # (N, N, H)
    d = 1
    while d < n:                                                        # log2(N) steps
        shifted = jnp.concatenate(
            [jnp.full((n, d, h), NEG, jnp.float32), m[:, :n - d, :]], axis=1)
        m = jnp.maximum(m, shifted)
        d *= 2
    prop = jnp.where(upper3, m, 0.0)                                    # (N, N, H)

    # ---- fusion: F.normalize(txt_h * Conv2d_1x1(map), dim=channel) * map_mask ----
    m2 = prop.reshape(n * n, h)
    mv = jnp.dot(m2, wv_ref[...], preferred_element_type=jnp.float32) + bv_ref[...]
    f = mv * txt_ref[0]                                                 # (N*N, H) * (1, H)
    norm = jnp.sqrt(jnp.sum(f * f, axis=-1, keepdims=True))
    f = f / jnp.maximum(norm, 1e-12)                                    # F.normalize (eps=1e-12)
    y = f.reshape(n, n, h) * mask3                                      # (N, N, H)

    # ---- map module: L x (masked conv3x3 'same' + ReLU), im2col matmul per layer ----
    xpad_ref[...] = jnp.zeros_like(xpad_ref)                            # zero halo (+interior)
    num_layers = wmap_ref.shape[0]
    for l in range(num_layers):
        # masked, padded input for this layer lives in VMEM scratch
        xpad_ref[pl.ds(1, n), pl.ds(1, n), :] = y * mask3
        xp = xpad_ref[...]                                              # (N+2, N+2, H)
        cols = [xp[di:di + n, dj:dj + n, :].reshape(n * n, h)
                for di in range(3) for dj in range(3)]
        xs = jnp.concatenate(cols, axis=-1)                             # (N*N, 9H)
        y = jnp.dot(xs, wmap_ref[l], preferred_element_type=jnp.float32) + bmap_ref[l]
        y = jnp.maximum(y, 0.0).reshape(n, n, h)

    # ---- pred: Conv2d(H,1,1) as a lane reduction, then TAN-level prediction * map_mask ----
    p = jnp.sum(y * wp_ref[...], axis=-1, keepdims=True) + bp_ref[...]  # (N, N, 1)
    out_ref[0] = p * mask3


# ============================== pallas_call wrappers ==============================

def clip_call(vis_nlc, wc, bc):
    b, t, dv = vis_nlc.shape
    return pl.pallas_call(
        clip_kernel,
        out_shape=jax.ShapeDtypeStruct((b, NC, H), jnp.float32),
        grid=(b,),
        in_specs=[pl.BlockSpec((1, t, dv), lambda i: (i, 0, 0)),
                  pl.BlockSpec((dv, H), lambda i: (0, 0)),
                  pl.BlockSpec((1, H), lambda i: (0, 0))],
        out_specs=pl.BlockSpec((1, NC, H), lambda i: (i, 0, 0)),
        compiler_params=pltpu.CompilerParams(dimension_semantics=("parallel",)),
    )(vis_nlc, wc, bc)


def text_call(txt_sbd, mask_sb1, w_ih, w_hh, b_lstm, w_tex, b_tex):
    b = txt_sbd.shape[1]
    return pl.pallas_call(
        text_kernel,
        out_shape=jax.ShapeDtypeStruct((b, 1, H), jnp.float32),
    )(txt_sbd, mask_sb1, w_ih, w_hh, b_lstm, w_tex, b_tex)


def fused_scale_call(clips, map_mask4, txt_h, wv, bv, wmap, bmap, wp_row, bp):
    b, n, h = clips.shape
    num_layers = wmap.shape[0]
    return pl.pallas_call(
        fused_scale_kernel,
        out_shape=jax.ShapeDtypeStruct((b, n, n, 1), jnp.float32),
        grid_spec=pltpu.PrefetchScalarGridSpec(
            num_scalar_prefetch=0,
            grid=(b,),
            in_specs=[pl.BlockSpec((1, n, h), lambda i: (i, 0, 0)),
                      pl.BlockSpec((1, n, n, 1), lambda i: (i, 0, 0, 0)),
                      pl.BlockSpec((1, 1, h), lambda i: (i, 0, 0)),
                      pl.BlockSpec((h, h), lambda i: (0, 0)),
                      pl.BlockSpec((1, h), lambda i: (0, 0)),
                      pl.BlockSpec((num_layers, 9 * h, h), lambda i: (0, 0, 0)),
                      pl.BlockSpec((num_layers, 1, h), lambda i: (0, 0, 0)),
                      pl.BlockSpec((1, h), lambda i: (0, 0)),
                      pl.BlockSpec((1, 1), lambda i: (0, 0))],
            out_specs=pl.BlockSpec((1, n, n, 1), lambda i: (i, 0, 0, 0)),
            scratch_shapes=[pltpu.VMEM((n + 2, n + 2, h), jnp.float32)]),
        compiler_params=pltpu.CompilerParams(dimension_semantics=("parallel",)),
    )(clips, map_mask4, txt_h, wv, bv, wmap, bmap, wp_row, bp)


# ================================ parameters ================================

def init_params(key):
    ks = jax.random.split(key, 24)

    def nrm(k, shape, scale=0.1):
        return (scale * jax.random.normal(k, shape)).astype(jnp.float32)

    params = {
        "wc": nrm(ks[0], (DV, H)), "bc": nrm(ks[1], (1, H)),
        # LSTM weights, PyTorch gate order (i, f, g, o); b = b_ih + b_hh
        "w_ih": nrm(ks[2], (DT, 4 * HL)), "w_hh": nrm(ks[3], (HL, 4 * HL)),
        "b_lstm": nrm(ks[4], (1, 4 * HL)),
        "w_tex": nrm(ks[5], (HL, H)), "b_tex": nrm(ks[6], (1, H)),
        "wv": nrm(ks[7], (H, H)), "bv": nrm(ks[8], (1, H)),
        "map_w": [], "map_b": [], "pred_w": [], "pred_b": [],
    }
    idx = 9
    for _ in range(NUM_SCALES):
        ws, bs = [], []
        for _ in range(NUM_MAP_LAYERS):
            ws.append(nrm(ks[idx], (9, H, H))); idx += 1
            bs.append(nrm(ks[idx], (1, H))); idx += 1
        params["map_w"].append(ws)
        params["map_b"].append(bs)
        params["pred_w"].append(nrm(ks[idx], (H, 1))); idx += 1
        params["pred_b"].append(nrm(ks[idx], (1, 1))); idx += 1
    return params


# ================================ forward pass ================================

def multiscale_tan_forward(textual_input, textual_mask, visual_input, visual_mask, params):
    """textual_input (B,S,DT), textual_mask (B,S,1), visual_input (B,DV,T) [NCL],
    visual_mask (B,1,T).  Returns ([pred_s (B,1,N_s,N_s)], [mask_s (B,1,N_s,N_s)])."""
    b = visual_input.shape[0]

    # ---- clip module ----
    vis_nlc = jnp.transpose(visual_input, (0, 2, 1))                     # (B, T, DV)
    clips0 = clip_call(vis_nlc, params["wc"], params["bc"])              # (B, NC, H)
    clip_mask = jnp.round(jnp.mean(visual_mask.reshape(b, 1, NC, K), axis=-1))  # (B,1,NC)

    # ---- fusion textual branch (LSTM), shared across scales ----
    txt_sbd = jnp.transpose(textual_input, (1, 0, 2))                    # (S, B, DT)
    mask_sb1 = jnp.transpose(textual_mask, (1, 0, 2))                    # (S, B, 1)
    txt_h = text_call(txt_sbd, mask_sb1, params["w_ih"], params["w_hh"],
                      params["b_lstm"], params["w_tex"], params["b_tex"])  # (B,1,H)

    # ---- multi-scale clip pyramids (max-pool by 2 between scales) ----
    clips_list = [clips0]
    valid_list = [clip_mask[:, 0, :]]
    for _ in range(1, NUM_SCALES):
        c, v = clips_list[-1], valid_list[-1]
        clips_list.append(jnp.maximum(c[:, 0::2, :], c[:, 1::2, :]))
        valid_list.append(jnp.maximum(v[:, 0::2], v[:, 1::2]))

    predictions, map_masks = [], []
    for s in range(NUM_SCALES):
        clips, valid = clips_list[s], valid_list[s]
        n = clips.shape[1]

        ii = jnp.arange(n)[:, None]
        jj = jnp.arange(n)[None, :]
        band = (jj >= ii).astype(jnp.float32)
        mm = band[None] * valid[:, :, None] * valid[:, None, :]          # (B, N, N)
        map_mask4 = mm[..., None]                                        # (B, N, N, 1)

        # pack per-scale conv weights for im2col: (L, 9*H, H) / (L, 1, H)
        wmap = jnp.stack([params["map_w"][s][l].reshape(9 * H, H)
                          for l in range(NUM_MAP_LAYERS)])
        bmap = jnp.stack([params["map_b"][s][l] for l in range(NUM_MAP_LAYERS)])
        wp_row = params["pred_w"][s].reshape(1, H)                       # (H,1) -> (1,H)

        pred4 = fused_scale_call(clips, map_mask4, txt_h,
                                 params["wv"], params["bv"],
                                 wmap, bmap, wp_row, params["pred_b"][s])  # (B,N,N,1)

        predictions.append(jnp.transpose(pred4, (0, 3, 1, 2)))           # (B,1,N,N)
        map_masks.append(jnp.transpose(map_mask4, (0, 3, 1, 2)))         # (B,1,N,N)

    return predictions, map_masks


# ==================================== main ====================================

if __name__ == "__main__":
    key = jax.random.PRNGKey(0)
    k_txt, k_vis, k_par = jax.random.split(key, 3)

    textual_input = jax.random.normal(k_txt, (B, S, DT), jnp.float32)
    visual_input = jax.random.normal(k_vis, (B, DV, T), jnp.float32)

    txt_lens = jnp.array([S, 5])
    textual_mask = (jnp.arange(S)[None, :] < txt_lens[:, None]).astype(jnp.float32)[..., None]  # (B,S,1)
    vis_lens = jnp.array([T, 24])
    visual_mask = (jnp.arange(T)[None, :] < vis_lens[:, None]).astype(jnp.float32)[:, None, :]  # (B,1,T)

    params = init_params(k_par)

    fwd = jax.jit(multiscale_tan_forward)
    predictions, map_masks = fwd(textual_input, textual_mask,
                                 visual_input, visual_mask, params)

    for p in predictions:
        jax.block_until_ready(p)
    for m in map_masks:
        jax.block_until_ready(m)

    assert predictions[0].shape == (B, 1, NC, NC)
    assert predictions[1].shape == (B, 1, NC // 2, NC // 2)
    assert map_masks[0].shape == (B, 1, NC, NC)
    assert all(bool(jnp.all(jnp.isfinite(p))) for p in predictions)

    print("KERNEL_OK")
</pallas_src>

<mosaic_0001>
module attributes {stable_mosaic.version = 11 : i64} {
  func.func @clip_kernel(%arg0: i32, %arg1: memref<1x32x16xf32, #tpu.memory_space<vmem>>, %arg2: memref<16x32xf32, #tpu.memory_space<vmem>>, %arg3: memref<1x32xf32, #tpu.memory_space<vmem>>, %arg4: memref<1x16x32xf32, #tpu.memory_space<vmem>>) attributes {dimension_semantics = [#tpu.dimension_semantics<parallel>], iteration_bounds = array<i64: 2>, scalar_prefetch = 0 : i64, scratch_operands = 0 : i64, tpu.core_type = #tpu.core_type<tc>, window_params = [{transform_indices = @transform_0, window_bounds = array<i64: 1, 32, 16>}, {pipeline_mode = #tpu.pipeline_mode<synchronous>, transform_indices = @transform_1, window_bounds = array<i64: 16, 32>}, {pipeline_mode = #tpu.pipeline_mode<synchronous>, transform_indices = @transform_2, window_bounds = array<i64: 1, 32>}, {transform_indices = @transform_3, window_bounds = array<i64: 1, 16, 32>}]} {
    %c0 = arith.constant 0 : index
    %c0_0 = arith.constant 0 : index
    %c0_1 = arith.constant 0 : index
    %0 = vector.load %arg1[%c0, %c0_0, %c0_1] : memref<1x32x16xf32, #tpu.memory_space<vmem>>, vector<1x32x16xf32>
    %1 = vector.shape_cast %0 : vector<1x32x16xf32> to vector<32x16xf32>
    %c0_2 = arith.constant 0 : index
    %c0_3 = arith.constant 0 : index
    %2 = vector.load %arg2[%c0_2, %c0_3] : memref<16x32xf32, #tpu.memory_space<vmem>>, vector<16x32xf32>
    %cst = arith.constant dense<0.000000e+00> : vector<32x32xf32>
    %3 = tpu.matmul %1, %2, %cst {dimension_numbers = #tpu.dot_dimension_numbers<[1], [0], [0], [1], [0, 0, 1, 1], [], []>} : vector<32x16xf32>, vector<16x32xf32>, vector<32x32xf32> -> vector<32x32xf32>
    %c0_4 = arith.constant 0 : index
    %c0_5 = arith.constant 0 : index
    %4 = vector.load %arg3[%c0_4, %c0_5] : memref<1x32xf32, #tpu.memory_space<vmem>>, vector<1x32xf32>
    %5 = vector.broadcast %4 : vector<1x32xf32> to vector<32x32xf32>
    %6 = arith.addf %3, %5 : vector<32x32xf32>
    %cst_6 = arith.constant 0.000000e+00 : f32
    %7 = vector.broadcast %cst_6 : f32 to vector<32x32xf32>
    %8 = arith.maximumf %6, %7 : vector<32x32xf32>
    %9 = vector.shape_cast %8 : vector<32x32xf32> to vector<16x2x32xf32>
    %cst_7 = arith.constant dense<0.000000e+00> : vector<16x32xf32>
    %10 = vector.multi_reduction <add>, %9, %cst_7 [1] : vector<16x2x32xf32> to vector<16x32xf32>
    %cst_8 = arith.constant 2.000000e+00 : f32
    %11 = vector.broadcast %cst_8 : f32 to vector<16x32xf32>
    %12 = arith.divf %10, %11 : vector<16x32xf32>
    %c0_9 = arith.constant 0 : index
    %c0_10 = arith.constant 0 : index
    %c0_11 = arith.constant 0 : index
    %13 = vector.load %arg4[%c0_9, %c0_10, %c0_11] : memref<1x16x32xf32, #tpu.memory_space<vmem>>, vector<1x16x32xf32>
    %14 = vector.shape_cast %13 : vector<1x16x32xf32> to vector<16x32xf32>
    %15 = vector.shape_cast %12 : vector<16x32xf32> to vector<1x16x32xf32>
    tpu.vector_store %arg4[%c0_9, %c0_10, %c0_11], %15 {strides = array<i32>} : memref<1x16x32xf32, #tpu.memory_space<vmem>>, vector<1x16x32xf32>,
    return
  }
  func.func @transform_0(%arg0: i32) -> (i32, i32, i32) {
    %c0_i32 = arith.constant 0 : i32
    %c0_i32_0 = arith.constant 0 : i32
    %c0_i32_1 = arith.constant 0 : i32
    return %arg0, %c0_i32, %c0_i32_0 : i32, i32, i32
  }
  func.func @transform_1(%arg0: i32) -> (i32, i32) {
    %c0_i32 = arith.constant 0 : i32
    %c0_i32_0 = arith.constant 0 : i32
    %c0_i32_1 = arith.constant 0 : i32
    return %c0_i32, %c0_i32_0 : i32, i32
  }
  func.func @transform_2(%arg0: i32) -> (i32, i32) {
    %c0_i32 = arith.constant 0 : i32
    %c0_i32_0 = arith.constant 0 : i32
    %c0_i32_1 = arith.constant 0 : i32
    return %c0_i32, %c0_i32_0 : i32, i32
  }
  func.func @transform_3(%arg0: i32) -> (i32, i32, i32) {
    %c0_i32 = arith.constant 0 : i32
    %c0_i32_0 = arith.constant 0 : i32
    %c0_i32_1 = arith.constant 0 : i32
    return %arg0, %c0_i32, %c0_i32_0 : i32, i32, i32
  }
}

module attributes {stable_mosaic.version = 11 : i64} {
  func.func @fused_scale_kernel(%arg0: i32, %arg1: memref<1x16x32xf32, #tpu.memory_space<vmem>>, %arg2: memref<1x16x16x1xf32, #tpu.memory_space<vmem>>, %arg3: memref<1x1x32xf32, #tpu.memory_space<vmem>>, %arg4: memref<32x32xf32, #tpu.memory_space<vmem>>, %arg5: memref<1x32xf32, #tpu.memory_space<vmem>>, %arg6: memref<2x288x32xf32, #tpu.memory_space<vmem>>, %arg7: memref<2x1x32xf32, #tpu.memory_space<vmem>>, %arg8: memref<1x32xf32, #tpu.memory_space<vmem>>, %arg9: memref<1x1xf32, #tpu.memory_space<vmem>>, %arg10: memref<1x16x16x1xf32, #tpu.memory_space<vmem>>, %arg11: memref<18x18x32xf32, #tpu.memory_space<vmem>>) attributes {dimension_semantics = [#tpu.dimension_semantics<parallel>], iteration_bounds = array<i64: 2>, scalar_prefetch = 0 : i64, scratch_operands = 1 : i64, tpu.core_type = #tpu.core_type<tc>, window_params = [{transform_indices = @transform_0, window_bounds = array<i64: 1, 16, 32>}, {transform_indices = @transform_1, window_bounds = array<i64: 1, 16, 16, 1>}, {transform_indices = @transform_2, window_bounds = array<i64: 1, 1, 32>}, {pipeline_mode = #tpu.pipeline_mode<synchronous>, transform_indices = @transform_3, window_bounds = array<i64: 32, 32>}, {pipeline_mode = #tpu.pipeline_mode<synchronous>, transform_indices = @transform_4, window_bounds = array<i64: 1, 32>}, {pipeline_mode = #tpu.pipeline_mode<synchronous>, transform_indices = @transform_5, window_bounds = array<i64: 2, 288, 32>}, {pipeline_mode = #tpu.pipeline_mode<synchronous>, transform_indices = @transform_6, window_bounds = array<i64: 2, 1, 32>}, {pipeline_mode = #tpu.pipeline_mode<synchronous>, transform_indices = @transform_7, window_bounds = array<i64: 1, 32>}, {pipeline_mode = #tpu.pipeline_mode<synchronous>, transform_indices = @transform_8, window_bounds = array<i64: 1, 1>}, {transform_indices = @transform_9, window_bounds = array<i64: 1, 16, 16, 1>}]} {
    %c0 = arith.constant 0 : index
    %c0_0 = arith.constant 0 : index
    %c0_1 = arith.constant 0 : index
    %0 = vector.load %arg1[%c0, %c0_0, %c0_1] : memref<1x16x32xf32, #tpu.memory_space<vmem>>, vector<1x16x32xf32>
    %1 = vector.shape_cast %0 : vector<1x16x32xf32> to vector<16x32xf32>
    %c0_2 = arith.constant 0 : index
    %c0_3 = arith.constant 0 : index
    %c0_4 = arith.constant 0 : index
    %c0_5 = arith.constant 0 : index
    %2 = vector.load %arg2[%c0_2, %c0_3, %c0_4, %c0_5] : memref<1x16x16x1xf32, #tpu.memory_space<vmem>>, vector<1x16x16x1xf32>
    %3 = vector.shape_cast %2 : vector<1x16x16x1xf32> to vector<16x16x1xf32>
    %4 = tpu.iota {dimensions = array<i32: 0>} : vector<16x16x1xi32>
    %5 = tpu.iota {dimensions = array<i32: 1>} : vector<16x16x1xi32>
    %6 = arith.cmpi sge, %5, %4 : vector<16x16x1xi32>
    %7 = vector.shape_cast %1 : vector<16x32xf32> to vector<1x16x32xf32>
    %8 = vector.shape_cast %7 : vector<1x16x32xf32> to vector<1x16x32xf32>
    %9 = vector.broadcast %8 : vector<1x16x32xf32> to vector<16x16x32xf32>
    %cst = arith.constant -1.000000e+30 : f32
    %10 = vector.shape_cast %6 : vector<16x16x1xi1> to vector<16x16x1xi1>
    %11 = vector.broadcast %10 : vector<16x16x1xi1> to vector<16x16x32xi1>
    %12 = vector.broadcast %cst : f32 to vector<16x16x32xf32>
    %13 = arith.select %11, %9, %12 : vector<16x16x32xi1>, vector<16x16x32xf32>
    %cst_6 = arith.constant -1.000000e+30 : f32
    %14 = vector.broadcast %cst_6 : f32 to vector<16x1x32xf32>
    %15 = vector.extract_strided_slice %13 {offsets = [0, 0, 0], sizes = [16, 15, 32], strides = [1, 1, 1]} : vector<16x16x32xf32> to vector<16x15x32xf32>
    %16 = tpu.concatenate %14, %15 in 1 : vector<16x1x32xf32>, vector<16x15x32xf32> -> vector<16x16x32xf32>
    %17 = arith.maximumf %13, %16 : vector<16x16x32xf32>
    %cst_7 = arith.constant -1.000000e+30 : f32
    %18 = vector.broadcast %cst_7 : f32 to vector<16x2x32xf32>
    %19 = vector.extract_strided_slice %17 {offsets = [0, 0, 0], sizes = [16, 14, 32], strides = [1, 1, 1]} : vector<16x16x32xf32> to vector<16x14x32xf32>
    %20 = tpu.concatenate %18, %19 in 1 : vector<16x2x32xf32>, vector<16x14x32xf32> -> vector<16x16x32xf32>
    %21 = arith.maximumf %17, %20 : vector<16x16x32xf32>
    %cst_8 = arith.constant -1.000000e+30 : f32
    %22 = vector.broadcast %cst_8 : f32 to vector<16x4x32xf32>
    %23 = vector.extract_strided_slice %21 {offsets = [0, 0, 0], sizes = [16, 12, 32], strides = [1, 1, 1]} : vector<16x16x32xf32> to vector<16x12x32xf32>
    %24 = tpu.concatenate %22, %23 in 1 : vector<16x4x32xf32>, vector<16x12x32xf32> -> vector<16x16x32xf32>
    %25 = arith.maximumf %21, %24 : vector<16x16x32xf32>
    %cst_9 = arith.constant -1.000000e+30 : f32
    %26 = vector.broadcast %cst_9 : f32 to vector<16x8x32xf32>
    %27 = vector.extract_strided_slice %25 {offsets = [0, 0, 0], sizes = [16, 8, 32], strides = [1, 1, 1]} : vector<16x16x32xf32> to vector<16x8x32xf32>
    %28 = tpu.concatenate %26, %27 in 1 : vector<16x8x32xf32>, vector<16x8x32xf32> -> vector<16x16x32xf32>
    %29 = arith.maximumf %25, %28 : vector<16x16x32xf32>
    %cst_10 = arith.constant 0.000000e+00 : f32
    %30 = vector.shape_cast %6 : vector<16x16x1xi1> to vector<16x16x1xi1>
    %31 = vector.broadcast %30 : vector<16x16x1xi1> to vector<16x16x32xi1>
    %32 = vector.broadcast %cst_10 : f32 to vector<16x16x32xf32>
    %33 = arith.select %31, %29, %32 : vector<16x16x32xi1>, vector<16x16x32xf32>
    %34 = vector.shape_cast %33 : vector<16x16x32xf32> to vector<256x32xf32>
    %c0_11 = arith.constant 0 : index
    %c0_12 = arith.constant 0 : index
    %35 = vector.load %arg4[%c0_11, %c0_12] : memref<32x32xf32, #tpu.memory_space<vmem>>, vector<32x32xf32>
    %cst_13 = arith.constant dense<0.000000e+00> : vector<256x32xf32>
    %36 = tpu.matmul %34, %35, %cst_13 {dimension_numbers = #tpu.dot_dimension_numbers<[1], [0], [0], [1], [0, 0, 1, 1], [], []>} : vector<256x32xf32>, vector<32x32xf32>, vector<256x32xf32> -> vector<256x32xf32>
    %c0_14 = arith.constant 0 : index
    %c0_15 = arith.constant 0 : index
    %37 = vector.load %arg5[%c0_14, %c0_15] : memref<1x32xf32, #tpu.memory_space<vmem>>, vector<1x32xf32>
    %38 = vector.broadcast %37 : vector<1x32xf32> to vector<256x32xf32>
    %39 = arith.addf %36, %38 : vector<256x32xf32>
    %c0_16 = arith.constant 0 : index
    %c0_17 = arith.constant 0 : index
    %c0_18 = arith.constant 0 : index
    %40 = vector.load %arg3[%c0_16, %c0_17, %c0_18] : memref<1x1x32xf32, #tpu.memory_space<vmem>>, vector<1x1x32xf32>
    %41 = vector.shape_cast %40 : vector<1x1x32xf32> to vector<1x32xf32>
    %42 = vector.broadcast %41 : vector<1x32xf32> to vector<256x32xf32>
    %43 = arith.mulf %39, %42 : vector<256x32xf32>
    %44 = arith.mulf %43, %43 : vector<256x32xf32>
    %cst_19 = arith.constant dense<0.000000e+00> : vector<256xf32>
    %45 = vector.multi_reduction <add>, %44, %cst_19 [1] : vector<256x32xf32> to vector<256xf32>
    %46 = vector.shape_cast %45 : vector<256xf32> to vector<256x1xf32>
    %47 = math.sqrt %46 : vector<256x1xf32>
    %cst_20 = arith.constant 9.99999996E-13 : f32
    %48 = vector.broadcast %cst_20 : f32 to vector<256x1xf32>
    %49 = arith.maximumf %47, %48 : vector<256x1xf32>
    %50 = vector.broadcast %49 : vector<256x1xf32> to vector<256x32xf32>
    %51 = arith.divf %43, %50 : vector<256x32xf32>
    %52 = vector.shape_cast %51 : vector<256x32xf32> to vector<16x16x32xf32>
    %53 = vector.broadcast %3 : vector<16x16x1xf32> to vector<16x16x32xf32>
    %54 = arith.mulf %52, %53 : vector<16x16x32xf32>
    %cst_21 = arith.constant 0.000000e+00 : f32
    %55 = vector.broadcast %cst_21 : f32 to vector<18x18x32xf32>
    %c0_22 = arith.constant 0 : index
    %c0_23 = arith.constant 0 : index
    %c0_24 = arith.constant 0 : index
    %56 = vector.load %arg11[%c0_22, %c0_23, %c0_24] : memref<18x18x32xf32, #tpu.memory_space<vmem>>, vector<18x18x32xf32>
    tpu.vector_store %arg11[%c0_22, %c0_23, %c0_24], %55 {strides = array<i32>} : memref<18x18x32xf32, #tpu.memory_space<vmem>>, vector<18x18x32xf32>,
    %57 = vector.broadcast %3 : vector<16x16x1xf32> to vector<16x16x32xf32>
    %58 = arith.mulf %54, %57 : vector<16x16x32xf32>
    %c1 = arith.constant 1 : index
    %c1_25 = arith.constant 1 : index
    %c0_26 = arith.constant 0 : index
    %59 = vector.load %arg11[%c1, %c1_25, %c0_26] : memref<18x18x32xf32, #tpu.memory_space<vmem>>, vector<16x16x32xf32>
    tpu.vector_store %arg11[%c1, %c1_25, %c0_26], %58 {strides = array<i32>} : memref<18x18x32xf32, #tpu.memory_space<vmem>>, vector<16x16x32xf32>,
    %c0_27 = arith.constant 0 : index
    %c0_28 = arith.constant 0 : index
    %c0_29 = arith.constant 0 : index
    %60 = vector.load %arg11[%c0_27, %c0_28, %c0_29] : memref<18x18x32xf32, #tpu.memory_space<vmem>>, vector<18x18x32xf32>
    %61 = vector.extract_strided_slice %60 {offsets = [0, 0, 0], sizes = [16, 16, 32], strides = [1, 1, 1]} : vector<18x18x32xf32> to vector<16x16x32xf32>
    %62 = vector.shape_cast %61 : vector<16x16x32xf32> to vector<256x32xf32>
    %63 = vector.extract_strided_slice %60 {offsets = [0, 1, 0], sizes = [16, 16, 32], strides = [1, 1, 1]} : vector<18x18x32xf32> to vector<16x16x32xf32>
    %64 = vector.shape_cast %63 : vector<16x16x32xf32> to vector<256x32xf32>
    %65 = vector.extract_strided_slice %60 {offsets = [0, 2, 0], sizes = [16, 16, 32], strides = [1, 1, 1]} : vector<18x18x32xf32> to vector<16x16x32xf32>
    %66 = vector.shape_cast %65 : vector<16x16x32xf32> to vector<256x32xf32>
    %67 = vector.extract_strided_slice %60 {offsets = [1, 0, 0], sizes = [16, 16, 32], strides = [1, 1, 1]} : vector<18x18x32xf32> to vector<16x16x32xf32>
    %68 = vector.shape_cast %67 : vector<16x16x32xf32> to vector<256x32xf32>
    %69 = vector.extract_strided_slice %60 {offsets = [1, 1, 0], sizes = [16, 16, 32], strides = [1, 1, 1]} : vector<18x18x32xf32> to vector<16x16x32xf32>
    %70 = vector.shape_cast %69 : vector<16x16x32xf32> to vector<256x32xf32>
    %71 = vector.extract_strided_slice %60 {offsets = [1, 2, 0], sizes = [16, 16, 32], strides = [1, 1, 1]} : vector<18x18x32xf32> to vector<16x16x32xf32>
    %72 = vector.shape_cast %71 : vector<16x16x32xf32> to vector<256x32xf32>
    %73 = vector.extract_strided_slice %60 {offsets = [2, 0, 0], sizes = [16, 16, 32], strides = [1, 1, 1]} : vector<18x18x32xf32> to vector<16x16x32xf32>
    %74 = vector.shape_cast %73 : vector<16x16x32xf32> to vector<256x32xf32>
    %75 = vector.extract_strided_slice %60 {offsets = [2, 1, 0], sizes = [16, 16, 32], strides = [1, 1, 1]} : vector<18x18x32xf32> to vector<16x16x32xf32>
    %76 = vector.shape_cast %75 : vector<16x16x32xf32> to vector<256x32xf32>
    %77 = vector.extract_strided_slice %60 {offsets = [2, 2, 0], sizes = [16, 16, 32], strides = [1, 1, 1]} : vector<18x18x32xf32> to vector<16x16x32xf32>
    %78 = vector.shape_cast %77 : vector<16x16x32xf32> to vector<256x32xf32>
    %79 = tpu.concatenate %62, %64, %66, %68, %70, %72, %74, %76, %78 in 1 : vector<256x32xf32>, vector<256x32xf32>, vector<256x32xf32>, vector<256x32xf32>, vector<256x32xf32>, vector<256x32xf32>, vector<256x32xf32>, vector<256x32xf32>, vector<256x32xf32> -> vector<256x288xf32>
    %c0_30 = arith.constant 0 : index
    %c0_31 = arith.constant 0 : index
    %c0_32 = arith.constant 0 : index
    %80 = vector.load %arg6[%c0_30, %c0_31, %c0_32] : memref<2x288x32xf32, #tpu.memory_space<vmem>>, vector<1x288x32xf32>
    %81 = vector.shape_cast %80 : vector<1x288x32xf32> to vector<288x32xf32>
    %cst_33 = arith.constant dense<0.000000e+00> : vector<256x32xf32>
    %82 = tpu.matmul %79, %81, %cst_33 {dimension_numbers = #tpu.dot_dimension_numbers<[1], [0], [0], [1], [0, 0, 1, 1], [], []>} : vector<256x288xf32>, vector<288x32xf32>, vector<256x32xf32> -> vector<256x32xf32>
    %c0_34 = arith.constant 0 : index
    %c0_35 = arith.constant 0 : index
    %c0_36 = arith.constant 0 : index
    %83 = vector.load %arg7[%c0_34, %c0_35, %c0_36] : memref<2x1x32xf32, #tpu.memory_space<vmem>>, vector<1x1x32xf32>
    %84 = vector.shape_cast %83 : vector<1x1x32xf32> to vector<1x32xf32>
    %85 = vector.broadcast %84 : vector<1x32xf32> to vector<256x32xf32>
    %86 = arith.addf %82, %85 : vector<256x32xf32>
    %cst_37 = arith.constant 0.000000e+00 : f32
    %87 = vector.broadcast %cst_37 : f32 to vector<256x32xf32>
    %88 = arith.maximumf %86, %87 : vector<256x32xf32>
    %89 = vector.shape_cast %88 : vector<256x32xf32> to vector<16x16x32xf32>
    %90 = vector.broadcast %3 : vector<16x16x1xf32> to vector<16x16x32xf32>
    %91 = arith.mulf %89, %90 : vector<16x16x32xf32>
    %c1_38 = arith.constant 1 : index
    %c1_39 = arith.constant 1 : index
    %c0_40 = arith.constant 0 : index
    %92 = vector.load %arg11[%c1_38, %c1_39, %c0_40] : memref<18x18x32xf32, #tpu.memory_space<vmem>>, vector<16x16x32xf32>
    tpu.vector_store %arg11[%c1_38, %c1_39, %c0_40], %91 {strides = array<i32>} : memref<18x18x32xf32, #tpu.memory_space<vmem>>, vector<16x16x32xf32>,
    %c0_41 = arith.constant 0 : index
    %c0_42 = arith.constant 0 : index
    %c0_43 = arith.constant 0 : index
    %93 = vector.load %arg11[%c0_41, %c0_42, %c0_43] : memref<18x18x32xf32, #tpu.memory_space<vmem>>, vector<18x18x32xf32>
    %94 = vector.extract_strided_slice %93 {offsets = [0, 0, 0], sizes = [16, 16, 32], strides = [1, 1, 1]} : vector<18x18x32xf32> to vector<16x16x32xf32>
    %95 = vector.shape_cast %94 : vector<16x16x32xf32> to vector<256x32xf32>
    %96 = vector.extract_strided_slice %93 {offsets = [0, 1, 0], sizes = [16, 16, 32], strides = [1, 1, 1]} : vector<18x18x32xf32> to vector<16x16x32xf32>
    %97 = vector.shape_cast %96 : vector<16x16x32xf32> to vector<256x32xf32>
    %98 = vector.extract_strided_slice %93 {offsets = [0, 2, 0], sizes = [16, 16, 32], strides = [1, 1, 1]} : vector<18x18x32xf32> to vector<16x16x32xf32>
    %99 = vector.shape_cast %98 : vector<16x16x32xf32> to vector<256x32xf32>
    %100 = vector.extract_strided_slice %93 {offsets = [1, 0, 0], sizes = [16, 16, 32], strides = [1, 1, 1]} : vector<18x18x32xf32> to vector<16x16x32xf32>
    %101 = vector.shape_cast %100 : vector<16x16x32xf32> to vector<256x32xf32>
    %102 = vector.extract_strided_slice %93 {offsets = [1, 1, 0], sizes = [16, 16, 32], strides = [1, 1, 1]} : vector<18x18x32xf32> to vector<16x16x32xf32>
    %103 = vector.shape_cast %102 : vector<16x16x32xf32> to vector<256x32xf32>
    %104 = vector.extract_strided_slice %93 {offsets = [1, 2, 0], sizes = [16, 16, 32], strides = [1, 1, 1]} : vector<18x18x32xf32> to vector<16x16x32xf32>
    %105 = vector.shape_cast %104 : vector<16x16x32xf32> to vector<256x32xf32>
    %106 = vector.extract_strided_slice %93 {offsets = [2, 0, 0], sizes = [16, 16, 32], strides = [1, 1, 1]} : vector<18x18x32xf32> to vector<16x16x32xf32>
    %107 = vector.shape_cast %106 : vector<16x16x32xf32> to vector<256x32xf32>
    %108 = vector.extract_strided_slice %93 {offsets = [2, 1, 0], sizes = [16, 16, 32], strides = [1, 1, 1]} : vector<18x18x32xf32> to vector<16x16x32xf32>
    %109 = vector.shape_cast %108 : vector<16x16x32xf32> to vector<256x32xf32>
    %110 = vector.extract_strided_slice %93 {offsets = [2, 2, 0], sizes = [16, 16, 32], strides = [1, 1, 1]} : vector<18x18x32xf32> to vector<16x16x32xf32>
    %111 = vector.shape_cast %110 : vector<16x16x32xf32> to vector<256x32xf32>
    %112 = tpu.concatenate %95, %97, %99, %101, %103, %105, %107, %109, %111 in 1 : vector<256x32xf32>, vector<256x32xf32>, vector<256x32xf32>, vector<256x32xf32>, vector<256x32xf32>, vector<256x32xf32>, vector<256x32xf32>, vector<256x32xf32>, vector<256x32xf32> -> vector<256x288xf32>
    %c1_44 = arith.constant 1 : index
    %c0_45 = arith.constant 0 : index
    %c0_46 = arith.constant 0 : index
    %113 = vector.load %arg6[%c1_44, %c0_45, %c0_46] : memref<2x288x32xf32, #tpu.memory_space<vmem>>, vector<1x288x32xf32>
    %114 = vector.shape_cast %113 : vector<1x288x32xf32> to vector<288x32xf32>
    %cst_47 = arith.constant dense<0.000000e+00> : vector<256x32xf32>
    %115 = tpu.matmul %112, %114, %cst_47 {dimension_numbers = #tpu.dot_dimension_numbers<[1], [0], [0], [1], [0, 0, 1, 1], [], []>} : vector<256x288xf32>, vector<288x32xf32>, vector<256x32xf32> -> vector<256x32xf32>
    %c1_48 = arith.constant 1 : index
    %c0_49 = arith.constant 0 : index
    %c0_50 = arith.constant 0 : index
    %116 = vector.load %arg7[%c1_48, %c0_49, %c0_50] : memref<2x1x32xf32, #tpu.memory_space<vmem>>, vector<1x1x32xf32>
    %117 = vector.shape_cast %116 : vector<1x1x32xf32> to vector<1x32xf32>
    %118 = vector.broadcast %117 : vector<1x32xf32> to vector<256x32xf32>
    %119 = arith.addf %115, %118 : vector<256x32xf32>
    %cst_51 = arith.constant 0.000000e+00 : f32
    %120 = vector.broadcast %cst_51 : f32 to vector<256x32xf32>
    %121 = arith.maximumf %119, %120 : vector<256x32xf32>
    %122 = vector.shape_cast %121 : vector<256x32xf32> to vector<16x16x32xf32>
    %c0_52 = arith.constant 0 : index
    %c0_53 = arith.constant 0 : index
    %123 = vector.load %arg8[%c0_52, %c0_53] : memref<1x32xf32, #tpu.memory_space<vmem>>, vector<1x32xf32>
    %124 = vector.shape_cast %123 : vector<1x32xf32> to vector<1x1x32xf32>
    %125 = vector.broadcast %124 : vector<1x1x32xf32> to vector<16x16x32xf32>
    %126 = arith.mulf %122, %125 : vector<16x16x32xf32>
    %cst_54 = arith.constant dense<0.000000e+00> : vector<16x16xf32>
    %127 = vector.multi_reduction <add>, %126, %cst_54 [2] : vector<16x16x32xf32> to vector<16x16xf32>
    %128 = vector.shape_cast %127 : vector<16x16xf32> to vector<16x16x1xf32>
    %c0_55 = arith.constant 0 : index
    %c0_56 = arith.constant 0 : index
    %129 = vector.load %arg9[%c0_55, %c0_56] : memref<1x1xf32, #tpu.memory_space<vmem>>, vector<1x1xf32>
    %130 = vector.shape_cast %129 : vector<1x1xf32> to vector<1x1x1xf32>
    %131 = vector.broadcast %130 : vector<1x1x1xf32> to vector<16x16x1xf32>
    %132 = arith.addf %128, %131 : vector<16x16x1xf32>
    %133 = arith.mulf %132, %3 : vector<16x16x1xf32>
    %c0_57 = arith.constant 0 : index
    %c0_58 = arith.constant 0 : index
    %c0_59 = arith.constant 0 : index
    %c0_60 = arith.constant 0 : index
    %134 = vector.load %arg10[%c0_57, %c0_58, %c0_59, %c0_60] : memref<1x16x16x1xf32, #tpu.memory_space<vmem>>, vector<1x16x16x1xf32>
    %135 = vector.shape_cast %134 : vector<1x16x16x1xf32> to vector<16x16x1xf32>
    %136 = vector.shape_cast %133 : vector<16x16x1xf32> to vector<1x16x16x1xf32>
    tpu.vector_store %arg10[%c0_57, %c0_58, %c0_59, %c0_60], %136 {strides = array<i32>} : memref<1x16x16x1xf32, #tpu.memory_space<vmem>>, vector<1x16x16x1xf32>,
    return
  }
  func.func @transform_0(%arg0: i32) -> (i32, i32, i32) {
    %c0_i32 = arith.constant 0 : i32
    %c0_i32_0 = arith.constant 0 : i32
    %c0_i32_1 = arith.constant 0 : i32
    return %arg0, %c0_i32, %c0_i32_0 : i32, i32, i32
  }
  func.func @transform_1(%arg0: i32) -> (i32, i32, i32, i32) {
    %c0_i32 = arith.constant 0 : i32
    %c0_i32_0 = arith.constant 0 : i32
    %c0_i32_1 = arith.constant 0 : i32
    %c0_i32_2 = arith.constant 0 : i32
    return %arg0, %c0_i32, %c0_i32_0, %c0_i32_1 : i32, i32, i32, i32
  }
  func.func @transform_2(%arg0: i32) -> (i32, i32, i32) {
    %c0_i32 = arith.constant 0 : i32
    %c0_i32_0 = arith.constant 0 : i32
    %c0_i32_1 = arith.constant 0 : i32
    return %arg0, %c0_i32, %c0_i32_0 : i32, i32, i32
  }
  func.func @transform_3(%arg0: i32) -> (i32, i32) {
    %c0_i32 = arith.constant 0 : i32
    %c0_i32_0 = arith.constant 0 : i32
    %c0_i32_1 = arith.constant 0 : i32
    return %c0_i32, %c0_i32_0 : i32, i32
  }
  func.func @transform_4(%arg0: i32) -> (i32, i32) {
    %c0_i32 = arith.constant 0 : i32
    %c0_i32_0 = arith.constant 0 : i32
    %c0_i32_1 = arith.constant 0 : i32
    return %c0_i32, %c0_i32_0 : i32, i32
  }
  func.func @transform_5(%arg0: i32) -> (i32, i32, i32) {
    %c0_i32 = arith.constant 0 : i32
    %c0_i32_0 = arith.constant 0 : i32
    %c0_i32_1 = arith.constant 0 : i32
    %c0_i32_2 = arith.constant 0 : i32
    return %c0_i32, %c0_i32_0, %c0_i32_1 : i32, i32, i32
  }
  func.func @transform_6(%arg0: i32) -> (i32, i32, i32) {
    %c0_i32 = arith.constant 0 : i32
    %c0_i32_0 = arith.constant 0 : i32
    %c0_i32_1 = arith.constant 0 : i32
    %c0_i32_2 = arith.constant 0 : i32
    return %c0_i32, %c0_i32_0, %c0_i32_1 : i32, i32, i32
  }
  func.func @transform_7(%arg0: i32) -> (i32, i32) {
    %c0_i32 = arith.constant 0 : i32
    %c0_i32_0 = arith.constant 0 : i32
    %c0_i32_1 = arith.constant 0 : i32
    return %c0_i32, %c0_i32_0 : i32, i32
  }
  func.func @transform_8(%arg0: i32) -> (i32, i32) {
    %c0_i32 = arith.constant 0 : i32
    %c0_i32_0 = arith.constant 0 : i32
    %c0_i32_1 = arith.constant 0 : i32
    return %c0_i32, %c0_i32_0 : i32, i32
  }
  func.func @transform_9(%arg0: i32) -> (i32, i32, i32, i32) {
    %c0_i32 = arith.constant 0 : i32
    %c0_i32_0 = arith.constant 0 : i32
    %c0_i32_1 = arith.constant 0 : i32
    %c0_i32_2 = arith.constant 0 : i32
    return %arg0, %c0_i32, %c0_i32_0, %c0_i32_1 : i32, i32, i32, i32
  }
}

module attributes {stable_mosaic.version = 11 : i64} {
  func.func @text_kernel(%arg0: memref<8x2x16xf32, #tpu.memory_space<vmem>>, %arg1: memref<8x2x1xf32, #tpu.memory_space<vmem>>, %arg2: memref<16x128xf32, #tpu.memory_space<vmem>>, %arg3: memref<32x128xf32, #tpu.memory_space<vmem>>, %arg4: memref<1x128xf32, #tpu.memory_space<vmem>>, %arg5: memref<32x32xf32, #tpu.memory_space<vmem>>, %arg6: memref<1x32xf32, #tpu.memory_space<vmem>>, %arg7: memref<2x1x32xf32, #tpu.memory_space<vmem>>) attributes {dimension_semantics = [], scalar_prefetch = 0 : i64, scratch_operands = 0 : i64, tpu.core_type = #tpu.core_type<tc>} {
    %c0 = arith.constant 0 : index
    %c0_0 = arith.constant 0 : index
    %c0_1 = arith.constant 0 : index
    %0 = vector.load %arg1[%c0, %c0_0, %c0_1] : memref<8x2x1xf32, #tpu.memory_space<vmem>>, vector<8x2x1xf32>
    %cst = arith.constant dense<0.000000e+00> : vector<2x1xf32>
    %1 = vector.multi_reduction <add>, %0, %cst [0] : vector<8x2x1xf32> to vector<2x1xf32>
    %cst_2 = arith.constant 1.000000e+00 : f32
    %2 = vector.broadcast %cst_2 : f32 to vector<2x1xf32>
    %3 = arith.subf %1, %2 : vector<2x1xf32>
    %4 = arith.fptosi %3 : vector<2x1xf32> to vector<2x1xi32>
    %c0_3 = arith.constant 0 : index
    %c0_4 = arith.constant 0 : index
    %c0_5 = arith.constant 0 : index
    %5 = vector.load %arg0[%c0_3, %c0_4, %c0_5] : memref<8x2x16xf32, #tpu.memory_space<vmem>>, vector<8x2x16xf32>
    %6 = vector.shape_cast %5 : vector<8x2x16xf32> to vector<16x16xf32>
    %c0_6 = arith.constant 0 : index
    %c0_7 = arith.constant 0 : index
    %7 = vector.load %arg2[%c0_6, %c0_7] : memref<16x128xf32, #tpu.memory_space<vmem>>, vector<16x128xf32>
    %cst_8 = arith.constant dense<0.000000e+00> : vector<16x128xf32>
    %8 = tpu.matmul %6, %7, %cst_8 {dimension_numbers = #tpu.dot_dimension_numbers<[1], [0], [0], [1], [0, 0, 1, 1], [], []>} : vector<16x16xf32>, vector<16x128xf32>, vector<16x128xf32> -> vector<16x128xf32>
    %c0_9 = arith.constant 0 : index
    %c0_10 = arith.constant 0 : index
    %9 = vector.load %arg4[%c0_9, %c0_10] : memref<1x128xf32, #tpu.memory_space<vmem>>, vector<1x128xf32>
    %10 = vector.broadcast %9 : vector<1x128xf32> to vector<16x128xf32>
    %11 = arith.addf %8, %10 : vector<16x128xf32>
    %12 = vector.shape_cast %11 : vector<16x128xf32> to vector<8x2x128xf32>
    %cst_11 = arith.constant 0.000000e+00 : f32
    %13 = vector.broadcast %cst_11 : f32 to vector<2x32xf32>
    %cst_12 = arith.constant 0.000000e+00 : f32
    %14 = vector.broadcast %cst_12 : f32 to vector<2x32xf32>
    %cst_13 = arith.constant 0.000000e+00 : f32
    %15 = vector.broadcast %cst_13 : f32 to vector<2x32xf32>
    %16 = vector.extract_strided_slice %12 {offsets = [0, 0, 0], sizes = [1, 2, 128], strides = [1, 1, 1]} : vector<8x2x128xf32> to vector<1x2x128xf32>
    %17 = vector.shape_cast %16 : vector<1x2x128xf32> to vector<2x128xf32>
    %c0_14 = arith.constant 0 : index
    %c0_15 = arith.constant 0 : index
    %18 = vector.load %arg3[%c0_14, %c0_15] : memref<32x128xf32, #tpu.memory_space<vmem>>, vector<32x128xf32>
    %cst_16 = arith.constant dense<0.000000e+00> : vector<2x128xf32>
    %19 = tpu.matmul %13, %18, %cst_16 {dimension_numbers = #tpu.dot_dimension_numbers<[1], [0], [0], [1], [0, 0, 1, 1], [], []>} : vector<2x32xf32>, vector<32x128xf32>, vector<2x128xf32> -> vector<2x128xf32>
    %20 = arith.addf %17, %19 : vector<2x128xf32>
    %21 = vector.extract_strided_slice %20 {offsets = [0, 0], sizes = [2, 32], strides = [1, 1]} : vector<2x128xf32> to vector<2x32xf32>
    %22 = arith.negf %21 : vector<2x32xf32>
    %23 = math.exp %22 : vector<2x32xf32>
    %cst_17 = arith.constant 1.000000e+00 : f32
    %24 = vector.broadcast %cst_17 : f32 to vector<2x32xf32>
    %25 = arith.addf %24, %23 : vector<2x32xf32>
    %26 = arith.divf %24, %25 : vector<2x32xf32>
    %27 = vector.extract_strided_slice %20 {offsets = [0, 32], sizes = [2, 32], strides = [1, 1]} : vector<2x128xf32> to vector<2x32xf32>
    %28 = arith.negf %27 : vector<2x32xf32>
    %29 = math.exp %28 : vector<2x32xf32>
    %cst_18 = arith.constant 1.000000e+00 : f32
    %30 = vector.broadcast %cst_18 : f32 to vector<2x32xf32>
    %31 = arith.addf %30, %29 : vector<2x32xf32>
    %32 = arith.divf %30, %31 : vector<2x32xf32>
    %33 = vector.extract_strided_slice %20 {offsets = [0, 64], sizes = [2, 32], strides = [1, 1]} : vector<2x128xf32> to vector<2x32xf32>
    %34 = math.tanh %33 : vector<2x32xf32>
    %35 = vector.extract_strided_slice %20 {offsets = [0, 96], sizes = [2, 32], strides = [1, 1]} : vector<2x128xf32> to vector<2x32xf32>
    %36 = arith.negf %35 : vector<2x32xf32>
    %37 = math.exp %36 : vector<2x32xf32>
    %cst_19 = arith.constant 1.000000e+00 : f32
    %38 = vector.broadcast %cst_19 : f32 to vector<2x32xf32>
    %39 = arith.addf %38, %37 : vector<2x32xf32>
    %40 = arith.divf %38, %39 : vector<2x32xf32>
    %41 = arith.mulf %32, %14 : vector<2x32xf32>
    %42 = arith.mulf %26, %34 : vector<2x32xf32>
    %43 = arith.addf %41, %42 : vector<2x32xf32>
    %44 = math.tanh %43 : vector<2x32xf32>
    %45 = arith.mulf %40, %44 : vector<2x32xf32>
    %c0_i32 = arith.constant 0 : i32
    %46 = vector.broadcast %c0_i32 : i32 to vector<2x1xi32>
    %47 = arith.cmpi eq, %4, %46 : vector<2x1xi32>
    %48 = vector.shape_cast %47 : vector<2x1xi1> to vector<2x1xi1>
    %49 = vector.broadcast %48 : vector<2x1xi1> to vector<2x32xi1>
    %50 = arith.select %49, %45, %15 : vector<2x32xi1>, vector<2x32xf32>
    %51 = vector.extract_strided_slice %12 {offsets = [1, 0, 0], sizes = [1, 2, 128], strides = [1, 1, 1]} : vector<8x2x128xf32> to vector<1x2x128xf32>
    %52 = vector.shape_cast %51 : vector<1x2x128xf32> to vector<2x128xf32>
    %c0_20 = arith.constant 0 : index
    %c0_21 = arith.constant 0 : index
    %53 = vector.load %arg3[%c0_20, %c0_21] : memref<32x128xf32, #tpu.memory_space<vmem>>, vector<32x128xf32>
    %cst_22 = arith.constant dense<0.000000e+00> : vector<2x128xf32>
    %54 = tpu.matmul %45, %53, %cst_22 {dimension_numbers = #tpu.dot_dimension_numbers<[1], [0], [0], [1], [0, 0, 1, 1], [], []>} : vector<2x32xf32>, vector<32x128xf32>, vector<2x128xf32> -> vector<2x128xf32>
    %55 = arith.addf %52, %54 : vector<2x128xf32>
    %56 = vector.extract_strided_slice %55 {offsets = [0, 0], sizes = [2, 32], strides = [1, 1]} : vector<2x128xf32> to vector<2x32xf32>
    %57 = arith.negf %56 : vector<2x32xf32>
    %58 = math.exp %57 : vector<2x32xf32>
    %cst_23 = arith.constant 1.000000e+00 : f32
    %59 = vector.broadcast %cst_23 : f32 to vector<2x32xf32>
    %60 = arith.addf %59, %58 : vector<2x32xf32>
    %61 = arith.divf %59, %60 : vector<2x32xf32>
    %62 = vector.extract_strided_slice %55 {offsets = [0, 32], sizes = [2, 32], strides = [1, 1]} : vector<2x128xf32> to vector<2x32xf32>
    %63 = arith.negf %62 : vector<2x32xf32>
    %64 = math.exp %63 : vector<2x32xf32>
    %cst_24 = arith.constant 1.000000e+00 : f32
    %65 = vector.broadcast %cst_24 : f32 to vector<2x32xf32>
    %66 = arith.addf %65, %64 : vector<2x32xf32>
    %67 = arith.divf %65, %66 : vector<2x32xf32>
    %68 = vector.extract_strided_slice %55 {offsets = [0, 64], sizes = [2, 32], strides = [1, 1]} : vector<2x128xf32> to vector<2x32xf32>
    %69 = math.tanh %68 : vector<2x32xf32>
    %70 = vector.extract_strided_slice %55 {offsets = [0, 96], sizes = [2, 32], strides = [1, 1]} : vector<2x128xf32> to vector<2x32xf32>
    %71 = arith.negf %70 : vector<2x32xf32>
    %72 = math.exp %71 : vector<2x32xf32>
    %cst_25 = arith.constant 1.000000e+00 : f32
    %73 = vector.broadcast %cst_25 : f32 to vector<2x32xf32>
    %74 = arith.addf %73, %72 : vector<2x32xf32>
    %75 = arith.divf %73, %74 : vector<2x32xf32>
    %76 = arith.mulf %67, %43 : vector<2x32xf32>
    %77 = arith.mulf %61, %69 : vector<2x32xf32>
    %78 = arith.addf %76, %77 : vector<2x32xf32>
    %79 = math.tanh %78 : vector<2x32xf32>
    %80 = arith.mulf %75, %79 : vector<2x32xf32>
    %c1_i32 = arith.constant 1 : i32
    %81 = vector.broadcast %c1_i32 : i32 to vector<2x1xi32>
    %82 = arith.cmpi eq, %4, %81 : vector<2x1xi32>
    %83 = vector.shape_cast %82 : vector<2x1xi1> to vector<2x1xi1>
    %84 = vector.broadcast %83 : vector<2x1xi1> to vector<2x32xi1>
    %85 = arith.select %84, %80, %50 : vector<2x32xi1>, vector<2x32xf32>
    %86 = vector.extract_strided_slice %12 {offsets = [2, 0, 0], sizes = [1, 2, 128], strides = [1, 1, 1]} : vector<8x2x128xf32> to vector<1x2x128xf32>
    %87 = vector.shape_cast %86 : vector<1x2x128xf32> to vector<2x128xf32>
    %c0_26 = arith.constant 0 : index
    %c0_27 = arith.constant 0 : index
    %88 = vector.load %arg3[%c0_26, %c0_27] : memref<32x128xf32, #tpu.memory_space<vmem>>, vector<32x128xf32>
    %cst_28 = arith.constant dense<0.000000e+00> : vector<2x128xf32>
    %89 = tpu.matmul %80, %88, %cst_28 {dimension_numbers = #tpu.dot_dimension_numbers<[1], [0], [0], [1], [0, 0, 1, 1], [], []>} : vector<2x32xf32>, vector<32x128xf32>, vector<2x128xf32> -> vector<2x128xf32>
    %90 = arith.addf %87, %89 : vector<2x128xf32>
    %91 = vector.extract_strided_slice %90 {offsets = [0, 0], sizes = [2, 32], strides = [1, 1]} : vector<2x128xf32> to vector<2x32xf32>
    %92 = arith.negf %91 : vector<2x32xf32>
    %93 = math.exp %92 : vector<2x32xf32>
    %cst_29 = arith.constant 1.000000e+00 : f32
    %94 = vector.broadcast %cst_29 : f32 to vector<2x32xf32>
    %95 = arith.addf %94, %93 : vector<2x32xf32>
    %96 = arith.divf %94, %95 : vector<2x32xf32>
    %97 = vector.extract_strided_slice %90 {offsets = [0, 32], sizes = [2, 32], strides = [1, 1]} : vector<2x128xf32> to vector<2x32xf32>
    %98 = arith.negf %97 : vector<2x32xf32>
    %99 = math.exp %98 : vector<2x32xf32>
    %cst_30 = arith.constant 1.000000e+00 : f32
    %100 = vector.broadcast %cst_30 : f32 to vector<2x32xf32>
    %101 = arith.addf %100, %99 : vector<2x32xf32>
    %102 = arith.divf %100, %101 : vector<2x32xf32>
    %103 = vector.extract_strided_slice %90 {offsets = [0, 64], sizes = [2, 32], strides = [1, 1]} : vector<2x128xf32> to vector<2x32xf32>
    %104 = math.tanh %103 : vector<2x32xf32>
    %105 = vector.extract_strided_slice %90 {offsets = [0, 96], sizes = [2, 32], strides = [1, 1]} : vector<2x128xf32> to vector<2x32xf32>
    %106 = arith.negf %105 : vector<2x32xf32>
    %107 = math.exp %106 : vector<2x32xf32>
    %cst_31 = arith.constant 1.000000e+00 : f32
    %108 = vector.broadcast %cst_31 : f32 to vector<2x32xf32>
    %109 = arith.addf %108, %107 : vector<2x32xf32>
    %110 = arith.divf %108, %109 : vector<2x32xf32>
    %111 = arith.mulf %102, %78 : vector<2x32xf32>
    %112 = arith.mulf %96, %104 : vector<2x32xf32>
    %113 = arith.addf %111, %112 : vector<2x32xf32>
    %114 = math.tanh %113 : vector<2x32xf32>
    %115 = arith.mulf %110, %114 : vector<2x32xf32>
    %c2_i32 = arith.constant 2 : i32
    %116 = vector.broadcast %c2_i32 : i32 to vector<2x1xi32>
    %117 = arith.cmpi eq, %4, %116 : vector<2x1xi32>
    %118 = vector.shape_cast %117 : vector<2x1xi1> to vector<2x1xi1>
    %119 = vector.broadcast %118 : vector<2x1xi1> to vector<2x32xi1>
    %120 = arith.select %119, %115, %85 : vector<2x32xi1>, vector<2x32xf32>
    %121 = vector.extract_strided_slice %12 {offsets = [3, 0, 0], sizes = [1, 2, 128], strides = [1, 1, 1]} : vector<8x2x128xf32> to vector<1x2x128xf32>
    %122 = vector.shape_cast %121 : vector<1x2x128xf32> to vector<2x128xf32>
    %c0_32 = arith.constant 0 : index
    %c0_33 = arith.constant 0 : index
    %123 = vector.load %arg3[%c0_32, %c0_33] : memref<32x128xf32, #tpu.memory_space<vmem>>, vector<32x128xf32>
    %cst_34 = arith.constant dense<0.000000e+00> : vector<2x128xf32>
    %124 = tpu.matmul %115, %123, %cst_34 {dimension_numbers = #tpu.dot_dimension_numbers<[1], [0], [0], [1], [0, 0, 1, 1], [], []>} : vector<2x32xf32>, vector<32x128xf32>, vector<2x128xf32> -> vector<2x128xf32>
    %125 = arith.addf %122, %124 : vector<2x128xf32>
    %126 = vector.extract_strided_slice %125 {offsets = [0, 0], sizes = [2, 32], strides = [1, 1]} : vector<2x128xf32> to vector<2x32xf32>
    %127 = arith.negf %126 : vector<2x32xf32>
    %128 = math.exp %127 : vector<2x32xf32>
    %cst_35 = arith.constant 1.000000e+00 : f32
    %129 = vector.broadcast %cst_35 : f32 to vector<2x32xf32>
    %130 = arith.addf %129, %128 : vector<2x32xf32>
    %131 = arith.divf %129, %130 : vector<2x32xf32>
    %132 = vector.extract_strided_slice %125 {offsets = [0, 32], sizes = [2, 32], strides = [1, 1]} : vector<2x128xf32> to vector<2x32xf32>
    %133 = arith.negf %132 : vector<2x32xf32>
    %134 = math.exp %133 : vector<2x32xf32>
    %cst_36 = arith.constant 1.000000e+00 : f32
    %135 = vector.broadcast %cst_36 : f32 to vector<2x32xf32>
    %136 = arith.addf %135, %134 : vector<2x32xf32>
    %137 = arith.divf %135, %136 : vector<2x32xf32>
    %138 = vector.extract_strided_slice %125 {offsets = [0, 64], sizes = [2, 32], strides = [1, 1]} : vector<2x128xf32> to vector<2x32xf32>
    %139 = math.tanh %138 : vector<2x32xf32>
    %140 = vector.extract_strided_slice %125 {offsets = [0, 96], sizes = [2, 32], strides = [1, 1]} : vector<2x128xf32> to vector<2x32xf32>
    %141 = arith.negf %140 : vector<2x32xf32>
    %142 = math.exp %141 : vector<2x32xf32>
    %cst_37 = arith.constant 1.000000e+00 : f32
    %143 = vector.broadcast %cst_37 : f32 to vector<2x32xf32>
    %144 = arith.addf %143, %142 : vector<2x32xf32>
    %145 = arith.divf %143, %144 : vector<2x32xf32>
    %146 = arith.mulf %137, %113 : vector<2x32xf32>
    %147 = arith.mulf %131, %139 : vector<2x32xf32>
    %148 = arith.addf %146, %147 : vector<2x32xf32>
    %149 = math.tanh %148 : vector<2x32xf32>
    %150 = arith.mulf %145, %149 : vector<2x32xf32>
    %c3_i32 = arith.constant 3 : i32
    %151 = vector.broadcast %c3_i32 : i32 to vector<2x1xi32>
    %152 = arith.cmpi eq, %4, %151 : vector<2x1xi32>
    %153 = vector.shape_cast %152 : vector<2x1xi1> to vector<2x1xi1>
    %154 = vector.broadcast %153 : vector<2x1xi1> to vector<2x32xi1>
    %155 = arith.select %154, %150, %120 : vector<2x32xi1>, vector<2x32xf32>
    %156 = vector.extract_strided_slice %12 {offsets = [4, 0, 0], sizes = [1, 2, 128], strides = [1, 1, 1]} : vector<8x2x128xf32> to vector<1x2x128xf32>
    %157 = vector.shape_cast %156 : vector<1x2x128xf32> to vector<2x128xf32>
    %c0_38 = arith.constant 0 : index
    %c0_39 = arith.constant 0 : index
    %158 = vector.load %arg3[%c0_38, %c0_39] : memref<32x128xf32, #tpu.memory_space<vmem>>, vector<32x128xf32>
    %cst_40 = arith.constant dense<0.000000e+00> : vector<2x128xf32>
    %159 = tpu.matmul %150, %158, %cst_40 {dimension_numbers = #tpu.dot_dimension_numbers<[1], [0], [0], [1], [0, 0, 1, 1], [], []>} : vector<2x32xf32>, vector<32x128xf32>, vector<2x128xf32> -> vector<2x128xf32>
    %160 = arith.addf %157, %159 : vector<2x128xf32>
    %161 = vector.extract_strided_slice %160 {offsets = [0, 0], sizes = [2, 32], strides = [1, 1]} : vector<2x128xf32> to vector<2x32xf32>
    %162 = arith.negf %161 : vector<2x32xf32>
    %163 = math.exp %162 : vector<2x32xf32>
    %cst_41 = arith.constant 1.000000e+00 : f32
    %164 = vector.broadcast %cst_41 : f32 to vector<2x32xf32>
    %165 = arith.addf %164, %163 : vector<2x32xf32>
    %166 = arith.divf %164, %165 : vector<2x32xf32>
    %167 = vector.extract_strided_slice %160 {offsets = [0, 32], sizes = [2, 32], strides = [1, 1]} : vector<2x128xf32> to vector<2x32xf32>
    %168 = arith.negf %167 : vector<2x32xf32>
    %169 = math.exp %168 : vector<2x32xf32>
    %cst_42 = arith.constant 1.000000e+00 : f32
    %170 = vector.broadcast %cst_42 : f32 to vector<2x32xf32>
    %171 = arith.addf %170, %169 : vector<2x32xf32>
    %172 = arith.divf %170, %171 : vector<2x32xf32>
    %173 = vector.extract_strided_slice %160 {offsets = [0, 64], sizes = [2, 32], strides = [1, 1]} : vector<2x128xf32> to vector<2x32xf32>
    %174 = math.tanh %173 : vector<2x32xf32>
    %175 = vector.extract_strided_slice %160 {offsets = [0, 96], sizes = [2, 32], strides = [1, 1]} : vector<2x128xf32> to vector<2x32xf32>
    %176 = arith.negf %175 : vector<2x32xf32>
    %177 = math.exp %176 : vector<2x32xf32>
    %cst_43 = arith.constant 1.000000e+00 : f32
    %178 = vector.broadcast %cst_43 : f32 to vector<2x32xf32>
    %179 = arith.addf %178, %177 : vector<2x32xf32>
    %180 = arith.divf %178, %179 : vector<2x32xf32>
    %181 = arith.mulf %172, %148 : vector<2x32xf32>
    %182 = arith.mulf %166, %174 : vector<2x32xf32>
    %183 = arith.addf %181, %182 : vector<2x32xf32>
    %184 = math.tanh %183 : vector<2x32xf32>
    %185 = arith.mulf %180, %184 : vector<2x32xf32>
    %c4_i32 = arith.constant 4 : i32
    %186 = vector.broadcast %c4_i32 : i32 to vector<2x1xi32>
    %187 = arith.cmpi eq, %4, %186 : vector<2x1xi32>
    %188 = vector.shape_cast %187 : vector<2x1xi1> to vector<2x1xi1>
    %189 = vector.broadcast %188 : vector<2x1xi1> to vector<2x32xi1>
    %190 = arith.select %189, %185, %155 : vector<2x32xi1>, vector<2x32xf32>
    %191 = vector.extract_strided_slice %12 {offsets = [5, 0, 0], sizes = [1, 2, 128], strides = [1, 1, 1]} : vector<8x2x128xf32> to vector<1x2x128xf32>
    %192 = vector.shape_cast %191 : vector<1x2x128xf32> to vector<2x128xf32>
    %c0_44 = arith.constant 0 : index
    %c0_45 = arith.constant 0 : index
    %193 = vector.load %arg3[%c0_44, %c0_45] : memref<32x128xf32, #tpu.memory_space<vmem>>, vector<32x128xf32>
    %cst_46 = arith.constant dense<0.000000e+00> : vector<2x128xf32>
    %194 = tpu.matmul %185, %193, %cst_46 {dimension_numbers = #tpu.dot_dimension_numbers<[1], [0], [0], [1], [0, 0, 1, 1], [], []>} : vector<2x32xf32>, vector<32x128xf32>, vector<2x128xf32> -> vector<2x128xf32>
    %195 = arith.addf %192, %194 : vector<2x128xf32>
    %196 = vector.extract_strided_slice %195 {offsets = [0, 0], sizes = [2, 32], strides = [1, 1]} : vector<2x128xf32> to vector<2x32xf32>
    %197 = arith.negf %196 : vector<2x32xf32>
    %198 = math.exp %197 : vector<2x32xf32>
    %cst_47 = arith.constant 1.000000e+00 : f32
    %199 = vector.broadcast %cst_47 : f32 to vector<2x32xf32>
    %200 = arith.addf %199, %198 : vector<2x32xf32>
    %201 = arith.divf %199, %200 : vector<2x32xf32>
    %202 = vector.extract_strided_slice %195 {offsets = [0, 32], sizes = [2, 32], strides = [1, 1]} : vector<2x128xf32> to vector<2x32xf32>
    %203 = arith.negf %202 : vector<2x32xf32>
    %204 = math.exp %203 : vector<2x32xf32>
    %cst_48 = arith.constant 1.000000e+00 : f32
    %205 = vector.broadcast %cst_48 : f32 to vector<2x32xf32>
    %206 = arith.addf %205, %204 : vector<2x32xf32>
    %207 = arith.divf %205, %206 : vector<2x32xf32>
    %208 = vector.extract_strided_slice %195 {offsets = [0, 64], sizes = [2, 32], strides = [1, 1]} : vector<2x128xf32> to vector<2x32xf32>
    %209 = math.tanh %208 : vector<2x32xf32>
    %210 = vector.extract_strided_slice %195 {offsets = [0, 96], sizes = [2, 32], strides = [1, 1]} : vector<2x128xf32> to vector<2x32xf32>
    %211 = arith.negf %210 : vector<2x32xf32>
    %212 = math.exp %211 : vector<2x32xf32>
    %cst_49 = arith.constant 1.000000e+00 : f32
    %213 = vector.broadcast %cst_49 : f32 to vector<2x32xf32>
    %214 = arith.addf %213, %212 : vector<2x32xf32>
    %215 = arith.divf %213, %214 : vector<2x32xf32>
    %216 = arith.mulf %207, %183 : vector<2x32xf32>
    %217 = arith.mulf %201, %209 : vector<2x32xf32>
    %218 = arith.addf %216, %217 : vector<2x32xf32>
    %219 = math.tanh %218 : vector<2x32xf32>
    %220 = arith.mulf %215, %219 : vector<2x32xf32>
    %c5_i32 = arith.constant 5 : i32
    %221 = vector.broadcast %c5_i32 : i32 to vector<2x1xi32>
    %222 = arith.cmpi eq, %4, %221 : vector<2x1xi32>
    %223 = vector.shape_cast %222 : vector<2x1xi1> to vector<2x1xi1>
    %224 = vector.broadcast %223 : vector<2x1xi1> to vector<2x32xi1>
    %225 = arith.select %224, %220, %190 : vector<2x32xi1>, vector<2x32xf32>
    %226 = vector.extract_strided_slice %12 {offsets = [6, 0, 0], sizes = [1, 2, 128], strides = [1, 1, 1]} : vector<8x2x128xf32> to vector<1x2x128xf32>
    %227 = vector.shape_cast %226 : vector<1x2x128xf32> to vector<2x128xf32>
    %c0_50 = arith.constant 0 : index
    %c0_51 = arith.constant 0 : index
    %228 = vector.load %arg3[%c0_50, %c0_51] : memref<32x128xf32, #tpu.memory_space<vmem>>, vector<32x128xf32>
    %cst_52 = arith.constant dense<0.000000e+00> : vector<2x128xf32>
    %229 = tpu.matmul %220, %228, %cst_52 {dimension_numbers = #tpu.dot_dimension_numbers<[1], [0], [0], [1], [0, 0, 1, 1], [], []>} : vector<2x32xf32>, vector<32x128xf32>, vector<2x128xf32> -> vector<2x128xf32>
    %230 = arith.addf %227, %229 : vector<2x128xf32>
    %231 = vector.extract_strided_slice %230 {offsets = [0, 0], sizes = [2, 32], strides = [1, 1]} : vector<2x128xf32> to vector<2x32xf32>
    %232 = arith.negf %231 : vector<2x32xf32>
    %233 = math.exp %232 : vector<2x32xf32>
    %cst_53 = arith.constant 1.000000e+00 : f32
    %234 = vector.broadcast %cst_53 : f32 to vector<2x32xf32>
    %235 = arith.addf %234, %233 : vector<2x32xf32>
    %236 = arith.divf %234, %235 : vector<2x32xf32>
    %237 = vector.extract_strided_slice %230 {offsets = [0, 32], sizes = [2, 32], strides = [1, 1]} : vector<2x128xf32> to vector<2x32xf32>
    %238 = arith.negf %237 : vector<2x32xf32>
    %239 = math.exp %238 : vector<2x32xf32>
    %cst_54 = arith.constant 1.000000e+00 : f32
    %240 = vector.broadcast %cst_54 : f32 to vector<2x32xf32>
    %241 = arith.addf %240, %239 : vector<2x32xf32>
    %242 = arith.divf %240, %241 : vector<2x32xf32>
    %243 = vector.extract_strided_slice %230 {offsets = [0, 64], sizes = [2, 32], strides = [1, 1]} : vector<2x128xf32> to vector<2x32xf32>
    %244 = math.tanh %243 : vector<2x32xf32>
    %245 = vector.extract_strided_slice %230 {offsets = [0, 96], sizes = [2, 32], strides = [1, 1]} : vector<2x128xf32> to vector<2x32xf32>
    %246 = arith.negf %245 : vector<2x32xf32>
    %247 = math.exp %246 : vector<2x32xf32>
    %cst_55 = arith.constant 1.000000e+00 : f32
    %248 = vector.broadcast %cst_55 : f32 to vector<2x32xf32>
    %249 = arith.addf %248, %247 : vector<2x32xf32>
    %250 = arith.divf %248, %249 : vector<2x32xf32>
    %251 = arith.mulf %242, %218 : vector<2x32xf32>
    %252 = arith.mulf %236, %244 : vector<2x32xf32>
    %253 = arith.addf %251, %252 : vector<2x32xf32>
    %254 = math.tanh %253 : vector<2x32xf32>
    %255 = arith.mulf %250, %254 : vector<2x32xf32>
    %c6_i32 = arith.constant 6 : i32
    %256 = vector.broadcast %c6_i32 : i32 to vector<2x1xi32>
    %257 = arith.cmpi eq, %4, %256 : vector<2x1xi32>
    %258 = vector.shape_cast %257 : vector<2x1xi1> to vector<2x1xi1>
    %259 = vector.broadcast %258 : vector<2x1xi1> to vector<2x32xi1>
    %260 = arith.select %259, %255, %225 : vector<2x32xi1>, vector<2x32xf32>
    %261 = vector.extract_strided_slice %12 {offsets = [7, 0, 0], sizes = [1, 2, 128], strides = [1, 1, 1]} : vector<8x2x128xf32> to vector<1x2x128xf32>
    %262 = vector.shape_cast %261 : vector<1x2x128xf32> to vector<2x128xf32>
    %c0_56 = arith.constant 0 : index
    %c0_57 = arith.constant 0 : index
    %263 = vector.load %arg3[%c0_56, %c0_57] : memref<32x128xf32, #tpu.memory_space<vmem>>, vector<32x128xf32>
    %cst_58 = arith.constant dense<0.000000e+00> : vector<2x128xf32>
    %264 = tpu.matmul %255, %263, %cst_58 {dimension_numbers = #tpu.dot_dimension_numbers<[1], [0], [0], [1], [0, 0, 1, 1], [], []>} : vector<2x32xf32>, vector<32x128xf32>, vector<2x128xf32> -> vector<2x128xf32>
    %265 = arith.addf %262, %264 : vector<2x128xf32>
    %266 = vector.extract_strided_slice %265 {offsets = [0, 0], sizes = [2, 32], strides = [1, 1]} : vector<2x128xf32> to vector<2x32xf32>
    %267 = arith.negf %266 : vector<2x32xf32>
    %268 = math.exp %267 : vector<2x32xf32>
    %cst_59 = arith.constant 1.000000e+00 : f32
    %269 = vector.broadcast %cst_59 : f32 to vector<2x32xf32>
    %270 = arith.addf %269, %268 : vector<2x32xf32>
    %271 = arith.divf %269, %270 : vector<2x32xf32>
    %272 = vector.extract_strided_slice %265 {offsets = [0, 32], sizes = [2, 32], strides = [1, 1]} : vector<2x128xf32> to vector<2x32xf32>
    %273 = arith.negf %272 : vector<2x32xf32>
    %274 = math.exp %273 : vector<2x32xf32>
    %cst_60 = arith.constant 1.000000e+00 : f32
    %275 = vector.broadcast %cst_60 : f32 to vector<2x32xf32>
    %276 = arith.addf %275, %274 : vector<2x32xf32>
    %277 = arith.divf %275, %276 : vector<2x32xf32>
    %278 = vector.extract_strided_slice %265 {offsets = [0, 64], sizes = [2, 32], strides = [1, 1]} : vector<2x128xf32> to vector<2x32xf32>
    %279 = math.tanh %278 : vector<2x32xf32>
    %280 = vector.extract_strided_slice %265 {offsets = [0, 96], sizes = [2, 32], strides = [1, 1]} : vector<2x128xf32> to vector<2x32xf32>
    %281 = arith.negf %280 : vector<2x32xf32>
    %282 = math.exp %281 : vector<2x32xf32>
    %cst_61 = arith.constant 1.000000e+00 : f32
    %283 = vector.broadcast %cst_61 : f32 to vector<2x32xf32>
    %284 = arith.addf %283, %282 : vector<2x32xf32>
    %285 = arith.divf %283, %284 : vector<2x32xf32>
    %286 = arith.mulf %277, %253 : vector<2x32xf32>
    %287 = arith.mulf %271, %279 : vector<2x32xf32>
    %288 = arith.addf %286, %287 : vector<2x32xf32>
    %289 = math.tanh %288 : vector<2x32xf32>
    %290 = arith.mulf %285, %289 : vector<2x32xf32>
    %c7_i32 = arith.constant 7 : i32
    %291 = vector.broadcast %c7_i32 : i32 to vector<2x1xi32>
    %292 = arith.cmpi eq, %4, %291 : vector<2x1xi32>
    %293 = vector.shape_cast %292 : vector<2x1xi1> to vector<2x1xi1>
    %294 = vector.broadcast %293 : vector<2x1xi1> to vector<2x32xi1>
    %295 = arith.select %294, %290, %260 : vector<2x32xi1>, vector<2x32xf32>
    %c0_62 = arith.constant 0 : index
    %c0_63 = arith.constant 0 : index
    %296 = vector.load %arg5[%c0_62, %c0_63] : memref<32x32xf32, #tpu.memory_space<vmem>>, vector<32x32xf32>
    %cst_64 = arith.constant dense<0.000000e+00> : vector<2x32xf32>
    %297 = tpu.matmul %295, %296, %cst_64 {dimension_numbers = #tpu.dot_dimension_numbers<[1], [0], [0], [1], [0, 0, 1, 1], [], []>} : vector<2x32xf32>, vector<32x32xf32>, vector<2x32xf32> -> vector<2x32xf32>
    %c0_65 = arith.constant 0 : index
    %c0_66 = arith.constant 0 : index
    %298 = vector.load %arg6[%c0_65, %c0_66] : memref<1x32xf32, #tpu.memory_space<vmem>>, vector<1x32xf32>
    %299 = vector.broadcast %298 : vector<1x32xf32> to vector<2x32xf32>
    %300 = arith.addf %297, %299 : vector<2x32xf32>
    %301 = vector.shape_cast %300 : vector<2x32xf32> to vector<2x1x32xf32>
    %c0_67 = arith.constant 0 : index
    %c0_68 = arith.constant 0 : index
    %c0_69 = arith.constant 0 : index
    %302 = vector.load %arg7[%c0_67, %c0_68, %c0_69] : memref<2x1x32xf32, #tpu.memory_space<vmem>>, vector<2x1x32xf32>
    tpu.vector_store %arg7[%c0_67, %c0_68, %c0_69], %301 {strides = array<i32>} : memref<2x1x32xf32, #tpu.memory_space<vmem>>, vector<2x1x32xf32>,
    return
  }
}

module attributes {stable_mosaic.version = 11 : i64} {
  func.func @fused_scale_kernel(%arg0: i32, %arg1: memref<1x8x32xf32, #tpu.memory_space<vmem>>, %arg2: memref<1x8x8x1xf32, #tpu.memory_space<vmem>>, %arg3: memref<1x1x32xf32, #tpu.memory_space<vmem>>, %arg4: memref<32x32xf32, #tpu.memory_space<vmem>>, %arg5: memref<1x32xf32, #tpu.memory_space<vmem>>, %arg6: memref<2x288x32xf32, #tpu.memory_space<vmem>>, %arg7: memref<2x1x32xf32, #tpu.memory_space<vmem>>, %arg8: memref<1x32xf32, #tpu.memory_space<vmem>>, %arg9: memref<1x1xf32, #tpu.memory_space<vmem>>, %arg10: memref<1x8x8x1xf32, #tpu.memory_space<vmem>>, %arg11: memref<10x10x32xf32, #tpu.memory_space<vmem>>) attributes {dimension_semantics = [#tpu.dimension_semantics<parallel>], iteration_bounds = array<i64: 2>, scalar_prefetch = 0 : i64, scratch_operands = 1 : i64, tpu.core_type = #tpu.core_type<tc>, window_params = [{transform_indices = @transform_0, window_bounds = array<i64: 1, 8, 32>}, {transform_indices = @transform_1, window_bounds = array<i64: 1, 8, 8, 1>}, {transform_indices = @transform_2, window_bounds = array<i64: 1, 1, 32>}, {pipeline_mode = #tpu.pipeline_mode<synchronous>, transform_indices = @transform_3, window_bounds = array<i64: 32, 32>}, {pipeline_mode = #tpu.pipeline_mode<synchronous>, transform_indices = @transform_4, window_bounds = array<i64: 1, 32>}, {pipeline_mode = #tpu.pipeline_mode<synchronous>, transform_indices = @transform_5, window_bounds = array<i64: 2, 288, 32>}, {pipeline_mode = #tpu.pipeline_mode<synchronous>, transform_indices = @transform_6, window_bounds = array<i64: 2, 1, 32>}, {pipeline_mode = #tpu.pipeline_mode<synchronous>, transform_indices = @transform_7, window_bounds = array<i64: 1, 32>}, {pipeline_mode = #tpu.pipeline_mode<synchronous>, transform_indices = @transform_8, window_bounds = array<i64: 1, 1>}, {transform_indices = @transform_9, window_bounds = array<i64: 1, 8, 8, 1>}]} {
    %c0 = arith.constant 0 : index
    %c0_0 = arith.constant 0 : index
    %c0_1 = arith.constant 0 : index
    %0 = vector.load %arg1[%c0, %c0_0, %c0_1] : memref<1x8x32xf32, #tpu.memory_space<vmem>>, vector<1x8x32xf32>
    %1 = vector.shape_cast %0 : vector<1x8x32xf32> to vector<8x32xf32>
    %c0_2 = arith.constant 0 : index
    %c0_3 = arith.constant 0 : index
    %c0_4 = arith.constant 0 : index
    %c0_5 = arith.constant 0 : index
    %2 = vector.load %arg2[%c0_2, %c0_3, %c0_4, %c0_5] : memref<1x8x8x1xf32, #tpu.memory_space<vmem>>, vector<1x8x8x1xf32>
    %3 = vector.shape_cast %2 : vector<1x8x8x1xf32> to vector<8x8x1xf32>
    %4 = tpu.iota {dimensions = array<i32: 0>} : vector<8x8x1xi32>
    %5 = tpu.iota {dimensions = array<i32: 1>} : vector<8x8x1xi32>
    %6 = arith.cmpi sge, %5, %4 : vector<8x8x1xi32>
    %7 = vector.shape_cast %1 : vector<8x32xf32> to vector<1x8x32xf32>
    %8 = vector.shape_cast %7 : vector<1x8x32xf32> to vector<1x8x32xf32>
    %9 = vector.broadcast %8 : vector<1x8x32xf32> to vector<8x8x32xf32>
    %cst = arith.constant -1.000000e+30 : f32
    %10 = vector.shape_cast %6 : vector<8x8x1xi1> to vector<8x8x1xi1>
    %11 = vector.broadcast %10 : vector<8x8x1xi1> to vector<8x8x32xi1>
    %12 = vector.broadcast %cst : f32 to vector<8x8x32xf32>
    %13 = arith.select %11, %9, %12 : vector<8x8x32xi1>, vector<8x8x32xf32>
    %cst_6 = arith.constant -1.000000e+30 : f32
    %14 = vector.broadcast %cst_6 : f32 to vector<8x1x32xf32>
    %15 = vector.extract_strided_slice %13 {offsets = [0, 0, 0], sizes = [8, 7, 32], strides = [1, 1, 1]} : vector<8x8x32xf32> to vector<8x7x32xf32>
    %16 = tpu.concatenate %14, %15 in 1 : vector<8x1x32xf32>, vector<8x7x32xf32> -> vector<8x8x32xf32>
    %17 = arith.maximumf %13, %16 : vector<8x8x32xf32>
    %cst_7 = arith.constant -1.000000e+30 : f32
    %18 = vector.broadcast %cst_7 : f32 to vector<8x2x32xf32>
    %19 = vector.extract_strided_slice %17 {offsets = [0, 0, 0], sizes = [8, 6, 32], strides = [1, 1, 1]} : vector<8x8x32xf32> to vector<8x6x32xf32>
    %20 = tpu.concatenate %18, %19 in 1 : vector<8x2x32xf32>, vector<8x6x32xf32> -> vector<8x8x32xf32>
    %21 = arith.maximumf %17, %20 : vector<8x8x32xf32>
    %cst_8 = arith.constant -1.000000e+30 : f32
    %22 = vector.broadcast %cst_8 : f32 to vector<8x4x32xf32>
    %23 = vector.extract_strided_slice %21 {offsets = [0, 0, 0], sizes = [8, 4, 32], strides = [1, 1, 1]} : vector<8x8x32xf32> to vector<8x4x32xf32>
    %24 = tpu.concatenate %22, %23 in 1 : vector<8x4x32xf32>, vector<8x4x32xf32> -> vector<8x8x32xf32>
    %25 = arith.maximumf %21, %24 : vector<8x8x32xf32>
    %cst_9 = arith.constant 0.000000e+00 : f32
    %26 = vector.shape_cast %6 : vector<8x8x1xi1> to vector<8x8x1xi1>
    %27 = vector.broadcast %26 : vector<8x8x1xi1> to vector<8x8x32xi1>
    %28 = vector.broadcast %cst_9 : f32 to vector<8x8x32xf32>
    %29 = arith.select %27, %25, %28 : vector<8x8x32xi1>, vector<8x8x32xf32>
    %30 = vector.shape_cast %29 : vector<8x8x32xf32> to vector<64x32xf32>
    %c0_10 = arith.constant 0 : index
    %c0_11 = arith.constant 0 : index
    %31 = vector.load %arg4[%c0_10, %c0_11] : memref<32x32xf32, #tpu.memory_space<vmem>>, vector<32x32xf32>
    %cst_12 = arith.constant dense<0.000000e+00> : vector<64x32xf32>
    %32 = tpu.matmul %30, %31, %cst_12 {dimension_numbers = #tpu.dot_dimension_numbers<[1], [0], [0], [1], [0, 0, 1, 1], [], []>} : vector<64x32xf32>, vector<32x32xf32>, vector<64x32xf32> -> vector<64x32xf32>
    %c0_13 = arith.constant 0 : index
    %c0_14 = arith.constant 0 : index
    %33 = vector.load %arg5[%c0_13, %c0_14] : memref<1x32xf32, #tpu.memory_space<vmem>>, vector<1x32xf32>
    %34 = vector.broadcast %33 : vector<1x32xf32> to vector<64x32xf32>
    %35 = arith.addf %32, %34 : vector<64x32xf32>
    %c0_15 = arith.constant 0 : index
    %c0_16 = arith.constant 0 : index
    %c0_17 = arith.constant 0 : index
    %36 = vector.load %arg3[%c0_15, %c0_16, %c0_17] : memref<1x1x32xf32, #tpu.memory_space<vmem>>, vector<1x1x32xf32>
    %37 = vector.shape_cast %36 : vector<1x1x32xf32> to vector<1x32xf32>
    %38 = vector.broadcast %37 : vector<1x32xf32> to vector<64x32xf32>
    %39 = arith.mulf %35, %38 : vector<64x32xf32>
    %40 = arith.mulf %39, %39 : vector<64x32xf32>
    %cst_18 = arith.constant dense<0.000000e+00> : vector<64xf32>
    %41 = vector.multi_reduction <add>, %40, %cst_18 [1] : vector<64x32xf32> to vector<64xf32>
    %42 = vector.shape_cast %41 : vector<64xf32> to vector<64x1xf32>
    %43 = math.sqrt %42 : vector<64x1xf32>
    %cst_19 = arith.constant 9.99999996E-13 : f32
    %44 = vector.broadcast %cst_19 : f32 to vector<64x1xf32>
    %45 = arith.maximumf %43, %44 : vector<64x1xf32>
    %46 = vector.broadcast %45 : vector<64x1xf32> to vector<64x32xf32>
    %47 = arith.divf %39, %46 : vector<64x32xf32>
    %48 = vector.shape_cast %47 : vector<64x32xf32> to vector<8x8x32xf32>
    %49 = vector.broadcast %3 : vector<8x8x1xf32> to vector<8x8x32xf32>
    %50 = arith.mulf %48, %49 : vector<8x8x32xf32>
    %cst_20 = arith.constant 0.000000e+00 : f32
    %51 = vector.broadcast %cst_20 : f32 to vector<10x10x32xf32>
    %c0_21 = arith.constant 0 : index
    %c0_22 = arith.constant 0 : index
    %c0_23 = arith.constant 0 : index
    %52 = vector.load %arg11[%c0_21, %c0_22, %c0_23] : memref<10x10x32xf32, #tpu.memory_space<vmem>>, vector<10x10x32xf32>
    tpu.vector_store %arg11[%c0_21, %c0_22, %c0_23], %51 {strides = array<i32>} : memref<10x10x32xf32, #tpu.memory_space<vmem>>, vector<10x10x32xf32>,
    %53 = vector.broadcast %3 : vector<8x8x1xf32> to vector<8x8x32xf32>
    %54 = arith.mulf %50, %53 : vector<8x8x32xf32>
    %c1 = arith.constant 1 : index
    %c1_24 = arith.constant 1 : index
    %c0_25 = arith.constant 0 : index
    %55 = vector.load %arg11[%c1, %c1_24, %c0_25] : memref<10x10x32xf32, #tpu.memory_space<vmem>>, vector<8x8x32xf32>
    tpu.vector_store %arg11[%c1, %c1_24, %c0_25], %54 {strides = array<i32>} : memref<10x10x32xf32, #tpu.memory_space<vmem>>, vector<8x8x32xf32>,
    %c0_26 = arith.constant 0 : index
    %c0_27 = arith.constant 0 : index
    %c0_28 = arith.constant 0 : index
    %56 = vector.load %arg11[%c0_26, %c0_27, %c0_28] : memref<10x10x32xf32, #tpu.memory_space<vmem>>, vector<10x10x32xf32>
    %57 = vector.extract_strided_slice %56 {offsets = [0, 0, 0], sizes = [8, 8, 32], strides = [1, 1, 1]} : vector<10x10x32xf32> to vector<8x8x32xf32>
    %58 = vector.shape_cast %57 : vector<8x8x32xf32> to vector<64x32xf32>
    %59 = vector.extract_strided_slice %56 {offsets = [0, 1, 0], sizes = [8, 8, 32], strides = [1, 1, 1]} : vector<10x10x32xf32> to vector<8x8x32xf32>
    %60 = vector.shape_cast %59 : vector<8x8x32xf32> to vector<64x32xf32>
    %61 = vector.extract_strided_slice %56 {offsets = [0, 2, 0], sizes = [8, 8, 32], strides = [1, 1, 1]} : vector<10x10x32xf32> to vector<8x8x32xf32>
    %62 = vector.shape_cast %61 : vector<8x8x32xf32> to vector<64x32xf32>
    %63 = vector.extract_strided_slice %56 {offsets = [1, 0, 0], sizes = [8, 8, 32], strides = [1, 1, 1]} : vector<10x10x32xf32> to vector<8x8x32xf32>
    %64 = vector.shape_cast %63 : vector<8x8x32xf32> to vector<64x32xf32>
    %65 = vector.extract_strided_slice %56 {offsets = [1, 1, 0], sizes = [8, 8, 32], strides = [1, 1, 1]} : vector<10x10x32xf32> to vector<8x8x32xf32>
    %66 = vector.shape_cast %65 : vector<8x8x32xf32> to vector<64x32xf32>
    %67 = vector.extract_strided_slice %56 {offsets = [1, 2, 0], sizes = [8, 8, 32], strides = [1, 1, 1]} : vector<10x10x32xf32> to vector<8x8x32xf32>
    %68 = vector.shape_cast %67 : vector<8x8x32xf32> to vector<64x32xf32>
    %69 = vector.extract_strided_slice %56 {offsets = [2, 0, 0], sizes = [8, 8, 32], strides = [1, 1, 1]} : vector<10x10x32xf32> to vector<8x8x32xf32>
    %70 = vector.shape_cast %69 : vector<8x8x32xf32> to vector<64x32xf32>
    %71 = vector.extract_strided_slice %56 {offsets = [2, 1, 0], sizes = [8, 8, 32], strides = [1, 1, 1]} : vector<10x10x32xf32> to vector<8x8x32xf32>
    %72 = vector.shape_cast %71 : vector<8x8x32xf32> to vector<64x32xf32>
    %73 = vector.extract_strided_slice %56 {offsets = [2, 2, 0], sizes = [8, 8, 32], strides = [1, 1, 1]} : vector<10x10x32xf32> to vector<8x8x32xf32>
    %74 = vector.shape_cast %73 : vector<8x8x32xf32> to vector<64x32xf32>
    %75 = tpu.concatenate %58, %60, %62, %64, %66, %68, %70, %72, %74 in 1 : vector<64x32xf32>, vector<64x32xf32>, vector<64x32xf32>, vector<64x32xf32>, vector<64x32xf32>, vector<64x32xf32>, vector<64x32xf32>, vector<64x32xf32>, vector<64x32xf32> -> vector<64x288xf32>
    %c0_29 = arith.constant 0 : index
    %c0_30 = arith.constant 0 : index
    %c0_31 = arith.constant 0 : index
    %76 = vector.load %arg6[%c0_29, %c0_30, %c0_31] : memref<2x288x32xf32, #tpu.memory_space<vmem>>, vector<1x288x32xf32>
    %77 = vector.shape_cast %76 : vector<1x288x32xf32> to vector<288x32xf32>
    %cst_32 = arith.constant dense<0.000000e+00> : vector<64x32xf32>
    %78 = tpu.matmul %75, %77, %cst_32 {dimension_numbers = #tpu.dot_dimension_numbers<[1], [0], [0], [1], [0, 0, 1, 1], [], []>} : vector<64x288xf32>, vector<288x32xf32>, vector<64x32xf32> -> vector<64x32xf32>
    %c0_33 = arith.constant 0 : index
    %c0_34 = arith.constant 0 : index
    %c0_35 = arith.constant 0 : index
    %79 = vector.load %arg7[%c0_33, %c0_34, %c0_35] : memref<2x1x32xf32, #tpu.memory_space<vmem>>, vector<1x1x32xf32>
    %80 = vector.shape_cast %79 : vector<1x1x32xf32> to vector<1x32xf32>
    %81 = vector.broadcast %80 : vector<1x32xf32> to vector<64x32xf32>
    %82 = arith.addf %78, %81 : vector<64x32xf32>
    %cst_36 = arith.constant 0.000000e+00 : f32
    %83 = vector.broadcast %cst_36 : f32 to vector<64x32xf32>
    %84 = arith.maximumf %82, %83 : vector<64x32xf32>
    %85 = vector.shape_cast %84 : vector<64x32xf32> to vector<8x8x32xf32>
    %86 = vector.broadcast %3 : vector<8x8x1xf32> to vector<8x8x32xf32>
    %87 = arith.mulf %85, %86 : vector<8x8x32xf32>
    %c1_37 = arith.constant 1 : index
    %c1_38 = arith.constant 1 : index
    %c0_39 = arith.constant 0 : index
    %88 = vector.load %arg11[%c1_37, %c1_38, %c0_39] : memref<10x10x32xf32, #tpu.memory_space<vmem>>, vector<8x8x32xf32>
    tpu.vector_store %arg11[%c1_37, %c1_38, %c0_39], %87 {strides = array<i32>} : memref<10x10x32xf32, #tpu.memory_space<vmem>>, vector<8x8x32xf32>,
    %c0_40 = arith.constant 0 : index
    %c0_41 = arith.constant 0 : index
    %c0_42 = arith.constant 0 : index
    %89 = vector.load %arg11[%c0_40, %c0_41, %c0_42] : memref<10x10x32xf32, #tpu.memory_space<vmem>>, vector<10x10x32xf32>
    %90 = vector.extract_strided_slice %89 {offsets = [0, 0, 0], sizes = [8, 8, 32], strides = [1, 1, 1]} : vector<10x10x32xf32> to vector<8x8x32xf32>
    %91 = vector.shape_cast %90 : vector<8x8x32xf32> to vector<64x32xf32>
    %92 = vector.extract_strided_slice %89 {offsets = [0, 1, 0], sizes = [8, 8, 32], strides = [1, 1, 1]} : vector<10x10x32xf32> to vector<8x8x32xf32>
    %93 = vector.shape_cast %92 : vector<8x8x32xf32> to vector<64x32xf32>
    %94 = vector.extract_strided_slice %89 {offsets = [0, 2, 0], sizes = [8, 8, 32], strides = [1, 1, 1]} : vector<10x10x32xf32> to vector<8x8x32xf32>
    %95 = vector.shape_cast %94 : vector<8x8x32xf32> to vector<64x32xf32>
    %96 = vector.extract_strided_slice %89 {offsets = [1, 0, 0], sizes = [8, 8, 32], strides = [1, 1, 1]} : vector<10x10x32xf32> to vector<8x8x32xf32>
    %97 = vector.shape_cast %96 : vector<8x8x32xf32> to vector<64x32xf32>
    %98 = vector.extract_strided_slice %89 {offsets = [1, 1, 0], sizes = [8, 8, 32], strides = [1, 1, 1]} : vector<10x10x32xf32> to vector<8x8x32xf32>
    %99 = vector.shape_cast %98 : vector<8x8x32xf32> to vector<64x32xf32>
    %100 = vector.extract_strided_slice %89 {offsets = [1, 2, 0], sizes = [8, 8, 32], strides = [1, 1, 1]} : vector<10x10x32xf32> to vector<8x8x32xf32>
    %101 = vector.shape_cast %100 : vector<8x8x32xf32> to vector<64x32xf32>
    %102 = vector.extract_strided_slice %89 {offsets = [2, 0, 0], sizes = [8, 8, 32], strides = [1, 1, 1]} : vector<10x10x32xf32> to vector<8x8x32xf32>
    %103 = vector.shape_cast %102 : vector<8x8x32xf32> to vector<64x32xf32>
    %104 = vector.extract_strided_slice %89 {offsets = [2, 1, 0], sizes = [8, 8, 32], strides = [1, 1, 1]} : vector<10x10x32xf32> to vector<8x8x32xf32>
    %105 = vector.shape_cast %104 : vector<8x8x32xf32> to vector<64x32xf32>
    %106 = vector.extract_strided_slice %89 {offsets = [2, 2, 0], sizes = [8, 8, 32], strides = [1, 1, 1]} : vector<10x10x32xf32> to vector<8x8x32xf32>
    %107 = vector.shape_cast %106 : vector<8x8x32xf32> to vector<64x32xf32>
    %108 = tpu.concatenate %91, %93, %95, %97, %99, %101, %103, %105, %107 in 1 : vector<64x32xf32>, vector<64x32xf32>, vector<64x32xf32>, vector<64x32xf32>, vector<64x32xf32>, vector<64x32xf32>, vector<64x32xf32>, vector<64x32xf32>, vector<64x32xf32> -> vector<64x288xf32>
    %c1_43 = arith.constant 1 : index
    %c0_44 = arith.constant 0 : index
    %c0_45 = arith.constant 0 : index
    %109 = vector.load %arg6[%c1_43, %c0_44, %c0_45] : memref<2x288x32xf32, #tpu.memory_space<vmem>>, vector<1x288x32xf32>
    %110 = vector.shape_cast %109 : vector<1x288x32xf32> to vector<288x32xf32>
    %cst_46 = arith.constant dense<0.000000e+00> : vector<64x32xf32>
    %111 = tpu.matmul %108, %110, %cst_46 {dimension_numbers = #tpu.dot_dimension_numbers<[1], [0], [0], [1], [0, 0, 1, 1], [], []>} : vector<64x288xf32>, vector<288x32xf32>, vector<64x32xf32> -> vector<64x32xf32>
    %c1_47 = arith.constant 1 : index
    %c0_48 = arith.constant 0 : index
    %c0_49 = arith.constant 0 : index
    %112 = vector.load %arg7[%c1_47, %c0_48, %c0_49] : memref<2x1x32xf32, #tpu.memory_space<vmem>>, vector<1x1x32xf32>
    %113 = vector.shape_cast %112 : vector<1x1x32xf32> to vector<1x32xf32>
    %114 = vector.broadcast %113 : vector<1x32xf32> to vector<64x32xf32>
    %115 = arith.addf %111, %114 : vector<64x32xf32>
    %cst_50 = arith.constant 0.000000e+00 : f32
    %116 = vector.broadcast %cst_50 : f32 to vector<64x32xf32>
    %117 = arith.maximumf %115, %116 : vector<64x32xf32>
    %118 = vector.shape_cast %117 : vector<64x32xf32> to vector<8x8x32xf32>
    %c0_51 = arith.constant 0 : index
    %c0_52 = arith.constant 0 : index
    %119 = vector.load %arg8[%c0_51, %c0_52] : memref<1x32xf32, #tpu.memory_space<vmem>>, vector<1x32xf32>
    %120 = vector.shape_cast %119 : vector<1x32xf32> to vector<1x1x32xf32>
    %121 = vector.broadcast %120 : vector<1x1x32xf32> to vector<8x8x32xf32>
    %122 = arith.mulf %118, %121 : vector<8x8x32xf32>
    %cst_53 = arith.constant dense<0.000000e+00> : vector<8x8xf32>
    %123 = vector.multi_reduction <add>, %122, %cst_53 [2] : vector<8x8x32xf32> to vector<8x8xf32>
    %124 = vector.shape_cast %123 : vector<8x8xf32> to vector<8x8x1xf32>
    %c0_54 = arith.constant 0 : index
    %c0_55 = arith.constant 0 : index
    %125 = vector.load %arg9[%c0_54, %c0_55] : memref<1x1xf32, #tpu.memory_space<vmem>>, vector<1x1xf32>
    %126 = vector.shape_cast %125 : vector<1x1xf32> to vector<1x1x1xf32>
    %127 = vector.broadcast %126 : vector<1x1x1xf32> to vector<8x8x1xf32>
    %128 = arith.addf %124, %127 : vector<8x8x1xf32>
    %129 = arith.mulf %128, %3 : vector<8x8x1xf32>
    %c0_56 = arith.constant 0 : index
    %c0_57 = arith.constant 0 : index
    %c0_58 = arith.constant 0 : index
    %c0_59 = arith.constant 0 : index
    %130 = vector.load %arg10[%c0_56, %c0_57, %c0_58, %c0_59] : memref<1x8x8x1xf32, #tpu.memory_space<vmem>>, vector<1x8x8x1xf32>
    %131 = vector.shape_cast %130 : vector<1x8x8x1xf32> to vector<8x8x1xf32>
    %132 = vector.shape_cast %129 : vector<8x8x1xf32> to vector<1x8x8x1xf32>
    tpu.vector_store %arg10[%c0_56, %c0_57, %c0_58, %c0_59], %132 {strides = array<i32>} : memref<1x8x8x1xf32, #tpu.memory_space<vmem>>, vector<1x8x8x1xf32>,
    return
  }
  func.func @transform_0(%arg0: i32) -> (i32, i32, i32) {
    %c0_i32 = arith.constant 0 : i32
    %c0_i32_0 = arith.constant 0 : i32
    %c0_i32_1 = arith.constant 0 : i32
    return %arg0, %c0_i32, %c0_i32_0 : i32, i32, i32
  }
  func.func @transform_1(%arg0: i32) -> (i32, i32, i32, i32) {
    %c0_i32 = arith.constant 0 : i32
    %c0_i32_0 = arith.constant 0 : i32
    %c0_i32_1 = arith.constant 0 : i32
    %c0_i32_2 = arith.constant 0 : i32
    return %arg0, %c0_i32, %c0_i32_0, %c0_i32_1 : i32, i32, i32, i32
  }
  func.func @transform_2(%arg0: i32) -> (i32, i32, i32) {
    %c0_i32 = arith.constant 0 : i32
    %c0_i32_0 = arith.constant 0 : i32
    %c0_i32_1 = arith.constant 0 : i32
    return %arg0, %c0_i32, %c0_i32_0 : i32, i32, i32
  }
  func.func @transform_3(%arg0: i32) -> (i32, i32) {
    %c0_i32 = arith.constant 0 : i32
    %c0_i32_0 = arith.constant 0 : i32
    %c0_i32_1 = arith.constant 0 : i32
    return %c0_i32, %c0_i32_0 : i32, i32
  }
  func.func @transform_4(%arg0: i32) -> (i32, i32) {
    %c0_i32 = arith.constant 0 : i32
    %c0_i32_0 = arith.constant 0 : i32
    %c0_i32_1 = arith.constant 0 : i32
    return %c0_i32, %c0_i32_0 : i32, i32
  }
  func.func @transform_5(%arg0: i32) -> (i32, i32, i32) {
    %c0_i32 = arith.constant 0 : i32
    %c0_i32_0 = arith.constant 0 : i32
    %c0_i32_1 = arith.constant 0 : i32
    %c0_i32_2 = arith.constant 0 : i32
    return %c0_i32, %c0_i32_0, %c0_i32_1 : i32, i32, i32
  }
  func.func @transform_6(%arg0: i32) -> (i32, i32, i32) {
    %c0_i32 = arith.constant 0 : i32
    %c0_i32_0 = arith.constant 0 : i32
    %c0_i32_1 = arith.constant 0 : i32
    %c0_i32_2 = arith.constant 0 : i32
    return %c0_i32, %c0_i32_0, %c0_i32_1 : i32, i32, i32
  }
  func.func @transform_7(%arg0: i32) -> (i32, i32) {
    %c0_i32 = arith.constant 0 : i32
    %c0_i32_0 = arith.constant 0 : i32
    %c0_i32_1 = arith.constant 0 : i32
    return %c0_i32, %c0_i32_0 : i32, i32
  }
  func.func @transform_8(%arg0: i32) -> (i32, i32) {
    %c0_i32 = arith.constant 0 : i32
    %c0_i32_0 = arith.constant 0 : i32
    %c0_i32_1 = arith.constant 0 : i32
    return %c0_i32, %c0_i32_0 : i32, i32
  }
  func.func @transform_9(%arg0: i32) -> (i32, i32, i32, i32) {
    %c0_i32 = arith.constant 0 : i32
    %c0_i32_0 = arith.constant 0 : i32
    %c0_i32_1 = arith.constant 0 : i32
    %c0_i32_2 = arith.constant 0 : i32
    return %arg0, %c0_i32, %c0_i32_0, %c0_i32_1 : i32, i32, i32, i32
  }
}

</mosaic_0001>

<llo_original>
// kernel: multiscale_tan_forward.4
$region0: #{multiscale_tan_forward.4}
  #allocation0 [shape = 'u32[]', space=smem, size = 0x4, offset = 0x4, fixed_abs, tag = 'smem constant byte address 0x4 - core index']
  #allocation1 [shape = 'u32[72,128]{1,0:T(1,128)}', space=vmem, size = 0x9000, scoped, tag = 'internal scratch']
  %s0 = inlined_call_operand.vmem [shape: f32[2,32,16], index: 0, kind: input, shape index: {}]
  %s1 = inlined_call_operand.vmem [shape: f32[16,32], index: 1, kind: input, shape index: {}]
  %s2 = inlined_call_operand.vmem [shape: f32[1,32], index: 2, kind: input, shape index: {}]
  %s3 = inlined_call_operand.vmem [shape: f32[2,16,32], index: 3, kind: output, shape index: {}]
  %s4 = sld [smem:[#allocation0]]
  $region45: #{multiscale_tan_forward.4} parent=0
    _
  %s6 = ssub.s32 1, %s4
  %s7 = scalar_select 0, %s6, %s4
  loop: start=0, step=1, limit=4
  $region2: #{multiscale_tan_forward.4} parent=0 // loop_pre_header
    _
  $region3: #{multiscale_tan_forward.4} parent=0 // loop_header
    %s9 = sphi 0, %s13
    %p10 = scmp.ge.s32.totalorder %s9, 4
    %s19 = sphi 0, %s21
    %s22 = sphi 0, %s19
    %s23 = sphi 0, %s22
    %s39 = sphi 0, %s23
    %s43 = sphi 0, %s43
    %s45 = sphi 0, %s43
    %s46 = sphi 0, %s45
    %s60 = sphi 0, %s46
    %s64 = sphi 0, %s64
    %s66 = sphi 0, %s64
    %s67 = sphi 0, %s66
    %s81 = sphi 0, %s67
    %s87 = sphi 0, %s89
    %s90 = sphi 0, %s87
    %s91 = sphi 0, %s90
    %s107 = sphi 0, %s91
  $region4: #{multiscale_tan_forward.4} parent=0 // loop_header_branch
    %12 = sbr.rel (%p10) target = $region8
  $region5: #{multiscale_tan_forward.4} parent=0 // loop_body
    %s14 = ssub.s32 %s9, 1
    %s15 = ssub.s32 %s9, 2
    %s16 = sadd.s32 %s9, 1
    %s17 = ssub.s32 %s9, %s16
    %p18 = scmp.eq.s32.totalorder %s17, 0
    %s20 = sadd.s32 %s19, 1
    %s21 = scalar_select %p18, %s19, %s20
    %p24 = pneg %p18
    %p25 = scmp.eq.s32.totalorder %s9, 1
    %p26 = por %p24, %p25
    %p27 = scmp.ne.s32.totalorder %s19, %s22
    %p28 = scmp.eq.s32.totalorder %s9, 0
    %p29 = por %p27, %p28
    %p30 = scmp.ne.s32.totalorder %s19, %s22
    %p31 = scmp.eq.s32.totalorder %s14, 1
    %p32 = por %p30, %p31
    %p33 = scmp.ne.s32.totalorder %s22, %s23
    %p34 = scmp.eq.s32.totalorder %s14, 0
    %p35 = por %p33, %p34
    %p36 = scmp.ne.s32.totalorder %s22, %s23
    %p37 = scmp.eq.s32.totalorder %s15, 1
    %p38 = por %p36, %p37
    %p40 = scmp.ne.s32.totalorder %s23, %s39
    %p41 = scmp.eq.s32.totalorder %s15, 0
    %p42 = por %p40, %p41
    %s44 = sadd.s32 %s43, 1
    %p47 = scmp.eq.s32.totalorder %s9, 1
    %p48 = scmp.ne.s32.totalorder %s43, %s45
    %p49 = scmp.eq.s32.totalorder %s9, 0
    %p50 = por %p48, %p49
    %p51 = scmp.ne.s32.totalorder %s43, %s45
    %p52 = scmp.eq.s32.totalorder %s14, 1
    %p53 = por %p51, %p52
    %p54 = scmp.ne.s32.totalorder %s45, %s46
    %p55 = scmp.eq.s32.totalorder %s14, 0
    %p56 = por %p54, %p55
    %p57 = scmp.ne.s32.totalorder %s45, %s46
    %p58 = scmp.eq.s32.totalorder %s15, 1
    %p59 = por %p57, %p58
    %p61 = scmp.ne.s32.totalorder %s46, %s60
    %p62 = scmp.eq.s32.totalorder %s15, 0
    %p63 = por %p61, %p62
    %s65 = sadd.s32 %s64, 1
    %p68 = scmp.eq.s32.totalorder %s9, 1
    %p69 = scmp.ne.s32.totalorder %s64, %s66
    %p70 = scmp.eq.s32.totalorder %s9, 0
    %p71 = por %p69, %p70
    %p72 = scmp.ne.s32.totalorder %s64, %s66
    %p73 = scmp.eq.s32.totalorder %s14, 1
    %p74 = por %p72, %p73
    %p75 = scmp.ne.s32.totalorder %s66, %s67
    %p76 = scmp.eq.s32.totalorder %s14, 0
    %p77 = por %p75, %p76
    %p78 = scmp.ne.s32.totalorder %s66, %s67
    %p79 = scmp.eq.s32.totalorder %s15, 1
    %p80 = por %p78, %p79
    %p82 = scmp.ne.s32.totalorder %s67, %s81
    %p83 = scmp.eq.s32.totalorder %s15, 0
    %p84 = por %p82, %p83
    %s85 = ssub.s32 %s9, %s16
    %p86 = scmp.eq.s32.totalorder %s85, 0
    %s88 = sadd.s32 %s87, 1
    %s89 = scalar_select %p86, %s87, %s88
    %p92 = pneg %p86
    %p93 = scmp.eq.s32.totalorder %s9, 1
    %p94 = por %p92, %p93
    %p95 = scmp.ne.s32.totalorder %s87, %s90
    %p96 = scmp.eq.s32.totalorder %s9, 0
    %p97 = por %p95, %p96
    %p98 = scmp.ne.s32.totalorder %s87, %s90
    %p99 = scmp.eq.s32.totalorder %s14, 1
    %p100 = por %p98, %p99
    %p101 = scmp.ne.s32.totalorder %s90, %s91
    %p102 = scmp.eq.s32.totalorder %s14, 0
    %p103 = por %p101, %p102
    %p104 = scmp.ne.s32.totalorder %s90, %s91
    %p105 = scmp.eq.s32.totalorder %s15, 1
    %p106 = por %p104, %p105
    %p108 = scmp.ne.s32.totalorder %s91, %s107
    %p109 = scmp.eq.s32.totalorder %s15, 0
    %p110 = por %p108, %p109
    %p111 = scmp.le.s32.totalorder 1, %s9
    %p112 = scmp.lt.s32.totalorder %s9, 3
    %p113 = pnand %p111, %p112
    %p114 = pneg %p113
    // Predicated region
    $region9: #{multiscale_tan_forward.4} parent=5 // pred_check
      _
    $region10: #{multiscale_tan_forward.4} parent=5 // pred_check_branch
      %116 = sbr.rel (%p113) target = $region12
    $region11: #{multiscale_tan_forward.4} parent=5 // pred_region
      %s117 = ssub.s32 %s9, 1
      // Predicated region
      $region13: #{multiscale_tan_forward.4} parent=11 // pred_check
        %p118 = pneg %p56
      $region14: #{multiscale_tan_forward.4} parent=11 // pred_check_branch
        %120 = sbr.rel (%p118) target = $region16
      $region15: #{multiscale_tan_forward.4} parent=11 // pred_region
        _
      $region16: #{multiscale_tan_forward.4} parent=11 // pred_fallthru
        _
      // Predicated region
      $region17: #{multiscale_tan_forward.4} parent=11 // pred_check
        %p121 = pneg %p77
      $region18: #{multiscale_tan_forward.4} parent=11 // pred_check_branch
        %123 = sbr.rel (%p121) target = $region20
      $region19: #{multiscale_tan_forward.4} parent=11 // pred_region
        _
      $region20: #{multiscale_tan_forward.4} parent=11 // pred_fallthru
        _
    $region12: #{multiscale_tan_forward.4} parent=5 // pred_fallthru
      _
    %p124 = scmp.lt.s32.totalorder %s9, 2
    // Predicated region
    $region21: #{multiscale_tan_forward.4} parent=5 // pred_check
      %p125 = pneg %p124
    $region22: #{multiscale_tan_forward.4} parent=5 // pred_check_branch
      %127 = sbr.rel (%p125) target = $region24
    $region23: #{multiscale_tan_forward.4} parent=5 // pred_region
      // Predicated region
      $region25: #{multiscale_tan_forward.4} parent=23 // pred_check
        %p128 = pneg %p29
      $region26: #{multiscale_tan_forward.4} parent=23 // pred_check_branch
        %130 = sbr.rel (%p128) target = $region28
      $region27: #{multiscale_tan_forward.4} parent=23 // pred_region
        %p131 = scmp.lt.s32.totalorder %s9, 1
        %s132 = scalar_select %p131, %s9, 1
        %s133 = smul.addr %s132, 4
        %s134 = smul.addr %s133, 8
        %s135 = scalar_lea.vmem %s0, %s134
      $region28: #{multiscale_tan_forward.4} parent=23 // pred_fallthru
        _
    $region24: #{multiscale_tan_forward.4} parent=5 // pred_fallthru
      _
    %p136 = scmp.le.s32.totalorder 1, %s9
    %p137 = scmp.lt.s32.totalorder %s9, 3
    %p138 = pnand %p136, %p137
    %p139 = pneg %p138
    // Predicated region
    $region29: #{multiscale_tan_forward.4} parent=5 // pred_check
      _
    $region30: #{multiscale_tan_forward.4} parent=5 // pred_check_branch
      %141 = sbr.rel (%p138) target = $region32
    $region31: #{multiscale_tan_forward.4} parent=5 // pred_region
      %s142 = ssub.s32 %s9, 1
      %p143 = scmp.lt.s32.totalorder %s14, 1
      %s144 = scalar_select %p143, %s14, 1
      %s145 = smul.addr %s144, 4
      %s146 = smul.addr %s145, 8
      %s147 = scalar_lea.vmem %s0, %s146
      %p148 = pneg %p35
      %p149 = pneg %p32
      %p150 = pneg %p56
      %p151 = pneg %p53
      %p152 = pneg %p77
      %p153 = pneg %p74
      %p154 = pneg %p103
      %p155 = pneg %p100
      %p156 = scmp.lt.s32.totalorder %s14, 1
      %s157 = scalar_select %p156, %s14, 1
      %s158 = smul.addr %s157, 2
      %s159 = smul.addr %s158, 8
      %s160 = scalar_lea.vmem %s3, %s159
      %p161 = scmp.lt.s32.totalorder %s14, 1
      %s162 = scalar_select %p161, %s14, 1
      %s163 = smul.addr %s162, 4
      %s164 = smul.addr %s163, 8
      %s165 = scalar_lea.vmem %s0, %s164
      %p166 = scmp.lt.s32.totalorder %s14, 1
      %s167 = scalar_select %p166, %s14, 1
      %s168 = smul.addr %s167, 2
      %s169 = smul.addr %s168, 8
      %s170 = scalar_lea.vmem %s3, %s169
      %v171 = vld [vmem:[%s165] sm:$0xff]
      %v172 = vld [vmem:[%s165 + $0x8] sm:$0xff]
      %v173 = vld [vmem:[%s165 + $0x10] sm:$0xff]
      %v174 = vld [vmem:[%s165 + $0x18] sm:$0xff]
      %v175 = vld [vmem:[%s1] sm:$0xff]
      %v176 = vld [vmem:[%s1 + $0x8] sm:$0xff]
      %v177 = vld [vmem:[%s2] sm:$0x1]
      %v179 = vperm.slane %v177, 0
      %vm181 = vcmask 130048
      %v183 = vsel %vm181, %v171, 0
      %v186 = vsel %vm181, %v172, 0
      %v189 = vsel %vm181, %v173, 0
      %v192 = vsel %vm181, %v174, 0
      %194 = vmatpush.msra.mxu0 0.0
      %195 = vmatpush.msra.mxu0 0.0
      %196 = vmatpush.msra.mxu0 0.0
      %197 = vmatpush.msra.mxu0 0.0
      %198 = vmatpush.msra.mxu0 0.0
      %199 = vmatpush.msra.mxu0 0.0
      %200 = vmatpush.msra.mxu0 0.0
      %201 = vmatpush.msra.mxu0 0.0
      %202 = vmatpush.msra.mxu0 0.0
      %203 = vmatpush.msra.mxu0 0.0
      %204 = vmatpush.msra.mxu0 0.0
      %205 = vmatpush.msra.mxu0 0.0
      %206 = vmatpush.msra.mxu0 0.0
      %207 = vmatpush.msra.mxu0 0.0
      %208 = vmatpush.msra.mxu0 %v176
      %209 = vmatpush.msra.mxu0 %v175
      %210 = vmatmul.f32.gmra.mxu0 %v183
      %v211 = vpop.f32.mrf.mxu0
      %v212 = vadd.f32 %v179, %v211
      %213 = vmatmul.f32.gmra.mxu0 %v186
      %v214 = vpop.f32.mrf.mxu0
      %v215 = vadd.f32 %v179, %v214
      %216 = vmatmul.f32.gmra.mxu0 %v189
      %v217 = vpop.f32.mrf.mxu0
      %v218 = vadd.f32 %v179, %v217
      %219 = vmatmul.f32.gmra.mxu0 %v192
      %v220 = vpop.f32.mrf.mxu0
      %v221 = vadd.f32 %v179, %v220
      %222 = vdwg.mxu0
      %v223 = vmax.f32 %v212, 0.0
      %v224 = vmax.f32 %v215, 0.0
      %v225 = vmax.f32 %v218, 0.0
      %v226 = vmax.f32 %v221, 0.0
      %v231 = vrot.slane %v223, 2
      %v232 = vrot.slane %v223, 4
      %v233 = vrot.slane %v223, 6
      %v234 = vrot.slane %v224, 2
      %v235 = vrot.slane %v224, 4
      %v236 = vrot.slane %v224, 6
      %v237 = vrot.slane %v225, 2
      %v238 = vrot.slane %v225, 4
      %v239 = vrot.slane %v225, 6
      %v240 = vrot.slane %v226, 2
      %v241 = vrot.slane %v226, 4
      %v242 = vrot.slane %v226, 6
      %vm255 = vcmask 254976
      %v256 = vsel %vm255, %v223, 0.0
      %v257 = vrot.slane %v256, 4
      %v258 = vadd.f32 %v256, %v257
      %v259 = vrot.slane %v258, 2
      %v260 = vadd.f32 %v258, %v259
      %v261 = vrot.slane %v260, 1
      %v262 = vadd.f32 %v260, %v261
      %v263 = vsel %vm255, %v231, 0.0
      %v264 = vrot.slane %v263, 4
      %v265 = vadd.f32 %v263, %v264
      %v266 = vrot.slane %v265, 2
      %v267 = vadd.f32 %v265, %v266
      %v268 = vrot.slane %v267, 1
      %v269 = vadd.f32 %v267, %v268
      %v270 = vsel %vm255, %v232, 0.0
      %v271 = vrot.slane %v270, 4
      %v272 = vadd.f32 %v270, %v271
      %v273 = vrot.slane %v272, 2
      %v274 = vadd.f32 %v272, %v273
      %v275 = vrot.slane %v274, 1
      %v276 = vadd.f32 %v274, %v275
      %v277 = vsel %vm255, %v233, 0.0
      %v278 = vrot.slane %v277, 4
      %v279 = vadd.f32 %v277, %v278
      %v280 = vrot.slane %v279, 2
      %v281 = vadd.f32 %v279, %v280
      %v282 = vrot.slane %v281, 1
      %v283 = vadd.f32 %v281, %v282
      %v284 = vsel %vm255, %v224, 0.0
      %v285 = vrot.slane %v284, 4
      %v286 = vadd.f32 %v284, %v285
      %v287 = vrot.slane %v286, 2
      %v288 = vadd.f32 %v286, %v287
      %v289 = vrot.slane %v288, 1
      %v290 = vadd.f32 %v288, %v289
      %v291 = vsel %vm255, %v234, 0.0
      %v292 = vrot.slane %v291, 4
      %v293 = vadd.f32 %v291, %v292
      %v294 = vrot.slane %v293, 2
      %v295 = vadd.f32 %v293, %v294
      %v296 = vrot.slane %v295, 1
      %v297 = vadd.f32 %v295, %v296
      %v298 = vsel %vm255, %v235, 0.0
      %v299 = vrot.slane %v298, 4
      %v300 = vadd.f32 %v298, %v299
      %v301 = vrot.slane %v300, 2
      %v302 = vadd.f32 %v300, %v301
      %v303 = vrot.slane %v302, 1
      %v304 = vadd.f32 %v302, %v303
      %v305 = vsel %vm255, %v236, 0.0
      %v306 = vrot.slane %v305, 4
      %v307 = vadd.f32 %v305, %v306
      %v308 = vrot.slane %v307, 2
      %v309 = vadd.f32 %v307, %v308
      %v310 = vrot.slane %v309, 1
      %v311 = vadd.f32 %v309, %v310
      %v312 = vsel %vm255, %v225, 0.0
      %v313 = vrot.slane %v312, 4
      %v314 = vadd.f32 %v312, %v313
      %v315 = vrot.slane %v314, 2
      %v316 = vadd.f32 %v314, %v315
      %v317 = vrot.slane %v316, 1
      %v318 = vadd.f32 %v316, %v317
      %v319 = vsel %vm255, %v237, 0.0
      %v320 = vrot.slane %v319, 4
      %v321 = vadd.f32 %v319, %v320
      %v322 = vrot.slane %v321, 2
      %v323 = vadd.f32 %v321, %v322
      %v324 = vrot.slane %v323, 1
      %v325 = vadd.f32 %v323, %v324
      %v326 = vsel %vm255, %v238, 0.0
      %v327 = vrot.slane %v326, 4
      %v328 = vadd.f32 %v326, %v327
      %v329 = vrot.slane %v328, 2
      %v330 = vadd.f32 %v328, %v329
      %v331 = vrot.slane %v330, 1
      %v332 = vadd.f32 %v330, %v331
      %v333 = vsel %vm255, %v239, 0.0
      %v334 = vrot.slane %v333, 4
      %v335 = vadd.f32 %v333, %v334
      %v336 = vrot.slane %v335, 2
      %v337 = vadd.f32 %v335, %v336
      %v338 = vrot.slane %v337, 1
      %v339 = vadd.f32 %v337, %v338
      %v340 = vsel %vm255, %v226, 0.0
      %v341 = vrot.slane %v340, 4
      %v342 = vadd.f32 %v340, %v341
      %v343 = vrot.slane %v342, 2
      %v344 = vadd.f32 %v342, %v343
      %v345 = vrot.slane %v344, 1
      %v346 = vadd.f32 %v344, %v345
      %v347 = vsel %vm255, %v240, 0.0
      %v348 = vrot.slane %v347, 4
      %v349 = vadd.f32 %v347, %v348
      %v350 = vrot.slane %v349, 2
      %v351 = vadd.f32 %v349, %v350
      %v352 = vrot.slane %v351, 1
      %v353 = vadd.f32 %v351, %v352
      %v354 = vsel %vm255, %v241, 0.0
      %v355 = vrot.slane %v354, 4
      %v356 = vadd.f32 %v354, %v355
      %v357 = vrot.slane %v356, 2
      %v358 = vadd.f32 %v356, %v357
      %v359 = vrot.slane %v358, 1
      %v360 = vadd.f32 %v358, %v359
      %v361 = vsel %vm255, %v242, 0.0
      %v362 = vrot.slane %v361, 4
      %v363 = vadd.f32 %v361, %v362
      %v364 = vrot.slane %v363, 2
      %v365 = vadd.f32 %v363, %v364
      %v366 = vrot.slane %v365, 1
      %v367 = vadd.f32 %v365, %v366
      %v368 = vrcp.pop 2.0
      %v369 = vmul.f32 2.0, %v368
      %v370 = vsub.f32 1.0, %v369
      %v371 = vmul.f32 %v368, %v370
      %v372 = vadd.f32 %v368, %v371
      %vm373 = vweird.f32 %v368
      %v374 = vsel %vm373, %v368, %v372
      %v375 = vmul.f32 %v262, %v374
      %v376 = vmul.f32 %v269, %v374
      %v377 = vmul.f32 %v276, %v374
      %v378 = vmul.f32 %v283, %v374
      %v379 = vmul.f32 %v290, %v374
      %v380 = vmul.f32 %v297, %v374
      %v381 = vmul.f32 %v304, %v374
      %v382 = vmul.f32 %v311, %v374
      %v383 = vmul.f32 %v318, %v374
      %v384 = vmul.f32 %v325, %v374
      %v385 = vmul.f32 %v332, %v374
      %v386 = vmul.f32 %v339, %v374
      %v387 = vmul.f32 %v346, %v374
      %v388 = vmul.f32 %v353, %v374
      %v389 = vmul.f32 %v360, %v374
      %v390 = vmul.f32 %v367, %v374
      %vm407 = vcmask 1041409
      %v408 = vsel %vm407, %v376, %v375
      %vm409 = vcmask 1042434
      %v410 = vsel %vm409, %v377, %v408
      %vm411 = vcmask 1043459
      %v412 = vsel %vm411, %v378, %v410
      %vm413 = vcmask 1044484
      %v414 = vsel %vm413, %v379, %v412
      %vm415 = vcmask 1045509
      %v416 = vsel %vm415, %v380, %v414
      %vm417 = vcmask 1046534
      %v418 = vsel %vm417, %v381, %v416
      %vm419 = vcmask 1047559
      %v420 = vsel %vm419, %v382, %v418
      %v421 = vsel %vm407, %v384, %v383
      %v422 = vsel %vm409, %v385, %v421
      %v423 = vsel %vm411, %v386, %v422
      %v424 = vsel %vm413, %v387, %v423
      %v425 = vsel %vm415, %v388, %v424
      %v426 = vsel %vm417, %v389, %v425
      %v427 = vsel %vm419, %v390, %v426
      %vm430 = vcmask 261120
      %431 = vst.msk [vmem:[%s170] sm:$0xff] %vm430, %v420
      %432 = vst.msk [vmem:[%s170 + $0x8] sm:$0xff] %vm430, %v427
      %p433 = scmp.lt.s32.totalorder %s14, 1
      %s434 = scalar_select %p433, %s14, 1
      %s435 = smul.addr %s434, 2
      %s436 = smul.addr %s435, 8
      %s437 = scalar_lea.vmem %s3, %s436
      // Predicated region
      $region33: #{multiscale_tan_forward.4} parent=31 // pred_check
        %p438 = pneg %p100
      $region34: #{multiscale_tan_forward.4} parent=31 // pred_check_branch
        %440 = sbr.rel (%p438) target = $region36
      $region35: #{multiscale_tan_forward.4} parent=31 // pred_region
        _
      $region36: #{multiscale_tan_forward.4} parent=31 // pred_fallthru
        _
    $region32: #{multiscale_tan_forward.4} parent=5 // pred_fallthru
      _
    %p441 = scmp.le.s32.totalorder 2, %s9
    // Predicated region
    $region37: #{multiscale_tan_forward.4} parent=5 // pred_check
      %p442 = pneg %p441
    $region38: #{multiscale_tan_forward.4} parent=5 // pred_check_branch
      %444 = sbr.rel (%p442) target = $region40
    $region39: #{multiscale_tan_forward.4} parent=5 // pred_region
      %s445 = ssub.s32 %s9, 2
      // Predicated region
      $region41: #{multiscale_tan_forward.4} parent=39 // pred_check
        %p446 = pneg %p106
      $region42: #{multiscale_tan_forward.4} parent=39 // pred_check_branch
        %448 = sbr.rel (%p446) target = $region44
      $region43: #{multiscale_tan_forward.4} parent=39 // pred_region
        %p449 = scmp.lt.s32.totalorder %s15, 1
        %s450 = scalar_select %p449, %s15, 1
        %s451 = smul.addr %s450, 2
        %s452 = smul.addr %s451, 8
        %s453 = scalar_lea.vmem %s3, %s452
      $region44: #{multiscale_tan_forward.4} parent=39 // pred_fallthru
        _
    $region40: #{multiscale_tan_forward.4} parent=5 // pred_fallthru
      _
  $region6: #{multiscale_tan_forward.4} parent=0 // loop_footer
    %s13 = sadd.s32 1, %s9
  $region7: #{multiscale_tan_forward.4} parent=0 // loop_footer_branch
    %8 = sbr.rel target = $region3
  $region8: #{multiscale_tan_forward.4} parent=0 // loop_exit
    _

// kernel: multiscale_tan_forward.5
$region0: #{multiscale_tan_forward.5}
  #allocation0 [shape = 'u32[]', space=smem, size = 0x4, offset = 0x4, fixed_abs, tag = 'smem constant byte address 0x4 - core index']
  #allocation1 [shape = 'u32[72,128]{1,0:T(1,128)}', space=vmem, size = 0x9000, scoped, tag = 'internal scratch']
  %s0 = inlined_call_operand.vmem [shape: f32[8,2,16], index: 0, kind: input, shape index: {}]
  %s1 = inlined_call_operand.vmem [shape: f32[8,2,1], index: 1, kind: input, shape index: {}]
  %s2 = inlined_call_operand.vmem [shape: f32[16,128], index: 2, kind: input, shape index: {}]
  %s3 = inlined_call_operand.vmem [shape: f32[32,128], index: 3, kind: input, shape index: {}]
  %s4 = inlined_call_operand.vmem [shape: f32[1,128], index: 4, kind: input, shape index: {}]
  %s5 = inlined_call_operand.vmem [shape: f32[32,32], index: 5, kind: input, shape index: {}]
  %s6 = inlined_call_operand.vmem [shape: f32[1,32], index: 6, kind: input, shape index: {}]
  %s7 = inlined_call_operand.vmem [shape: f32[2,1,32], index: 7, kind: output, shape index: {}]
  %s8 = sld [smem:[#allocation0]]
  $region38: #{multiscale_tan_forward.5} parent=0
    _
  %s10 = ssub.s32 1, %s8
  %s11 = scalar_select 0, %s10, %s8
  // Predicated region
  $region2: #{multiscale_tan_forward.5} parent=0 // pred_check
    _
  $region3: #{multiscale_tan_forward.5} parent=0 // pred_check_branch
    %13 = sbr.rel (0) target = $region5
  $region4: #{multiscale_tan_forward.5} parent=0 // pred_region
    _
  $region5: #{multiscale_tan_forward.5} parent=0 // pred_fallthru
    _
  // Predicated region
  $region6: #{multiscale_tan_forward.5} parent=0 // pred_check
    _
  $region7: #{multiscale_tan_forward.5} parent=0 // pred_check_branch
    %15 = sbr.rel (0) target = $region9
  $region8: #{multiscale_tan_forward.5} parent=0 // pred_region
    _
  $region9: #{multiscale_tan_forward.5} parent=0 // pred_fallthru
    _
  // Predicated region
  $region10: #{multiscale_tan_forward.5} parent=0 // pred_check
    _
  $region11: #{multiscale_tan_forward.5} parent=0 // pred_check_branch
    %17 = sbr.rel (0) target = $region13
  $region12: #{multiscale_tan_forward.5} parent=0 // pred_region
    _
  $region13: #{multiscale_tan_forward.5} parent=0 // pred_fallthru
    _
  // Predicated region
  $region14: #{multiscale_tan_forward.5} parent=0 // pred_check
    _
  $region15: #{multiscale_tan_forward.5} parent=0 // pred_check_branch
    %19 = sbr.rel (0) target = $region17
  $region16: #{multiscale_tan_forward.5} parent=0 // pred_region
    _
  $region17: #{multiscale_tan_forward.5} parent=0 // pred_fallthru
    _
  // Predicated region
  $region18: #{multiscale_tan_forward.5} parent=0 // pred_check
    _
  $region19: #{multiscale_tan_forward.5} parent=0 // pred_check_branch
    %21 = sbr.rel (0) target = $region21
  $region20: #{multiscale_tan_forward.5} parent=0 // pred_region
    _
  $region21: #{multiscale_tan_forward.5} parent=0 // pred_fallthru
    _
  // Predicated region
  $region22: #{multiscale_tan_forward.5} parent=0 // pred_check
    _
  $region23: #{multiscale_tan_forward.5} parent=0 // pred_check_branch
    %23 = sbr.rel (0) target = $region25
  $region24: #{multiscale_tan_forward.5} parent=0 // pred_region
    _
  $region25: #{multiscale_tan_forward.5} parent=0 // pred_fallthru
    _
  // Predicated region
  $region26: #{multiscale_tan_forward.5} parent=0 // pred_check
    _
  $region27: #{multiscale_tan_forward.5} parent=0 // pred_check_branch
    %25 = sbr.rel (0) target = $region29
  $region28: #{multiscale_tan_forward.5} parent=0 // pred_region
    _
  $region29: #{multiscale_tan_forward.5} parent=0 // pred_fallthru
    _
  %v26 = vld [vmem:[%s1] sm:$0x3]
  %v27 = vld [vmem:[%s1 + $0x2] sm:$0x3]
  %v28 = vld [vmem:[%s1 + $0x4] sm:$0x3]
  %v29 = vld [vmem:[%s1 + $0x6] sm:$0x3]
  %v30 = vld [vmem:[%s1 + $0x8] sm:$0x3]
  %v31 = vld [vmem:[%s1 + $0xa] sm:$0x3]
  %v32 = vld [vmem:[%s1 + $0xc] sm:$0x3]
  %v33 = vld [vmem:[%s1 + $0xe] sm:$0x3]
  %vm34 = vcmask 1024
  %v35 = vsel %vm34, %v26, 0.0
  %v36 = vsel %vm34, %v27, 0.0
  %v37 = vadd.f32 %v35, %v36
  %v38 = vsel %vm34, %v28, 0.0
  %v39 = vadd.f32 %v37, %v38
  %v40 = vsel %vm34, %v29, 0.0
  %v41 = vadd.f32 %v39, %v40
  %v42 = vsel %vm34, %v30, 0.0
  %v43 = vadd.f32 %v41, %v42
  %v44 = vsel %vm34, %v31, 0.0
  %v45 = vadd.f32 %v43, %v44
  %v46 = vsel %vm34, %v32, 0.0
  %v47 = vadd.f32 %v45, %v46
  %v48 = vsel %vm34, %v33, 0.0
  %v49 = vadd.f32 %v47, %v48
  %v50 = vsub.f32 %v49, 1.0
  %v51 = vcvt.f32.s32.to.zero.pseudo %v50
  %v52 = vld [vmem:[%s0] sm:$0x3]
  %v53 = vld [vmem:[%s0 + $0x2] sm:$0x3]
  %v54 = vld [vmem:[%s0 + $0x4] sm:$0x3]
  %v55 = vld [vmem:[%s0 + $0x6] sm:$0x3]
  %v56 = vld [vmem:[%s0 + $0x8] sm:$0x3]
  %v57 = vld [vmem:[%s0 + $0xa] sm:$0x3]
  %v58 = vld [vmem:[%s0 + $0xc] sm:$0x3]
  %v59 = vld [vmem:[%s0 + $0xe] sm:$0x3]
  %v60 = vld [vmem:[%s2] sm:$0xff]
  %v61 = vld [vmem:[%s2 + $0x8] sm:$0xff]
  %v62 = vld [vmem:[%s4] sm:$0x1]
  %v64 = vperm.slane %v62, 0
  %74 = vst [vmem:[#allocation1] ss:$4 sm:$0xff] %v52
  %s75 = scalar_lea.vmem [#allocation1], 1
  %76 = vst [vmem:[%s75] ss:$4 sm:$0xff] %v53
  %s77 = scalar_lea.vmem [#allocation1], 2
  %78 = vst [vmem:[%s77] ss:$4 sm:$0xff] %v54
  %s79 = scalar_lea.vmem [#allocation1], 3
  %80 = vst [vmem:[%s79] ss:$4 sm:$0xff] %v55
  %s81 = scalar_lea.vmem [#allocation1], 32
  %82 = vst [vmem:[%s81] ss:$4 sm:$0xff] %v56
  %s83 = scalar_lea.vmem [#allocation1], 33
  %84 = vst [vmem:[%s83] ss:$4 sm:$0xff] %v57
  %s85 = scalar_lea.vmem [#allocation1], 34
  %86 = vst [vmem:[%s85] ss:$4 sm:$0xff] %v58
  %s87 = scalar_lea.vmem [#allocation1], 35
  %88 = vst [vmem:[%s87] ss:$4 sm:$0xff] %v59
  %v89 = vld.sshfl [vmem:[#allocation1] sm:$0xff pattern:$0x73625140]
  %v90 = vld.sshfl [vmem:[#allocation1 + $0x20] sm:$0xff pattern:$0x73625140]
  %vm91 = vcmask 130048
  %v92 = vsel %vm91, %v89, 0
  %v94 = vsel %vm91, %v90, 0
  %96 = vmatpush.msra.mxu0 0.0
  %97 = vmatpush.msra.mxu0 0.0
  %98 = vmatpush.msra.mxu0 0.0
  %99 = vmatpush.msra.mxu0 0.0
  %100 = vmatpush.msra.mxu0 0.0
  %101 = vmatpush.msra.mxu0 0.0
  %102 = vmatpush.msra.mxu0 0.0
  %103 = vmatpush.msra.mxu0 0.0
  %104 = vmatpush.msra.mxu0 0.0
  %105 = vmatpush.msra.mxu0 0.0
  %106 = vmatpush.msra.mxu0 0.0
  %107 = vmatpush.msra.mxu0 0.0
  %108 = vmatpush.msra.mxu0 0.0
  %109 = vmatpush.msra.mxu0 0.0
  %110 = vmatpush.msra.mxu0 %v61
  %111 = vmatpush.msra.mxu0 %v60
  %112 = vmatmul.f32.gmra.mxu0 %v92
  %v113 = vpop.f32.mrf.mxu0
  %v114 = vadd.f32 %v64, %v113
  %115 = vmatmul.f32.gmra.mxu0 %v94
  %v116 = vpop.f32.mrf.mxu0
  %v117 = vadd.f32 %v64, %v116
  %118 = vdwg.mxu0
  %v121 = vrot.slane %v114, 2
  %v122 = vrot.slane %v114, 4
  %v123 = vrot.slane %v114, 6
  %v124 = vrot.slane %v117, 2
  %v125 = vrot.slane %v117, 4
  %v126 = vrot.slane %v117, 6
  %v133 = vld [vmem:[%s3] sm:$0xff]
  %v134 = vld [vmem:[%s3 + $0x8] sm:$0xff]
  %v135 = vld [vmem:[%s3 + $0x10] sm:$0xff]
  %v136 = vld [vmem:[%s3 + $0x18] sm:$0xff]
  %vm137 = vcmask 261120
  %v139 = vsel %vm137, 0.0, 0
  %141 = vmatpush.msra.mxu0 0.0
  %142 = vmatpush.msra.mxu0 0.0
  %143 = vmatpush.msra.mxu0 0.0
  %144 = vmatpush.msra.mxu0 0.0
  %145 = vmatpush.msra.mxu0 0.0
  %146 = vmatpush.msra.mxu0 0.0
  %147 = vmatpush.msra.mxu0 0.0
  %148 = vmatpush.msra.mxu0 0.0
  %149 = vmatpush.msra.mxu0 0.0
  %150 = vmatpush.msra.mxu0 0.0
  %151 = vmatpush.msra.mxu0 0.0
  %152 = vmatpush.msra.mxu0 0.0
  %153 = vmatpush.msra.mxu0 %v136
  %154 = vmatpush.msra.mxu0 %v135
  %155 = vmatpush.msra.mxu0 %v134
  %156 = vmatpush.msra.mxu0 %v133
  %157 = vmatmul.f32.gmra.mxu0 %v139
  %v158 = vpop.f32.mrf.mxu0
  %v159 = vadd.f32 0.0, %v158
  %160 = vdwg.mxu0
  %v161 = vadd.f32 %v114, %v159
  %v162 = vxor.u32 %v161, 2147483648
  %v163 = vmul.f32 %v162, 1.442695
  %v164 = vpow.pop %v163
  %v165 = vadd.f32 %v164, 1.0
  %v166 = vrcp.pop %v165
  %v167 = vmul.f32 %v165, %v166
  %v168 = vsub.f32 1.0, %v167
  %v169 = vmul.f32 %v166, %v168
  %v170 = vadd.f32 %v166, %v169
  %vm171 = vweird.f32 %v165
  %vm172 = vweird.f32 %v166
  %vm173 = vmor %vm171, %vm172
  %v174 = vsel %vm173, %v166, %v170
  %v175 = vand.u32 2147483647, %v165
  %vm176 = vcmp.eq.f32.partialorder %v175, 8.507059e+37
  %v177 = vand.u32 %v165, 2147483648
  %v178 = vor.u32 1.1754944e-38, %v177
  %v179 = vsel %vm176, %v178, %v174
  %v180 = vmul.f32 1.0, %v179
  %v181 = vtanh.pop %v161
  %v182 = vmul.f32 %v180, 0.0
  %184 = vrot.lane.b32.xlu0 %v181, 64
  %v185 = vpop.permute.xlu0 %184
  %v187 = vmul.f32 %v180, %v185
  %189 = vrot.lane.b32.xlu0 %v187, 32
  %v190 = vpop.permute.xlu0 %189
  %v192 = vadd.f32 %v182, %v190
  %v193 = vtanh.pop %v192
  %195 = vrot.lane.b32.xlu0 %v193, 64
  %v196 = vpop.permute.xlu0 %195
  %v198 = vmul.f32 %v180, %v196
  %vm199 = vcmp.eq.s32.totalorder %v51, 0
  %v200 = vsel %vm199, 1, 0
  %201 = vset.pattern.permute.xlu0 0
  %202 = vperm.xlu0 %201, %v200
  %v203 = vpop.permute.xlu0 %202
  %vm204 = vcmp.eq.s32.totalorder %v203, 1
  %206 = vst [vmem:[#allocation1] ss:$4 sm:$0xff] %v198
  %v207 = vld.sshfl [vmem:[#allocation1] sm:$0xff pattern:$0x73625140]
  %208 = vrot.lane.b32.xlu0 %v207, 32
  %v209 = vpop.permute.xlu0 %208
  %v211 = vsel %vm204, %v209, 0.0
  %212 = vst [vmem:[#allocation1] ss:$4 sm:$0xff] %v198
  %v213 = vld.sshfl [vmem:[#allocation1] sm:$0xff pattern:$0x73625140]
  %214 = vrot.lane.b32.xlu0 %v213, 32
  %v215 = vpop.permute.xlu0 %214
  %v216 = vsel %vm137, %v215, 0
  %218 = vmatpush.msra.mxu0 0.0
  %219 = vmatpush.msra.mxu0 0.0
  %220 = vmatpush.msra.mxu0 0.0
  %221 = vmatpush.msra.mxu0 0.0
  %222 = vmatpush.msra.mxu0 0.0
  %223 = vmatpush.msra.mxu0 0.0
  %224 = vmatpush.msra.mxu0 0.0
  %225 = vmatpush.msra.mxu0 0.0
  %226 = vmatpush.msra.mxu0 0.0
  %227 = vmatpush.msra.mxu0 0.0
  %228 = vmatpush.msra.mxu0 0.0
  %229 = vmatpush.msra.mxu0 0.0
  %230 = vmatpush.msra.mxu0 %v136
  %231 = vmatpush.msra.mxu0 %v135
  %232 = vmatpush.msra.mxu0 %v134
  %233 = vmatpush.msra.mxu0 %v133
  %234 = vmatmul.f32.gmra.mxu0 %v216
  %v235 = vpop.f32.mrf.mxu0
  %v236 = vadd.f32 0.0, %v235
  %237 = vdwg.mxu0
  %v238 = vadd.f32 %v121, %v236
  %v239 = vxor.u32 %v238, 2147483648
  %v240 = vmul.f32 %v239, 1.442695
  %v241 = vpow.pop %v240
  %v242 = vadd.f32 %v241, 1.0
  %v243 = vrcp.pop %v242
  %v244 = vmul.f32 %v242, %v243
  %v245 = vsub.f32 1.0, %v244
  %v246 = vmul.f32 %v243, %v245
  %v247 = vadd.f32 %v243, %v246
  %vm248 = vweird.f32 %v242
  %vm249 = vweird.f32 %v243
  %vm250 = vmor %vm248, %vm249
  %v251 = vsel %vm250, %v243, %v247
  %v252 = vand.u32 2147483647, %v242
  %vm253 = vcmp.eq.f32.partialorder %v252, 8.507059e+37
  %v254 = vand.u32 %v242, 2147483648
  %v255 = vor.u32 1.1754944e-38, %v254
  %v256 = vsel %vm253, %v255, %v251
  %v257 = vmul.f32 1.0, %v256
  %v258 = vtanh.pop %v238
  %v259 = vmul.f32 %v257, %v192
  %261 = vrot.lane.b32.xlu0 %v258, 64
  %v262 = vpop.permute.xlu0 %261
  %v264 = vmul.f32 %v257, %v262
  %266 = vrot.lane.b32.xlu0 %v264, 32
  %v267 = vpop.permute.xlu0 %266
  %v269 = vadd.f32 %v259, %v267
  %v270 = vtanh.pop %v269
  %272 = vrot.lane.b32.xlu0 %v270, 64
  %v273 = vpop.permute.xlu0 %272
  %v275 = vmul.f32 %v257, %v273
  %vm276 = vcmp.eq.s32.totalorder %v51, 1
  %v277 = vsel %vm276, 1, 0
  %278 = vset.pattern.permute.xlu0 0
  %279 = vperm.xlu0 %278, %v277
  %v280 = vpop.permute.xlu0 %279
  %vm281 = vcmp.eq.s32.totalorder %v280, 1
  %283 = vst [vmem:[#allocation1] ss:$4 sm:$0xff] %v275
  %v284 = vld.sshfl [vmem:[#allocation1] sm:$0xff pattern:$0x73625140]
  %285 = vrot.lane.b32.xlu0 %v284, 32
  %v286 = vpop.permute.xlu0 %285
  %v288 = vsel %vm281, %v286, %v211
  %289 = vst [vmem:[#allocation1] ss:$4 sm:$0xff] %v275
  %v290 = vld.sshfl [vmem:[#allocation1] sm:$0xff pattern:$0x73625140]
  %291 = vrot.lane.b32.xlu0 %v290, 32
  %v292 = vpop.permute.xlu0 %291
  %v293 = vsel %vm137, %v292, 0
  %295 = vmatpush.msra.mxu0 0.0
  %296 = vmatpush.msra.mxu0 0.0
  %297 = vmatpush.msra.mxu0 0.0
  %298 = vmatpush.msra.mxu0 0.0
  %299 = vmatpush.msra.mxu0 0.0
  %300 = vmatpush.msra.mxu0 0.0
  %301 = vmatpush.msra.mxu0 0.0
  %302 = vmatpush.msra.mxu0 0.0
  %303 = vmatpush.msra.mxu0 0.0
  %304 = vmatpush.msra.mxu0 0.0
  %305 = vmatpush.msra.mxu0 0.0
  %306 = vmatpush.msra.mxu0 0.0
  %307 = vmatpush.msra.mxu0 %v136
  %308 = vmatpush.msra.mxu0 %v135
  %309 = vmatpush.msra.mxu0 %v134
  %310 = vmatpush.msra.mxu0 %v133
  %311 = vmatmul.f32.gmra.mxu0 %v293
  %v312 = vpop.f32.mrf.mxu0
  %v313 = vadd.f32 0.0, %v312
  %314 = vdwg.mxu0
  %v315 = vadd.f32 %v122, %v313
  %v316 = vxor.u32 %v315, 2147483648
  %v317 = vmul.f32 %v316, 1.442695
  %v318 = vpow.pop %v317
  %v319 = vadd.f32 %v318, 1.0
  %v320 = vrcp.pop %v319
  %v321 = vmul.f32 %v319, %v320
  %v322 = vsub.f32 1.0, %v321
  %v323 = vmul.f32 %v320, %v322
  %v324 = vadd.f32 %v320, %v323
  %vm325 = vweird.f32 %v319
  %vm326 = vweird.f32 %v320
  %vm327 = vmor %vm325, %vm326
  %v328 = vsel %vm327, %v320, %v324
  %v329 = vand.u32 2147483647, %v319
  %vm330 = vcmp.eq.f32.partialorder %v329, 8.507059e+37
  %v331 = vand.u32 %v319, 2147483648
  %v332 = vor.u32 1.1754944e-38, %v331
  %v333 = vsel %vm330, %v332, %v328
  %v334 = vmul.f32 1.0, %v333
  %v335 = vtanh.pop %v315
  %v336 = vmul.f32 %v334, %v269
  %338 = vrot.lane.b32.xlu0 %v335, 64
  %v339 = vpop.permute.xlu0 %338
  %v341 = vmul.f32 %v334, %v339
  %343 = vrot.lane.b32.xlu0 %v341, 32
  %v344 = vpop.permute.xlu0 %343
  %v346 = vadd.f32 %v336, %v344
  %v347 = vtanh.pop %v346
  %349 = vrot.lane.b32.xlu0 %v347, 64
  %v350 = vpop.permute.xlu0 %349
  %v352 = vmul.f32 %v334, %v350
  %vm353 = vcmp.eq.s32.totalorder %v51, 2
  %v354 = vsel %vm353, 1, 0
  %355 = vset.pattern.permute.xlu0 0
  %356 = vperm.xlu0 %355, %v354
  %v357 = vpop.permute.xlu0 %356
  %vm358 = vcmp.eq.s32.totalorder %v357, 1
  %360 = vst [vmem:[#allocation1] ss:$4 sm:$0xff] %v352
  %v361 = vld.sshfl [vmem:[#allocation1] sm:$0xff pattern:$0x73625140]
  %362 = vrot.lane.b32.xlu0 %v361, 32
  %v363 = vpop.permute.xlu0 %362
  %v365 = vsel %vm358, %v363, %v288
  %366 = vst [vmem:[#allocation1] ss:$4 sm:$0xff] %v352
  %v367 = vld.sshfl [vmem:[#allocation1] sm:$0xff pattern:$0x73625140]
  %368 = vrot.lane.b32.xlu0 %v367, 32
  %v369 = vpop.permute.xlu0 %368
  %v370 = vsel %vm137, %v369, 0
  %372 = vmatpush.msra.mxu0 0.0
  %373 = vmatpush.msra.mxu0 0.0
  %374 = vmatpush.msra.mxu0 0.0
  %375 = vmatpush.msra.mxu0 0.0
  %376 = vmatpush.msra.mxu0 0.0
  %377 = vmatpush.msra.mxu0 0.0
  %378 = vmatpush.msra.mxu0 0.0
  %379 = vmatpush.msra.mxu0 0.0
  %380 = vmatpush.msra.mxu0 0.0
  %381 = vmatpush.msra.mxu0 0.0
  %382 = vmatpush.msra.mxu0 0.0
  %383 = vmatpush.msra.mxu0 0.0
  %384 = vmatpush.msra.mxu0 %v136
  %385 = vmatpush.msra.mxu0 %v135
  %386 = vmatpush.msra.mxu0 %v134
  %387 = vmatpush.msra.mxu0 %v133
  %388 = vmatmul.f32.gmra.mxu0 %v370
  %v389 = vpop.f32.mrf.mxu0
  %v390 = vadd.f32 0.0, %v389
  %391 = vdwg.mxu0
  %v392 = vadd.f32 %v123, %v390
  %v393 = vxor.u32 %v392, 2147483648
  %v394 = vmul.f32 %v393, 1.442695
  %v395 = vpow.pop %v394
  %v396 = vadd.f32 %v395, 1.0
  %v397 = vrcp.pop %v396
  %v398 = vmul.f32 %v396, %v397
  %v399 = vsub.f32 1.0, %v398
  %v400 = vmul.f32 %v397, %v399
  %v401 = vadd.f32 %v397, %v400
  %vm402 = vweird.f32 %v396
  %vm403 = vweird.f32 %v397
  %vm404 = vmor %vm402, %vm403
  %v405 = vsel %vm404, %v397, %v401
  %v406 = vand.u32 2147483647, %v396
  %vm407 = vcmp.eq.f32.partialorder %v406, 8.507059e+37
  %v408 = vand.u32 %v396, 2147483648
  %v409 = vor.u32 1.1754944e-38, %v408
  %v410 = vsel %vm407, %v409, %v405
  %v411 = vmul.f32 1.0, %v410
  %v412 = vtanh.pop %v392
  %v413 = vmul.f32 %v411, %v346
  %415 = vrot.lane.b32.xlu0 %v412, 64
  %v416 = vpop.permute.xlu0 %415
  %v418 = vmul.f32 %v411, %v416
  %420 = vrot.lane.b32.xlu0 %v418, 32
  %v421 = vpop.permute.xlu0 %420
  %v423 = vadd.f32 %v413, %v421
  %v424 = vtanh.pop %v423
  %426 = vrot.lane.b32.xlu0 %v424, 64
  %v427 = vpop.permute.xlu0 %426
  %v429 = vmul.f32 %v411, %v427
  %vm430 = vcmp.eq.s32.totalorder %v51, 3
  %v431 = vsel %vm430, 1, 0
  %432 = vset.pattern.permute.xlu0 0
  %433 = vperm.xlu0 %432, %v431
  %v434 = vpop.permute.xlu0 %433
  %vm435 = vcmp.eq.s32.totalorder %v434, 1
  %437 = vst [vmem:[#allocation1] ss:$4 sm:$0xff] %v429
  %v438 = vld.sshfl [vmem:[#allocation1] sm:$0xff pattern:$0x73625140]
  %439 = vrot.lane.b32.xlu0 %v438, 32
  %v440 = vpop.permute.xlu0 %439
  %v442 = vsel %vm435, %v440, %v365
  %443 = vst [vmem:[#allocation1] ss:$4 sm:$0xff] %v429
  %v444 = vld.sshfl [vmem:[#allocation1] sm:$0xff pattern:$0x73625140]
  %445 = vrot.lane.b32.xlu0 %v444, 32
  %v446 = vpop.permute.xlu0 %445
  %v447 = vsel %vm137, %v446, 0
  %449 = vmatpush.msra.mxu0 0.0
  %450 = vmatpush.msra.mxu0 0.0
  %451 = vmatpush.msra.mxu0 0.0
  %452 = vmatpush.msra.mxu0 0.0
  %453 = vmatpush.msra.mxu0 0.0
  %454 = vmatpush.msra.mxu0 0.0
  %455 = vmatpush.msra.mxu0 0.0
  %456 = vmatpush.msra.mxu0 0.0
  %457 = vmatpush.msra.mxu0 0.0
  %458 = vmatpush.msra.mxu0 0.0
  %459 = vmatpush.msra.mxu0 0.0
  %460 = vmatpush.msra.mxu0 0.0
  %461 = vmatpush.msra.mxu0 %v136
  %462 = vmatpush.msra.mxu0 %v135
  %463 = vmatpush.msra.mxu0 %v134
  %464 = vmatpush.msra.mxu0 %v133
  %465 = vmatmul.f32.gmra.mxu0 %v447
  %v466 = vpop.f32.mrf.mxu0
  %v467 = vadd.f32 0.0, %v466
  %468 = vdwg.mxu0
  %v469 = vadd.f32 %v117, %v467
  %v470 = vxor.u32 %v469, 2147483648
  %v471 = vmul.f32 %v470, 1.442695
  %v472 = vpow.pop %v471
  %v473 = vadd.f32 %v472, 1.0
  %v474 = vrcp.pop %v473
  %v475 = vmul.f32 %v473, %v474
  %v476 = vsub.f32 1.0, %v475
  %v477 = vmul.f32 %v474, %v476
  %v478 = vadd.f32 %v474, %v477
  %vm479 = vweird.f32 %v473
  %vm480 = vweird.f32 %v474
  %vm481 = vmor %vm479, %vm480
  %v482 = vsel %vm481, %v474, %v478
  %v483 = vand.u32 2147483647, %v473
  %vm484 = vcmp.eq.f32.partialorder %v483, 8.507059e+37
  %v485 = vand.u32 %v473, 2147483648
  %v486 = vor.u32 1.1754944e-38, %v485
  %v487 = vsel %vm484, %v486, %v482
  %v488 = vmul.f32 1.0, %v487
  %v489 = vtanh.pop %v469
  %v490 = vmul.f32 %v488, %v423
  %492 = vrot.lane.b32.xlu0 %v489, 64
  %v493 = vpop.permute.xlu0 %492
  %v495 = vmul.f32 %v488, %v493
  %497 = vrot.lane.b32.xlu0 %v495, 32
  %v498 = vpop.permute.xlu0 %497
  %v500 = vadd.f32 %v490, %v498
  %v501 = vtanh.pop %v500
  %503 = vrot.lane.b32.xlu0 %v501, 64
  %v504 = vpop.permute.xlu0 %503
  %v506 = vmul.f32 %v488, %v504
  %vm507 = vcmp.eq.s32.totalorder %v51, 4
  %v508 = vsel %vm507, 1, 0
  %509 = vset.pattern.permute.xlu0 0
  %510 = vperm.xlu0 %509, %v508
  %v511 = vpop.permute.xlu0 %510
  %vm512 = vcmp.eq.s32.totalorder %v511, 1
  %514 = vst [vmem:[#allocation1] ss:$4 sm:$0xff] %v506
  %v515 = vld.sshfl [vmem:[#allocation1] sm:$0xff pattern:$0x73625140]
  %516 = vrot.lane.b32.xlu0 %v515, 32
  %v517 = vpop.permute.xlu0 %516
  %v519 = vsel %vm512, %v517, %v442
  %520 = vst [vmem:[#allocation1] ss:$4 sm:$0xff] %v506
  %v521 = vld.sshfl [vmem:[#allocation1] sm:$0xff pattern:$0x73625140]
  %522 = vrot.lane.b32.xlu0 %v521, 32
  %v523 = vpop.permute.xlu0 %522
  %v524 = vsel %vm137, %v523, 0
  %526 = vmatpush.msra.mxu0 0.0
  %527 = vmatpush.msra.mxu0 0.0
  %528 = vmatpush.msra.mxu0 0.0
  %529 = vmatpush.msra.mxu0 0.0
  %530 = vmatpush.msra.mxu0 0.0
  %531 = vmatpush.msra.mxu0 0.0
  %532 = vmatpush.msra.mxu0 0.0
  %533 = vmatpush.msra.mxu0 0.0
  %534 = vmatpush.msra.mxu0 0.0
  %535 = vmatpush.msra.mxu0 0.0
  %536 = vmatpush.msra.mxu0 0.0
  %537 = vmatpush.msra.mxu0 0.0
  %538 = vmatpush.msra.mxu0 %v136
  %539 = vmatpush.msra.mxu0 %v135
  %540 = vmatpush.msra.mxu0 %v134
  %541 = vmatpush.msra.mxu0 %v133
  %542 = vmatmul.f32.gmra.mxu0 %v524
  %v543 = vpop.f32.mrf.mxu0
  %v544 = vadd.f32 0.0, %v543
  %545 = vdwg.mxu0
  %v546 = vadd.f32 %v124, %v544
  %v547 = vxor.u32 %v546, 2147483648
  %v548 = vmul.f32 %v547, 1.442695
  %v549 = vpow.pop %v548
  %v550 = vadd.f32 %v549, 1.0
  %v551 = vrcp.pop %v550
  %v552 = vmul.f32 %v550, %v551
  %v553 = vsub.f32 1.0, %v552
  %v554 = vmul.f32 %v551, %v553
  %v555 = vadd.f32 %v551, %v554
  %vm556 = vweird.f32 %v550
  %vm557 = vweird.f32 %v551
  %vm558 = vmor %vm556, %vm557
  %v559 = vsel %vm558, %v551, %v555
  %v560 = vand.u32 2147483647, %v550
  %vm561 = vcmp.eq.f32.partialorder %v560, 8.507059e+37
  %v562 = vand.u32 %v550, 2147483648
  %v563 = vor.u32 1.1754944e-38, %v562
  %v564 = vsel %vm561, %v563, %v559
  %v565 = vmul.f32 1.0, %v564
  %v566 = vtanh.pop %v546
  %v567 = vmul.f32 %v565, %v500
  %569 = vrot.lane.b32.xlu0 %v566, 64
  %v570 = vpop.permute.xlu0 %569
  %v572 = vmul.f32 %v565, %v570
  %574 = vrot.lane.b32.xlu0 %v572, 32
  %v575 = vpop.permute.xlu0 %574
  %v577 = vadd.f32 %v567, %v575
  %v578 = vtanh.pop %v577
  %580 = vrot.lane.b32.xlu0 %v578, 64
  %v581 = vpop.permute.xlu0 %580
  %v583 = vmul.f32 %v565, %v581
  %vm584 = vcmp.eq.s32.totalorder %v51, 5
  %v585 = vsel %vm584, 1, 0
  %586 = vset.pattern.permute.xlu0 0
  %587 = vperm.xlu0 %586, %v585
  %v588 = vpop.permute.xlu0 %587
  %vm589 = vcmp.eq.s32.totalorder %v588, 1
  %591 = vst [vmem:[#allocation1] ss:$4 sm:$0xff] %v583
  %v592 = vld.sshfl [vmem:[#allocation1] sm:$0xff pattern:$0x73625140]
  %593 = vrot.lane.b32.xlu0 %v592, 32
  %v594 = vpop.permute.xlu0 %593
  %v596 = vsel %vm589, %v594, %v519
  %597 = vst [vmem:[#allocation1] ss:$4 sm:$0xff] %v583
  %v598 = vld.sshfl [vmem:[#allocation1] sm:$0xff pattern:$0x73625140]
  %599 = vrot.lane.b32.xlu0 %v598, 32
  %v600 = vpop.permute.xlu0 %599
  %v601 = vsel %vm137, %v600, 0
  %603 = vmatpush.msra.mxu0 0.0
  %604 = vmatpush.msra.mxu0 0.0
  %605 = vmatpush.msra.mxu0 0.0
  %606 = vmatpush.msra.mxu0 0.0
  %607 = vmatpush.msra.mxu0 0.0
  %608 = vmatpush.msra.mxu0 0.0
  %609 = vmatpush.msra.mxu0 0.0
  %610 = vmatpush.msra.mxu0 0.0
  %611 = vmatpush.msra.mxu0 0.0
  %612 = vmatpush.msra.mxu0 0.0
  %613 = vmatpush.msra.mxu0 0.0
  %614 = vmatpush.msra.mxu0 0.0
  %615 = vmatpush.msra.mxu0 %v136
  %616 = vmatpush.msra.mxu0 %v135
  %617 = vmatpush.msra.mxu0 %v134
  %618 = vmatpush.msra.mxu0 %v133
  %619 = vmatmul.f32.gmra.mxu0 %v601
  %v620 = vpop.f32.mrf.mxu0
  %v621 = vadd.f32 0.0, %v620
  %622 = vdwg.mxu0
  %v623 = vadd.f32 %v125, %v621
  %v624 = vxor.u32 %v623, 2147483648
  %v625 = vmul.f32 %v624, 1.442695
  %v626 = vpow.pop %v625
  %v627 = vadd.f32 %v626, 1.0
  %v628 = vrcp.pop %v627
  %v629 = vmul.f32 %v627, %v628
  %v630 = vsub.f32 1.0, %v629
  %v631 = vmul.f32 %v628, %v630
  %v632 = vadd.f32 %v628, %v631
  %vm633 = vweird.f32 %v627
  %vm634 = vweird.f32 %v628
  %vm635 = vmor %vm633, %vm634
  %v636 = vsel %vm635, %v628, %v632
  %v637 = vand.u32 2147483647, %v627
  %vm638 = vcmp.eq.f32.partialorder %v637, 8.507059e+37
  %v639 = vand.u32 %v627, 2147483648
  %v640 = vor.u32 1.1754944e-38, %v639
  %v641 = vsel %vm638, %v640, %v636
  %v642 = vmul.f32 1.0, %v641
  %v643 = vtanh.pop %v623
  %v644 = vmul.f32 %v642, %v577
  %646 = vrot.lane.b32.xlu0 %v643, 64
  %v647 = vpop.permute.xlu0 %646
  %v649 = vmul.f32 %v642, %v647
  %651 = vrot.lane.b32.xlu0 %v649, 32
  %v652 = vpop.permute.xlu0 %651
  %v654 = vadd.f32 %v644, %v652
  %v655 = vtanh.pop %v654
  %657 = vrot.lane.b32.xlu0 %v655, 64
  %v658 = vpop.permute.xlu0 %657
  %v660 = vmul.f32 %v642, %v658
  %vm661 = vcmp.eq.s32.totalorder %v51, 6
  %v662 = vsel %vm661, 1, 0
  %663 = vset.pattern.permute.xlu0 0
  %664 = vperm.xlu0 %663, %v662
  %v665 = vpop.permute.xlu0 %664
  %vm666 = vcmp.eq.s32.totalorder %v665, 1
  %668 = vst [vmem:[#allocation1] ss:$4 sm:$0xff] %v660
  %v669 = vld.sshfl [vmem:[#allocation1] sm:$0xff pattern:$0x73625140]
  %670 = vrot.lane.b32.xlu0 %v669, 32
  %v671 = vpop.permute.xlu0 %670
  %v673 = vsel %vm666, %v671, %v596
  %674 = vst [vmem:[#allocation1] ss:$4 sm:$0xff] %v660
  %v675 = vld.sshfl [vmem:[#allocation1] sm:$0xff pattern:$0x73625140]
  %676 = vrot.lane.b32.xlu0 %v675, 32
  %v677 = vpop.permute.xlu0 %676
  %v678 = vsel %vm137, %v677, 0
  %680 = vmatpush.msra.mxu0 0.0
  %681 = vmatpush.msra.mxu0 0.0
  %682 = vmatpush.msra.mxu0 0.0
  %683 = vmatpush.msra.mxu0 0.0
  %684 = vmatpush.msra.mxu0 0.0
  %685 = vmatpush.msra.mxu0 0.0
  %686 = vmatpush.msra.mxu0 0.0
  %687 = vmatpush.msra.mxu0 0.0
  %688 = vmatpush.msra.mxu0 0.0
  %689 = vmatpush.msra.mxu0 0.0
  %690 = vmatpush.msra.mxu0 0.0
  %691 = vmatpush.msra.mxu0 0.0
  %692 = vmatpush.msra.mxu0 %v136
  %693 = vmatpush.msra.mxu0 %v135
  %694 = vmatpush.msra.mxu0 %v134
  %695 = vmatpush.msra.mxu0 %v133
  %696 = vmatmul.f32.gmra.mxu0 %v678
  %v697 = vpop.f32.mrf.mxu0
  %v698 = vadd.f32 0.0, %v697
  %699 = vdwg.mxu0
  %v700 = vadd.f32 %v126, %v698
  %v701 = vxor.u32 %v700, 2147483648
  %v702 = vmul.f32 %v701, 1.442695
  %v703 = vpow.pop %v702
  %v704 = vadd.f32 %v703, 1.0
  %v705 = vrcp.pop %v704
  %v706 = vmul.f32 %v704, %v705
  %v707 = vsub.f32 1.0, %v706
  %v708 = vmul.f32 %v705, %v707
  %v709 = vadd.f32 %v705, %v708
  %vm710 = vweird.f32 %v704
  %vm711 = vweird.f32 %v705
  %vm712 = vmor %vm710, %vm711
  %v713 = vsel %vm712, %v705, %v709
  %v714 = vand.u32 2147483647, %v704
  %vm715 = vcmp.eq.f32.partialorder %v714, 8.507059e+37
  %v716 = vand.u32 %v704, 2147483648
  %v717 = vor.u32 1.1754944e-38, %v716
  %v718 = vsel %vm715, %v717, %v713
  %v719 = vmul.f32 1.0, %v718
  %v720 = vtanh.pop %v700
  %v721 = vmul.f32 %v719, %v654
  %723 = vrot.lane.b32.xlu0 %v720, 64
  %v724 = vpop.permute.xlu0 %723
  %v726 = vmul.f32 %v719, %v724
  %728 = vrot.lane.b32.xlu0 %v726, 32
  %v729 = vpop.permute.xlu0 %728
  %v731 = vadd.f32 %v721, %v729
  %v732 = vtanh.pop %v731
  %734 = vrot.lane.b32.xlu0 %v732, 64
  %v735 = vpop.permute.xlu0 %734
  %v737 = vmul.f32 %v719, %v735
  %vm738 = vcmp.eq.s32.totalorder %v51, 7
  %v739 = vsel %vm738, 1, 0
  %740 = vset.pattern.permute.xlu0 0
  %741 = vperm.xlu0 %740, %v739
  %v742 = vpop.permute.xlu0 %741
  %vm743 = vcmp.eq.s32.totalorder %v742, 1
  %745 = vst [vmem:[#allocation1] ss:$4 sm:$0xff] %v737
  %v746 = vld.sshfl [vmem:[#allocation1] sm:$0xff pattern:$0x73625140]
  %747 = vrot.lane.b32.xlu0 %v746, 32
  %v748 = vpop.permute.xlu0 %747
  %v750 = vsel %vm743, %v748, %v673
  %v751 = vld [vmem:[%s5] sm:$0xff]
  %v752 = vld [vmem:[%s5 + $0x8] sm:$0xff]
  %v753 = vld [vmem:[%s5 + $0x10] sm:$0xff]
  %v754 = vld [vmem:[%s5 + $0x18] sm:$0xff]
  %v755 = vld [vmem:[%s6] sm:$0x1]
  %v757 = vperm.slane %v755, 0
  %v760 = vsel %vm137, %v750, 0
  %762 = vmatpush.msra.mxu0 0.0
  %763 = vmatpush.msra.mxu0 0.0
  %764 = vmatpush.msra.mxu0 0.0
  %765 = vmatpush.msra.mxu0 0.0
  %766 = vmatpush.msra.mxu0 0.0
  %767 = vmatpush.msra.mxu0 0.0
  %768 = vmatpush.msra.mxu0 0.0
  %769 = vmatpush.msra.mxu0 0.0
  %770 = vmatpush.msra.mxu0 0.0
  %771 = vmatpush.msra.mxu0 0.0
  %772 = vmatpush.msra.mxu0 0.0
  %773 = vmatpush.msra.mxu0 0.0
  %774 = vmatpush.msra.mxu0 %v754
  %775 = vmatpush.msra.mxu0 %v753
  %776 = vmatpush.msra.mxu0 %v752
  %777 = vmatpush.msra.mxu0 %v751
  %778 = vmatmul.f32.gmra.mxu0 %v760
  %v779 = vpop.f32.mrf.mxu0
  %v780 = vadd.f32 %v757, %v779
  %781 = vdwg.mxu0
  %v783 = vrot.slane %v780, 1
  %vm785 = vcmask 253952
  %786 = vst.msk [vmem:[%s7] sm:$0x1] %vm785, %v780
  %787 = vst.msk [vmem:[%s7 + $0x1] sm:$0x1] %vm785, %v783
  // Predicated region
  $region30: #{multiscale_tan_forward.5} parent=0 // pred_check
    _
  $region31: #{multiscale_tan_forward.5} parent=0 // pred_check_branch
    %789 = sbr.rel (0) target = $region33
  $region32: #{multiscale_tan_forward.5} parent=0 // pred_region
    _
  $region33: #{multiscale_tan_forward.5} parent=0 // pred_fallthru
    _
  // Predicated region
  $region34: #{multiscale_tan_forward.5} parent=0 // pred_check
    _
  $region35: #{multiscale_tan_forward.5} parent=0 // pred_check_branch
    %791 = sbr.rel (0) target = $region37
  $region36: #{multiscale_tan_forward.5} parent=0 // pred_region
    _
  $region37: #{multiscale_tan_forward.5} parent=0 // pred_fallthru
    _

// kernel: multiscale_tan_forward.6
$region0: #{multiscale_tan_forward.6}
  #allocation0 [shape = 'u32[]', space=smem, size = 0x4, offset = 0x4, fixed_abs, tag = 'smem constant byte address 0x4 - core index']
  #allocation1 [shape = 'u32[72,128]{1,0:T(1,128)}', space=vmem, size = 0x9000, scoped, tag = 'internal scratch']
  #allocation2 [shape = 'f32[18,18,32]{2,1,0:T(8,128)}', space=vmem, size = 0x36000, scoped, tag = 'scratch operand']
  #allocation3 [shape = 'f32[1,1]{1,0:T(1,128)S(1)}', space=vmem, size = 0x200, scoped, tag = 'scoped memory for multiscale_tan_forward.6']
  %s0 = inlined_call_operand.vmem [shape: f32[2,16,32], index: 0, kind: input, shape index: {}]
  %s1 = inlined_call_operand.vmem [shape: f32[2,16,16,1], index: 1, kind: input, shape index: {}]
  %s2 = inlined_call_operand.vmem [shape: f32[2,1,32], index: 2, kind: input, shape index: {}]
  %s3 = inlined_call_operand.vmem [shape: f32[32,32], index: 3, kind: input, shape index: {}]
  %s4 = inlined_call_operand.vmem [shape: f32[1,32], index: 4, kind: input, shape index: {}]
  %s5 = inlined_call_operand.vmem [shape: f32[2,288,32], index: 5, kind: input, shape index: {}]
  %s6 = inlined_call_operand.vmem [shape: f32[2,1,32], index: 6, kind: input, shape index: {}]
  %s7 = inlined_call_operand.vmem [shape: f32[1,32], index: 7, kind: input, shape index: {}]
  %s8 = inlined_call_operand.<no memory space> [shape: f32[1,1], index: 8, kind: input, shape index: {}]
  %s9 = inlined_call_operand.vmem [shape: f32[2,16,16,1], index: 9, kind: output, shape index: {}]
  %s10 = sld [smem:[#allocation0]]
  $region69: #{multiscale_tan_forward.6} parent=0
    _
  %s12 = ssub.s32 1, %s10
  %s13 = scalar_select 0, %s12, %s10
  %v14 = vstv %s8
  %15 = vst [vmem:[#allocation3] sm:$0x1] %v14
  loop: start=0, step=1, limit=4
  $region2: #{multiscale_tan_forward.6} parent=0 // loop_pre_header
    _
  $region3: #{multiscale_tan_forward.6} parent=0 // loop_header
    %s17 = sphi 0, %s21
    %p18 = scmp.ge.s32.totalorder %s17, 4
    %s27 = sphi 0, %s29
    %s30 = sphi 0, %s27
    %s31 = sphi 0, %s30
    %s47 = sphi 0, %s31
    %s53 = sphi 0, %s55
    %s56 = sphi 0, %s53
    %s57 = sphi 0, %s56
    %s73 = sphi 0, %s57
    %s79 = sphi 0, %s81
    %s82 = sphi 0, %s79
    %s83 = sphi 0, %s82
    %s99 = sphi 0, %s83
    %s103 = sphi 0, %s103
    %s105 = sphi 0, %s103
    %s106 = sphi 0, %s105
    %s120 = sphi 0, %s106
    %s124 = sphi 0, %s124
    %s126 = sphi 0, %s124
    %s127 = sphi 0, %s126
    %s141 = sphi 0, %s127
    %s145 = sphi 0, %s145
    %s147 = sphi 0, %s145
    %s148 = sphi 0, %s147
    %s162 = sphi 0, %s148
    %s166 = sphi 0, %s166
    %s168 = sphi 0, %s166
    %s169 = sphi 0, %s168
    %s183 = sphi 0, %s169
    %s187 = sphi 0, %s187
    %s189 = sphi 0, %s187
    %s190 = sphi 0, %s189
    %s204 = sphi 0, %s190
    %s208 = sphi 0, %s208
    %s210 = sphi 0, %s208
    %s211 = sphi 0, %s210
    %s225 = sphi 0, %s211
    %s231 = sphi 0, %s233
    %s234 = sphi 0, %s231
    %s235 = sphi 0, %s234
    %s251 = sphi 0, %s235
  $region4: #{multiscale_tan_forward.6} parent=0 // loop_header_branch
    %20 = sbr.rel (%p18) target = $region8
  $region5: #{multiscale_tan_forward.6} parent=0 // loop_body
    %s22 = ssub.s32 %s17, 1
    %s23 = ssub.s32 %s17, 2
    %s24 = sadd.s32 %s17, 1
    %s25 = ssub.s32 %s17, %s24
    %p26 = scmp.eq.s32.totalorder %s25, 0
    %s28 = sadd.s32 %s27, 1
    %s29 = scalar_select %p26, %s27, %s28
    %p32 = pneg %p26
    %p33 = scmp.eq.s32.totalorder %s17, 1
    %p34 = por %p32, %p33
    %p35 = scmp.ne.s32.totalorder %s27, %s30
    %p36 = scmp.eq.s32.totalorder %s17, 0
    %p37 = por %p35, %p36
    %p38 = scmp.ne.s32.totalorder %s27, %s30
    %p39 = scmp.eq.s32.totalorder %s22, 1
    %p40 = por %p38, %p39
    %p41 = scmp.ne.s32.totalorder %s30, %s31
    %p42 = scmp.eq.s32.totalorder %s22, 0
    %p43 = por %p41, %p42
    %p44 = scmp.ne.s32.totalorder %s30, %s31
    %p45 = scmp.eq.s32.totalorder %s23, 1
    %p46 = por %p44, %p45
    %p48 = scmp.ne.s32.totalorder %s31, %s47
    %p49 = scmp.eq.s32.totalorder %s23, 0
    %p50 = por %p48, %p49
    %s51 = ssub.s32 %s17, %s24
    %p52 = scmp.eq.s32.totalorder %s51, 0
    %s54 = sadd.s32 %s53, 1
    %s55 = scalar_select %p52, %s53, %s54
    %p58 = pneg %p52
    %p59 = scmp.eq.s32.totalorder %s17, 1
    %p60 = por %p58, %p59
    %p61 = scmp.ne.s32.totalorder %s53, %s56
    %p62 = scmp.eq.s32.totalorder %s17, 0
    %p63 = por %p61, %p62
    %p64 = scmp.ne.s32.totalorder %s53, %s56
    %p65 = scmp.eq.s32.totalorder %s22, 1
    %p66 = por %p64, %p65
    %p67 = scmp.ne.s32.totalorder %s56, %s57
    %p68 = scmp.eq.s32.totalorder %s22, 0
    %p69 = por %p67, %p68
    %p70 = scmp.ne.s32.totalorder %s56, %s57
    %p71 = scmp.eq.s32.totalorder %s23, 1
    %p72 = por %p70, %p71
    %p74 = scmp.ne.s32.totalorder %s57, %s73
    %p75 = scmp.eq.s32.totalorder %s23, 0
    %p76 = por %p74, %p75
    %s77 = ssub.s32 %s17, %s24
    %p78 = scmp.eq.s32.totalorder %s77, 0
    %s80 = sadd.s32 %s79, 1
    %s81 = scalar_select %p78, %s79, %s80
    %p84 = pneg %p78
    %p85 = scmp.eq.s32.totalorder %s17, 1
    %p86 = por %p84, %p85
    %p87 = scmp.ne.s32.totalorder %s79, %s82
    %p88 = scmp.eq.s32.totalorder %s17, 0
    %p89 = por %p87, %p88
    %p90 = scmp.ne.s32.totalorder %s79, %s82
    %p91 = scmp.eq.s32.totalorder %s22, 1
    %p92 = por %p90, %p91
    %p93 = scmp.ne.s32.totalorder %s82, %s83
    %p94 = scmp.eq.s32.totalorder %s22, 0
    %p95 = por %p93, %p94
    %p96 = scmp.ne.s32.totalorder %s82, %s83
    %p97 = scmp.eq.s32.totalorder %s23, 1
    %p98 = por %p96, %p97
    %p100 = scmp.ne.s32.totalorder %s83, %s99
    %p101 = scmp.eq.s32.totalorder %s23, 0
    %p102 = por %p100, %p101
    %s104 = sadd.s32 %s103, 1
    %p107 = scmp.eq.s32.totalorder %s17, 1
    %p108 = scmp.ne.s32.totalorder %s103, %s105
    %p109 = scmp.eq.s32.totalorder %s17, 0
    %p110 = por %p108, %p109
    %p111 = scmp.ne.s32.totalorder %s103, %s105
    %p112 = scmp.eq.s32.totalorder %s22, 1
    %p113 = por %p111, %p112
    %p114 = scmp.ne.s32.totalorder %s105, %s106
    %p115 = scmp.eq.s32.totalorder %s22, 0
    %p116 = por %p114, %p115
    %p117 = scmp.ne.s32.totalorder %s105, %s106
    %p118 = scmp.eq.s32.totalorder %s23, 1
    %p119 = por %p117, %p118
    %p121 = scmp.ne.s32.totalorder %s106, %s120
    %p122 = scmp.eq.s32.totalorder %s23, 0
    %p123 = por %p121, %p122
    %s125 = sadd.s32 %s124, 1
    %p128 = scmp.eq.s32.totalorder %s17, 1
    %p129 = scmp.ne.s32.totalorder %s124, %s126
    %p130 = scmp.eq.s32.totalorder %s17, 0
    %p131 = por %p129, %p130
    %p132 = scmp.ne.s32.totalorder %s124, %s126
    %p133 = scmp.eq.s32.totalorder %s22, 1
    %p134 = por %p132, %p133
    %p135 = scmp.ne.s32.totalorder %s126, %s127
    %p136 = scmp.eq.s32.totalorder %s22, 0
    %p137 = por %p135, %p136
    %p138 = scmp.ne.s32.totalorder %s126, %s127
    %p139 = scmp.eq.s32.totalorder %s23, 1
    %p140 = por %p138, %p139
    %p142 = scmp.ne.s32.totalorder %s127, %s141
    %p143 = scmp.eq.s32.totalorder %s23, 0
    %p144 = por %p142, %p143
    %s146 = sadd.s32 %s145, 1
    %p149 = scmp.eq.s32.totalorder %s17, 1
    %p150 = scmp.ne.s32.totalorder %s145, %s147
    %p151 = scmp.eq.s32.totalorder %s17, 0
    %p152 = por %p150, %p151
    %p153 = scmp.ne.s32.totalorder %s145, %s147
    %p154 = scmp.eq.s32.totalorder %s22, 1
    %p155 = por %p153, %p154
    %p156 = scmp.ne.s32.totalorder %s147, %s148
    %p157 = scmp.eq.s32.totalorder %s22, 0
    %p158 = por %p156, %p157
    %p159 = scmp.ne.s32.totalorder %s147, %s148
    %p160 = scmp.eq.s32.totalorder %s23, 1
    %p161 = por %p159, %p160
    %p163 = scmp.ne.s32.totalorder %s148, %s162
    %p164 = scmp.eq.s32.totalorder %s23, 0
    %p165 = por %p163, %p164
    %s167 = sadd.s32 %s166, 1
    %p170 = scmp.eq.s32.totalorder %s17, 1
    %p171 = scmp.ne.s32.totalorder %s166, %s168
    %p172 = scmp.eq.s32.totalorder %s17, 0
    %p173 = por %p171, %p172
    %p174 = scmp.ne.s32.totalorder %s166, %s168
    %p175 = scmp.eq.s32.totalorder %s22, 1
    %p176 = por %p174, %p175
    %p177 = scmp.ne.s32.totalorder %s168, %s169
    %p178 = scmp.eq.s32.totalorder %s22, 0
    %p179 = por %p177, %p178
    %p180 = scmp.ne.s32.totalorder %s168, %s169
    %p181 = scmp.eq.s32.totalorder %s23, 1
    %p182 = por %p180, %p181
    %p184 = scmp.ne.s32.totalorder %s169, %s183
    %p185 = scmp.eq.s32.totalorder %s23, 0
    %p186 = por %p184, %p185
    %s188 = sadd.s32 %s187, 1
    %p191 = scmp.eq.s32.totalorder %s17, 1
    %p192 = scmp.ne.s32.totalorder %s187, %s189
    %p193 = scmp.eq.s32.totalorder %s17, 0
    %p194 = por %p192, %p193
    %p195 = scmp.ne.s32.totalorder %s187, %s189
    %p196 = scmp.eq.s32.totalorder %s22, 1
    %p197 = por %p195, %p196
    %p198 = scmp.ne.s32.totalorder %s189, %s190
    %p199 = scmp.eq.s32.totalorder %s22, 0
    %p200 = por %p198, %p199
    %p201 = scmp.ne.s32.totalorder %s189, %s190
    %p202 = scmp.eq.s32.totalorder %s23, 1
    %p203 = por %p201, %p202
    %p205 = scmp.ne.s32.totalorder %s190, %s204
    %p206 = scmp.eq.s32.totalorder %s23, 0
    %p207 = por %p205, %p206
    %s209 = sadd.s32 %s208, 1
    %p212 = scmp.eq.s32.totalorder %s17, 1
    %p213 = scmp.ne.s32.totalorder %s208, %s210
    %p214 = scmp.eq.s32.totalorder %s17, 0
    %p215 = por %p213, %p214
    %p216 = scmp.ne.s32.totalorder %s208, %s210
    %p217 = scmp.eq.s32.totalorder %s22, 1
    %p218 = por %p216, %p217
    %p219 = scmp.ne.s32.totalorder %s210, %s211
    %p220 = scmp.eq.s32.totalorder %s22, 0
    %p221 = por %p219, %p220
    %p222 = scmp.ne.s32.totalorder %s210, %s211
    %p223 = scmp.eq.s32.totalorder %s23, 1
    %p224 = por %p222, %p223
    %p226 = scmp.ne.s32.totalorder %s211, %s225
    %p227 = scmp.eq.s32.totalorder %s23, 0
    %p228 = por %p226, %p227
    %s229 = ssub.s32 %s17, %s24
    %p230 = scmp.eq.s32.totalorder %s229, 0
    %s232 = sadd.s32 %s231, 1
    %s233 = scalar_select %p230, %s231, %s232
    %p236 = pneg %p230
    %p237 = scmp.eq.s32.totalorder %s17, 1
    %p238 = por %p236, %p237
    %p239 = scmp.ne.s32.totalorder %s231, %s234
    %p240 = scmp.eq.s32.totalorder %s17, 0
    %p241 = por %p239, %p240
    %p242 = scmp.ne.s32.totalorder %s231, %s234
    %p243 = scmp.eq.s32.totalorder %s22, 1
    %p244 = por %p242, %p243
    %p245 = scmp.ne.s32.totalorder %s234, %s235
    %p246 = scmp.eq.s32.totalorder %s22, 0
    %p247 = por %p245, %p246
    %p248 = scmp.ne.s32.totalorder %s234, %s235
    %p249 = scmp.eq.s32.totalorder %s23, 1
    %p250 = por %p248, %p249
    %p252 = scmp.ne.s32.totalorder %s235, %s251
    %p253 = scmp.eq.s32.totalorder %s23, 0
    %p254 = por %p252, %p253
    %p255 = scmp.le.s32.totalorder 1, %s17
    %p256 = scmp.lt.s32.totalorder %s17, 3
    %p257 = pnand %p255, %p256
    %p258 = pneg %p257
    // Predicated region
    $region9: #{multiscale_tan_forward.6} parent=5 // pred_check
      _
    $region10: #{multiscale_tan_forward.6} parent=5 // pred_check_branch
      %260 = sbr.rel (%p257) target = $region12
    $region11: #{multiscale_tan_forward.6} parent=5 // pred_region
      %s261 = ssub.s32 %s17, 1
      // Predicated region
      $region13: #{multiscale_tan_forward.6} parent=11 // pred_check
        %p262 = pneg %p116
      $region14: #{multiscale_tan_forward.6} parent=11 // pred_check_branch
        %264 = sbr.rel (%p262) target = $region16
      $region15: #{multiscale_tan_forward.6} parent=11 // pred_region
        _
      $region16: #{multiscale_tan_forward.6} parent=11 // pred_fallthru
        _
      // Predicated region
      $region17: #{multiscale_tan_forward.6} parent=11 // pred_check
        %p265 = pneg %p137
      $region18: #{multiscale_tan_forward.6} parent=11 // pred_check_branch
        %267 = sbr.rel (%p265) target = $region20
      $region19: #{multiscale_tan_forward.6} parent=11 // pred_region
        _
      $region20: #{multiscale_tan_forward.6} parent=11 // pred_fallthru
        _
      // Predicated region
      $region21: #{multiscale_tan_forward.6} parent=11 // pred_check
        %p268 = pneg %p158
      $region22: #{multiscale_tan_forward.6} parent=11 // pred_check_branch
        %270 = sbr.rel (%p268) target = $region24
      $region23: #{multiscale_tan_forward.6} parent=11 // pred_region
        _
      $region24: #{multiscale_tan_forward.6} parent=11 // pred_fallthru
        _
      // Predicated region
      $region25: #{multiscale_tan_forward.6} parent=11 // pred_check
        %p271 = pneg %p179
      $region26: #{multiscale_tan_forward.6} parent=11 // pred_check_branch
        %273 = sbr.rel (%p271) target = $region28
      $region27: #{multiscale_tan_forward.6} parent=11 // pred_region
        _
      $region28: #{multiscale_tan_forward.6} parent=11 // pred_fallthru
        _
      // Predicated region
      $region29: #{multiscale_tan_forward.6} parent=11 // pred_check
        %p274 = pneg %p200
      $region30: #{multiscale_tan_forward.6} parent=11 // pred_check_branch
        %276 = sbr.rel (%p274) target = $region32
      $region31: #{multiscale_tan_forward.6} parent=11 // pred_region
        _
      $region32: #{multiscale_tan_forward.6} parent=11 // pred_fallthru
        _
      // Predicated region
      $region33: #{multiscale_tan_forward.6} parent=11 // pred_check
        %p277 = pneg %p221
      $region34: #{multiscale_tan_forward.6} parent=11 // pred_check_branch
        %279 = sbr.rel (%p277) target = $region36
      $region35: #{multiscale_tan_forward.6} parent=11 // pred_region
        _
      $region36: #{multiscale_tan_forward.6} parent=11 // pred_fallthru
        _
    $region12: #{multiscale_tan_forward.6} parent=5 // pred_fallthru
      _
    %p280 = scmp.lt.s32.totalorder %s17, 2
    // Predicated region
    $region37: #{multiscale_tan_forward.6} parent=5 // pred_check
      %p281 = pneg %p280
    $region38: #{multiscale_tan_forward.6} parent=5 // pred_check_branch
      %283 = sbr.rel (%p281) target = $region40
    $region39: #{multiscale_tan_forward.6} parent=5 // pred_region
      // Predicated region
      $region41: #{multiscale_tan_forward.6} parent=39 // pred_check
        %p284 = pneg %p37
      $region42: #{multiscale_tan_forward.6} parent=39 // pred_check_branch
        %286 = sbr.rel (%p284) target = $region44
      $region43: #{multiscale_tan_forward.6} parent=39 // pred_region
        %p287 = scmp.lt.s32.totalorder %s17, 1
        %s288 = scalar_select %p287, %s17, 1
        %s289 = smul.addr %s288, 2
        %s290 = smul.addr %s289, 8
        %s291 = scalar_lea.vmem %s0, %s290
      $region44: #{multiscale_tan_forward.6} parent=39 // pred_fallthru
        _
      // Predicated region
      $region45: #{multiscale_tan_forward.6} parent=39 // pred_check
        %p292 = pneg %p63
      $region46: #{multiscale_tan_forward.6} parent=39 // pred_check_branch
        %294 = sbr.rel (%p292) target = $region48
      $region47: #{multiscale_tan_forward.6} parent=39 // pred_region
        %p295 = scmp.lt.s32.totalorder %s17, 1
        %s296 = scalar_select %p295, %s17, 1
        %s297 = smul.addr %s296, 32
        %s298 = smul.addr %s297, 8
        %s299 = scalar_lea.vmem %s1, %s298
      $region48: #{multiscale_tan_forward.6} parent=39 // pred_fallthru
        _
      // Predicated region
      $region49: #{multiscale_tan_forward.6} parent=39 // pred_check
        %p300 = pneg %p89
      $region50: #{multiscale_tan_forward.6} parent=39 // pred_check_branch
        %302 = sbr.rel (%p300) target = $region52
      $region51: #{multiscale_tan_forward.6} parent=39 // pred_region
        %p303 = scmp.lt.s32.totalorder %s17, 1
        %s304 = scalar_select %p303, %s17, 1
        %s305 = scalar_lea.vmem %s2, %s304
      $region52: #{multiscale_tan_forward.6} parent=39 // pred_fallthru
        _
    $region40: #{multiscale_tan_forward.6} parent=5 // pred_fallthru
      _
    %p306 = scmp.le.s32.totalorder 1, %s17
    %p307 = scmp.lt.s32.totalorder %s17, 3
    %p308 = pnand %p306, %p307
    %p309 = pneg %p308
    // Predicated region
    $region53: #{multiscale_tan_forward.6} parent=5 // pred_check
      _
    $region54: #{multiscale_tan_forward.6} parent=5 // pred_check_branch
      %311 = sbr.rel (%p308) target = $region56
    $region55: #{multiscale_tan_forward.6} parent=5 // pred_region
      %s312 = ssub.s32 %s17, 1
      %p313 = scmp.lt.s32.totalorder %s22, 1
      %s314 = scalar_select %p313, %s22, 1
      %s315 = smul.addr %s314, 2
      %s316 = smul.addr %s315, 8
      %s317 = scalar_lea.vmem %s0, %s316
      %p318 = pneg %p43
      %p319 = pneg %p40
      %p320 = scmp.lt.s32.totalorder %s22, 1
      %s321 = scalar_select %p320, %s22, 1
      %s322 = smul.addr %s321, 32
      %s323 = smul.addr %s322, 8
      %s324 = scalar_lea.vmem %s1, %s323
      %p325 = pneg %p69
      %p326 = pneg %p66
      %p327 = scmp.lt.s32.totalorder %s22, 1
      %s328 = scalar_select %p327, %s22, 1
      %s329 = scalar_lea.vmem %s2, %s328
      %p330 = pneg %p95
      %p331 = pneg %p92
      %p332 = pneg %p116
      %p333 = pneg %p113
      %p334 = pneg %p137
      %p335 = pneg %p134
      %p336 = pneg %p158
      %p337 = pneg %p155
      %p338 = pneg %p179
      %p339 = pneg %p176
      %p340 = pneg %p200
      %p341 = pneg %p197
      %p342 = pneg %p221
      %p343 = pneg %p218
      %p344 = pneg %p247
      %p345 = pneg %p244
      %p346 = scmp.lt.s32.totalorder %s22, 1
      %s347 = scalar_select %p346, %s22, 1
      %s348 = smul.addr %s347, 32
      %s349 = smul.addr %s348, 8
      %s350 = scalar_lea.vmem %s9, %s349
      %p351 = scmp.lt.s32.totalorder %s22, 1
      %s352 = scalar_select %p351, %s22, 1
      %s353 = smul.addr %s352, 2
      %s354 = smul.addr %s353, 8
      %s355 = scalar_lea.vmem %s0, %s354
      %p356 = scmp.lt.s32.totalorder %s22, 1
      %s357 = scalar_select %p356, %s22, 1
      %s358 = smul.addr %s357, 32
      %s359 = smul.addr %s358, 8
      %s360 = scalar_lea.vmem %s1, %s359
      %p361 = scmp.lt.s32.totalorder %s22, 1
      %s362 = scalar_select %p361, %s22, 1
      %s363 = scalar_lea.vmem %s2, %s362
      %p364 = scmp.lt.s32.totalorder %s22, 1
      %s365 = scalar_select %p364, %s22, 1
      %s366 = smul.addr %s365, 32
      %s367 = smul.addr %s366, 8
      %s368 = scalar_lea.vmem %s9, %s367
      %v369 = vld [vmem:[%s355] sm:$0xff]
      %v370 = vld [vmem:[%s355 + $0x8] sm:$0xff]
      %v371 = vld [vmem:[%s360] sm:$0xff]
      %v372 = vld [vmem:[%s360 + $0x8] sm:$0xff]
      %v373 = vld [vmem:[%s360 + $0x10] sm:$0xff]
      %v374 = vld [vmem:[%s360 + $0x18] sm:$0xff]
      %v375 = vld [vmem:[%s360 + $0x20] sm:$0xff]
      %v376 = vld [vmem:[%s360 + $0x28] sm:$0xff]
      %v377 = vld [vmem:[%s360 + $0x30] sm:$0xff]
      %v378 = vld [vmem:[%s360 + $0x38] sm:$0xff]
      %v379 = vld [vmem:[%s360 + $0x40] sm:$0xff]
      %v380 = vld [vmem:[%s360 + $0x48] sm:$0xff]
      %v381 = vld [vmem:[%s360 + $0x50] sm:$0xff]
      %v382 = vld [vmem:[%s360 + $0x58] sm:$0xff]
      %v383 = vld [vmem:[%s360 + $0x60] sm:$0xff]
      %v384 = vld [vmem:[%s360 + $0x68] sm:$0xff]
      %v385 = vld [vmem:[%s360 + $0x70] sm:$0xff]
      %v386 = vld [vmem:[%s360 + $0x78] sm:$0xff]
      %v387 = vld [vmem:[%s360 + $0x80] sm:$0xff]
      %v388 = vld [vmem:[%s360 + $0x88] sm:$0xff]
      %v389 = vld [vmem:[%s360 + $0x90] sm:$0xff]
      %v390 = vld [vmem:[%s360 + $0x98] sm:$0xff]
      %v391 = vld [vmem:[%s360 + $0xa0] sm:$0xff]
      %v392 = vld [vmem:[%s360 + $0xa8] sm:$0xff]
      %v393 = vld [vmem:[%s360 + $0xb0] sm:$0xff]
      %v394 = vld [vmem:[%s360 + $0xb8] sm:$0xff]
      %v395 = vld [vmem:[%s360 + $0xc0] sm:$0xff]
      %v396 = vld [vmem:[%s360 + $0xc8] sm:$0xff]
      %v397 = vld [vmem:[%s360 + $0xd0] sm:$0xff]
      %v398 = vld [vmem:[%s360 + $0xd8] sm:$0xff]
      %v399 = vld [vmem:[%s360 + $0xe0] sm:$0xff]
      %v400 = vld [vmem:[%s360 + $0xe8] sm:$0xff]
      %v401 = vld [vmem:[%s360 + $0xf0] sm:$0xff]
      %v402 = vld [vmem:[%s360 + $0xf8] sm:$0xff]
      %v403 = vlaneseq
      %v404 = vshrl.u32 %v403, 7
      %v405 = vadd.s32 %v404, 8
      %vm406 = vcmp.ge.s32.totalorder %v404, 0
      %vm407 = vcmp.ge.s32.totalorder %v405, 0
      %vm408 = vcmp.ge.s32.totalorder %v404, 1
      %vm409 = vcmp.ge.s32.totalorder %v405, 1
      %vm410 = vcmp.ge.s32.totalorder %v404, 2
      %vm411 = vcmp.ge.s32.totalorder %v405, 2
      %vm412 = vcmp.ge.s32.totalorder %v404, 3
      %vm413 = vcmp.ge.s32.totalorder %v405, 3
      %vm414 = vcmp.ge.s32.totalorder %v404, 4
      %vm415 = vcmp.ge.s32.totalorder %v405, 4
      %vm416 = vcmp.ge.s32.totalorder %v404, 5
      %vm417 = vcmp.ge.s32.totalorder %v405, 5
      %vm418 = vcmp.ge.s32.totalorder %v404, 6
      %vm419 = vcmp.ge.s32.totalorder %v405, 6
      %vm420 = vcmp.ge.s32.totalorder %v404, 7
      %vm421 = vcmp.ge.s32.totalorder %v405, 7
      %vm422 = vcmp.ge.s32.totalorder %v404, 8
      %vm423 = vcmp.ge.s32.totalorder %v405, 8
      %vm424 = vcmp.ge.s32.totalorder %v404, 9
      %vm425 = vcmp.ge.s32.totalorder %v405, 9
      %vm426 = vcmp.ge.s32.totalorder %v404, 10
      %vm427 = vcmp.ge.s32.totalorder %v405, 10
      %vm428 = vcmp.ge.s32.totalorder %v404, 11
      %vm429 = vcmp.ge.s32.totalorder %v405, 11
      %vm430 = vcmp.ge.s32.totalorder %v404, 12
      %vm431 = vcmp.ge.s32.totalorder %v405, 12
      %vm432 = vcmp.ge.s32.totalorder %v404, 13
      %vm433 = vcmp.ge.s32.totalorder %v405, 13
      %vm434 = vcmp.ge.s32.totalorder %v404, 14
      %vm435 = vcmp.ge.s32.totalorder %v405, 14
      %vm436 = vcmp.ge.s32.totalorder %v404, 15
      %vm437 = vcmp.ge.s32.totalorder %v405, 15
      %v438 = vsel %vm406, 1, 0
      %v439 = vsel %vm407, 1, 0
      %v440 = vsel %vm408, 1, 0
      %v441 = vsel %vm409, 1, 0
      %v442 = vsel %vm410, 1, 0
      %v443 = vsel %vm411, 1, 0
      %v444 = vsel %vm412, 1, 0
      %v445 = vsel %vm413, 1, 0
      %v446 = vsel %vm414, 1, 0
      %v447 = vsel %vm415, 1, 0
      %v448 = vsel %vm416, 1, 0
      %v449 = vsel %vm417, 1, 0
      %v450 = vsel %vm418, 1, 0
      %v451 = vsel %vm419, 1, 0
      %v452 = vsel %vm420, 1, 0
      %v453 = vsel %vm421, 1, 0
      %v454 = vsel %vm422, 1, 0
      %v455 = vsel %vm423, 1, 0
      %v456 = vsel %vm424, 1, 0
      %v457 = vsel %vm425, 1, 0
      %v458 = vsel %vm426, 1, 0
      %v459 = vsel %vm427, 1, 0
      %v460 = vsel %vm428, 1, 0
      %v461 = vsel %vm429, 1, 0
      %v462 = vsel %vm430, 1, 0
      %v463 = vsel %vm431, 1, 0
      %v464 = vsel %vm432, 1, 0
      %v465 = vsel %vm433, 1, 0
      %v466 = vsel %vm434, 1, 0
      %v467 = vsel %vm435, 1, 0
      %v468 = vsel %vm436, 1, 0
      %v469 = vsel %vm437, 1, 0
      %vm470 = vcmp.eq.s32.totalorder %v438, 1
      %vm471 = vcmp.eq.s32.totalorder %v439, 1
      %vm472 = vcmp.eq.s32.totalorder %v440, 1
      %vm473 = vcmp.eq.s32.totalorder %v441, 1
      %vm474 = vcmp.eq.s32.totalorder %v442, 1
      %vm475 = vcmp.eq.s32.totalorder %v443, 1
      %vm476 = vcmp.eq.s32.totalorder %v444, 1
      %vm477 = vcmp.eq.s32.totalorder %v445, 1
      %vm478 = vcmp.eq.s32.totalorder %v446, 1
      %vm479 = vcmp.eq.s32.totalorder %v447, 1
      %vm480 = vcmp.eq.s32.totalorder %v448, 1
      %vm481 = vcmp.eq.s32.totalorder %v449, 1
      %vm482 = vcmp.eq.s32.totalorder %v450, 1
      %vm483 = vcmp.eq.s32.totalorder %v451, 1
      %vm484 = vcmp.eq.s32.totalorder %v452, 1
      %vm485 = vcmp.eq.s32.totalorder %v453, 1
      %vm486 = vcmp.eq.s32.totalorder %v454, 1
      %vm487 = vcmp.eq.s32.totalorder %v455, 1
      %vm488 = vcmp.eq.s32.totalorder %v456, 1
      %vm489 = vcmp.eq.s32.totalorder %v457, 1
      %vm490 = vcmp.eq.s32.totalorder %v458, 1
      %vm491 = vcmp.eq.s32.totalorder %v459, 1
      %vm492 = vcmp.eq.s32.totalorder %v460, 1
      %vm493 = vcmp.eq.s32.totalorder %v461, 1
      %vm494 = vcmp.eq.s32.totalorder %v462, 1
      %vm495 = vcmp.eq.s32.totalorder %v463, 1
      %vm496 = vcmp.eq.s32.totalorder %v464, 1
      %vm497 = vcmp.eq.s32.totalorder %v465, 1
      %vm498 = vcmp.eq.s32.totalorder %v466, 1
      %vm499 = vcmp.eq.s32.totalorder %v467, 1
      %vm500 = vcmp.eq.s32.totalorder %v468, 1
      %vm501 = vcmp.eq.s32.totalorder %v469, 1
      %v502 = vsel %vm470, %v369, -1e+30
      %v503 = vsel %vm471, %v370, -1e+30
      %v504 = vsel %vm472, %v369, -1e+30
      %v505 = vsel %vm473, %v370, -1e+30
      %v506 = vsel %vm474, %v369, -1e+30
      %v507 = vsel %vm475, %v370, -1e+30
      %v508 = vsel %vm476, %v369, -1e+30
      %v509 = vsel %vm477, %v370, -1e+30
      %v510 = vsel %vm478, %v369, -1e+30
      %v511 = vsel %vm479, %v370, -1e+30
      %v512 = vsel %vm480, %v369, -1e+30
      %v513 = vsel %vm481, %v370, -1e+30
      %v514 = vsel %vm482, %v369, -1e+30
      %v515 = vsel %vm483, %v370, -1e+30
      %v516 = vsel %vm484, %v369, -1e+30
      %v517 = vsel %vm485, %v370, -1e+30
      %v518 = vsel %vm486, %v369, -1e+30
      %v519 = vsel %vm487, %v370, -1e+30
      %v520 = vsel %vm488, %v369, -1e+30
      %v521 = vsel %vm489, %v370, -1e+30
      %v522 = vsel %vm490, %v369, -1e+30
      %v523 = vsel %vm491, %v370, -1e+30
      %v524 = vsel %vm492, %v369, -1e+30
      %v525 = vsel %vm493, %v370, -1e+30
      %v526 = vsel %vm494, %v369, -1e+30
      %v527 = vsel %vm495, %v370, -1e+30
      %v528 = vsel %vm496, %v369, -1e+30
      %v529 = vsel %vm497, %v370, -1e+30
      %v530 = vsel %vm498, %v369, -1e+30
      %v531 = vsel %vm499, %v370, -1e+30
      %v532 = vsel %vm500, %v369, -1e+30
      %v533 = vsel %vm501, %v370, -1e+30
      %vm566 = vcmask 1040384
      %v567 = vrot.slane %v502, 7
      %v568 = vrot.slane %v503, 7
      %v569 = vsel %vm566, %v567, %v568
      %v570 = vrot.slane %v504, 7
      %v571 = vrot.slane %v505, 7
      %v572 = vsel %vm566, %v570, %v571
      %v573 = vrot.slane %v506, 7
      %v574 = vrot.slane %v507, 7
      %v575 = vsel %vm566, %v573, %v574
      %v576 = vrot.slane %v508, 7
      %v577 = vrot.slane %v509, 7
      %v578 = vsel %vm566, %v576, %v577
      %v579 = vrot.slane %v510, 7
      %v580 = vrot.slane %v511, 7
      %v581 = vsel %vm566, %v579, %v580
      %v582 = vrot.slane %v512, 7
      %v583 = vrot.slane %v513, 7
      %v584 = vsel %vm566, %v582, %v583
      %v585 = vrot.slane %v514, 7
      %v586 = vrot.slane %v515, 7
      %v587 = vsel %vm566, %v585, %v586
      %v588 = vrot.slane %v516, 7
      %v589 = vrot.slane %v517, 7
      %v590 = vsel %vm566, %v588, %v589
      %v591 = vrot.slane %v518, 7
      %v592 = vrot.slane %v519, 7
      %v593 = vsel %vm566, %v591, %v592
      %v594 = vrot.slane %v520, 7
      %v595 = vrot.slane %v521, 7
      %v596 = vsel %vm566, %v594, %v595
      %v597 = vrot.slane %v522, 7
      %v598 = vrot.slane %v523, 7
      %v599 = vsel %vm566, %v597, %v598
      %v600 = vrot.slane %v524, 7
      %v601 = vrot.slane %v525, 7
      %v602 = vsel %vm566, %v600, %v601
      %v603 = vrot.slane %v526, 7
      %v604 = vrot.slane %v527, 7
      %v605 = vsel %vm566, %v603, %v604
      %v606 = vrot.slane %v528, 7
      %v607 = vrot.slane %v529, 7
      %v608 = vsel %vm566, %v606, %v607
      %v609 = vrot.slane %v530, 7
      %v610 = vrot.slane %v531, 7
      %v611 = vsel %vm566, %v609, %v610
      %v612 = vrot.slane %v532, 7
      %v613 = vrot.slane %v533, 7
      %v614 = vsel %vm566, %v612, %v613
      %v647 = vsel %vm566, -1e+30, %v567
      %v648 = vsel %vm566, -1e+30, %v570
      %v649 = vsel %vm566, -1e+30, %v573
      %v650 = vsel %vm566, -1e+30, %v576
      %v651 = vsel %vm566, -1e+30, %v579
      %v652 = vsel %vm566, -1e+30, %v582
      %v653 = vsel %vm566, -1e+30, %v585
      %v654 = vsel %vm566, -1e+30, %v588
      %v655 = vsel %vm566, -1e+30, %v591
      %v656 = vsel %vm566, -1e+30, %v594
      %v657 = vsel %vm566, -1e+30, %v597
      %v658 = vsel %vm566, -1e+30, %v600
      %v659 = vsel %vm566, -1e+30, %v603
      %v660 = vsel %vm566, -1e+30, %v606
      %v661 = vsel %vm566, -1e+30, %v609
      %v662 = vsel %vm566, -1e+30, %v612
      %v663 = vmax.f32 %v502, %v647
      %v664 = vmax.f32 %v503, %v569
      %v665 = vmax.f32 %v504, %v648
      %v666 = vmax.f32 %v505, %v572
      %v667 = vmax.f32 %v506, %v649
      %v668 = vmax.f32 %v507, %v575
      %v669 = vmax.f32 %v508, %v650
      %v670 = vmax.f32 %v509, %v578
      %v671 = vmax.f32 %v510, %v651
      %v672 = vmax.f32 %v511, %v581
      %v673 = vmax.f32 %v512, %v652
      %v674 = vmax.f32 %v513, %v584
      %v675 = vmax.f32 %v514, %v653
      %v676 = vmax.f32 %v515, %v587
      %v677 = vmax.f32 %v516, %v654
      %v678 = vmax.f32 %v517, %v590
      %v679 = vmax.f32 %v518, %v655
      %v680 = vmax.f32 %v519, %v593
      %v681 = vmax.f32 %v520, %v656
      %v682 = vmax.f32 %v521, %v596
      %v683 = vmax.f32 %v522, %v657
      %v684 = vmax.f32 %v523, %v599
      %v685 = vmax.f32 %v524, %v658
      %v686 = vmax.f32 %v525, %v602
      %v687 = vmax.f32 %v526, %v659
      %v688 = vmax.f32 %v527, %v605
      %v689 = vmax.f32 %v528, %v660
      %v690 = vmax.f32 %v529, %v608
      %v691 = vmax.f32 %v530, %v661
      %v692 = vmax.f32 %v531, %v611
      %v693 = vmax.f32 %v532, %v662
      %v694 = vmax.f32 %v533, %v614
      %vm727 = vcmask 1041408
      %v728 = vrot.slane %v663, 6
      %v729 = vrot.slane %v664, 6
      %v730 = vsel %vm727, %v728, %v729
      %v731 = vrot.slane %v665, 6
      %v732 = vrot.slane %v666, 6
      %v733 = vsel %vm727, %v731, %v732
      %v734 = vrot.slane %v667, 6
      %v735 = vrot.slane %v668, 6
      %v736 = vsel %vm727, %v734, %v735
      %v737 = vrot.slane %v669, 6
      %v738 = vrot.slane %v670, 6
      %v739 = vsel %vm727, %v737, %v738
      %v740 = vrot.slane %v671, 6
      %v741 = vrot.slane %v672, 6
      %v742 = vsel %vm727, %v740, %v741
      %v743 = vrot.slane %v673, 6
      %v744 = vrot.slane %v674, 6
      %v745 = vsel %vm727, %v743, %v744
      %v746 = vrot.slane %v675, 6
      %v747 = vrot.slane %v676, 6
      %v748 = vsel %vm727, %v746, %v747
      %v749 = vrot.slane %v677, 6
      %v750 = vrot.slane %v678, 6
      %v751 = vsel %vm727, %v749, %v750
      %v752 = vrot.slane %v679, 6
      %v753 = vrot.slane %v680, 6
      %v754 = vsel %vm727, %v752, %v753
      %v755 = vrot.slane %v681, 6
      %v756 = vrot.slane %v682, 6
      %v757 = vsel %vm727, %v755, %v756
      %v758 = vrot.slane %v683, 6
      %v759 = vrot.slane %v684, 6
      %v760 = vsel %vm727, %v758, %v759
      %v761 = vrot.slane %v685, 6
      %v762 = vrot.slane %v686, 6
      %v763 = vsel %vm727, %v761, %v762
      %v764 = vrot.slane %v687, 6
      %v765 = vrot.slane %v688, 6
      %v766 = vsel %vm727, %v764, %v765
      %v767 = vrot.slane %v689, 6
      %v768 = vrot.slane %v690, 6
      %v769 = vsel %vm727, %v767, %v768
      %v770 = vrot.slane %v691, 6
      %v771 = vrot.slane %v692, 6
      %v772 = vsel %vm727, %v770, %v771
      %v773 = vrot.slane %v693, 6
      %v774 = vrot.slane %v694, 6
      %v775 = vsel %vm727, %v773, %v774
      %v808 = vsel %vm727, -1e+30, %v728
      %v809 = vsel %vm727, -1e+30, %v731
      %v810 = vsel %vm727, -1e+30, %v734
      %v811 = vsel %vm727, -1e+30, %v737
      %v812 = vsel %vm727, -1e+30, %v740
      %v813 = vsel %vm727, -1e+30, %v743
      %v814 = vsel %vm727, -1e+30, %v746
      %v815 = vsel %vm727, -1e+30, %v749
      %v816 = vsel %vm727, -1e+30, %v752
      %v817 = vsel %vm727, -1e+30, %v755
      %v818 = vsel %vm727, -1e+30, %v758
      %v819 = vsel %vm727, -1e+30, %v761
      %v820 = vsel %vm727, -1e+30, %v764
      %v821 = vsel %vm727, -1e+30, %v767
      %v822 = vsel %vm727, -1e+30, %v770
      %v823 = vsel %vm727, -1e+30, %v773
      %v824 = vmax.f32 %v663, %v808
      %v825 = vmax.f32 %v664, %v730
      %v826 = vmax.f32 %v665, %v809
      %v827 = vmax.f32 %v666, %v733
      %v828 = vmax.f32 %v667, %v810
      %v829 = vmax.f32 %v668, %v736
      %v830 = vmax.f32 %v669, %v811
      %v831 = vmax.f32 %v670, %v739
      %v832 = vmax.f32 %v671, %v812
      %v833 = vmax.f32 %v672, %v742
      %v834 = vmax.f32 %v673, %v813
      %v835 = vmax.f32 %v674, %v745
      %v836 = vmax.f32 %v675, %v814
      %v837 = vmax.f32 %v676, %v748
      %v838 = vmax.f32 %v677, %v815
      %v839 = vmax.f32 %v678, %v751
      %v840 = vmax.f32 %v679, %v816
      %v841 = vmax.f32 %v680, %v754
      %v842 = vmax.f32 %v681, %v817
      %v843 = vmax.f32 %v682, %v757
      %v844 = vmax.f32 %v683, %v818
      %v845 = vmax.f32 %v684, %v760
      %v846 = vmax.f32 %v685, %v819
      %v847 = vmax.f32 %v686, %v763
      %v848 = vmax.f32 %v687, %v820
      %v849 = vmax.f32 %v688, %v766
      %v850 = vmax.f32 %v689, %v821
      %v851 = vmax.f32 %v690, %v769
      %v852 = vmax.f32 %v691, %v822
      %v853 = vmax.f32 %v692, %v772
      %v854 = vmax.f32 %v693, %v823
      %v855 = vmax.f32 %v694, %v775
      %vm888 = vcmask 1043456
      %v889 = vrot.slane %v824, 4
      %v890 = vrot.slane %v825, 4
      %v891 = vsel %vm888, %v889, %v890
      %v892 = vrot.slane %v826, 4
      %v893 = vrot.slane %v827, 4
      %v894 = vsel %vm888, %v892, %v893
      %v895 = vrot.slane %v828, 4
      %v896 = vrot.slane %v829, 4
      %v897 = vsel %vm888, %v895, %v896
      %v898 = vrot.slane %v830, 4
      %v899 = vrot.slane %v831, 4
      %v900 = vsel %vm888, %v898, %v899
      %v901 = vrot.slane %v832, 4
      %v902 = vrot.slane %v833, 4
      %v903 = vsel %vm888, %v901, %v902
      %v904 = vrot.slane %v834, 4
      %v905 = vrot.slane %v835, 4
      %v906 = vsel %vm888, %v904, %v905
      %v907 = vrot.slane %v836, 4
      %v908 = vrot.slane %v837, 4
      %v909 = vsel %vm888, %v907, %v908
      %v910 = vrot.slane %v838, 4
      %v911 = vrot.slane %v839, 4
      %v912 = vsel %vm888, %v910, %v911
      %v913 = vrot.slane %v840, 4
      %v914 = vrot.slane %v841, 4
      %v915 = vsel %vm888, %v913, %v914
      %v916 = vrot.slane %v842, 4
      %v917 = vrot.slane %v843, 4
      %v918 = vsel %vm888, %v916, %v917
      %v919 = vrot.slane %v844, 4
      %v920 = vrot.slane %v845, 4
      %v921 = vsel %vm888, %v919, %v920
      %v922 = vrot.slane %v846, 4
      %v923 = vrot.slane %v847, 4
      %v924 = vsel %vm888, %v922, %v923
      %v925 = vrot.slane %v848, 4
      %v926 = vrot.slane %v849, 4
      %v927 = vsel %vm888, %v925, %v926
      %v928 = vrot.slane %v850, 4
      %v929 = vrot.slane %v851, 4
      %v930 = vsel %vm888, %v928, %v929
      %v931 = vrot.slane %v852, 4
      %v932 = vrot.slane %v853, 4
      %v933 = vsel %vm888, %v931, %v932
      %v934 = vrot.slane %v854, 4
      %v935 = vrot.slane %v855, 4
      %v936 = vsel %vm888, %v934, %v935
      %v969 = vsel %vm888, -1e+30, %v889
      %v970 = vsel %vm888, -1e+30, %v892
      %v971 = vsel %vm888, -1e+30, %v895
      %v972 = vsel %vm888, -1e+30, %v898
      %v973 = vsel %vm888, -1e+30, %v901
      %v974 = vsel %vm888, -1e+30, %v904
      %v975 = vsel %vm888, -1e+30, %v907
      %v976 = vsel %vm888, -1e+30, %v910
      %v977 = vsel %vm888, -1e+30, %v913
      %v978 = vsel %vm888, -1e+30, %v916
      %v979 = vsel %vm888, -1e+30, %v919
      %v980 = vsel %vm888, -1e+30, %v922
      %v981 = vsel %vm888, -1e+30, %v925
      %v982 = vsel %vm888, -1e+30, %v928
      %v983 = vsel %vm888, -1e+30, %v931
      %v984 = vsel %vm888, -1e+30, %v934
      %v985 = vmax.f32 %v824, %v969
      %v986 = vmax.f32 %v825, %v891
      %v987 = vmax.f32 %v826, %v970
      %v988 = vmax.f32 %v827, %v894
      %v989 = vmax.f32 %v828, %v971
      %v990 = vmax.f32 %v829, %v897
      %v991 = vmax.f32 %v830, %v972
      %v992 = vmax.f32 %v831, %v900
      %v993 = vmax.f32 %v832, %v973
      %v994 = vmax.f32 %v833, %v903
      %v995 = vmax.f32 %v834, %v974
      %v996 = vmax.f32 %v835, %v906
      %v997 = vmax.f32 %v836, %v975
      %v998 = vmax.f32 %v837, %v909
      %v999 = vmax.f32 %v838, %v976
      %v1000 = vmax.f32 %v839, %v912
      %v1001 = vmax.f32 %v840, %v977
      %v1002 = vmax.f32 %v841, %v915
      %v1003 = vmax.f32 %v842, %v978
      %v1004 = vmax.f32 %v843, %v918
      %v1005 = vmax.f32 %v844, %v979
      %v1006 = vmax.f32 %v845, %v921
      %v1007 = vmax.f32 %v846, %v980
      %v1008 = vmax.f32 %v847, %v924
      %v1009 = vmax.f32 %v848, %v981
      %v1010 = vmax.f32 %v849, %v927
      %v1011 = vmax.f32 %v850, %v982
      %v1012 = vmax.f32 %v851, %v930
      %v1013 = vmax.f32 %v852, %v983
      %v1014 = vmax.f32 %v853, %v933
      %v1015 = vmax.f32 %v854, %v984
      %v1016 = vmax.f32 %v855, %v936
      %v1017 = vmax.f32 %v985, -1e+30
      %v1018 = vmax.f32 %v986, %v985
      %v1019 = vmax.f32 %v987, -1e+30
      %v1020 = vmax.f32 %v988, %v987
      %v1021 = vmax.f32 %v989, -1e+30
      %v1022 = vmax.f32 %v990, %v989
      %v1023 = vmax.f32 %v991, -1e+30
      %v1024 = vmax.f32 %v992, %v991
      %v1025 = vmax.f32 %v993, -1e+30
      %v1026 = vmax.f32 %v994, %v993
      %v1027 = vmax.f32 %v995, -1e+30
      %v1028 = vmax.f32 %v996, %v995
      %v1029 = vmax.f32 %v997, -1e+30
      %v1030 = vmax.f32 %v998, %v997
      %v1031 = vmax.f32 %v999, -1e+30
      %v1032 = vmax.f32 %v1000, %v999
      %v1033 = vmax.f32 %v1001, -1e+30
      %v1034 = vmax.f32 %v1002, %v1001
      %v1035 = vmax.f32 %v1003, -1e+30
      %v1036 = vmax.f32 %v1004, %v1003
      %v1037 = vmax.f32 %v1005, -1e+30
      %v1038 = vmax.f32 %v1006, %v1005
      %v1039 = vmax.f32 %v1007, -1e+30
      %v1040 = vmax.f32 %v1008, %v1007
      %v1041 = vmax.f32 %v1009, -1e+30
      %v1042 = vmax.f32 %v1010, %v1009
      %v1043 = vmax.f32 %v1011, -1e+30
      %v1044 = vmax.f32 %v1012, %v1011
      %v1045 = vmax.f32 %v1013, -1e+30
      %v1046 = vmax.f32 %v1014, %v1013
      %v1047 = vmax.f32 %v1015, -1e+30
      %v1048 = vmax.f32 %v1016, %v1015
      %v1049 = vsel %vm470, %v1017, 0.0
      %v1050 = vsel %vm471, %v1018, 0.0
      %v1051 = vsel %vm472, %v1019, 0.0
      %v1052 = vsel %vm473, %v1020, 0.0
      %v1053 = vsel %vm474, %v1021, 0.0
      %v1054 = vsel %vm475, %v1022, 0.0
      %v1055 = vsel %vm476, %v1023, 0.0
      %v1056 = vsel %vm477, %v1024, 0.0
      %v1057 = vsel %vm478, %v1025, 0.0
      %v1058 = vsel %vm479, %v1026, 0.0
      %v1059 = vsel %vm480, %v1027, 0.0
      %v1060 = vsel %vm481, %v1028, 0.0
      %v1061 = vsel %vm482, %v1029, 0.0
      %v1062 = vsel %vm483, %v1030, 0.0
      %v1063 = vsel %vm484, %v1031, 0.0
      %v1064 = vsel %vm485, %v1032, 0.0
      %v1065 = vsel %vm486, %v1033, 0.0
      %v1066 = vsel %vm487, %v1034, 0.0
      %v1067 = vsel %vm488, %v1035, 0.0
      %v1068 = vsel %vm489, %v1036, 0.0
      %v1069 = vsel %vm490, %v1037, 0.0
      %v1070 = vsel %vm491, %v1038, 0.0
      %v1071 = vsel %vm492, %v1039, 0.0
      %v1072 = vsel %vm493, %v1040, 0.0
      %v1073 = vsel %vm494, %v1041, 0.0
      %v1074 = vsel %vm495, %v1042, 0.0
      %v1075 = vsel %vm496, %v1043, 0.0
      %v1076 = vsel %vm497, %v1044, 0.0
      %v1077 = vsel %vm498, %v1045, 0.0
      %v1078 = vsel %vm499, %v1046, 0.0
      %v1079 = vsel %vm500, %v1047, 0.0
      %v1080 = vsel %vm501, %v1048, 0.0
      %v1081 = vld [vmem:[%s3] sm:$0xff]
      %v1082 = vld [vmem:[%s3 + $0x8] sm:$0xff]
      %v1083 = vld [vmem:[%s3 + $0x10] sm:$0xff]
      %v1084 = vld [vmem:[%s3 + $0x18] sm:$0xff]
      %v1085 = vld [vmem:[%s4] sm:$0x1]
      %v1087 = vperm.slane %v1085, 0
      %vm1089 = vcmask 261120
      %v1091 = vsel %vm1089, %v1049, 0
      %v1094 = vsel %vm1089, %v1050, 0
      %v1097 = vsel %vm1089, %v1051, 0
      %v1100 = vsel %vm1089, %v1052, 0
      %v1103 = vsel %vm1089, %v1053, 0
      %v1106 = vsel %vm1089, %v1054, 0
      %v1109 = vsel %vm1089, %v1055, 0
      %v1112 = vsel %vm1089, %v1056, 0
      %v1115 = vsel %vm1089, %v1057, 0
      %v1118 = vsel %vm1089, %v1058, 0
      %v1121 = vsel %vm1089, %v1059, 0
      %v1124 = vsel %vm1089, %v1060, 0
      %v1127 = vsel %vm1089, %v1061, 0
      %v1130 = vsel %vm1089, %v1062, 0
      %v1133 = vsel %vm1089, %v1063, 0
      %v1136 = vsel %vm1089, %v1064, 0
      %v1139 = vsel %vm1089, %v1065, 0
      %v1142 = vsel %vm1089, %v1066, 0
      %v1145 = vsel %vm1089, %v1067, 0
      %v1148 = vsel %vm1089, %v1068, 0
      %v1151 = vsel %vm1089, %v1069, 0
      %v1154 = vsel %vm1089, %v1070, 0
      %v1157 = vsel %vm1089, %v1071, 0
      %v1160 = vsel %vm1089, %v1072, 0
      %v1163 = vsel %vm1089, %v1073, 0
      %v1166 = vsel %vm1089, %v1074, 0
      %v1169 = vsel %vm1089, %v1075, 0
      %v1172 = vsel %vm1089, %v1076, 0
      %v1175 = vsel %vm1089, %v1077, 0
      %v1178 = vsel %vm1089, %v1078, 0
      %v1181 = vsel %vm1089, %v1079, 0
      %v1184 = vsel %vm1089, %v1080, 0
      %1186 = vmatpush.msra.mxu0 0.0
      %1187 = vmatpush.msra.mxu0 0.0
      %1188 = vmatpush.msra.mxu0 0.0
      %1189 = vmatpush.msra.mxu0 0.0
      %1190 = vmatpush.msra.mxu0 0.0
      %1191 = vmatpush.msra.mxu0 0.0
      %1192 = vmatpush.msra.mxu0 0.0
      %1193 = vmatpush.msra.mxu0 0.0
      %1194 = vmatpush.msra.mxu0 0.0
      %1195 = vmatpush.msra.mxu0 0.0
      %1196 = vmatpush.msra.mxu0 0.0
      %1197 = vmatpush.msra.mxu0 0.0
      %1198 = vmatpush.msra.mxu0 %v1084
      %1199 = vmatpush.msra.mxu0 %v1083
      %1200 = vmatpush.msra.mxu0 %v1082
      %1201 = vmatpush.msra.mxu0 %v1081
      %1202 = vmatmul.f32.gmra.mxu0 %v1091
      %v1203 = vpop.f32.mrf.mxu0
      %v1204 = vadd.f32 %v1087, %v1203
      %1205 = vmatmul.f32.gmra.mxu0 %v1094
      %v1206 = vpop.f32.mrf.mxu0
      %v1207 = vadd.f32 %v1087, %v1206
      %1208 = vmatmul.f32.gmra.mxu0 %v1097
      %v1209 = vpop.f32.mrf.mxu0
      %v1210 = vadd.f32 %v1087, %v1209
      %1211 = vmatmul.f32.gmra.mxu0 %v1100
      %v1212 = vpop.f32.mrf.mxu0
      %v1213 = vadd.f32 %v1087, %v1212
      %1214 = vmatmul.f32.gmra.mxu0 %v1103
      %v1215 = vpop.f32.mrf.mxu0
      %v1216 = vadd.f32 %v1087, %v1215
      %1217 = vmatmul.f32.gmra.mxu0 %v1106
      %v1218 = vpop.f32.mrf.mxu0
      %v1219 = vadd.f32 %v1087, %v1218
      %1220 = vmatmul.f32.gmra.mxu0 %v1109
      %v1221 = vpop.f32.mrf.mxu0
      %v1222 = vadd.f32 %v1087, %v1221
      %1223 = vmatmul.f32.gmra.mxu0 %v1112
      %v1224 = vpop.f32.mrf.mxu0
      %v1225 = vadd.f32 %v1087, %v1224
      %1226 = vmatmul.f32.gmra.mxu0 %v1115
      %v1227 = vpop.f32.mrf.mxu0
      %v1228 = vadd.f32 %v1087, %v1227
      %1229 = vmatmul.f32.gmra.mxu0 %v1118
      %v1230 = vpop.f32.mrf.mxu0
      %v1231 = vadd.f32 %v1087, %v1230
      %1232 = vmatmul.f32.gmra.mxu0 %v1121
      %v1233 = vpop.f32.mrf.mxu0
      %v1234 = vadd.f32 %v1087, %v1233
      %1235 = vmatmul.f32.gmra.mxu0 %v1124
      %v1236 = vpop.f32.mrf.mxu0
      %v1237 = vadd.f32 %v1087, %v1236
      %1238 = vmatmul.f32.gmra.mxu0 %v1127
      %v1239 = vpop.f32.mrf.mxu0
      %v1240 = vadd.f32 %v1087, %v1239
      %1241 = vmatmul.f32.gmra.mxu0 %v1130
      %v1242 = vpop.f32.mrf.mxu0
      %v1243 = vadd.f32 %v1087, %v1242
      %1244 = vmatmul.f32.gmra.mxu0 %v1133
      %v1245 = vpop.f32.mrf.mxu0
      %v1246 = vadd.f32 %v1087, %v1245
      %1247 = vmatmul.f32.gmra.mxu0 %v1136
      %v1248 = vpop.f32.mrf.mxu0
      %v1249 = vadd.f32 %v1087, %v1248
      %1250 = vmatmul.f32.gmra.mxu0 %v1139
      %v1251 = vpop.f32.mrf.mxu0
      %v1252 = vadd.f32 %v1087, %v1251
      %1253 = vmatmul.f32.gmra.mxu0 %v1142
      %v1254 = vpop.f32.mrf.mxu0
      %v1255 = vadd.f32 %v1087, %v1254
      %1256 = vmatmul.f32.gmra.mxu0 %v1145
      %v1257 = vpop.f32.mrf.mxu0
      %v1258 = vadd.f32 %v1087, %v1257
      %1259 = vmatmul.f32.gmra.mxu0 %v1148
      %v1260 = vpop.f32.mrf.mxu0
      %v1261 = vadd.f32 %v1087, %v1260
      %1262 = vmatmul.f32.gmra.mxu0 %v1151
      %v1263 = vpop.f32.mrf.mxu0
      %v1264 = vadd.f32 %v1087, %v1263
      %1265 = vmatmul.f32.gmra.mxu0 %v1154
      %v1266 = vpop.f32.mrf.mxu0
      %v1267 = vadd.f32 %v1087, %v1266
      %1268 = vmatmul.f32.gmra.mxu0 %v1157
      %v1269 = vpop.f32.mrf.mxu0
      %v1270 = vadd.f32 %v1087, %v1269
      %1271 = vmatmul.f32.gmra.mxu0 %v1160
      %v1272 = vpop.f32.mrf.mxu0
      %v1273 = vadd.f32 %v1087, %v1272
      %1274 = vmatmul.f32.gmra.mxu0 %v1163
      %v1275 = vpop.f32.mrf.mxu0
      %v1276 = vadd.f32 %v1087, %v1275
      %1277 = vmatmul.f32.gmra.mxu0 %v1166
      %v1278 = vpop.f32.mrf.mxu0
      %v1279 = vadd.f32 %v1087, %v1278
      %1280 = vmatmul.f32.gmra.mxu0 %v1169
      %v1281 = vpop.f32.mrf.mxu0
      %v1282 = vadd.f32 %v1087, %v1281
      %1283 = vmatmul.f32.gmra.mxu0 %v1172
      %v1284 = vpop.f32.mrf.mxu0
      %v1285 = vadd.f32 %v1087, %v1284
      %1286 = vmatmul.f32.gmra.mxu0 %v1175
      %v1287 = vpop.f32.mrf.mxu0
      %v1288 = vadd.f32 %v1087, %v1287
      %1289 = vmatmul.f32.gmra.mxu0 %v1178
      %v1290 = vpop.f32.mrf.mxu0
      %v1291 = vadd.f32 %v1087, %v1290
      %1292 = vmatmul.f32.gmra.mxu0 %v1181
      %v1293 = vpop.f32.mrf.mxu0
      %v1294 = vadd.f32 %v1087, %v1293
      %1295 = vmatmul.f32.gmra.mxu0 %v1184
      %v1296 = vpop.f32.mrf.mxu0
      %v1297 = vadd.f32 %v1087, %v1296
      %1298 = vdwg.mxu0
      %v1299 = vld [vmem:[%s363] sm:$0x1]
      %v1301 = vperm.slane %v1299, 0
      %v1303 = vmul.f32 %v1204, %v1301
      %v1304 = vmul.f32 %v1207, %v1301
      %v1305 = vmul.f32 %v1210, %v1301
      %v1306 = vmul.f32 %v1213, %v1301
      %v1307 = vmul.f32 %v1216, %v1301
      %v1308 = vmul.f32 %v1219, %v1301
      %v1309 = vmul.f32 %v1222, %v1301
      %v1310 = vmul.f32 %v1225, %v1301
      %v1311 = vmul.f32 %v1228, %v1301
      %v1312 = vmul.f32 %v1231, %v1301
      %v1313 = vmul.f32 %v1234, %v1301
      %v1314 = vmul.f32 %v1237, %v1301
      %v1315 = vmul.f32 %v1240, %v1301
      %v1316 = vmul.f32 %v1243, %v1301
      %v1317 = vmul.f32 %v1246, %v1301
      %v1318 = vmul.f32 %v1249, %v1301
      %v1319 = vmul.f32 %v1252, %v1301
      %v1320 = vmul.f32 %v1255, %v1301
      %v1321 = vmul.f32 %v1258, %v1301
      %v1322 = vmul.f32 %v1261, %v1301
      %v1323 = vmul.f32 %v1264, %v1301
      %v1324 = vmul.f32 %v1267, %v1301
      %v1325 = vmul.f32 %v1270, %v1301
      %v1326 = vmul.f32 %v1273, %v1301
      %v1327 = vmul.f32 %v1276, %v1301
      %v1328 = vmul.f32 %v1279, %v1301
      %v1329 = vmul.f32 %v1282, %v1301
      %v1330 = vmul.f32 %v1285, %v1301
      %v1331 = vmul.f32 %v1288, %v1301
      %v1332 = vmul.f32 %v1291, %v1301
      %v1333 = vmul.f32 %v1294, %v1301
      %v1334 = vmul.f32 %v1297, %v1301
      %v1335 = vmul.f32 %v1303, %v1303
      %v1336 = vmul.f32 %v1304, %v1304
      %v1337 = vmul.f32 %v1305, %v1305
      %v1338 = vmul.f32 %v1306, %v1306
      %v1339 = vmul.f32 %v1307, %v1307
      %v1340 = vmul.f32 %v1308, %v1308
      %v1341 = vmul.f32 %v1309, %v1309
      %v1342 = vmul.f32 %v1310, %v1310
      %v1343 = vmul.f32 %v1311, %v1311
      %v1344 = vmul.f32 %v1312, %v1312
      %v1345 = vmul.f32 %v1313, %v1313
      %v1346 = vmul.f32 %v1314, %v1314
      %v1347 = vmul.f32 %v1315, %v1315
      %v1348 = vmul.f32 %v1316, %v1316
      %v1349 = vmul.f32 %v1317, %v1317
      %v1350 = vmul.f32 %v1318, %v1318
      %v1351 = vmul.f32 %v1319, %v1319
      %v1352 = vmul.f32 %v1320, %v1320
      %v1353 = vmul.f32 %v1321, %v1321
      %v1354 = vmul.f32 %v1322, %v1322
      %v1355 = vmul.f32 %v1323, %v1323
      %v1356 = vmul.f32 %v1324, %v1324
      %v1357 = vmul.f32 %v1325, %v1325
      %v1358 = vmul.f32 %v1326, %v1326
      %v1359 = vmul.f32 %v1327, %v1327
      %v1360 = vmul.f32 %v1328, %v1328
      %v1361 = vmul.f32 %v1329, %v1329
      %v1362 = vmul.f32 %v1330, %v1330
      %v1363 = vmul.f32 %v1331, %v1331
      %v1364 = vmul.f32 %v1332, %v1332
      %v1365 = vmul.f32 %v1333, %v1333
      %v1366 = vmul.f32 %v1334, %v1334
      %v1367 = vsel %vm1089, %v1335, 0.0
      %1368 = vadd.xlane.f32.xlu0 %v1367
      %v1369 = vpop.xlane.xlu0 %1368
      %v1370 = vsel %vm1089, %v1336, 0.0
      %1371 = vadd.xlane.f32.xlu0 %v1370
      %v1372 = vpop.xlane.xlu0 %1371
      %v1373 = vsel %vm1089, %v1337, 0.0
      %1374 = vadd.xlane.f32.xlu0 %v1373
      %v1375 = vpop.xlane.xlu0 %1374
      %v1376 = vsel %vm1089, %v1338, 0.0
      %1377 = vadd.xlane.f32.xlu0 %v1376
      %v1378 = vpop.xlane.xlu0 %1377
      %v1379 = vsel %vm1089, %v1339, 0.0
      %1380 = vadd.xlane.f32.xlu0 %v1379
      %v1381 = vpop.xlane.xlu0 %1380
      %v1382 = vsel %vm1089, %v1340, 0.0
      %1383 = vadd.xlane.f32.xlu0 %v1382
      %v1384 = vpop.xlane.xlu0 %1383
      %v1385 = vsel %vm1089, %v1341, 0.0
      %1386 = vadd.xlane.f32.xlu0 %v1385
      %v1387 = vpop.xlane.xlu0 %1386
      %v1388 = vsel %vm1089, %v1342, 0.0
      %1389 = vadd.xlane.f32.xlu0 %v1388
      %v1390 = vpop.xlane.xlu0 %1389
      %v1391 = vsel %vm1089, %v1343, 0.0
      %1392 = vadd.xlane.f32.xlu0 %v1391
      %v1393 = vpop.xlane.xlu0 %1392
      %v1394 = vsel %vm1089, %v1344, 0.0
      %1395 = vadd.xlane.f32.xlu0 %v1394
      %v1396 = vpop.xlane.xlu0 %1395
      %v1397 = vsel %vm1089, %v1345, 0.0
      %1398 = vadd.xlane.f32.xlu0 %v1397
      %v1399 = vpop.xlane.xlu0 %1398
      %v1400 = vsel %vm1089, %v1346, 0.0
      %1401 = vadd.xlane.f32.xlu0 %v1400
      %v1402 = vpop.xlane.xlu0 %1401
      %v1403 = vsel %vm1089, %v1347, 0.0
      %1404 = vadd.xlane.f32.xlu0 %v1403
      %v1405 = vpop.xlane.xlu0 %1404
      %v1406 = vsel %vm1089, %v1348, 0.0
      %1407 = vadd.xlane.f32.xlu0 %v1406
      %v1408 = vpop.xlane.xlu0 %1407
      %v1409 = vsel %vm1089, %v1349, 0.0
      %1410 = vadd.xlane.f32.xlu0 %v1409
      %v1411 = vpop.xlane.xlu0 %1410
      %v1412 = vsel %vm1089, %v1350, 0.0
      %1413 = vadd.xlane.f32.xlu0 %v1412
      %v1414 = vpop.xlane.xlu0 %1413
      %v1415 = vsel %vm1089, %v1351, 0.0
      %1416 = vadd.xlane.f32.xlu0 %v1415
      %v1417 = vpop.xlane.xlu0 %1416
      %v1418 = vsel %vm1089, %v1352, 0.0
      %1419 = vadd.xlane.f32.xlu0 %v1418
      %v1420 = vpop.xlane.xlu0 %1419
      %v1421 = vsel %vm1089, %v1353, 0.0
      %1422 = vadd.xlane.f32.xlu0 %v1421
      %v1423 = vpop.xlane.xlu0 %1422
      %v1424 = vsel %vm1089, %v1354, 0.0
      %1425 = vadd.xlane.f32.xlu0 %v1424
      %v1426 = vpop.xlane.xlu0 %1425
      %v1427 = vsel %vm1089, %v1355, 0.0
      %1428 = vadd.xlane.f32.xlu0 %v1427
      %v1429 = vpop.xlane.xlu0 %1428
      %v1430 = vsel %vm1089, %v1356, 0.0
      %1431 = vadd.xlane.f32.xlu0 %v1430
      %v1432 = vpop.xlane.xlu0 %1431
      %v1433 = vsel %vm1089, %v1357, 0.0
      %1434 = vadd.xlane.f32.xlu0 %v1433
      %v1435 = vpop.xlane.xlu0 %1434
      %v1436 = vsel %vm1089, %v1358, 0.0
      %1437 = vadd.xlane.f32.xlu0 %v1436
      %v1438 = vpop.xlane.xlu0 %1437
      %v1439 = vsel %vm1089, %v1359, 0.0
      %1440 = vadd.xlane.f32.xlu0 %v1439
      %v1441 = vpop.xlane.xlu0 %1440
      %v1442 = vsel %vm1089, %v1360, 0.0
      %1443 = vadd.xlane.f32.xlu0 %v1442
      %v1444 = vpop.xlane.xlu0 %1443
      %v1445 = vsel %vm1089, %v1361, 0.0
      %1446 = vadd.xlane.f32.xlu0 %v1445
      %v1447 = vpop.xlane.xlu0 %1446
      %v1448 = vsel %vm1089, %v1362, 0.0
      %1449 = vadd.xlane.f32.xlu0 %v1448
      %v1450 = vpop.xlane.xlu0 %1449
      %v1451 = vsel %vm1089, %v1363, 0.0
      %1452 = vadd.xlane.f32.xlu0 %v1451
      %v1453 = vpop.xlane.xlu0 %1452
      %v1454 = vsel %vm1089, %v1364, 0.0
      %1455 = vadd.xlane.f32.xlu0 %v1454
      %v1456 = vpop.xlane.xlu0 %1455
      %v1457 = vsel %vm1089, %v1365, 0.0
      %1458 = vadd.xlane.f32.xlu0 %v1457
      %v1459 = vpop.xlane.xlu0 %1458
      %v1460 = vsel %vm1089, %v1366, 0.0
      %1461 = vadd.xlane.f32.xlu0 %v1460
      %v1462 = vpop.xlane.xlu0 %1461
      %v1463 = vrsqrt.pop %v1369
      %v1464 = vmul.f32 %v1463, %v1369
      %v1465 = vmul.f32 %v1464, %v1463
      %v1466 = vmul.f32 0.5, %v1465
      %v1467 = vsub.f32 1.5, %v1466
      %v1468 = vmul.f32 %v1463, %v1467
      %v1469 = vmul.f32 %v1369, %v1468
      %vm1470 = vcmp.eq.f32.partialorder %v1369, inf
      %v1471 = vsel %vm1470, %v1369, %v1469
      %vm1472 = vcmp.eq.f32.partialorder %v1369, 0.0
      %v1473 = vand.u32 %v1369, 2147483648
      %v1474 = vsel %vm1472, %v1473, %v1471
      %v1475 = vrsqrt.pop %v1372
      %v1476 = vmul.f32 %v1475, %v1372
      %v1477 = vmul.f32 %v1476, %v1475
      %v1478 = vmul.f32 0.5, %v1477
      %v1479 = vsub.f32 1.5, %v1478
      %v1480 = vmul.f32 %v1475, %v1479
      %v1481 = vmul.f32 %v1372, %v1480
      %vm1482 = vcmp.eq.f32.partialorder %v1372, inf
      %v1483 = vsel %vm1482, %v1372, %v1481
      %vm1484 = vcmp.eq.f32.partialorder %v1372, 0.0
      %v1485 = vand.u32 %v1372, 2147483648
      %v1486 = vsel %vm1484, %v1485, %v1483
      %v1487 = vrsqrt.pop %v1375
      %v1488 = vmul.f32 %v1487, %v1375
      %v1489 = vmul.f32 %v1488, %v1487
      %v1490 = vmul.f32 0.5, %v1489
      %v1491 = vsub.f32 1.5, %v1490
      %v1492 = vmul.f32 %v1487, %v1491
      %v1493 = vmul.f32 %v1375, %v1492
      %vm1494 = vcmp.eq.f32.partialorder %v1375, inf
      %v1495 = vsel %vm1494, %v1375, %v1493
      %vm1496 = vcmp.eq.f32.partialorder %v1375, 0.0
      %v1497 = vand.u32 %v1375, 2147483648
      %v1498 = vsel %vm1496, %v1497, %v1495
      %v1499 = vrsqrt.pop %v1378
      %v1500 = vmul.f32 %v1499, %v1378
      %v1501 = vmul.f32 %v1500, %v1499
      %v1502 = vmul.f32 0.5, %v1501
      %v1503 = vsub.f32 1.5, %v1502
      %v1504 = vmul.f32 %v1499, %v1503
      %v1505 = vmul.f32 %v1378, %v1504
      %vm1506 = vcmp.eq.f32.partialorder %v1378, inf
      %v1507 = vsel %vm1506, %v1378, %v1505
      %vm1508 = vcmp.eq.f32.partialorder %v1378, 0.0
      %v1509 = vand.u32 %v1378, 2147483648
      %v1510 = vsel %vm1508, %v1509, %v1507
      %v1511 = vrsqrt.pop %v1381
      %v1512 = vmul.f32 %v1511, %v1381
      %v1513 = vmul.f32 %v1512, %v1511
      %v1514 = vmul.f32 0.5, %v1513
      %v1515 = vsub.f32 1.5, %v1514
      %v1516 = vmul.f32 %v1511, %v1515
      %v1517 = vmul.f32 %v1381, %v1516
      %vm1518 = vcmp.eq.f32.partialorder %v1381, inf
      %v1519 = vsel %vm1518, %v1381, %v1517
      %vm1520 = vcmp.eq.f32.partialorder %v1381, 0.0
      %v1521 = vand.u32 %v1381, 2147483648
      %v1522 = vsel %vm1520, %v1521, %v1519
      %v1523 = vrsqrt.pop %v1384
      %v1524 = vmul.f32 %v1523, %v1384
      %v1525 = vmul.f32 %v1524, %v1523
      %v1526 = vmul.f32 0.5, %v1525
      %v1527 = vsub.f32 1.5, %v1526
      %v1528 = vmul.f32 %v1523, %v1527
      %v1529 = vmul.f32 %v1384, %v1528
      %vm1530 = vcmp.eq.f32.partialorder %v1384, inf
      %v1531 = vsel %vm1530, %v1384, %v1529
      %vm1532 = vcmp.eq.f32.partialorder %v1384, 0.0
      %v1533 = vand.u32 %v1384, 2147483648
      %v1534 = vsel %vm1532, %v1533, %v1531
      %v1535 = vrsqrt.pop %v1387
      %v1536 = vmul.f32 %v1535, %v1387
      %v1537 = vmul.f32 %v1536, %v1535
      %v1538 = vmul.f32 0.5, %v1537
      %v1539 = vsub.f32 1.5, %v1538
      %v1540 = vmul.f32 %v1535, %v1539
      %v1541 = vmul.f32 %v1387, %v1540
      %vm1542 = vcmp.eq.f32.partialorder %v1387, inf
      %v1543 = vsel %vm1542, %v1387, %v1541
      %vm1544 = vcmp.eq.f32.partialorder %v1387, 0.0
      %v1545 = vand.u32 %v1387, 2147483648
      %v1546 = vsel %vm1544, %v1545, %v1543
      %v1547 = vrsqrt.pop %v1390
      %v1548 = vmul.f32 %v1547, %v1390
      %v1549 = vmul.f32 %v1548, %v1547
      %v1550 = vmul.f32 0.5, %v1549
      %v1551 = vsub.f32 1.5, %v1550
      %v1552 = vmul.f32 %v1547, %v1551
      %v1553 = vmul.f32 %v1390, %v1552
      %vm1554 = vcmp.eq.f32.partialorder %v1390, inf
      %v1555 = vsel %vm1554, %v1390, %v1553
      %vm1556 = vcmp.eq.f32.partialorder %v1390, 0.0
      %v1557 = vand.u32 %v1390, 2147483648
      %v1558 = vsel %vm1556, %v1557, %v1555
      %v1559 = vrsqrt.pop %v1393
      %v1560 = vmul.f32 %v1559, %v1393
      %v1561 = vmul.f32 %v1560, %v1559
      %v1562 = vmul.f32 0.5, %v1561
      %v1563 = vsub.f32 1.5, %v1562
      %v1564 = vmul.f32 %v1559, %v1563
      %v1565 = vmul.f32 %v1393, %v1564
      %vm1566 = vcmp.eq.f32.partialorder %v1393, inf
      %v1567 = vsel %vm1566, %v1393, %v1565
      %vm1568 = vcmp.eq.f32.partialorder %v1393, 0.0
      %v1569 = vand.u32 %v1393, 2147483648
      %v1570 = vsel %vm1568, %v1569, %v1567
      %v1571 = vrsqrt.pop %v1396
      %v1572 = vmul.f32 %v1571, %v1396
      %v1573 = vmul.f32 %v1572, %v1571
      %v1574 = vmul.f32 0.5, %v1573
      %v1575 = vsub.f32 1.5, %v1574
      %v1576 = vmul.f32 %v1571, %v1575
      %v1577 = vmul.f32 %v1396, %v1576
      %vm1578 = vcmp.eq.f32.partialorder %v1396, inf
      %v1579 = vsel %vm1578, %v1396, %v1577
      %vm1580 = vcmp.eq.f32.partialorder %v1396, 0.0
      %v1581 = vand.u32 %v1396, 2147483648
      %v1582 = vsel %vm1580, %v1581, %v1579
      %v1583 = vrsqrt.pop %v1399
      %v1584 = vmul.f32 %v1583, %v1399
      %v1585 = vmul.f32 %v1584, %v1583
      %v1586 = vmul.f32 0.5, %v1585
      %v1587 = vsub.f32 1.5, %v1586
      %v1588 = vmul.f32 %v1583, %v1587
      %v1589 = vmul.f32 %v1399, %v1588
      %vm1590 = vcmp.eq.f32.partialorder %v1399, inf
      %v1591 = vsel %vm1590, %v1399, %v1589
      %vm1592 = vcmp.eq.f32.partialorder %v1399, 0.0
      %v1593 = vand.u32 %v1399, 2147483648
      %v1594 = vsel %vm1592, %v1593, %v1591
      %v1595 = vrsqrt.pop %v1402
      %v1596 = vmul.f32 %v1595, %v1402
      %v1597 = vmul.f32 %v1596, %v1595
      %v1598 = vmul.f32 0.5, %v1597
      %v1599 = vsub.f32 1.5, %v1598
      %v1600 = vmul.f32 %v1595, %v1599
      %v1601 = vmul.f32 %v1402, %v1600
      %vm1602 = vcmp.eq.f32.partialorder %v1402, inf
      %v1603 = vsel %vm1602, %v1402, %v1601
      %vm1604 = vcmp.eq.f32.partialorder %v1402, 0.0
      %v1605 = vand.u32 %v1402, 2147483648
      %v1606 = vsel %vm1604, %v1605, %v1603
      %v1607 = vrsqrt.pop %v1405
      %v1608 = vmul.f32 %v1607, %v1405
      %v1609 = vmul.f32 %v1608, %v1607
      %v1610 = vmul.f32 0.5, %v1609
      %v1611 = vsub.f32 1.5, %v1610
      %v1612 = vmul.f32 %v1607, %v1611
      %v1613 = vmul.f32 %v1405, %v1612
      %vm1614 = vcmp.eq.f32.partialorder %v1405, inf
      %v1615 = vsel %vm1614, %v1405, %v1613
      %vm1616 = vcmp.eq.f32.partialorder %v1405, 0.0
      %v1617 = vand.u32 %v1405, 2147483648
      %v1618 = vsel %vm1616, %v1617, %v1615
      %v1619 = vrsqrt.pop %v1408
      %v1620 = vmul.f32 %v1619, %v1408
      %v1621 = vmul.f32 %v1620, %v1619
      %v1622 = vmul.f32 0.5, %v1621
      %v1623 = vsub.f32 1.5, %v1622
      %v1624 = vmul.f32 %v1619, %v1623
      %v1625 = vmul.f32 %v1408, %v1624
      %vm1626 = vcmp.eq.f32.partialorder %v1408, inf
      %v1627 = vsel %vm1626, %v1408, %v1625
      %vm1628 = vcmp.eq.f32.partialorder %v1408, 0.0
      %v1629 = vand.u32 %v1408, 2147483648
      %v1630 = vsel %vm1628, %v1629, %v1627
      %v1631 = vrsqrt.pop %v1411
      %v1632 = vmul.f32 %v1631, %v1411
      %v1633 = vmul.f32 %v1632, %v1631
      %v1634 = vmul.f32 0.5, %v1633
      %v1635 = vsub.f32 1.5, %v1634
      %v1636 = vmul.f32 %v1631, %v1635
      %v1637 = vmul.f32 %v1411, %v1636
      %vm1638 = vcmp.eq.f32.partialorder %v1411, inf
      %v1639 = vsel %vm1638, %v1411, %v1637
      %vm1640 = vcmp.eq.f32.partialorder %v1411, 0.0
      %v1641 = vand.u32 %v1411, 2147483648
      %v1642 = vsel %vm1640, %v1641, %v1639
      %v1643 = vrsqrt.pop %v1414
      %v1644 = vmul.f32 %v1643, %v1414
      %v1645 = vmul.f32 %v1644, %v1643
      %v1646 = vmul.f32 0.5, %v1645
      %v1647 = vsub.f32 1.5, %v1646
      %v1648 = vmul.f32 %v1643, %v1647
      %v1649 = vmul.f32 %v1414, %v1648
      %vm1650 = vcmp.eq.f32.partialorder %v1414, inf
      %v1651 = vsel %vm1650, %v1414, %v1649
      %vm1652 = vcmp.eq.f32.partialorder %v1414, 0.0
      %v1653 = vand.u32 %v1414, 2147483648
      %v1654 = vsel %vm1652, %v1653, %v1651
      %v1655 = vrsqrt.pop %v1417
      %v1656 = vmul.f32 %v1655, %v1417
      %v1657 = vmul.f32 %v1656, %v1655
      %v1658 = vmul.f32 0.5, %v1657
      %v1659 = vsub.f32 1.5, %v1658
      %v1660 = vmul.f32 %v1655, %v1659
      %v1661 = vmul.f32 %v1417, %v1660
      %vm1662 = vcmp.eq.f32.partialorder %v1417, inf
      %v1663 = vsel %vm1662, %v1417, %v1661
      %vm1664 = vcmp.eq.f32.partialorder %v1417, 0.0
      %v1665 = vand.u32 %v1417, 2147483648
      %v1666 = vsel %vm1664, %v1665, %v1663
      %v1667 = vrsqrt.pop %v1420
      %v1668 = vmul.f32 %v1667, %v1420
      %v1669 = vmul.f32 %v1668, %v1667
      %v1670 = vmul.f32 0.5, %v1669
      %v1671 = vsub.f32 1.5, %v1670
      %v1672 = vmul.f32 %v1667, %v1671
      %v1673 = vmul.f32 %v1420, %v1672
      %vm1674 = vcmp.eq.f32.partialorder %v1420, inf
      %v1675 = vsel %vm1674, %v1420, %v1673
      %vm1676 = vcmp.eq.f32.partialorder %v1420, 0.0
      %v1677 = vand.u32 %v1420, 2147483648
      %v1678 = vsel %vm1676, %v1677, %v1675
      %v1679 = vrsqrt.pop %v1423
      %v1680 = vmul.f32 %v1679, %v1423
      %v1681 = vmul.f32 %v1680, %v1679
      %v1682 = vmul.f32 0.5, %v1681
      %v1683 = vsub.f32 1.5, %v1682
      %v1684 = vmul.f32 %v1679, %v1683
      %v1685 = vmul.f32 %v1423, %v1684
      %vm1686 = vcmp.eq.f32.partialorder %v1423, inf
      %v1687 = vsel %vm1686, %v1423, %v1685
      %vm1688 = vcmp.eq.f32.partialorder %v1423, 0.0
      %v1689 = vand.u32 %v1423, 2147483648
      %v1690 = vsel %vm1688, %v1689, %v1687
      %v1691 = vrsqrt.pop %v1426
      %v1692 = vmul.f32 %v1691, %v1426
      %v1693 = vmul.f32 %v1692, %v1691
      %v1694 = vmul.f32 0.5, %v1693
      %v1695 = vsub.f32 1.5, %v1694
      %v1696 = vmul.f32 %v1691, %v1695
      %v1697 = vmul.f32 %v1426, %v1696
      %vm1698 = vcmp.eq.f32.partialorder %v1426, inf
      %v1699 = vsel %vm1698, %v1426, %v1697
      %vm1700 = vcmp.eq.f32.partialorder %v1426, 0.0
      %v1701 = vand.u32 %v1426, 2147483648
      %v1702 = vsel %vm1700, %v1701, %v1699
      %v1703 = vrsqrt.pop %v1429
      %v1704 = vmul.f32 %v1703, %v1429
      %v1705 = vmul.f32 %v1704, %v1703
      %v1706 = vmul.f32 0.5, %v1705
      %v1707 = vsub.f32 1.5, %v1706
      %v1708 = vmul.f32 %v1703, %v1707
      %v1709 = vmul.f32 %v1429, %v1708
      %vm1710 = vcmp.eq.f32.partialorder %v1429, inf
      %v1711 = vsel %vm1710, %v1429, %v1709
      %vm1712 = vcmp.eq.f32.partialorder %v1429, 0.0
      %v1713 = vand.u32 %v1429, 2147483648
      %v1714 = vsel %vm1712, %v1713, %v1711
      %v1715 = vrsqrt.pop %v1432
      %v1716 = vmul.f32 %v1715, %v1432
      %v1717 = vmul.f32 %v1716, %v1715
      %v1718 = vmul.f32 0.5, %v1717
      %v1719 = vsub.f32 1.5, %v1718
      %v1720 = vmul.f32 %v1715, %v1719
      %v1721 = vmul.f32 %v1432, %v1720
      %vm1722 = vcmp.eq.f32.partialorder %v1432, inf
      %v1723 = vsel %vm1722, %v1432, %v1721
      %vm1724 = vcmp.eq.f32.partialorder %v1432, 0.0
      %v1725 = vand.u32 %v1432, 2147483648
      %v1726 = vsel %vm1724, %v1725, %v1723
      %v1727 = vrsqrt.pop %v1435
      %v1728 = vmul.f32 %v1727, %v1435
      %v1729 = vmul.f32 %v1728, %v1727
      %v1730 = vmul.f32 0.5, %v1729
      %v1731 = vsub.f32 1.5, %v1730
      %v1732 = vmul.f32 %v1727, %v1731
      %v1733 = vmul.f32 %v1435, %v1732
      %vm1734 = vcmp.eq.f32.partialorder %v1435, inf
      %v1735 = vsel %vm1734, %v1435, %v1733
      %vm1736 = vcmp.eq.f32.partialorder %v1435, 0.0
      %v1737 = vand.u32 %v1435, 2147483648
      %v1738 = vsel %vm1736, %v1737, %v1735
      %v1739 = vrsqrt.pop %v1438
      %v1740 = vmul.f32 %v1739, %v1438
      %v1741 = vmul.f32 %v1740, %v1739
      %v1742 = vmul.f32 0.5, %v1741
      %v1743 = vsub.f32 1.5, %v1742
      %v1744 = vmul.f32 %v1739, %v1743
      %v1745 = vmul.f32 %v1438, %v1744
      %vm1746 = vcmp.eq.f32.partialorder %v1438, inf
      %v1747 = vsel %vm1746, %v1438, %v1745
      %vm1748 = vcmp.eq.f32.partialorder %v1438, 0.0
      %v1749 = vand.u32 %v1438, 2147483648
      %v1750 = vsel %vm1748, %v1749, %v1747
      %v1751 = vrsqrt.pop %v1441
      %v1752 = vmul.f32 %v1751, %v1441
      %v1753 = vmul.f32 %v1752, %v1751
      %v1754 = vmul.f32 0.5, %v1753
      %v1755 = vsub.f32 1.5, %v1754
      %v1756 = vmul.f32 %v1751, %v1755
      %v1757 = vmul.f32 %v1441, %v1756
      %vm1758 = vcmp.eq.f32.partialorder %v1441, inf
      %v1759 = vsel %vm1758, %v1441, %v1757
      %vm1760 = vcmp.eq.f32.partialorder %v1441, 0.0
      %v1761 = vand.u32 %v1441, 2147483648
      %v1762 = vsel %vm1760, %v1761, %v1759
      %v1763 = vrsqrt.pop %v1444
      %v1764 = vmul.f32 %v1763, %v1444
      %v1765 = vmul.f32 %v1764, %v1763
      %v1766 = vmul.f32 0.5, %v1765
      %v1767 = vsub.f32 1.5, %v1766
      %v1768 = vmul.f32 %v1763, %v1767
      %v1769 = vmul.f32 %v1444, %v1768
      %vm1770 = vcmp.eq.f32.partialorder %v1444, inf
      %v1771 = vsel %vm1770, %v1444, %v1769
      %vm1772 = vcmp.eq.f32.partialorder %v1444, 0.0
      %v1773 = vand.u32 %v1444, 2147483648
      %v1774 = vsel %vm1772, %v1773, %v1771
      %v1775 = vrsqrt.pop %v1447
      %v1776 = vmul.f32 %v1775, %v1447
      %v1777 = vmul.f32 %v1776, %v1775
      %v1778 = vmul.f32 0.5, %v1777
      %v1779 = vsub.f32 1.5, %v1778
      %v1780 = vmul.f32 %v1775, %v1779
      %v1781 = vmul.f32 %v1447, %v1780
      %vm1782 = vcmp.eq.f32.partialorder %v1447, inf
      %v1783 = vsel %vm1782, %v1447, %v1781
      %vm1784 = vcmp.eq.f32.partialorder %v1447, 0.0
      %v1785 = vand.u32 %v1447, 2147483648
      %v1786 = vsel %vm1784, %v1785, %v1783
      %v1787 = vrsqrt.pop %v1450
      %v1788 = vmul.f32 %v1787, %v1450
      %v1789 = vmul.f32 %v1788, %v1787
      %v1790 = vmul.f32 0.5, %v1789
      %v1791 = vsub.f32 1.5, %v1790
      %v1792 = vmul.f32 %v1787, %v1791
      %v1793 = vmul.f32 %v1450, %v1792
      %vm1794 = vcmp.eq.f32.partialorder %v1450, inf
      %v1795 = vsel %vm1794, %v1450, %v1793
      %vm1796 = vcmp.eq.f32.partialorder %v1450, 0.0
      %v1797 = vand.u32 %v1450, 2147483648
      %v1798 = vsel %vm1796, %v1797, %v1795
      %v1799 = vrsqrt.pop %v1453
      %v1800 = vmul.f32 %v1799, %v1453
      %v1801 = vmul.f32 %v1800, %v1799
      %v1802 = vmul.f32 0.5, %v1801
      %v1803 = vsub.f32 1.5, %v1802
      %v1804 = vmul.f32 %v1799, %v1803
      %v1805 = vmul.f32 %v1453, %v1804
      %vm1806 = vcmp.eq.f32.partialorder %v1453, inf
      %v1807 = vsel %vm1806, %v1453, %v1805
      %vm1808 = vcmp.eq.f32.partialorder %v1453, 0.0
      %v1809 = vand.u32 %v1453, 2147483648
      %v1810 = vsel %vm1808, %v1809, %v1807
      %v1811 = vrsqrt.pop %v1456
      %v1812 = vmul.f32 %v1811, %v1456
      %v1813 = vmul.f32 %v1812, %v1811
      %v1814 = vmul.f32 0.5, %v1813
      %v1815 = vsub.f32 1.5, %v1814
      %v1816 = vmul.f32 %v1811, %v1815
      %v1817 = vmul.f32 %v1456, %v1816
      %vm1818 = vcmp.eq.f32.partialorder %v1456, inf
      %v1819 = vsel %vm1818, %v1456, %v1817
      %vm1820 = vcmp.eq.f32.partialorder %v1456, 0.0
      %v1821 = vand.u32 %v1456, 2147483648
      %v1822 = vsel %vm1820, %v1821, %v1819
      %v1823 = vrsqrt.pop %v1459
      %v1824 = vmul.f32 %v1823, %v1459
      %v1825 = vmul.f32 %v1824, %v1823
      %v1826 = vmul.f32 0.5, %v1825
      %v1827 = vsub.f32 1.5, %v1826
      %v1828 = vmul.f32 %v1823, %v1827
      %v1829 = vmul.f32 %v1459, %v1828
      %vm1830 = vcmp.eq.f32.partialorder %v1459, inf
      %v1831 = vsel %vm1830, %v1459, %v1829
      %vm1832 = vcmp.eq.f32.partialorder %v1459, 0.0
      %v1833 = vand.u32 %v1459, 2147483648
      %v1834 = vsel %vm1832, %v1833, %v1831
      %v1835 = vrsqrt.pop %v1462
      %v1836 = vmul.f32 %v1835, %v1462
      %v1837 = vmul.f32 %v1836, %v1835
      %v1838 = vmul.f32 0.5, %v1837
      %v1839 = vsub.f32 1.5, %v1838
      %v1840 = vmul.f32 %v1835, %v1839
      %v1841 = vmul.f32 %v1462, %v1840
      %vm1842 = vcmp.eq.f32.partialorder %v1462, inf
      %v1843 = vsel %vm1842, %v1462, %v1841
      %vm1844 = vcmp.eq.f32.partialorder %v1462, 0.0
      %v1845 = vand.u32 %v1462, 2147483648
      %v1846 = vsel %vm1844, %v1845, %v1843
      %v1847 = vmax.f32 %v1474, 1e-12
      %v1848 = vmax.f32 %v1486, 1e-12
      %v1849 = vmax.f32 %v1498, 1e-12
      %v1850 = vmax.f32 %v1510, 1e-12
      %v1851 = vmax.f32 %v1522, 1e-12
      %v1852 = vmax.f32 %v1534, 1e-12
      %v1853 = vmax.f32 %v1546, 1e-12
      %v1854 = vmax.f32 %v1558, 1e-12
      %v1855 = vmax.f32 %v1570, 1e-12
      %v1856 = vmax.f32 %v1582, 1e-12
      %v1857 = vmax.f32 %v1594, 1e-12
      %v1858 = vmax.f32 %v1606, 1e-12
      %v1859 = vmax.f32 %v1618, 1e-12
      %v1860 = vmax.f32 %v1630, 1e-12
      %v1861 = vmax.f32 %v1642, 1e-12
      %v1862 = vmax.f32 %v1654, 1e-12
      %v1863 = vmax.f32 %v1666, 1e-12
      %v1864 = vmax.f32 %v1678, 1e-12
      %v1865 = vmax.f32 %v1690, 1e-12
      %v1866 = vmax.f32 %v1702, 1e-12
      %v1867 = vmax.f32 %v1714, 1e-12
      %v1868 = vmax.f32 %v1726, 1e-12
      %v1869 = vmax.f32 %v1738, 1e-12
      %v1870 = vmax.f32 %v1750, 1e-12
      %v1871 = vmax.f32 %v1762, 1e-12
      %v1872 = vmax.f32 %v1774, 1e-12
      %v1873 = vmax.f32 %v1786, 1e-12
      %v1874 = vmax.f32 %v1798, 1e-12
      %v1875 = vmax.f32 %v1810, 1e-12
      %v1876 = vmax.f32 %v1822, 1e-12
      %v1877 = vmax.f32 %v1834, 1e-12
      %v1878 = vmax.f32 %v1846, 1e-12
      %v1879 = vrcp.pop %v1847
      %v1880 = vmul.f32 %v1847, %v1879
      %v1881 = vsub.f32 1.0, %v1880
      %v1882 = vmul.f32 %v1879, %v1881
      %v1883 = vadd.f32 %v1879, %v1882
      %vm1884 = vweird.f32 %v1847
      %vm1885 = vweird.f32 %v1879
      %vm1886 = vmor %vm1884, %vm1885
      %v1887 = vsel %vm1886, %v1879, %v1883
      %v1888 = vand.u32 2147483647, %v1847
      %vm1889 = vcmp.eq.f32.partialorder %v1888, 8.507059e+37
      %v1890 = vand.u32 %v1847, 2147483648
      %v1891 = vor.u32 1.1754944e-38, %v1890
      %v1892 = vsel %vm1889, %v1891, %v1887
      %v1893 = vmul.f32 %v1303, %v1892
      %v1894 = vrcp.pop %v1848
      %v1895 = vmul.f32 %v1848, %v1894
      %v1896 = vsub.f32 1.0, %v1895
      %v1897 = vmul.f32 %v1894, %v1896
      %v1898 = vadd.f32 %v1894, %v1897
      %vm1899 = vweird.f32 %v1848
      %vm1900 = vweird.f32 %v1894
      %vm1901 = vmor %vm1899, %vm1900
      %v1902 = vsel %vm1901, %v1894, %v1898
      %v1903 = vand.u32 2147483647, %v1848
      %vm1904 = vcmp.eq.f32.partialorder %v1903, 8.507059e+37
      %v1905 = vand.u32 %v1848, 2147483648
      %v1906 = vor.u32 1.1754944e-38, %v1905
      %v1907 = vsel %vm1904, %v1906, %v1902
      %v1908 = vmul.f32 %v1304, %v1907
      %v1909 = vrcp.pop %v1849
      %v1910 = vmul.f32 %v1849, %v1909
      %v1911 = vsub.f32 1.0, %v1910
      %v1912 = vmul.f32 %v1909, %v1911
      %v1913 = vadd.f32 %v1909, %v1912
      %vm1914 = vweird.f32 %v1849
      %vm1915 = vweird.f32 %v1909
      %vm1916 = vmor %vm1914, %vm1915
      %v1917 = vsel %vm1916, %v1909, %v1913
      %v1918 = vand.u32 2147483647, %v1849
      %vm1919 = vcmp.eq.f32.partialorder %v1918, 8.507059e+37
      %v1920 = vand.u32 %v1849, 2147483648
      %v1921 = vor.u32 1.1754944e-38, %v1920
      %v1922 = vsel %vm1919, %v1921, %v1917
      %v1923 = vmul.f32 %v1305, %v1922
      %v1924 = vrcp.pop %v1850
      %v1925 = vmul.f32 %v1850, %v1924
      %v1926 = vsub.f32 1.0, %v1925
      %v1927 = vmul.f32 %v1924, %v1926
      %v1928 = vadd.f32 %v1924, %v1927
      %vm1929 = vweird.f32 %v1850
      %vm1930 = vweird.f32 %v1924
      %vm1931 = vmor %vm1929, %vm1930
      %v1932 = vsel %vm1931, %v1924, %v1928
      %v1933 = vand.u32 2147483647, %v1850
      %vm1934 = vcmp.eq.f32.partialorder %v1933, 8.507059e+37
      %v1935 = vand.u32 %v1850, 2147483648
      %v1936 = vor.u32 1.1754944e-38, %v1935
      %v1937 = vsel %vm1934, %v1936, %v1932
      %v1938 = vmul.f32 %v1306, %v1937
      %v1939 = vrcp.pop %v1851
      %v1940 = vmul.f32 %v1851, %v1939
      %v1941 = vsub.f32 1.0, %v1940
      %v1942 = vmul.f32 %v1939, %v1941
      %v1943 = vadd.f32 %v1939, %v1942
      %vm1944 = vweird.f32 %v1851
      %vm1945 = vweird.f32 %v1939
      %vm1946 = vmor %vm1944, %vm1945
      %v1947 = vsel %vm1946, %v1939, %v1943
      %v1948 = vand.u32 2147483647, %v1851
      %vm1949 = vcmp.eq.f32.partialorder %v1948, 8.507059e+37
      %v1950 = vand.u32 %v1851, 2147483648
      %v1951 = vor.u32 1.1754944e-38, %v1950
      %v1952 = vsel %vm1949, %v1951, %v1947
      %v1953 = vmul.f32 %v1307, %v1952
      %v1954 = vrcp.pop %v1852
      %v1955 = vmul.f32 %v1852, %v1954
      %v1956 = vsub.f32 1.0, %v1955
      %v1957 = vmul.f32 %v1954, %v1956
      %v1958 = vadd.f32 %v1954, %v1957
      %vm1959 = vweird.f32 %v1852
      %vm1960 = vweird.f32 %v1954
      %vm1961 = vmor %vm1959, %vm1960
      %v1962 = vsel %vm1961, %v1954, %v1958
      %v1963 = vand.u32 2147483647, %v1852
      %vm1964 = vcmp.eq.f32.partialorder %v1963, 8.507059e+37
      %v1965 = vand.u32 %v1852, 2147483648
      %v1966 = vor.u32 1.1754944e-38, %v1965
      %v1967 = vsel %vm1964, %v1966, %v1962
      %v1968 = vmul.f32 %v1308, %v1967
      %v1969 = vrcp.pop %v1853
      %v1970 = vmul.f32 %v1853, %v1969
      %v1971 = vsub.f32 1.0, %v1970
      %v1972 = vmul.f32 %v1969, %v1971
      %v1973 = vadd.f32 %v1969, %v1972
      %vm1974 = vweird.f32 %v1853
      %vm1975 = vweird.f32 %v1969
      %vm1976 = vmor %vm1974, %vm1975
      %v1977 = vsel %vm1976, %v1969, %v1973
      %v1978 = vand.u32 2147483647, %v1853
      %vm1979 = vcmp.eq.f32.partialorder %v1978, 8.507059e+37
      %v1980 = vand.u32 %v1853, 2147483648
      %v1981 = vor.u32 1.1754944e-38, %v1980
      %v1982 = vsel %vm1979, %v1981, %v1977
      %v1983 = vmul.f32 %v1309, %v1982
      %v1984 = vrcp.pop %v1854
      %v1985 = vmul.f32 %v1854, %v1984
      %v1986 = vsub.f32 1.0, %v1985
      %v1987 = vmul.f32 %v1984, %v1986
      %v1988 = vadd.f32 %v1984, %v1987
      %vm1989 = vweird.f32 %v1854
      %vm1990 = vweird.f32 %v1984
      %vm1991 = vmor %vm1989, %vm1990
      %v1992 = vsel %vm1991, %v1984, %v1988
      %v1993 = vand.u32 2147483647, %v1854
      %vm1994 = vcmp.eq.f32.partialorder %v1993, 8.507059e+37
      %v1995 = vand.u32 %v1854, 2147483648
      %v1996 = vor.u32 1.1754944e-38, %v1995
      %v1997 = vsel %vm1994, %v1996, %v1992
      %v1998 = vmul.f32 %v1310, %v1997
      %v1999 = vrcp.pop %v1855
      %v2000 = vmul.f32 %v1855, %v1999
      %v2001 = vsub.f32 1.0, %v2000
      %v2002 = vmul.f32 %v1999, %v2001
      %v2003 = vadd.f32 %v1999, %v2002
      %vm2004 = vweird.f32 %v1855
      %vm2005 = vweird.f32 %v1999
      %vm2006 = vmor %vm2004, %vm2005
      %v2007 = vsel %vm2006, %v1999, %v2003
      %v2008 = vand.u32 2147483647, %v1855
      %vm2009 = vcmp.eq.f32.partialorder %v2008, 8.507059e+37
      %v2010 = vand.u32 %v1855, 2147483648
      %v2011 = vor.u32 1.1754944e-38, %v2010
      %v2012 = vsel %vm2009, %v2011, %v2007
      %v2013 = vmul.f32 %v1311, %v2012
      %v2014 = vrcp.pop %v1856
      %v2015 = vmul.f32 %v1856, %v2014
      %v2016 = vsub.f32 1.0, %v2015
      %v2017 = vmul.f32 %v2014, %v2016
      %v2018 = vadd.f32 %v2014, %v2017
      %vm2019 = vweird.f32 %v1856
      %vm2020 = vweird.f32 %v2014
      %vm2021 = vmor %vm2019, %vm2020
      %v2022 = vsel %vm2021, %v2014, %v2018
      %v2023 = vand.u32 2147483647, %v1856
      %vm2024 = vcmp.eq.f32.partialorder %v2023, 8.507059e+37
      %v2025 = vand.u32 %v1856, 2147483648
      %v2026 = vor.u32 1.1754944e-38, %v2025
      %v2027 = vsel %vm2024, %v2026, %v2022
      %v2028 = vmul.f32 %v1312, %v2027
      %v2029 = vrcp.pop %v1857
      %v2030 = vmul.f32 %v1857, %v2029
      %v2031 = vsub.f32 1.0, %v2030
      %v2032 = vmul.f32 %v2029, %v2031
      %v2033 = vadd.f32 %v2029, %v2032
      %vm2034 = vweird.f32 %v1857
      %vm2035 = vweird.f32 %v2029
      %vm2036 = vmor %vm2034, %vm2035
      %v2037 = vsel %vm2036, %v2029, %v2033
      %v2038 = vand.u32 2147483647, %v1857
      %vm2039 = vcmp.eq.f32.partialorder %v2038, 8.507059e+37
      %v2040 = vand.u32 %v1857, 2147483648
      %v2041 = vor.u32 1.1754944e-38, %v2040
      %v2042 = vsel %vm2039, %v2041, %v2037
      %v2043 = vmul.f32 %v1313, %v2042
      %v2044 = vrcp.pop %v1858
      %v2045 = vmul.f32 %v1858, %v2044
      %v2046 = vsub.f32 1.0, %v2045
      %v2047 = vmul.f32 %v2044, %v2046
      %v2048 = vadd.f32 %v2044, %v2047
      %vm2049 = vweird.f32 %v1858
      %vm2050 = vweird.f32 %v2044
      %vm2051 = vmor %vm2049, %vm2050
      %v2052 = vsel %vm2051, %v2044, %v2048
      %v2053 = vand.u32 2147483647, %v1858
      %vm2054 = vcmp.eq.f32.partialorder %v2053, 8.507059e+37
      %v2055 = vand.u32 %v1858, 2147483648
      %v2056 = vor.u32 1.1754944e-38, %v2055
      %v2057 = vsel %vm2054, %v2056, %v2052
      %v2058 = vmul.f32 %v1314, %v2057
      %v2059 = vrcp.pop %v1859
      %v2060 = vmul.f32 %v1859, %v2059
      %v2061 = vsub.f32 1.0, %v2060
      %v2062 = vmul.f32 %v2059, %v2061
      %v2063 = vadd.f32 %v2059, %v2062
      %vm2064 = vweird.f32 %v1859
      %vm2065 = vweird.f32 %v2059
      %vm2066 = vmor %vm2064, %vm2065
      %v2067 = vsel %vm2066, %v2059, %v2063
      %v2068 = vand.u32 2147483647, %v1859
      %vm2069 = vcmp.eq.f32.partialorder %v2068, 8.507059e+37
      %v2070 = vand.u32 %v1859, 2147483648
      %v2071 = vor.u32 1.1754944e-38, %v2070
      %v2072 = vsel %vm2069, %v2071, %v2067
      %v2073 = vmul.f32 %v1315, %v2072
      %v2074 = vrcp.pop %v1860
      %v2075 = vmul.f32 %v1860, %v2074
      %v2076 = vsub.f32 1.0, %v2075
      %v2077 = vmul.f32 %v2074, %v2076
      %v2078 = vadd.f32 %v2074, %v2077
      %vm2079 = vweird.f32 %v1860
      %vm2080 = vweird.f32 %v2074
      %vm2081 = vmor %vm2079, %vm2080
      %v2082 = vsel %vm2081, %v2074, %v2078
      %v2083 = vand.u32 2147483647, %v1860
      %vm2084 = vcmp.eq.f32.partialorder %v2083, 8.507059e+37
      %v2085 = vand.u32 %v1860, 2147483648
      %v2086 = vor.u32 1.1754944e-38, %v2085
      %v2087 = vsel %vm2084, %v2086, %v2082
      %v2088 = vmul.f32 %v1316, %v2087
      %v2089 = vrcp.pop %v1861
      %v2090 = vmul.f32 %v1861, %v2089
      %v2091 = vsub.f32 1.0, %v2090
      %v2092 = vmul.f32 %v2089, %v2091
      %v2093 = vadd.f32 %v2089, %v2092
      %vm2094 = vweird.f32 %v1861
      %vm2095 = vweird.f32 %v2089
      %vm2096 = vmor %vm2094, %vm2095
      %v2097 = vsel %vm2096, %v2089, %v2093
      %v2098 = vand.u32 2147483647, %v1861
      %vm2099 = vcmp.eq.f32.partialorder %v2098, 8.507059e+37
      %v2100 = vand.u32 %v1861, 2147483648
      %v2101 = vor.u32 1.1754944e-38, %v2100
      %v2102 = vsel %vm2099, %v2101, %v2097
      %v2103 = vmul.f32 %v1317, %v2102
      %v2104 = vrcp.pop %v1862
      %v2105 = vmul.f32 %v1862, %v2104
      %v2106 = vsub.f32 1.0, %v2105
      %v2107 = vmul.f32 %v2104, %v2106
      %v2108 = vadd.f32 %v2104, %v2107
      %vm2109 = vweird.f32 %v1862
      %vm2110 = vweird.f32 %v2104
      %vm2111 = vmor %vm2109, %vm2110
      %v2112 = vsel %vm2111, %v2104, %v2108
      %v2113 = vand.u32 2147483647, %v1862
      %vm2114 = vcmp.eq.f32.partialorder %v2113, 8.507059e+37
      %v2115 = vand.u32 %v1862, 2147483648
      %v2116 = vor.u32 1.1754944e-38, %v2115
      %v2117 = vsel %vm2114, %v2116, %v2112
      %v2118 = vmul.f32 %v1318, %v2117
      %v2119 = vrcp.pop %v1863
      %v2120 = vmul.f32 %v1863, %v2119
      %v2121 = vsub.f32 1.0, %v2120
      %v2122 = vmul.f32 %v2119, %v2121
      %v2123 = vadd.f32 %v2119, %v2122
      %vm2124 = vweird.f32 %v1863
      %vm2125 = vweird.f32 %v2119
      %vm2126 = vmor %vm2124, %vm2125
      %v2127 = vsel %vm2126, %v2119, %v2123
      %v2128 = vand.u32 2147483647, %v1863
      %vm2129 = vcmp.eq.f32.partialorder %v2128, 8.507059e+37
      %v2130 = vand.u32 %v1863, 2147483648
      %v2131 = vor.u32 1.1754944e-38, %v2130
      %v2132 = vsel %vm2129, %v2131, %v2127
      %v2133 = vmul.f32 %v1319, %v2132
      %v2134 = vrcp.pop %v1864
      %v2135 = vmul.f32 %v1864, %v2134
      %v2136 = vsub.f32 1.0, %v2135
      %v2137 = vmul.f32 %v2134, %v2136
      %v2138 = vadd.f32 %v2134, %v2137
      %vm2139 = vweird.f32 %v1864
      %vm2140 = vweird.f32 %v2134
      %vm2141 = vmor %vm2139, %vm2140
      %v2142 = vsel %vm2141, %v2134, %v2138
      %v2143 = vand.u32 2147483647, %v1864
      %vm2144 = vcmp.eq.f32.partialorder %v2143, 8.507059e+37
      %v2145 = vand.u32 %v1864, 2147483648
      %v2146 = vor.u32 1.1754944e-38, %v2145
      %v2147 = vsel %vm2144, %v2146, %v2142
      %v2148 = vmul.f32 %v1320, %v2147
      %v2149 = vrcp.pop %v1865
      %v2150 = vmul.f32 %v1865, %v2149
      %v2151 = vsub.f32 1.0, %v2150
      %v2152 = vmul.f32 %v2149, %v2151
      %v2153 = vadd.f32 %v2149, %v2152
      %vm2154 = vweird.f32 %v1865
      %vm2155 = vweird.f32 %v2149
      %vm2156 = vmor %vm2154, %vm2155
      %v2157 = vsel %vm2156, %v2149, %v2153
      %v2158 = vand.u32 2147483647, %v1865
      %vm2159 = vcmp.eq.f32.partialorder %v2158, 8.507059e+37
      %v2160 = vand.u32 %v1865, 2147483648
      %v2161 = vor.u32 1.1754944e-38, %v2160
      %v2162 = vsel %vm2159, %v2161, %v2157
      %v2163 = vmul.f32 %v1321, %v2162
      %v2164 = vrcp.pop %v1866
      %v2165 = vmul.f32 %v1866, %v2164
      %v2166 = vsub.f32 1.0, %v2165
      %v2167 = vmul.f32 %v2164, %v2166
      %v2168 = vadd.f32 %v2164, %v2167
      %vm2169 = vweird.f32 %v1866
      %vm2170 = vweird.f32 %v2164
      %vm2171 = vmor %vm2169, %vm2170
      %v2172 = vsel %vm2171, %v2164, %v2168
      %v2173 = vand.u32 2147483647, %v1866
      %vm2174 = vcmp.eq.f32.partialorder %v2173, 8.507059e+37
      %v2175 = vand.u32 %v1866, 2147483648
      %v2176 = vor.u32 1.1754944e-38, %v2175
      %v2177 = vsel %vm2174, %v2176, %v2172
      %v2178 = vmul.f32 %v1322, %v2177
      %v2179 = vrcp.pop %v1867
      %v2180 = vmul.f32 %v1867, %v2179
      %v2181 = vsub.f32 1.0, %v2180
      %v2182 = vmul.f32 %v2179, %v2181
      %v2183 = vadd.f32 %v2179, %v2182
      %vm2184 = vweird.f32 %v1867
      %vm2185 = vweird.f32 %v2179
      %vm2186 = vmor %vm2184, %vm2185
      %v2187 = vsel %vm2186, %v2179, %v2183
      %v2188 = vand.u32 2147483647, %v1867
      %vm2189 = vcmp.eq.f32.partialorder %v2188, 8.507059e+37
      %v2190 = vand.u32 %v1867, 2147483648
      %v2191 = vor.u32 1.1754944e-38, %v2190
      %v2192 = vsel %vm2189, %v2191, %v2187
      %v2193 = vmul.f32 %v1323, %v2192
      %v2194 = vrcp.pop %v1868
      %v2195 = vmul.f32 %v1868, %v2194
      %v2196 = vsub.f32 1.0, %v2195
      %v2197 = vmul.f32 %v2194, %v2196
      %v2198 = vadd.f32 %v2194, %v2197
      %vm2199 = vweird.f32 %v1868
      %vm2200 = vweird.f32 %v2194
      %vm2201 = vmor %vm2199, %vm2200
      %v2202 = vsel %vm2201, %v2194, %v2198
      %v2203 = vand.u32 2147483647, %v1868
      %vm2204 = vcmp.eq.f32.partialorder %v2203, 8.507059e+37
      %v2205 = vand.u32 %v1868, 2147483648
      %v2206 = vor.u32 1.1754944e-38, %v2205
      %v2207 = vsel %vm2204, %v2206, %v2202
      %v2208 = vmul.f32 %v1324, %v2207
      %v2209 = vrcp.pop %v1869
      %v2210 = vmul.f32 %v1869, %v2209
      %v2211 = vsub.f32 1.0, %v2210
      %v2212 = vmul.f32 %v2209, %v2211
      %v2213 = vadd.f32 %v2209, %v2212
      %vm2214 = vweird.f32 %v1869
      %vm2215 = vweird.f32 %v2209
      %vm2216 = vmor %vm2214, %vm2215
      %v2217 = vsel %vm2216, %v2209, %v2213
      %v2218 = vand.u32 2147483647, %v1869
      %vm2219 = vcmp.eq.f32.partialorder %v2218, 8.507059e+37
      %v2220 = vand.u32 %v1869, 2147483648
      %v2221 = vor.u32 1.1754944e-38, %v2220
      %v2222 = vsel %vm2219, %v2221, %v2217
      %v2223 = vmul.f32 %v1325, %v2222
      %v2224 = vrcp.pop %v1870
      %v2225 = vmul.f32 %v1870, %v2224
      %v2226 = vsub.f32 1.0, %v2225
      %v2227 = vmul.f32 %v2224, %v2226
      %v2228 = vadd.f32 %v2224, %v2227
      %vm2229 = vweird.f32 %v1870
      %vm2230 = vweird.f32 %v2224
      %vm2231 = vmor %vm2229, %vm2230
      %v2232 = vsel %vm2231, %v2224, %v2228
      %v2233 = vand.u32 2147483647, %v1870
      %vm2234 = vcmp.eq.f32.partialorder %v2233, 8.507059e+37
      %v2235 = vand.u32 %v1870, 2147483648
      %v2236 = vor.u32 1.1754944e-38, %v2235
      %v2237 = vsel %vm2234, %v2236, %v2232
      %v2238 = vmul.f32 %v1326, %v2237
      %v2239 = vrcp.pop %v1871
      %v2240 = vmul.f32 %v1871, %v2239
      %v2241 = vsub.f32 1.0, %v2240
      %v2242 = vmul.f32 %v2239, %v2241
      %v2243 = vadd.f32 %v2239, %v2242
      %vm2244 = vweird.f32 %v1871
      %vm2245 = vweird.f32 %v2239
      %vm2246 = vmor %vm2244, %vm2245
      %v2247 = vsel %vm2246, %v2239, %v2243
      %v2248 = vand.u32 2147483647, %v1871
      %vm2249 = vcmp.eq.f32.partialorder %v2248, 8.507059e+37
      %v2250 = vand.u32 %v1871, 2147483648
      %v2251 = vor.u32 1.1754944e-38, %v2250
      %v2252 = vsel %vm2249, %v2251, %v2247
      %v2253 = vmul.f32 %v1327, %v2252
      %v2254 = vrcp.pop %v1872
      %v2255 = vmul.f32 %v1872, %v2254
      %v2256 = vsub.f32 1.0, %v2255
      %v2257 = vmul.f32 %v2254, %v2256
      %v2258 = vadd.f32 %v2254, %v2257
      %vm2259 = vweird.f32 %v1872
      %vm2260 = vweird.f32 %v2254
      %vm2261 = vmor %vm2259, %vm2260
      %v2262 = vsel %vm2261, %v2254, %v2258
      %v2263 = vand.u32 2147483647, %v1872
      %vm2264 = vcmp.eq.f32.partialorder %v2263, 8.507059e+37
      %v2265 = vand.u32 %v1872, 2147483648
      %v2266 = vor.u32 1.1754944e-38, %v2265
      %v2267 = vsel %vm2264, %v2266, %v2262
      %v2268 = vmul.f32 %v1328, %v2267
      %v2269 = vrcp.pop %v1873
      %v2270 = vmul.f32 %v1873, %v2269
      %v2271 = vsub.f32 1.0, %v2270
      %v2272 = vmul.f32 %v2269, %v2271
      %v2273 = vadd.f32 %v2269, %v2272
      %vm2274 = vweird.f32 %v1873
      %vm2275 = vweird.f32 %v2269
      %vm2276 = vmor %vm2274, %vm2275
      %v2277 = vsel %vm2276, %v2269, %v2273
      %v2278 = vand.u32 2147483647, %v1873
      %vm2279 = vcmp.eq.f32.partialorder %v2278, 8.507059e+37
      %v2280 = vand.u32 %v1873, 2147483648
      %v2281 = vor.u32 1.1754944e-38, %v2280
      %v2282 = vsel %vm2279, %v2281, %v2277
      %v2283 = vmul.f32 %v1329, %v2282
      %v2284 = vrcp.pop %v1874
      %v2285 = vmul.f32 %v1874, %v2284
      %v2286 = vsub.f32 1.0, %v2285
      %v2287 = vmul.f32 %v2284, %v2286
      %v2288 = vadd.f32 %v2284, %v2287
      %vm2289 = vweird.f32 %v1874
      %vm2290 = vweird.f32 %v2284
      %vm2291 = vmor %vm2289, %vm2290
      %v2292 = vsel %vm2291, %v2284, %v2288
      %v2293 = vand.u32 2147483647, %v1874
      %vm2294 = vcmp.eq.f32.partialorder %v2293, 8.507059e+37
      %v2295 = vand.u32 %v1874, 2147483648
      %v2296 = vor.u32 1.1754944e-38, %v2295
      %v2297 = vsel %vm2294, %v2296, %v2292
      %v2298 = vmul.f32 %v1330, %v2297
      %v2299 = vrcp.pop %v1875
      %v2300 = vmul.f32 %v1875, %v2299
      %v2301 = vsub.f32 1.0, %v2300
      %v2302 = vmul.f32 %v2299, %v2301
      %v2303 = vadd.f32 %v2299, %v2302
      %vm2304 = vweird.f32 %v1875
      %vm2305 = vweird.f32 %v2299
      %vm2306 = vmor %vm2304, %vm2305
      %v2307 = vsel %vm2306, %v2299, %v2303
      %v2308 = vand.u32 2147483647, %v1875
      %vm2309 = vcmp.eq.f32.partialorder %v2308, 8.507059e+37
      %v2310 = vand.u32 %v1875, 2147483648
      %v2311 = vor.u32 1.1754944e-38, %v2310
      %v2312 = vsel %vm2309, %v2311, %v2307
      %v2313 = vmul.f32 %v1331, %v2312
      %v2314 = vrcp.pop %v1876
      %v2315 = vmul.f32 %v1876, %v2314
      %v2316 = vsub.f32 1.0, %v2315
      %v2317 = vmul.f32 %v2314, %v2316
      %v2318 = vadd.f32 %v2314, %v2317
      %vm2319 = vweird.f32 %v1876
      %vm2320 = vweird.f32 %v2314
      %vm2321 = vmor %vm2319, %vm2320
      %v2322 = vsel %vm2321, %v2314, %v2318
      %v2323 = vand.u32 2147483647, %v1876
      %vm2324 = vcmp.eq.f32.partialorder %v2323, 8.507059e+37
      %v2325 = vand.u32 %v1876, 2147483648
      %v2326 = vor.u32 1.1754944e-38, %v2325
      %v2327 = vsel %vm2324, %v2326, %v2322
      %v2328 = vmul.f32 %v1332, %v2327
      %v2329 = vrcp.pop %v1877
      %v2330 = vmul.f32 %v1877, %v2329
      %v2331 = vsub.f32 1.0, %v2330
      %v2332 = vmul.f32 %v2329, %v2331
      %v2333 = vadd.f32 %v2329, %v2332
      %vm2334 = vweird.f32 %v1877
      %vm2335 = vweird.f32 %v2329
      %vm2336 = vmor %vm2334, %vm2335
      %v2337 = vsel %vm2336, %v2329, %v2333
      %v2338 = vand.u32 2147483647, %v1877
      %vm2339 = vcmp.eq.f32.partialorder %v2338, 8.507059e+37
      %v2340 = vand.u32 %v1877, 2147483648
      %v2341 = vor.u32 1.1754944e-38, %v2340
      %v2342 = vsel %vm2339, %v2341, %v2337
      %v2343 = vmul.f32 %v1333, %v2342
      %v2344 = vrcp.pop %v1878
      %v2345 = vmul.f32 %v1878, %v2344
      %v2346 = vsub.f32 1.0, %v2345
      %v2347 = vmul.f32 %v2344, %v2346
      %v2348 = vadd.f32 %v2344, %v2347
      %vm2349 = vweird.f32 %v1878
      %vm2350 = vweird.f32 %v2344
      %vm2351 = vmor %vm2349, %vm2350
      %v2352 = vsel %vm2351, %v2344, %v2348
      %v2353 = vand.u32 2147483647, %v1878
      %vm2354 = vcmp.eq.f32.partialorder %v2353, 8.507059e+37
      %v2355 = vand.u32 %v1878, 2147483648
      %v2356 = vor.u32 1.1754944e-38, %v2355
      %v2357 = vsel %vm2354, %v2356, %v2352
      %v2358 = vmul.f32 %v1334, %v2357
      %2360 = vset.pattern.permute.xlu0 0
      %2361 = vperm.xlu0 %2360, %v371
      %v2362 = vpop.permute.xlu0 %2361
      %2365 = vset.pattern.permute.xlu0 0
      %2366 = vperm.xlu0 %2365, %v372
      %v2367 = vpop.permute.xlu0 %2366
      %2370 = vset.pattern.permute.xlu0 0
      %2371 = vperm.xlu0 %2370, %v373
      %v2372 = vpop.permute.xlu0 %2371
      %2375 = vset.pattern.permute.xlu0 0
      %2376 = vperm.xlu0 %2375, %v374
      %v2377 = vpop.permute.xlu0 %2376
      %2380 = vset.pattern.permute.xlu0 0
      %2381 = vperm.xlu0 %2380, %v375
      %v2382 = vpop.permute.xlu0 %2381
      %2385 = vset.pattern.permute.xlu0 0
      %2386 = vperm.xlu0 %2385, %v376
      %v2387 = vpop.permute.xlu0 %2386
      %2390 = vset.pattern.permute.xlu0 0
      %2391 = vperm.xlu0 %2390, %v377
      %v2392 = vpop.permute.xlu0 %2391
      %2395 = vset.pattern.permute.xlu0 0
      %2396 = vperm.xlu0 %2395, %v378
      %v2397 = vpop.permute.xlu0 %2396
      %2400 = vset.pattern.permute.xlu0 0
      %2401 = vperm.xlu0 %2400, %v379
      %v2402 = vpop.permute.xlu0 %2401
      %2405 = vset.pattern.permute.xlu0 0
      %2406 = vperm.xlu0 %2405, %v380
      %v2407 = vpop.permute.xlu0 %2406
      %2410 = vset.pattern.permute.xlu0 0
      %2411 = vperm.xlu0 %2410, %v381
      %v2412 = vpop.permute.xlu0 %2411
      %2415 = vset.pattern.permute.xlu0 0
      %2416 = vperm.xlu0 %2415, %v382
      %v2417 = vpop.permute.xlu0 %2416
      %2420 = vset.pattern.permute.xlu0 0
      %2421 = vperm.xlu0 %2420, %v383
      %v2422 = vpop.permute.xlu0 %2421
      %2425 = vset.pattern.permute.xlu0 0
      %2426 = vperm.xlu0 %2425, %v384
      %v2427 = vpop.permute.xlu0 %2426
      %2430 = vset.pattern.permute.xlu0 0
      %2431 = vperm.xlu0 %2430, %v385
      %v2432 = vpop.permute.xlu0 %2431
      %2435 = vset.pattern.permute.xlu0 0
      %2436 = vperm.xlu0 %2435, %v386
      %v2437 = vpop.permute.xlu0 %2436
      %2440 = vset.pattern.permute.xlu0 0
      %2441 = vperm.xlu0 %2440, %v387
      %v2442 = vpop.permute.xlu0 %2441
      %2445 = vset.pattern.permute.xlu0 0
      %2446 = vperm.xlu0 %2445, %v388
      %v2447 = vpop.permute.xlu0 %2446
      %2450 = vset.pattern.permute.xlu0 0
      %2451 = vperm.xlu0 %2450, %v389
      %v2452 = vpop.permute.xlu0 %2451
      %2455 = vset.pattern.permute.xlu0 0
      %2456 = vperm.xlu0 %2455, %v390
      %v2457 = vpop.permute.xlu0 %2456
      %2460 = vset.pattern.permute.xlu0 0
      %2461 = vperm.xlu0 %2460, %v391
      %v2462 = vpop.permute.xlu0 %2461
      %2465 = vset.pattern.permute.xlu0 0
      %2466 = vperm.xlu0 %2465, %v392
      %v2467 = vpop.permute.xlu0 %2466
      %2470 = vset.pattern.permute.xlu0 0
      %2471 = vperm.xlu0 %2470, %v393
      %v2472 = vpop.permute.xlu0 %2471
      %2475 = vset.pattern.permute.xlu0 0
      %2476 = vperm.xlu0 %2475, %v394
      %v2477 = vpop.permute.xlu0 %2476
      %2480 = vset.pattern.permute.xlu0 0
      %2481 = vperm.xlu0 %2480, %v395
      %v2482 = vpop.permute.xlu0 %2481
      %2485 = vset.pattern.permute.xlu0 0
      %2486 = vperm.xlu0 %2485, %v396
      %v2487 = vpop.permute.xlu0 %2486
      %2490 = vset.pattern.permute.xlu0 0
      %2491 = vperm.xlu0 %2490, %v397
      %v2492 = vpop.permute.xlu0 %2491
      %2495 = vset.pattern.permute.xlu0 0
      %2496 = vperm.xlu0 %2495, %v398
      %v2497 = vpop.permute.xlu0 %2496
      %2500 = vset.pattern.permute.xlu0 0
      %2501 = vperm.xlu0 %2500, %v399
      %v2502 = vpop.permute.xlu0 %2501
      %2505 = vset.pattern.permute.xlu0 0
      %2506 = vperm.xlu0 %2505, %v400
      %v2507 = vpop.permute.xlu0 %2506
      %2510 = vset.pattern.permute.xlu0 0
      %2511 = vperm.xlu0 %2510, %v401
      %v2512 = vpop.permute.xlu0 %2511
      %2515 = vset.pattern.permute.xlu0 0
      %2516 = vperm.xlu0 %2515, %v402
      %v2517 = vpop.permute.xlu0 %2516
      %v2519 = vmul.f32 %v1893, %v2362
      %v2520 = vmul.f32 %v1908, %v2367
      %v2521 = vmul.f32 %v1923, %v2372
      %v2522 = vmul.f32 %v1938, %v2377
      %v2523 = vmul.f32 %v1953, %v2382
      %v2524 = vmul.f32 %v1968, %v2387
      %v2525 = vmul.f32 %v1983, %v2392
      %v2526 = vmul.f32 %v1998, %v2397
      %v2527 = vmul.f32 %v2013, %v2402
      %v2528 = vmul.f32 %v2028, %v2407
      %v2529 = vmul.f32 %v2043, %v2412
      %v2530 = vmul.f32 %v2058, %v2417
      %v2531 = vmul.f32 %v2073, %v2422
      %v2532 = vmul.f32 %v2088, %v2427
      %v2533 = vmul.f32 %v2103, %v2432
      %v2534 = vmul.f32 %v2118, %v2437
      %v2535 = vmul.f32 %v2133, %v2442
      %v2536 = vmul.f32 %v2148, %v2447
      %v2537 = vmul.f32 %v2163, %v2452
      %v2538 = vmul.f32 %v2178, %v2457
      %v2539 = vmul.f32 %v2193, %v2462
      %v2540 = vmul.f32 %v2208, %v2467
      %v2541 = vmul.f32 %v2223, %v2472
      %v2542 = vmul.f32 %v2238, %v2477
      %v2543 = vmul.f32 %v2253, %v2482
      %v2544 = vmul.f32 %v2268, %v2487
      %v2545 = vmul.f32 %v2283, %v2492
      %v2546 = vmul.f32 %v2298, %v2497
      %v2547 = vmul.f32 %v2313, %v2502
      %v2548 = vmul.f32 %v2328, %v2507
      %v2549 = vmul.f32 %v2343, %v2512
      %v2550 = vmul.f32 %v2358, %v2517
      %2551 = vst.msk [vmem:[#allocation2] sm:$0xff] %vm1089, 0.0
      %2552 = vst.msk [vmem:[#allocation2 + $0x8] sm:$0xff] %vm1089, 0.0
      %vm2553 = vcmask 254976
      %2554 = vst.msk [vmem:[#allocation2 + $0x10] sm:$0x3] %vm2553, 0.0
      %2555 = vst.msk [vmem:[#allocation2 + $0x18] sm:$0xff] %vm1089, 0.0
      %2556 = vst.msk [vmem:[#allocation2 + $0x20] sm:$0xff] %vm1089, 0.0
      %2557 = vst.msk [vmem:[#allocation2 + $0x28] sm:$0x3] %vm2553, 0.0
      %2558 = vst.msk [vmem:[#allocation2 + $0x30] sm:$0xff] %vm1089, 0.0
      %2559 = vst.msk [vmem:[#allocation2 + $0x38] sm:$0xff] %vm1089, 0.0
      %2560 = vst.msk [vmem:[#allocation2 + $0x40] sm:$0x3] %vm2553, 0.0
      %2561 = vst.msk [vmem:[#allocation2 + $0x48] sm:$0xff] %vm1089, 0.0
      %2562 = vst.msk [vmem:[#allocation2 + $0x50] sm:$0xff] %vm1089, 0.0
      %2563 = vst.msk [vmem:[#allocation2 + $0x58] sm:$0x3] %vm2553, 0.0
      %2564 = vst.msk [vmem:[#allocation2 + $0x60] sm:$0xff] %vm1089, 0.0
      %2565 = vst.msk [vmem:[#allocation2 + $0x68] sm:$0xff] %vm1089, 0.0
      %2566 = vst.msk [vmem:[#allocation2 + $0x70] sm:$0x3] %vm2553, 0.0
      %2567 = vst.msk [vmem:[#allocation2 + $0x78] sm:$0xff] %vm1089, 0.0
      %2568 = vst.msk [vmem:[#allocation2 + $0x80] sm:$0xff] %vm1089, 0.0
      %2569 = vst.msk [vmem:[#allocation2 + $0x88] sm:$0x3] %vm2553, 0.0
      %2570 = vst.msk [vmem:[#allocation2 + $0x90] sm:$0xff] %vm1089, 0.0
      %2571 = vst.msk [vmem:[#allocation2 + $0x98] sm:$0xff] %vm1089, 0.0
      %2572 = vst.msk [vmem:[#allocation2 + $0xa0] sm:$0x3] %vm2553, 0.0
      %2573 = vst.msk [vmem:[#allocation2 + $0xa8] sm:$0xff] %vm1089, 0.0
      %2574 = vst.msk [vmem:[#allocation2 + $0xb0] sm:$0xff] %vm1089, 0.0
      %2575 = vst.msk [vmem:[#allocation2 + $0xb8] sm:$0x3] %vm2553, 0.0
      %2576 = vst.msk [vmem:[#allocation2 + $0xc0] sm:$0xff] %vm1089, 0.0
      %2577 = vst.msk [vmem:[#allocation2 + $0xc8] sm:$0xff] %vm1089, 0.0
      %2578 = vst.msk [vmem:[#allocation2 + $0xd0] sm:$0x3] %vm2553, 0.0
      %2579 = vst.msk [vmem:[#allocation2 + $0xd8] sm:$0xff] %vm1089, 0.0
      %2580 = vst.msk [vmem:[#allocation2 + $0xe0] sm:$0xff] %vm1089, 0.0
      %2581 = vst.msk [vmem:[#allocation2 + $0xe8] sm:$0x3] %vm2553, 0.0
      %2582 = vst.msk [vmem:[#allocation2 + $0xf0] sm:$0xff] %vm1089, 0.0
      %2583 = vst.msk [vmem:[#allocation2 + $0xf8] sm:$0xff] %vm1089, 0.0
      %2584 = vst.msk [vmem:[#allocation2 + $0x100] sm:$0x3] %vm2553, 0.0
      %2585 = vst.msk [vmem:[#allocation2 + $0x108] sm:$0xff] %vm1089, 0.0
      %2586 = vst.msk [vmem:[#allocation2 + $0x110] sm:$0xff] %vm1089, 0.0
      %2587 = vst.msk [vmem:[#allocation2 + $0x118] sm:$0x3] %vm2553, 0.0
      %2588 = vst.msk [vmem:[#allocation2 + $0x120] sm:$0xff] %vm1089, 0.0
      %2589 = vst.msk [vmem:[#allocation2 + $0x128] sm:$0xff] %vm1089, 0.0
      %2590 = vst.msk [vmem:[#allocation2 + $0x130] sm:$0x3] %vm2553, 0.0
      %2591 = vst.msk [vmem:[#allocation2 + $0x138] sm:$0xff] %vm1089, 0.0
      %2592 = vst.msk [vmem:[#allocation2 + $0x140] sm:$0xff] %vm1089, 0.0
      %2593 = vst.msk [vmem:[#allocation2 + $0x148] sm:$0x3] %vm2553, 0.0
      %2594 = vst.msk [vmem:[#allocation2 + $0x150] sm:$0xff] %vm1089, 0.0
      %2595 = vst.msk [vmem:[#allocation2 + $0x158] sm:$0xff] %vm1089, 0.0
      %2596 = vst.msk [vmem:[#allocation2 + $0x160] sm:$0x3] %vm2553, 0.0
      %2597 = vst.msk [vmem:[#allocation2 + $0x168] sm:$0xff] %vm1089, 0.0
      %2598 = vst.msk [vmem:[#allocation2 + $0x170] sm:$0xff] %vm1089, 0.0
      %2599 = vst.msk [vmem:[#allocation2 + $0x178] sm:$0x3] %vm2553, 0.0
      %2600 = vst.msk [vmem:[#allocation2 + $0x180] sm:$0xff] %vm1089, 0.0
      %2601 = vst.msk [vmem:[#allocation2 + $0x188] sm:$0xff] %vm1089, 0.0
      %2602 = vst.msk [vmem:[#allocation2 + $0x190] sm:$0x3] %vm2553, 0.0
      %2603 = vst.msk [vmem:[#allocation2 + $0x198] sm:$0xff] %vm1089, 0.0
      %2604 = vst.msk [vmem:[#allocation2 + $0x1a0] sm:$0xff] %vm1089, 0.0
      %2605 = vst.msk [vmem:[#allocation2 + $0x1a8] sm:$0x3] %vm2553, 0.0
      %v2606 = vmul.f32 %v2519, %v2362
      %v2607 = vmul.f32 %v2520, %v2367
      %v2608 = vmul.f32 %v2521, %v2372
      %v2609 = vmul.f32 %v2522, %v2377
      %v2610 = vmul.f32 %v2523, %v2382
      %v2611 = vmul.f32 %v2524, %v2387
      %v2612 = vmul.f32 %v2525, %v2392
      %v2613 = vmul.f32 %v2526, %v2397
      %v2614 = vmul.f32 %v2527, %v2402
      %v2615 = vmul.f32 %v2528, %v2407
      %v2616 = vmul.f32 %v2529, %v2412
      %v2617 = vmul.f32 %v2530, %v2417
      %v2618 = vmul.f32 %v2531, %v2422
      %v2619 = vmul.f32 %v2532, %v2427
      %v2620 = vmul.f32 %v2533, %v2432
      %v2621 = vmul.f32 %v2534, %v2437
      %v2622 = vmul.f32 %v2535, %v2442
      %v2623 = vmul.f32 %v2536, %v2447
      %v2624 = vmul.f32 %v2537, %v2452
      %v2625 = vmul.f32 %v2538, %v2457
      %v2626 = vmul.f32 %v2539, %v2462
      %v2627 = vmul.f32 %v2540, %v2467
      %v2628 = vmul.f32 %v2541, %v2472
      %v2629 = vmul.f32 %v2542, %v2477
      %v2630 = vmul.f32 %v2543, %v2482
      %v2631 = vmul.f32 %v2544, %v2487
      %v2632 = vmul.f32 %v2545, %v2492
      %v2633 = vmul.f32 %v2546, %v2497
      %v2634 = vmul.f32 %v2547, %v2502
      %v2635 = vmul.f32 %v2548, %v2507
      %v2636 = vmul.f32 %v2549, %v2512
      %v2637 = vmul.f32 %v2550, %v2517
      %s2638 = scalar_lea.vmem [#allocation2], 24
      %2639 = vst.msk [vmem:[%s2638 + $0x1] sm:$0xff] %vm1089, %v2606
      %2640 = vst.msk [vmem:[%s2638 + $0x9] sm:$0xff] %vm1089, %v2607
      %2641 = vst.msk [vmem:[%s2638 + $0x19] sm:$0xff] %vm1089, %v2608
      %2642 = vst.msk [vmem:[%s2638 + $0x21] sm:$0xff] %vm1089, %v2609
      %2643 = vst.msk [vmem:[%s2638 + $0x31] sm:$0xff] %vm1089, %v2610
      %2644 = vst.msk [vmem:[%s2638 + $0x39] sm:$0xff] %vm1089, %v2611
      %2645 = vst.msk [vmem:[%s2638 + $0x49] sm:$0xff] %vm1089, %v2612
      %2646 = vst.msk [vmem:[%s2638 + $0x51] sm:$0xff] %vm1089, %v2613
      %2647 = vst.msk [vmem:[%s2638 + $0x61] sm:$0xff] %vm1089, %v2614
      %2648 = vst.msk [vmem:[%s2638 + $0x69] sm:$0xff] %vm1089, %v2615
      %2649 = vst.msk [vmem:[%s2638 + $0x79] sm:$0xff] %vm1089, %v2616
      %2650 = vst.msk [vmem:[%s2638 + $0x81] sm:$0xff] %vm1089, %v2617
      %2651 = vst.msk [vmem:[%s2638 + $0x91] sm:$0xff] %vm1089, %v2618
      %2652 = vst.msk [vmem:[%s2638 + $0x99] sm:$0xff] %vm1089, %v2619
      %2653 = vst.msk [vmem:[%s2638 + $0xa9] sm:$0xff] %vm1089, %v2620
      %2654 = vst.msk [vmem:[%s2638 + $0xb1] sm:$0xff] %vm1089, %v2621
      %2655 = vst.msk [vmem:[%s2638 + $0xc1] sm:$0xff] %vm1089, %v2622
      %2656 = vst.msk [vmem:[%s2638 + $0xc9] sm:$0xff] %vm1089, %v2623
      %2657 = vst.msk [vmem:[%s2638 + $0xd9] sm:$0xff] %vm1089, %v2624
      %2658 = vst.msk [vmem:[%s2638 + $0xe1] sm:$0xff] %vm1089, %v2625
      %2659 = vst.msk [vmem:[%s2638 + $0xf1] sm:$0xff] %vm1089, %v2626
      %2660 = vst.msk [vmem:[%s2638 + $0xf9] sm:$0xff] %vm1089, %v2627
      %2661 = vst.msk [vmem:[%s2638 + $0x109] sm:$0xff] %vm1089, %v2628
      %2662 = vst.msk [vmem:[%s2638 + $0x111] sm:$0xff] %vm1089, %v2629
      %2663 = vst.msk [vmem:[%s2638 + $0x121] sm:$0xff] %vm1089, %v2630
      %2664 = vst.msk [vmem:[%s2638 + $0x129] sm:$0xff] %vm1089, %v2631
      %2665 = vst.msk [vmem:[%s2638 + $0x139] sm:$0xff] %vm1089, %v2632
      %2666 = vst.msk [vmem:[%s2638 + $0x141] sm:$0xff] %vm1089, %v2633
      %2667 = vst.msk [vmem:[%s2638 + $0x151] sm:$0xff] %vm1089, %v2634
      %2668 = vst.msk [vmem:[%s2638 + $0x159] sm:$0xff] %vm1089, %v2635
      %2669 = vst.msk [vmem:[%s2638 + $0x169] sm:$0xff] %vm1089, %v2636
      %2670 = vst.msk [vmem:[%s2638 + $0x171] sm:$0xff] %vm1089, %v2637
      %v2671 = vld [vmem:[#allocation2] sm:$0xff]
      %v2672 = vld [vmem:[#allocation2 + $0x8] sm:$0xff]
      %v2673 = vld [vmem:[#allocation2 + $0x10] sm:$0x3]
      %v2674 = vld [vmem:[#allocation2 + $0x18] sm:$0xff]
      %v2675 = vld [vmem:[#allocation2 + $0x20] sm:$0xff]
      %v2676 = vld [vmem:[#allocation2 + $0x28] sm:$0x3]
      %v2677 = vld [vmem:[#allocation2 + $0x30] sm:$0xff]
      %v2678 = vld [vmem:[#allocation2 + $0x38] sm:$0xff]
      %v2679 = vld [vmem:[#allocation2 + $0x40] sm:$0x3]
      %v2680 = vld [vmem:[#allocation2 + $0x48] sm:$0xff]
      %v2681 = vld [vmem:[#allocation2 + $0x50] sm:$0xff]
      %v2682 = vld [vmem:[#allocation2 + $0x58] sm:$0x3]
      %v2683 = vld [vmem:[#allocation2 + $0x60] sm:$0xff]
      %v2684 = vld [vmem:[#allocation2 + $0x68] sm:$0xff]
      %v2685 = vld [vmem:[#allocation2 + $0x70] sm:$0x3]
      %v2686 = vld [vmem:[#allocation2 + $0x78] sm:$0xff]
      %v2687 = vld [vmem:[#allocation2 + $0x80] sm:$0xff]
      %v2688 = vld [vmem:[#allocation2 + $0x88] sm:$0x3]
      %v2689 = vld [vmem:[#allocation2 + $0x90] sm:$0xff]
      %v2690 = vld [vmem:[#allocation2 + $0x98] sm:$0xff]
      %v2691 = vld [vmem:[#allocation2 + $0xa0] sm:$0x3]
      %v2692 = vld [vmem:[#allocation2 + $0xa8] sm:$0xff]
      %v2693 = vld [vmem:[#allocation2 + $0xb0] sm:$0xff]
      %v2694 = vld [vmem:[#allocation2 + $0xb8] sm:$0x3]
      %v2695 = vld [vmem:[#allocation2 + $0xc0] sm:$0xff]
      %v2696 = vld [vmem:[#allocation2 + $0xc8] sm:$0xff]
      %v2697 = vld [vmem:[#allocation2 + $0xd0] sm:$0x3]
      %v2698 = vld [vmem:[#allocation2 + $0xd8] sm:$0xff]
      %v2699 = vld [vmem:[#allocation2 + $0xe0] sm:$0xff]
      %v2700 = vld [vmem:[#allocation2 + $0xe8] sm:$0x3]
      %v2701 = vld [vmem:[#allocation2 + $0xf0] sm:$0xff]
      %v2702 = vld [vmem:[#allocation2 + $0xf8] sm:$0xff]
      %v2703 = vld [vmem:[#allocation2 + $0x100] sm:$0x3]
      %v2704 = vld [vmem:[#allocation2 + $0x108] sm:$0xff]
      %v2705 = vld [vmem:[#allocation2 + $0x110] sm:$0xff]
      %v2706 = vld [vmem:[#allocation2 + $0x118] sm:$0x3]
      %v2707 = vld [vmem:[#allocation2 + $0x120] sm:$0xff]
      %v2708 = vld [vmem:[#allocation2 + $0x128] sm:$0xff]
      %v2709 = vld [vmem:[#allocation2 + $0x130] sm:$0x3]
      %v2710 = vld [vmem:[#allocation2 + $0x138] sm:$0xff]
      %v2711 = vld [vmem:[#allocation2 + $0x140] sm:$0xff]
      %v2712 = vld [vmem:[#allocation2 + $0x148] sm:$0x3]
      %v2713 = vld [vmem:[#allocation2 + $0x150] sm:$0xff]
      %v2714 = vld [vmem:[#allocation2 + $0x158] sm:$0xff]
      %v2715 = vld [vmem:[#allocation2 + $0x160] sm:$0x3]
      %v2716 = vld [vmem:[#allocation2 + $0x168] sm:$0xff]
      %v2717 = vld [vmem:[#allocation2 + $0x170] sm:$0xff]
      %v2718 = vld [vmem:[#allocation2 + $0x178] sm:$0x3]
      %v2719 = vld [vmem:[#allocation2 + $0x180] sm:$0xff]
      %v2720 = vld [vmem:[#allocation2 + $0x188] sm:$0xff]
      %v2721 = vld [vmem:[#allocation2 + $0x190] sm:$0x3]
      %v2722 = vld [vmem:[#allocation2 + $0x198] sm:$0xff]
      %v2723 = vld [vmem:[#allocation2 + $0x1a0] sm:$0xff]
      %v2724 = vld [vmem:[#allocation2 + $0x1a8] sm:$0x3]
      %vm2773 = vcmask 1046528
      %v2774 = vrot.slane %v2671, 1
      %v2775 = vrot.slane %v2672, 1
      %v2776 = vsel %vm2773, %v2774, %v2775
      %v2777 = vrot.slane %v2673, 1
      %v2778 = vsel %vm2773, %v2775, %v2777
      %v2779 = vrot.slane %v2674, 1
      %v2780 = vrot.slane %v2675, 1
      %v2781 = vsel %vm2773, %v2779, %v2780
      %v2782 = vrot.slane %v2676, 1
      %v2783 = vsel %vm2773, %v2780, %v2782
      %v2784 = vrot.slane %v2677, 1
      %v2785 = vrot.slane %v2678, 1
      %v2786 = vsel %vm2773, %v2784, %v2785
      %v2787 = vrot.slane %v2679, 1
      %v2788 = vsel %vm2773, %v2785, %v2787
      %v2789 = vrot.slane %v2680, 1
      %v2790 = vrot.slane %v2681, 1
      %v2791 = vsel %vm2773, %v2789, %v2790
      %v2792 = vrot.slane %v2682, 1
      %v2793 = vsel %vm2773, %v2790, %v2792
      %v2794 = vrot.slane %v2683, 1
      %v2795 = vrot.slane %v2684, 1
      %v2796 = vsel %vm2773, %v2794, %v2795
      %v2797 = vrot.slane %v2685, 1
      %v2798 = vsel %vm2773, %v2795, %v2797
      %v2799 = vrot.slane %v2686, 1
      %v2800 = vrot.slane %v2687, 1
      %v2801 = vsel %vm2773, %v2799, %v2800
      %v2802 = vrot.slane %v2688, 1
      %v2803 = vsel %vm2773, %v2800, %v2802
      %v2804 = vrot.slane %v2689, 1
      %v2805 = vrot.slane %v2690, 1
      %v2806 = vsel %vm2773, %v2804, %v2805
      %v2807 = vrot.slane %v2691, 1
      %v2808 = vsel %vm2773, %v2805, %v2807
      %v2809 = vrot.slane %v2692, 1
      %v2810 = vrot.slane %v2693, 1
      %v2811 = vsel %vm2773, %v2809, %v2810
      %v2812 = vrot.slane %v2694, 1
      %v2813 = vsel %vm2773, %v2810, %v2812
      %v2814 = vrot.slane %v2695, 1
      %v2815 = vrot.slane %v2696, 1
      %v2816 = vsel %vm2773, %v2814, %v2815
      %v2817 = vrot.slane %v2697, 1
      %v2818 = vsel %vm2773, %v2815, %v2817
      %v2819 = vrot.slane %v2698, 1
      %v2820 = vrot.slane %v2699, 1
      %v2821 = vsel %vm2773, %v2819, %v2820
      %v2822 = vrot.slane %v2700, 1
      %v2823 = vsel %vm2773, %v2820, %v2822
      %v2824 = vrot.slane %v2701, 1
      %v2825 = vrot.slane %v2702, 1
      %v2826 = vsel %vm2773, %v2824, %v2825
      %v2827 = vrot.slane %v2703, 1
      %v2828 = vsel %vm2773, %v2825, %v2827
      %v2829 = vrot.slane %v2704, 1
      %v2830 = vrot.slane %v2705, 1
      %v2831 = vsel %vm2773, %v2829, %v2830
      %v2832 = vrot.slane %v2706, 1
      %v2833 = vsel %vm2773, %v2830, %v2832
      %v2834 = vrot.slane %v2707, 1
      %v2835 = vrot.slane %v2708, 1
      %v2836 = vsel %vm2773, %v2834, %v2835
      %v2837 = vrot.slane %v2709, 1
      %v2838 = vsel %vm2773, %v2835, %v2837
      %v2839 = vrot.slane %v2710, 1
      %v2840 = vrot.slane %v2711, 1
      %v2841 = vsel %vm2773, %v2839, %v2840
      %v2842 = vrot.slane %v2712, 1
      %v2843 = vsel %vm2773, %v2840, %v2842
      %v2844 = vrot.slane %v2713, 1
      %v2845 = vrot.slane %v2714, 1
      %v2846 = vsel %vm2773, %v2844, %v2845
      %v2847 = vrot.slane %v2715, 1
      %v2848 = vsel %vm2773, %v2845, %v2847
      %v2849 = vrot.slane %v2716, 1
      %v2850 = vrot.slane %v2717, 1
      %v2851 = vsel %vm2773, %v2849, %v2850
      %v2852 = vrot.slane %v2718, 1
      %v2853 = vsel %vm2773, %v2850, %v2852
      %vm2854 = vcmask 1045504
      %v2855 = vrot.slane %v2671, 2
      %v2856 = vrot.slane %v2672, 2
      %v2857 = vsel %vm2854, %v2855, %v2856
      %v2858 = vrot.slane %v2673, 2
      %v2859 = vsel %vm2854, %v2856, %v2858
      %v2860 = vrot.slane %v2674, 2
      %v2861 = vrot.slane %v2675, 2
      %v2862 = vsel %vm2854, %v2860, %v2861
      %v2863 = vrot.slane %v2676, 2
      %v2864 = vsel %vm2854, %v2861, %v2863
      %v2865 = vrot.slane %v2677, 2
      %v2866 = vrot.slane %v2678, 2
      %v2867 = vsel %vm2854, %v2865, %v2866
      %v2868 = vrot.slane %v2679, 2
      %v2869 = vsel %vm2854, %v2866, %v2868
      %v2870 = vrot.slane %v2680, 2
      %v2871 = vrot.slane %v2681, 2
      %v2872 = vsel %vm2854, %v2870, %v2871
      %v2873 = vrot.slane %v2682, 2
      %v2874 = vsel %vm2854, %v2871, %v2873
      %v2875 = vrot.slane %v2683, 2
      %v2876 = vrot.slane %v2684, 2
      %v2877 = vsel %vm2854, %v2875, %v2876
      %v2878 = vrot.slane %v2685, 2
      %v2879 = vsel %vm2854, %v2876, %v2878
      %v2880 = vrot.slane %v2686, 2
      %v2881 = vrot.slane %v2687, 2
      %v2882 = vsel %vm2854, %v2880, %v2881
      %v2883 = vrot.slane %v2688, 2
      %v2884 = vsel %vm2854, %v2881, %v2883
      %v2885 = vrot.slane %v2689, 2
      %v2886 = vrot.slane %v2690, 2
      %v2887 = vsel %vm2854, %v2885, %v2886
      %v2888 = vrot.slane %v2691, 2
      %v2889 = vsel %vm2854, %v2886, %v2888
      %v2890 = vrot.slane %v2692, 2
      %v2891 = vrot.slane %v2693, 2
      %v2892 = vsel %vm2854, %v2890, %v2891
      %v2893 = vrot.slane %v2694, 2
      %v2894 = vsel %vm2854, %v2891, %v2893
      %v2895 = vrot.slane %v2695, 2
      %v2896 = vrot.slane %v2696, 2
      %v2897 = vsel %vm2854, %v2895, %v2896
      %v2898 = vrot.slane %v2697, 2
      %v2899 = vsel %vm2854, %v2896, %v2898
      %v2900 = vrot.slane %v2698, 2
      %v2901 = vrot.slane %v2699, 2
      %v2902 = vsel %vm2854, %v2900, %v2901
      %v2903 = vrot.slane %v2700, 2
      %v2904 = vsel %vm2854, %v2901, %v2903
      %v2905 = vrot.slane %v2701, 2
      %v2906 = vrot.slane %v2702, 2
      %v2907 = vsel %vm2854, %v2905, %v2906
      %v2908 = vrot.slane %v2703, 2
      %v2909 = vsel %vm2854, %v2906, %v2908
      %v2910 = vrot.slane %v2704, 2
      %v2911 = vrot.slane %v2705, 2
      %v2912 = vsel %vm2854, %v2910, %v2911
      %v2913 = vrot.slane %v2706, 2
      %v2914 = vsel %vm2854, %v2911, %v2913
      %v2915 = vrot.slane %v2707, 2
      %v2916 = vrot.slane %v2708, 2
      %v2917 = vsel %vm2854, %v2915, %v2916
      %v2918 = vrot.slane %v2709, 2
      %v2919 = vsel %vm2854, %v2916, %v2918
      %v2920 = vrot.slane %v2710, 2
      %v2921 = vrot.slane %v2711, 2
      %v2922 = vsel %vm2854, %v2920, %v2921
      %v2923 = vrot.slane %v2712, 2
      %v2924 = vsel %vm2854, %v2921, %v2923
      %v2925 = vrot.slane %v2713, 2
      %v2926 = vrot.slane %v2714, 2
      %v2927 = vsel %vm2854, %v2925, %v2926
      %v2928 = vrot.slane %v2715, 2
      %v2929 = vsel %vm2854, %v2926, %v2928
      %v2930 = vrot.slane %v2716, 2
      %v2931 = vrot.slane %v2717, 2
      %v2932 = vsel %vm2854, %v2930, %v2931
      %v2933 = vrot.slane %v2718, 2
      %v2934 = vsel %vm2854, %v2931, %v2933
      %v2938 = vrot.slane %v2719, 1
      %v2939 = vrot.slane %v2720, 1
      %v2940 = vsel %vm2773, %v2938, %v2939
      %v2941 = vrot.slane %v2721, 1
      %v2942 = vsel %vm2773, %v2939, %v2941
      %v2975 = vrot.slane %v2719, 2
      %v2976 = vrot.slane %v2720, 2
      %v2977 = vsel %vm2854, %v2975, %v2976
      %v2978 = vrot.slane %v2721, 2
      %v2979 = vsel %vm2854, %v2976, %v2978
      %v2983 = vrot.slane %v2722, 1
      %v2984 = vrot.slane %v2723, 1
      %v2985 = vsel %vm2773, %v2983, %v2984
      %v2986 = vrot.slane %v2724, 1
      %v2987 = vsel %vm2773, %v2984, %v2986
      %v2988 = vrot.slane %v2722, 2
      %v2989 = vrot.slane %v2723, 2
      %v2990 = vsel %vm2854, %v2988, %v2989
      %v2991 = vrot.slane %v2724, 2
      %v2992 = vsel %vm2854, %v2989, %v2991
      %2993 = vrot.lane.b32.xlu0 %v2776, 32
      %v2994 = vpop.permute.xlu0 %2993
      %2995 = vrot.lane.b32.xlu0 %v2778, 32
      %v2996 = vpop.permute.xlu0 %2995
      %2997 = vrot.lane.b32.xlu0 %v2781, 32
      %v2998 = vpop.permute.xlu0 %2997
      %2999 = vrot.lane.b32.xlu0 %v2783, 32
      %v3000 = vpop.permute.xlu0 %2999
      %3001 = vrot.lane.b32.xlu0 %v2786, 32
      %v3002 = vpop.permute.xlu0 %3001
      %3003 = vrot.lane.b32.xlu0 %v2788, 32
      %v3004 = vpop.permute.xlu0 %3003
      %3005 = vrot.lane.b32.xlu0 %v2791, 32
      %v3006 = vpop.permute.xlu0 %3005
      %3007 = vrot.lane.b32.xlu0 %v2793, 32
      %v3008 = vpop.permute.xlu0 %3007
      %3009 = vrot.lane.b32.xlu0 %v2796, 32
      %v3010 = vpop.permute.xlu0 %3009
      %3011 = vrot.lane.b32.xlu0 %v2798, 32
      %v3012 = vpop.permute.xlu0 %3011
      %3013 = vrot.lane.b32.xlu0 %v2801, 32
      %v3014 = vpop.permute.xlu0 %3013
      %3015 = vrot.lane.b32.xlu0 %v2803, 32
      %v3016 = vpop.permute.xlu0 %3015
      %3017 = vrot.lane.b32.xlu0 %v2806, 32
      %v3018 = vpop.permute.xlu0 %3017
      %3019 = vrot.lane.b32.xlu0 %v2808, 32
      %v3020 = vpop.permute.xlu0 %3019
      %3021 = vrot.lane.b32.xlu0 %v2811, 32
      %v3022 = vpop.permute.xlu0 %3021
      %3023 = vrot.lane.b32.xlu0 %v2813, 32
      %v3024 = vpop.permute.xlu0 %3023
      %3025 = vrot.lane.b32.xlu0 %v2816, 32
      %v3026 = vpop.permute.xlu0 %3025
      %3027 = vrot.lane.b32.xlu0 %v2818, 32
      %v3028 = vpop.permute.xlu0 %3027
      %3029 = vrot.lane.b32.xlu0 %v2821, 32
      %v3030 = vpop.permute.xlu0 %3029
      %3031 = vrot.lane.b32.xlu0 %v2823, 32
      %v3032 = vpop.permute.xlu0 %3031
      %3033 = vrot.lane.b32.xlu0 %v2826, 32
      %v3034 = vpop.permute.xlu0 %3033
      %3035 = vrot.lane.b32.xlu0 %v2828, 32
      %v3036 = vpop.permute.xlu0 %3035
      %3037 = vrot.lane.b32.xlu0 %v2831, 32
      %v3038 = vpop.permute.xlu0 %3037
      %3039 = vrot.lane.b32.xlu0 %v2833, 32
      %v3040 = vpop.permute.xlu0 %3039
      %3041 = vrot.lane.b32.xlu0 %v2836, 32
      %v3042 = vpop.permute.xlu0 %3041
      %3043 = vrot.lane.b32.xlu0 %v2838, 32
      %v3044 = vpop.permute.xlu0 %3043
      %3045 = vrot.lane.b32.xlu0 %v2841, 32
      %v3046 = vpop.permute.xlu0 %3045
      %3047 = vrot.lane.b32.xlu0 %v2843, 32
      %v3048 = vpop.permute.xlu0 %3047
      %3049 = vrot.lane.b32.xlu0 %v2846, 32
      %v3050 = vpop.permute.xlu0 %3049
      %3051 = vrot.lane.b32.xlu0 %v2848, 32
      %v3052 = vpop.permute.xlu0 %3051
      %3053 = vrot.lane.b32.xlu0 %v2851, 32
      %v3054 = vpop.permute.xlu0 %3053
      %3055 = vrot.lane.b32.xlu0 %v2853, 32
      %v3056 = vpop.permute.xlu0 %3055
      %3089 = vrot.lane.b32.xlu0 %v2857, 64
      %v3090 = vpop.permute.xlu0 %3089
      %3091 = vrot.lane.b32.xlu0 %v2859, 64
      %v3092 = vpop.permute.xlu0 %3091
      %3093 = vrot.lane.b32.xlu0 %v2862, 64
      %v3094 = vpop.permute.xlu0 %3093
      %3095 = vrot.lane.b32.xlu0 %v2864, 64
      %v3096 = vpop.permute.xlu0 %3095
      %3097 = vrot.lane.b32.xlu0 %v2867, 64
      %v3098 = vpop.permute.xlu0 %3097
      %3099 = vrot.lane.b32.xlu0 %v2869, 64
      %v3100 = vpop.permute.xlu0 %3099
      %3101 = vrot.lane.b32.xlu0 %v2872, 64
      %v3102 = vpop.permute.xlu0 %3101
      %3103 = vrot.lane.b32.xlu0 %v2874, 64
      %v3104 = vpop.permute.xlu0 %3103
      %3105 = vrot.lane.b32.xlu0 %v2877, 64
      %v3106 = vpop.permute.xlu0 %3105
      %3107 = vrot.lane.b32.xlu0 %v2879, 64
      %v3108 = vpop.permute.xlu0 %3107
      %3109 = vrot.lane.b32.xlu0 %v2882, 64
      %v3110 = vpop.permute.xlu0 %3109
      %3111 = vrot.lane.b32.xlu0 %v2884, 64
      %v3112 = vpop.permute.xlu0 %3111
      %3113 = vrot.lane.b32.xlu0 %v2887, 64
      %v3114 = vpop.permute.xlu0 %3113
      %3115 = vrot.lane.b32.xlu0 %v2889, 64
      %v3116 = vpop.permute.xlu0 %3115
      %3117 = vrot.lane.b32.xlu0 %v2892, 64
      %v3118 = vpop.permute.xlu0 %3117
      %3119 = vrot.lane.b32.xlu0 %v2894, 64
      %v3120 = vpop.permute.xlu0 %3119
      %3121 = vrot.lane.b32.xlu0 %v2897, 64
      %v3122 = vpop.permute.xlu0 %3121
      %3123 = vrot.lane.b32.xlu0 %v2899, 64
      %v3124 = vpop.permute.xlu0 %3123
      %3125 = vrot.lane.b32.xlu0 %v2902, 64
      %v3126 = vpop.permute.xlu0 %3125
      %3127 = vrot.lane.b32.xlu0 %v2904, 64
      %v3128 = vpop.permute.xlu0 %3127
      %3129 = vrot.lane.b32.xlu0 %v2907, 64
      %v3130 = vpop.permute.xlu0 %3129
      %3131 = vrot.lane.b32.xlu0 %v2909, 64
      %v3132 = vpop.permute.xlu0 %3131
      %3133 = vrot.lane.b32.xlu0 %v2912, 64
      %v3134 = vpop.permute.xlu0 %3133
      %3135 = vrot.lane.b32.xlu0 %v2914, 64
      %v3136 = vpop.permute.xlu0 %3135
      %3137 = vrot.lane.b32.xlu0 %v2917, 64
      %v3138 = vpop.permute.xlu0 %3137
      %3139 = vrot.lane.b32.xlu0 %v2919, 64
      %v3140 = vpop.permute.xlu0 %3139
      %3141 = vrot.lane.b32.xlu0 %v2922, 64
      %v3142 = vpop.permute.xlu0 %3141
      %3143 = vrot.lane.b32.xlu0 %v2924, 64
      %v3144 = vpop.permute.xlu0 %3143
      %3145 = vrot.lane.b32.xlu0 %v2927, 64
      %v3146 = vpop.permute.xlu0 %3145
      %3147 = vrot.lane.b32.xlu0 %v2929, 64
      %v3148 = vpop.permute.xlu0 %3147
      %3149 = vrot.lane.b32.xlu0 %v2932, 64
      %v3150 = vpop.permute.xlu0 %3149
      %3151 = vrot.lane.b32.xlu0 %v2934, 64
      %v3152 = vpop.permute.xlu0 %3151
      %3185 = vrot.lane.b32.xlu0 %v2674, 96
      %v3186 = vpop.permute.xlu0 %3185
      %3187 = vrot.lane.b32.xlu0 %v2675, 96
      %v3188 = vpop.permute.xlu0 %3187
      %3189 = vrot.lane.b32.xlu0 %v2677, 96
      %v3190 = vpop.permute.xlu0 %3189
      %3191 = vrot.lane.b32.xlu0 %v2678, 96
      %v3192 = vpop.permute.xlu0 %3191
      %3193 = vrot.lane.b32.xlu0 %v2680, 96
      %v3194 = vpop.permute.xlu0 %3193
      %3195 = vrot.lane.b32.xlu0 %v2681, 96
      %v3196 = vpop.permute.xlu0 %3195
      %3197 = vrot.lane.b32.xlu0 %v2683, 96
      %v3198 = vpop.permute.xlu0 %3197
      %3199 = vrot.lane.b32.xlu0 %v2684, 96
      %v3200 = vpop.permute.xlu0 %3199
      %3201 = vrot.lane.b32.xlu0 %v2686, 96
      %v3202 = vpop.permute.xlu0 %3201
      %3203 = vrot.lane.b32.xlu0 %v2687, 96
      %v3204 = vpop.permute.xlu0 %3203
      %3205 = vrot.lane.b32.xlu0 %v2689, 96
      %v3206 = vpop.permute.xlu0 %3205
      %3207 = vrot.lane.b32.xlu0 %v2690, 96
      %v3208 = vpop.permute.xlu0 %3207
      %3209 = vrot.lane.b32.xlu0 %v2692, 96
      %v3210 = vpop.permute.xlu0 %3209
      %3211 = vrot.lane.b32.xlu0 %v2693, 96
      %v3212 = vpop.permute.xlu0 %3211
      %3213 = vrot.lane.b32.xlu0 %v2695, 96
      %v3214 = vpop.permute.xlu0 %3213
      %3215 = vrot.lane.b32.xlu0 %v2696, 96
      %v3216 = vpop.permute.xlu0 %3215
      %3217 = vrot.lane.b32.xlu0 %v2698, 96
      %v3218 = vpop.permute.xlu0 %3217
      %3219 = vrot.lane.b32.xlu0 %v2699, 96
      %v3220 = vpop.permute.xlu0 %3219
      %3221 = vrot.lane.b32.xlu0 %v2701, 96
      %v3222 = vpop.permute.xlu0 %3221
      %3223 = vrot.lane.b32.xlu0 %v2702, 96
      %v3224 = vpop.permute.xlu0 %3223
      %3225 = vrot.lane.b32.xlu0 %v2704, 96
      %v3226 = vpop.permute.xlu0 %3225
      %3227 = vrot.lane.b32.xlu0 %v2705, 96
      %v3228 = vpop.permute.xlu0 %3227
      %3229 = vrot.lane.b32.xlu0 %v2707, 96
      %v3230 = vpop.permute.xlu0 %3229
      %3231 = vrot.lane.b32.xlu0 %v2708, 96
      %v3232 = vpop.permute.xlu0 %3231
      %3233 = vrot.lane.b32.xlu0 %v2710, 96
      %v3234 = vpop.permute.xlu0 %3233
      %3235 = vrot.lane.b32.xlu0 %v2711, 96
      %v3236 = vpop.permute.xlu0 %3235
      %3237 = vrot.lane.b32.xlu0 %v2713, 96
      %v3238 = vpop.permute.xlu0 %3237
      %3239 = vrot.lane.b32.xlu0 %v2714, 96
      %v3240 = vpop.permute.xlu0 %3239
      %3241 = vrot.lane.b32.xlu0 %v2716, 96
      %v3242 = vpop.permute.xlu0 %3241
      %3243 = vrot.lane.b32.xlu0 %v2717, 96
      %v3244 = vpop.permute.xlu0 %3243
      %3245 = vrot.lane.b32.xlu0 %v2719, 96
      %v3246 = vpop.permute.xlu0 %3245
      %3247 = vrot.lane.b32.xlu0 %v2720, 96
      %v3248 = vpop.permute.xlu0 %3247
      %3281 = vrot.lane.b32.xlu0 %v2862, 32
      %v3282 = vpop.permute.xlu0 %3281
      %3283 = vrot.lane.b32.xlu0 %v2864, 32
      %v3284 = vpop.permute.xlu0 %3283
      %3285 = vrot.lane.b32.xlu0 %v2867, 32
      %v3286 = vpop.permute.xlu0 %3285
      %3287 = vrot.lane.b32.xlu0 %v2869, 32
      %v3288 = vpop.permute.xlu0 %3287
      %3289 = vrot.lane.b32.xlu0 %v2872, 32
      %v3290 = vpop.permute.xlu0 %3289
      %3291 = vrot.lane.b32.xlu0 %v2874, 32
      %v3292 = vpop.permute.xlu0 %3291
      %3293 = vrot.lane.b32.xlu0 %v2877, 32
      %v3294 = vpop.permute.xlu0 %3293
      %3295 = vrot.lane.b32.xlu0 %v2879, 32
      %v3296 = vpop.permute.xlu0 %3295
      %3297 = vrot.lane.b32.xlu0 %v2882, 32
      %v3298 = vpop.permute.xlu0 %3297
      %3299 = vrot.lane.b32.xlu0 %v2884, 32
      %v3300 = vpop.permute.xlu0 %3299
      %3301 = vrot.lane.b32.xlu0 %v2887, 32
      %v3302 = vpop.permute.xlu0 %3301
      %3303 = vrot.lane.b32.xlu0 %v2889, 32
      %v3304 = vpop.permute.xlu0 %3303
      %3305 = vrot.lane.b32.xlu0 %v2892, 32
      %v3306 = vpop.permute.xlu0 %3305
      %3307 = vrot.lane.b32.xlu0 %v2894, 32
      %v3308 = vpop.permute.xlu0 %3307
      %3309 = vrot.lane.b32.xlu0 %v2897, 32
      %v3310 = vpop.permute.xlu0 %3309
      %3311 = vrot.lane.b32.xlu0 %v2899, 32
      %v3312 = vpop.permute.xlu0 %3311
      %3313 = vrot.lane.b32.xlu0 %v2902, 32
      %v3314 = vpop.permute.xlu0 %3313
      %3315 = vrot.lane.b32.xlu0 %v2904, 32
      %v3316 = vpop.permute.xlu0 %3315
      %3317 = vrot.lane.b32.xlu0 %v2907, 32
      %v3318 = vpop.permute.xlu0 %3317
      %3319 = vrot.lane.b32.xlu0 %v2909, 32
      %v3320 = vpop.permute.xlu0 %3319
      %3321 = vrot.lane.b32.xlu0 %v2912, 32
      %v3322 = vpop.permute.xlu0 %3321
      %3323 = vrot.lane.b32.xlu0 %v2914, 32
      %v3324 = vpop.permute.xlu0 %3323
      %3325 = vrot.lane.b32.xlu0 %v2917, 32
      %v3326 = vpop.permute.xlu0 %3325
      %3327 = vrot.lane.b32.xlu0 %v2919, 32
      %v3328 = vpop.permute.xlu0 %3327
      %3329 = vrot.lane.b32.xlu0 %v2922, 32
      %v3330 = vpop.permute.xlu0 %3329
      %3331 = vrot.lane.b32.xlu0 %v2924, 32
      %v3332 = vpop.permute.xlu0 %3331
      %3333 = vrot.lane.b32.xlu0 %v2927, 32
      %v3334 = vpop.permute.xlu0 %3333
      %3335 = vrot.lane.b32.xlu0 %v2929, 32
      %v3336 = vpop.permute.xlu0 %3335
      %3337 = vrot.lane.b32.xlu0 %v2932, 32
      %v3338 = vpop.permute.xlu0 %3337
      %3339 = vrot.lane.b32.xlu0 %v2934, 32
      %v3340 = vpop.permute.xlu0 %3339
      %3341 = vrot.lane.b32.xlu0 %v2977, 32
      %v3342 = vpop.permute.xlu0 %3341
      %3343 = vrot.lane.b32.xlu0 %v2979, 32
      %v3344 = vpop.permute.xlu0 %3343
      %3377 = vrot.lane.b32.xlu0 %v2677, 64
      %v3378 = vpop.permute.xlu0 %3377
      %3379 = vrot.lane.b32.xlu0 %v2678, 64
      %v3380 = vpop.permute.xlu0 %3379
      %3381 = vrot.lane.b32.xlu0 %v2680, 64
      %v3382 = vpop.permute.xlu0 %3381
      %3383 = vrot.lane.b32.xlu0 %v2681, 64
      %v3384 = vpop.permute.xlu0 %3383
      %3385 = vrot.lane.b32.xlu0 %v2683, 64
      %v3386 = vpop.permute.xlu0 %3385
      %3387 = vrot.lane.b32.xlu0 %v2684, 64
      %v3388 = vpop.permute.xlu0 %3387
      %3389 = vrot.lane.b32.xlu0 %v2686, 64
      %v3390 = vpop.permute.xlu0 %3389
      %3391 = vrot.lane.b32.xlu0 %v2687, 64
      %v3392 = vpop.permute.xlu0 %3391
      %3393 = vrot.lane.b32.xlu0 %v2689, 64
      %v3394 = vpop.permute.xlu0 %3393
      %3395 = vrot.lane.b32.xlu0 %v2690, 64
      %v3396 = vpop.permute.xlu0 %3395
      %3397 = vrot.lane.b32.xlu0 %v2692, 64
      %v3398 = vpop.permute.xlu0 %3397
      %3399 = vrot.lane.b32.xlu0 %v2693, 64
      %v3400 = vpop.permute.xlu0 %3399
      %3401 = vrot.lane.b32.xlu0 %v2695, 64
      %v3402 = vpop.permute.xlu0 %3401
      %3403 = vrot.lane.b32.xlu0 %v2696, 64
      %v3404 = vpop.permute.xlu0 %3403
      %3405 = vrot.lane.b32.xlu0 %v2698, 64
      %v3406 = vpop.permute.xlu0 %3405
      %3407 = vrot.lane.b32.xlu0 %v2699, 64
      %v3408 = vpop.permute.xlu0 %3407
      %3409 = vrot.lane.b32.xlu0 %v2701, 64
      %v3410 = vpop.permute.xlu0 %3409
      %3411 = vrot.lane.b32.xlu0 %v2702, 64
      %v3412 = vpop.permute.xlu0 %3411
      %3413 = vrot.lane.b32.xlu0 %v2704, 64
      %v3414 = vpop.permute.xlu0 %3413
      %3415 = vrot.lane.b32.xlu0 %v2705, 64
      %v3416 = vpop.permute.xlu0 %3415
      %3417 = vrot.lane.b32.xlu0 %v2707, 64
      %v3418 = vpop.permute.xlu0 %3417
      %3419 = vrot.lane.b32.xlu0 %v2708, 64
      %v3420 = vpop.permute.xlu0 %3419
      %3421 = vrot.lane.b32.xlu0 %v2710, 64
      %v3422 = vpop.permute.xlu0 %3421
      %3423 = vrot.lane.b32.xlu0 %v2711, 64
      %v3424 = vpop.permute.xlu0 %3423
      %3425 = vrot.lane.b32.xlu0 %v2713, 64
      %v3426 = vpop.permute.xlu0 %3425
      %3427 = vrot.lane.b32.xlu0 %v2714, 64
      %v3428 = vpop.permute.xlu0 %3427
      %3429 = vrot.lane.b32.xlu0 %v2716, 64
      %v3430 = vpop.permute.xlu0 %3429
      %3431 = vrot.lane.b32.xlu0 %v2717, 64
      %v3432 = vpop.permute.xlu0 %3431
      %3433 = vrot.lane.b32.xlu0 %v2719, 64
      %v3434 = vpop.permute.xlu0 %3433
      %3435 = vrot.lane.b32.xlu0 %v2720, 64
      %v3436 = vpop.permute.xlu0 %3435
      %3437 = vrot.lane.b32.xlu0 %v2722, 64
      %v3438 = vpop.permute.xlu0 %3437
      %3439 = vrot.lane.b32.xlu0 %v2723, 64
      %v3440 = vpop.permute.xlu0 %3439
      %3473 = vrot.lane.b32.xlu0 %v2786, 96
      %v3474 = vpop.permute.xlu0 %3473
      %3475 = vrot.lane.b32.xlu0 %v2788, 96
      %v3476 = vpop.permute.xlu0 %3475
      %3477 = vrot.lane.b32.xlu0 %v2791, 96
      %v3478 = vpop.permute.xlu0 %3477
      %3479 = vrot.lane.b32.xlu0 %v2793, 96
      %v3480 = vpop.permute.xlu0 %3479
      %3481 = vrot.lane.b32.xlu0 %v2796, 96
      %v3482 = vpop.permute.xlu0 %3481
      %3483 = vrot.lane.b32.xlu0 %v2798, 96
      %v3484 = vpop.permute.xlu0 %3483
      %3485 = vrot.lane.b32.xlu0 %v2801, 96
      %v3486 = vpop.permute.xlu0 %3485
      %3487 = vrot.lane.b32.xlu0 %v2803, 96
      %v3488 = vpop.permute.xlu0 %3487
      %3489 = vrot.lane.b32.xlu0 %v2806, 96
      %v3490 = vpop.permute.xlu0 %3489
      %3491 = vrot.lane.b32.xlu0 %v2808, 96
      %v3492 = vpop.permute.xlu0 %3491
      %3493 = vrot.lane.b32.xlu0 %v2811, 96
      %v3494 = vpop.permute.xlu0 %3493
      %3495 = vrot.lane.b32.xlu0 %v2813, 96
      %v3496 = vpop.permute.xlu0 %3495
      %3497 = vrot.lane.b32.xlu0 %v2816, 96
      %v3498 = vpop.permute.xlu0 %3497
      %3499 = vrot.lane.b32.xlu0 %v2818, 96
      %v3500 = vpop.permute.xlu0 %3499
      %3501 = vrot.lane.b32.xlu0 %v2821, 96
      %v3502 = vpop.permute.xlu0 %3501
      %3503 = vrot.lane.b32.xlu0 %v2823, 96
      %v3504 = vpop.permute.xlu0 %3503
      %3505 = vrot.lane.b32.xlu0 %v2826, 96
      %v3506 = vpop.permute.xlu0 %3505
      %3507 = vrot.lane.b32.xlu0 %v2828, 96
      %v3508 = vpop.permute.xlu0 %3507
      %3509 = vrot.lane.b32.xlu0 %v2831, 96
      %v3510 = vpop.permute.xlu0 %3509
      %3511 = vrot.lane.b32.xlu0 %v2833, 96
      %v3512 = vpop.permute.xlu0 %3511
      %3513 = vrot.lane.b32.xlu0 %v2836, 96
      %v3514 = vpop.permute.xlu0 %3513
      %3515 = vrot.lane.b32.xlu0 %v2838, 96
      %v3516 = vpop.permute.xlu0 %3515
      %3517 = vrot.lane.b32.xlu0 %v2841, 96
      %v3518 = vpop.permute.xlu0 %3517
      %3519 = vrot.lane.b32.xlu0 %v2843, 96
      %v3520 = vpop.permute.xlu0 %3519
      %3521 = vrot.lane.b32.xlu0 %v2846, 96
      %v3522 = vpop.permute.xlu0 %3521
      %3523 = vrot.lane.b32.xlu0 %v2848, 96
      %v3524 = vpop.permute.xlu0 %3523
      %3525 = vrot.lane.b32.xlu0 %v2851, 96
      %v3526 = vpop.permute.xlu0 %3525
      %3527 = vrot.lane.b32.xlu0 %v2853, 96
      %v3528 = vpop.permute.xlu0 %3527
      %3529 = vrot.lane.b32.xlu0 %v2940, 96
      %v3530 = vpop.permute.xlu0 %3529
      %3531 = vrot.lane.b32.xlu0 %v2942, 96
      %v3532 = vpop.permute.xlu0 %3531
      %3533 = vrot.lane.b32.xlu0 %v2985, 96
      %v3534 = vpop.permute.xlu0 %3533
      %3535 = vrot.lane.b32.xlu0 %v2987, 96
      %v3536 = vpop.permute.xlu0 %3535
      %v3569 = vsel %vm1089, %v2671, %v2994
      %v3570 = vsel %vm1089, %v2672, %v2996
      %v3571 = vsel %vm1089, %v2674, %v2998
      %v3572 = vsel %vm1089, %v2675, %v3000
      %v3573 = vsel %vm1089, %v2677, %v3002
      %v3574 = vsel %vm1089, %v2678, %v3004
      %v3575 = vsel %vm1089, %v2680, %v3006
      %v3576 = vsel %vm1089, %v2681, %v3008
      %v3577 = vsel %vm1089, %v2683, %v3010
      %v3578 = vsel %vm1089, %v2684, %v3012
      %v3579 = vsel %vm1089, %v2686, %v3014
      %v3580 = vsel %vm1089, %v2687, %v3016
      %v3581 = vsel %vm1089, %v2689, %v3018
      %v3582 = vsel %vm1089, %v2690, %v3020
      %v3583 = vsel %vm1089, %v2692, %v3022
      %v3584 = vsel %vm1089, %v2693, %v3024
      %v3585 = vsel %vm1089, %v2695, %v3026
      %v3586 = vsel %vm1089, %v2696, %v3028
      %v3587 = vsel %vm1089, %v2698, %v3030
      %v3588 = vsel %vm1089, %v2699, %v3032
      %v3589 = vsel %vm1089, %v2701, %v3034
      %v3590 = vsel %vm1089, %v2702, %v3036
      %v3591 = vsel %vm1089, %v2704, %v3038
      %v3592 = vsel %vm1089, %v2705, %v3040
      %v3593 = vsel %vm1089, %v2707, %v3042
      %v3594 = vsel %vm1089, %v2708, %v3044
      %v3595 = vsel %vm1089, %v2710, %v3046
      %v3596 = vsel %vm1089, %v2711, %v3048
      %v3597 = vsel %vm1089, %v2713, %v3050
      %v3598 = vsel %vm1089, %v2714, %v3052
      %v3599 = vsel %vm1089, %v2716, %v3054
      %v3600 = vsel %vm1089, %v2717, %v3056
      %vm3601 = vcmask 523264
      %v3602 = vsel %vm3601, %v3569, %v3090
      %v3603 = vsel %vm3601, %v3570, %v3092
      %v3604 = vsel %vm3601, %v3571, %v3094
      %v3605 = vsel %vm3601, %v3572, %v3096
      %v3606 = vsel %vm3601, %v3573, %v3098
      %v3607 = vsel %vm3601, %v3574, %v3100
      %v3608 = vsel %vm3601, %v3575, %v3102
      %v3609 = vsel %vm3601, %v3576, %v3104
      %v3610 = vsel %vm3601, %v3577, %v3106
      %v3611 = vsel %vm3601, %v3578, %v3108
      %v3612 = vsel %vm3601, %v3579, %v3110
      %v3613 = vsel %vm3601, %v3580, %v3112
      %v3614 = vsel %vm3601, %v3581, %v3114
      %v3615 = vsel %vm3601, %v3582, %v3116
      %v3616 = vsel %vm3601, %v3583, %v3118
      %v3617 = vsel %vm3601, %v3584, %v3120
      %v3618 = vsel %vm3601, %v3585, %v3122
      %v3619 = vsel %vm3601, %v3586, %v3124
      %v3620 = vsel %vm3601, %v3587, %v3126
      %v3621 = vsel %vm3601, %v3588, %v3128
      %v3622 = vsel %vm3601, %v3589, %v3130
      %v3623 = vsel %vm3601, %v3590, %v3132
      %v3624 = vsel %vm3601, %v3591, %v3134
      %v3625 = vsel %vm3601, %v3592, %v3136
      %v3626 = vsel %vm3601, %v3593, %v3138
      %v3627 = vsel %vm3601, %v3594, %v3140
      %v3628 = vsel %vm3601, %v3595, %v3142
      %v3629 = vsel %vm3601, %v3596, %v3144
      %v3630 = vsel %vm3601, %v3597, %v3146
      %v3631 = vsel %vm3601, %v3598, %v3148
      %v3632 = vsel %vm3601, %v3599, %v3150
      %v3633 = vsel %vm3601, %v3600, %v3152
      %vm3634 = vcmask 785408
      %v3635 = vsel %vm3634, %v3602, %v3186
      %v3636 = vsel %vm3634, %v3603, %v3188
      %v3637 = vsel %vm3634, %v3604, %v3190
      %v3638 = vsel %vm3634, %v3605, %v3192
      %v3639 = vsel %vm3634, %v3606, %v3194
      %v3640 = vsel %vm3634, %v3607, %v3196
      %v3641 = vsel %vm3634, %v3608, %v3198
      %v3642 = vsel %vm3634, %v3609, %v3200
      %v3643 = vsel %vm3634, %v3610, %v3202
      %v3644 = vsel %vm3634, %v3611, %v3204
      %v3645 = vsel %vm3634, %v3612, %v3206
      %v3646 = vsel %vm3634, %v3613, %v3208
      %v3647 = vsel %vm3634, %v3614, %v3210
      %v3648 = vsel %vm3634, %v3615, %v3212
      %v3649 = vsel %vm3634, %v3616, %v3214
      %v3650 = vsel %vm3634, %v3617, %v3216
      %v3651 = vsel %vm3634, %v3618, %v3218
      %v3652 = vsel %vm3634, %v3619, %v3220
      %v3653 = vsel %vm3634, %v3620, %v3222
      %v3654 = vsel %vm3634, %v3621, %v3224
      %v3655 = vsel %vm3634, %v3622, %v3226
      %v3656 = vsel %vm3634, %v3623, %v3228
      %v3657 = vsel %vm3634, %v3624, %v3230
      %v3658 = vsel %vm3634, %v3625, %v3232
      %v3659 = vsel %vm3634, %v3626, %v3234
      %v3660 = vsel %vm3634, %v3627, %v3236
      %v3661 = vsel %vm3634, %v3628, %v3238
      %v3662 = vsel %vm3634, %v3629, %v3240
      %v3663 = vsel %vm3634, %v3630, %v3242
      %v3664 = vsel %vm3634, %v3631, %v3244
      %v3665 = vsel %vm3634, %v3632, %v3246
      %v3666 = vsel %vm3634, %v3633, %v3248
      %v3667 = vsel %vm1089, %v2781, %v3282
      %v3668 = vsel %vm1089, %v2783, %v3284
      %v3669 = vsel %vm1089, %v2786, %v3286
      %v3670 = vsel %vm1089, %v2788, %v3288
      %v3671 = vsel %vm1089, %v2791, %v3290
      %v3672 = vsel %vm1089, %v2793, %v3292
      %v3673 = vsel %vm1089, %v2796, %v3294
      %v3674 = vsel %vm1089, %v2798, %v3296
      %v3675 = vsel %vm1089, %v2801, %v3298
      %v3676 = vsel %vm1089, %v2803, %v3300
      %v3677 = vsel %vm1089, %v2806, %v3302
      %v3678 = vsel %vm1089, %v2808, %v3304
      %v3679 = vsel %vm1089, %v2811, %v3306
      %v3680 = vsel %vm1089, %v2813, %v3308
      %v3681 = vsel %vm1089, %v2816, %v3310
      %v3682 = vsel %vm1089, %v2818, %v3312
      %v3683 = vsel %vm1089, %v2821, %v3314
      %v3684 = vsel %vm1089, %v2823, %v3316
      %v3685 = vsel %vm1089, %v2826, %v3318
      %v3686 = vsel %vm1089, %v2828, %v3320
      %v3687 = vsel %vm1089, %v2831, %v3322
      %v3688 = vsel %vm1089, %v2833, %v3324
      %v3689 = vsel %vm1089, %v2836, %v3326
      %v3690 = vsel %vm1089, %v2838, %v3328
      %v3691 = vsel %vm1089, %v2841, %v3330
      %v3692 = vsel %vm1089, %v2843, %v3332
      %v3693 = vsel %vm1089, %v2846, %v3334
      %v3694 = vsel %vm1089, %v2848, %v3336
      %v3695 = vsel %vm1089, %v2851, %v3338
      %v3696 = vsel %vm1089, %v2853, %v3340
      %v3697 = vsel %vm1089, %v2940, %v3342
      %v3698 = vsel %vm1089, %v2942, %v3344
      %v3699 = vsel %vm3601, %v3667, %v3378
      %v3700 = vsel %vm3601, %v3668, %v3380
      %v3701 = vsel %vm3601, %v3669, %v3382
      %v3702 = vsel %vm3601, %v3670, %v3384
      %v3703 = vsel %vm3601, %v3671, %v3386
      %v3704 = vsel %vm3601, %v3672, %v3388
      %v3705 = vsel %vm3601, %v3673, %v3390
      %v3706 = vsel %vm3601, %v3674, %v3392
      %v3707 = vsel %vm3601, %v3675, %v3394
      %v3708 = vsel %vm3601, %v3676, %v3396
      %v3709 = vsel %vm3601, %v3677, %v3398
      %v3710 = vsel %vm3601, %v3678, %v3400
      %v3711 = vsel %vm3601, %v3679, %v3402
      %v3712 = vsel %vm3601, %v3680, %v3404
      %v3713 = vsel %vm3601, %v3681, %v3406
      %v3714 = vsel %vm3601, %v3682, %v3408
      %v3715 = vsel %vm3601, %v3683, %v3410
      %v3716 = vsel %vm3601, %v3684, %v3412
      %v3717 = vsel %vm3601, %v3685, %v3414
      %v3718 = vsel %vm3601, %v3686, %v3416
      %v3719 = vsel %vm3601, %v3687, %v3418
      %v3720 = vsel %vm3601, %v3688, %v3420
      %v3721 = vsel %vm3601, %v3689, %v3422
      %v3722 = vsel %vm3601, %v3690, %v3424
      %v3723 = vsel %vm3601, %v3691, %v3426
      %v3724 = vsel %vm3601, %v3692, %v3428
      %v3725 = vsel %vm3601, %v3693, %v3430
      %v3726 = vsel %vm3601, %v3694, %v3432
      %v3727 = vsel %vm3601, %v3695, %v3434
      %v3728 = vsel %vm3601, %v3696, %v3436
      %v3729 = vsel %vm3601, %v3697, %v3438
      %v3730 = vsel %vm3601, %v3698, %v3440
      %v3731 = vsel %vm3634, %v3699, %v3474
      %v3732 = vsel %vm3634, %v3700, %v3476
      %v3733 = vsel %vm3634, %v3701, %v3478
      %v3734 = vsel %vm3634, %v3702, %v3480
      %v3735 = vsel %vm3634, %v3703, %v3482
      %v3736 = vsel %vm3634, %v3704, %v3484
      %v3737 = vsel %vm3634, %v3705, %v3486
      %v3738 = vsel %vm3634, %v3706, %v3488
      %v3739 = vsel %vm3634, %v3707, %v3490
      %v3740 = vsel %vm3634, %v3708, %v3492
      %v3741 = vsel %vm3634, %v3709, %v3494
      %v3742 = vsel %vm3634, %v3710, %v3496
      %v3743 = vsel %vm3634, %v3711, %v3498
      %v3744 = vsel %vm3634, %v3712, %v3500
      %v3745 = vsel %vm3634, %v3713, %v3502
      %v3746 = vsel %vm3634, %v3714, %v3504
      %v3747 = vsel %vm3634, %v3715, %v3506
      %v3748 = vsel %vm3634, %v3716, %v3508
      %v3749 = vsel %vm3634, %v3717, %v3510
      %v3750 = vsel %vm3634, %v3718, %v3512
      %v3751 = vsel %vm3634, %v3719, %v3514
      %v3752 = vsel %vm3634, %v3720, %v3516
      %v3753 = vsel %vm3634, %v3721, %v3518
      %v3754 = vsel %vm3634, %v3722, %v3520
      %v3755 = vsel %vm3634, %v3723, %v3522
      %v3756 = vsel %vm3634, %v3724, %v3524
      %v3757 = vsel %vm3634, %v3725, %v3526
      %v3758 = vsel %vm3634, %v3726, %v3528
      %v3759 = vsel %vm3634, %v3727, %v3530
      %v3760 = vsel %vm3634, %v3728, %v3532
      %v3761 = vsel %vm3634, %v3729, %v3534
      %v3762 = vsel %vm3634, %v3730, %v3536
      %v3763 = vld [vmem:[%s5] sm:$0xff]
      %v3764 = vld [vmem:[%s5 + $0x8] sm:$0xff]
      %v3765 = vld [vmem:[%s5 + $0x10] sm:$0xff]
      %v3766 = vld [vmem:[%s5 + $0x18] sm:$0xff]
      %v3767 = vld [vmem:[%s5 + $0x20] sm:$0xff]
      %v3768 = vld [vmem:[%s5 + $0x28] sm:$0xff]
      %v3769 = vld [vmem:[%s5 + $0x30] sm:$0xff]
      %v3770 = vld [vmem:[%s5 + $0x38] sm:$0xff]
      %v3771 = vld [vmem:[%s5 + $0x40] sm:$0xff]
      %v3772 = vld [vmem:[%s5 + $0x48] sm:$0xff]
      %v3773 = vld [vmem:[%s5 + $0x50] sm:$0xff]
      %v3774 = vld [vmem:[%s5 + $0x58] sm:$0xff]
      %v3775 = vld [vmem:[%s5 + $0x60] sm:$0xff]
      %v3776 = vld [vmem:[%s5 + $0x68] sm:$0xff]
      %v3777 = vld [vmem:[%s5 + $0x70] sm:$0xff]
      %v3778 = vld [vmem:[%s5 + $0x78] sm:$0xff]
      %v3779 = vld [vmem:[%s5 + $0x80] sm:$0xff]
      %v3780 = vld [vmem:[%s5 + $0x88] sm:$0xff]
      %v3781 = vld [vmem:[%s5 + $0x90] sm:$0xff]
      %v3782 = vld [vmem:[%s5 + $0x98] sm:$0xff]
      %v3783 = vld [vmem:[%s5 + $0xa0] sm:$0xff]
      %v3784 = vld [vmem:[%s5 + $0xa8] sm:$0xff]
      %v3785 = vld [vmem:[%s5 + $0xb0] sm:$0xff]
      %v3786 = vld [vmem:[%s5 + $0xb8] sm:$0xff]
      %v3787 = vld [vmem:[%s5 + $0xc0] sm:$0xff]
      %v3788 = vld [vmem:[%s5 + $0xc8] sm:$0xff]
      %v3789 = vld [vmem:[%s5 + $0xd0] sm:$0xff]
      %v3790 = vld [vmem:[%s5 + $0xd8] sm:$0xff]
      %v3791 = vld [vmem:[%s5 + $0xe0] sm:$0xff]
      %v3792 = vld [vmem:[%s5 + $0xe8] sm:$0xff]
      %v3793 = vld [vmem:[%s5 + $0xf0] sm:$0xff]
      %v3794 = vld [vmem:[%s5 + $0xf8] sm:$0xff]
      %v3795 = vld [vmem:[%s5 + $0x100] sm:$0xff]
      %v3796 = vld [vmem:[%s5 + $0x108] sm:$0xff]
      %v3797 = vld [vmem:[%s5 + $0x110] sm:$0xff]
      %v3798 = vld [vmem:[%s5 + $0x118] sm:$0xff]
      %v3799 = vld [vmem:[%s6] sm:$0x1]
      %v3801 = vperm.slane %v3799, 0
      %v3803 = vsel %vm1089, %v2867, 0
      %v3805 = vsel %vm1089, %v2869, 0
      %v3807 = vsel %vm1089, %v2872, 0
      %v3809 = vsel %vm1089, %v2874, 0
      %v3811 = vsel %vm1089, %v2877, 0
      %v3813 = vsel %vm1089, %v2879, 0
      %v3815 = vsel %vm1089, %v2882, 0
      %v3817 = vsel %vm1089, %v2884, 0
      %v3819 = vsel %vm1089, %v2887, 0
      %v3821 = vsel %vm1089, %v2889, 0
      %v3823 = vsel %vm1089, %v2892, 0
      %v3825 = vsel %vm1089, %v2894, 0
      %v3827 = vsel %vm1089, %v2897, 0
      %v3829 = vsel %vm1089, %v2899, 0
      %v3831 = vsel %vm1089, %v2902, 0
      %v3833 = vsel %vm1089, %v2904, 0
      %v3835 = vsel %vm1089, %v2907, 0
      %v3837 = vsel %vm1089, %v2909, 0
      %v3839 = vsel %vm1089, %v2912, 0
      %v3841 = vsel %vm1089, %v2914, 0
      %v3843 = vsel %vm1089, %v2917, 0
      %v3845 = vsel %vm1089, %v2919, 0
      %v3847 = vsel %vm1089, %v2922, 0
      %v3849 = vsel %vm1089, %v2924, 0
      %v3851 = vsel %vm1089, %v2927, 0
      %v3853 = vsel %vm1089, %v2929, 0
      %v3855 = vsel %vm1089, %v2932, 0
      %v3857 = vsel %vm1089, %v2934, 0
      %v3859 = vsel %vm1089, %v2977, 0
      %v3861 = vsel %vm1089, %v2979, 0
      %v3863 = vsel %vm1089, %v2990, 0
      %v3865 = vsel %vm1089, %v2992, 0
      %3867 = vmatpush.msra.mxu0 %v3778
      %3868 = vmatpush.msra.mxu0 %v3777
      %3869 = vmatpush.msra.mxu0 %v3776
      %3870 = vmatpush.msra.mxu0 %v3775
      %3871 = vmatpush.msra.mxu0 %v3774
      %3872 = vmatpush.msra.mxu0 %v3773
      %3873 = vmatpush.msra.mxu0 %v3772
      %3874 = vmatpush.msra.mxu0 %v3771
      %3875 = vmatpush.msra.mxu0 %v3770
      %3876 = vmatpush.msra.mxu0 %v3769
      %3877 = vmatpush.msra.mxu0 %v3768
      %3878 = vmatpush.msra.mxu0 %v3767
      %3879 = vmatpush.msra.mxu0 %v3766
      %3880 = vmatpush.msra.mxu0 %v3765
      %3881 = vmatpush.msra.mxu0 %v3764
      %3882 = vmatpush.msra.mxu0 %v3763
      %3883 = vmatmul.f32.gmra.mxu0 %v3635
      %v3884 = vpop.f32.mrf.mxu0
      %v3885 = vadd.f32 %v3801, %v3884
      %3886 = vmatmul.f32.gmra.mxu0 %v3636
      %v3887 = vpop.f32.mrf.mxu0
      %v3888 = vadd.f32 %v3801, %v3887
      %3889 = vmatmul.f32.gmra.mxu0 %v3637
      %v3890 = vpop.f32.mrf.mxu0
      %v3891 = vadd.f32 %v3801, %v3890
      %3892 = vmatmul.f32.gmra.mxu0 %v3638
      %v3893 = vpop.f32.mrf.mxu0
      %v3894 = vadd.f32 %v3801, %v3893
      %3895 = vmatmul.f32.gmra.mxu0 %v3639
      %v3896 = vpop.f32.mrf.mxu0
      %v3897 = vadd.f32 %v3801, %v3896
      %3898 = vmatmul.f32.gmra.mxu0 %v3640
      %v3899 = vpop.f32.mrf.mxu0
      %v3900 = vadd.f32 %v3801, %v3899
      %3901 = vmatmul.f32.gmra.mxu0 %v3641
      %v3902 = vpop.f32.mrf.mxu0
      %v3903 = vadd.f32 %v3801, %v3902
      %3904 = vmatmul.f32.gmra.mxu0 %v3642
      %v3905 = vpop.f32.mrf.mxu0
      %v3906 = vadd.f32 %v3801, %v3905
      %3907 = vmatmul.f32.gmra.mxu0 %v3643
      %v3908 = vpop.f32.mrf.mxu0
      %v3909 = vadd.f32 %v3801, %v3908
      %3910 = vmatmul.f32.gmra.mxu0 %v3644
      %v3911 = vpop.f32.mrf.mxu0
      %v3912 = vadd.f32 %v3801, %v3911
      %3913 = vmatmul.f32.gmra.mxu0 %v3645
      %v3914 = vpop.f32.mrf.mxu0
      %v3915 = vadd.f32 %v3801, %v3914
      %3916 = vmatmul.f32.gmra.mxu0 %v3646
      %v3917 = vpop.f32.mrf.mxu0
      %v3918 = vadd.f32 %v3801, %v3917
      %3919 = vmatmul.f32.gmra.mxu0 %v3647
      %v3920 = vpop.f32.mrf.mxu0
      %v3921 = vadd.f32 %v3801, %v3920
      %3922 = vmatmul.f32.gmra.mxu0 %v3648
      %v3923 = vpop.f32.mrf.mxu0
      %v3924 = vadd.f32 %v3801, %v3923
      %3925 = vmatmul.f32.gmra.mxu0 %v3649
      %v3926 = vpop.f32.mrf.mxu0
      %v3927 = vadd.f32 %v3801, %v3926
      %3928 = vmatmul.f32.gmra.mxu0 %v3650
      %v3929 = vpop.f32.mrf.mxu0
      %v3930 = vadd.f32 %v3801, %v3929
      %3931 = vmatmul.f32.gmra.mxu0 %v3651
      %v3932 = vpop.f32.mrf.mxu0
      %v3933 = vadd.f32 %v3801, %v3932
      %3934 = vmatmul.f32.gmra.mxu0 %v3652
      %v3935 = vpop.f32.mrf.mxu0
      %v3936 = vadd.f32 %v3801, %v3935
      %3937 = vmatmul.f32.gmra.mxu0 %v3653
      %v3938 = vpop.f32.mrf.mxu0
      %v3939 = vadd.f32 %v3801, %v3938
      %3940 = vmatmul.f32.gmra.mxu0 %v3654
      %v3941 = vpop.f32.mrf.mxu0
      %v3942 = vadd.f32 %v3801, %v3941
      %3943 = vmatmul.f32.gmra.mxu0 %v3655
      %v3944 = vpop.f32.mrf.mxu0
      %v3945 = vadd.f32 %v3801, %v3944
      %3946 = vmatmul.f32.gmra.mxu0 %v3656
      %v3947 = vpop.f32.mrf.mxu0
      %v3948 = vadd.f32 %v3801, %v3947
      %3949 = vmatmul.f32.gmra.mxu0 %v3657
      %v3950 = vpop.f32.mrf.mxu0
      %v3951 = vadd.f32 %v3801, %v3950
      %3952 = vmatmul.f32.gmra.mxu0 %v3658
      %v3953 = vpop.f32.mrf.mxu0
      %v3954 = vadd.f32 %v3801, %v3953
      %3955 = vmatmul.f32.gmra.mxu0 %v3659
      %v3956 = vpop.f32.mrf.mxu0
      %v3957 = vadd.f32 %v3801, %v3956
      %3958 = vmatmul.f32.gmra.mxu0 %v3660
      %v3959 = vpop.f32.mrf.mxu0
      %v3960 = vadd.f32 %v3801, %v3959
      %3961 = vmatmul.f32.gmra.mxu0 %v3661
      %v3962 = vpop.f32.mrf.mxu0
      %v3963 = vadd.f32 %v3801, %v3962
      %3964 = vmatmul.f32.gmra.mxu0 %v3662
      %v3965 = vpop.f32.mrf.mxu0
      %v3966 = vadd.f32 %v3801, %v3965
      %3967 = vmatmul.f32.gmra.mxu0 %v3663
      %v3968 = vpop.f32.mrf.mxu0
      %v3969 = vadd.f32 %v3801, %v3968
      %3970 = vmatmul.f32.gmra.mxu0 %v3664
      %v3971 = vpop.f32.mrf.mxu0
      %v3972 = vadd.f32 %v3801, %v3971
      %3973 = vmatmul.f32.gmra.mxu0 %v3665
      %v3974 = vpop.f32.mrf.mxu0
      %v3975 = vadd.f32 %v3801, %v3974
      %3976 = vmatmul.f32.gmra.mxu0 %v3666
      %v3977 = vpop.f32.mrf.mxu0
      %v3978 = vadd.f32 %v3801, %v3977
      %3979 = vdwg.mxu0
      %3980 = vmatpush.msra.mxu0 %v3794
      %3981 = vmatpush.msra.mxu0 %v3793
      %3982 = vmatpush.msra.mxu0 %v3792
      %3983 = vmatpush.msra.mxu0 %v3791
      %3984 = vmatpush.msra.mxu0 %v3790
      %3985 = vmatpush.msra.mxu0 %v3789
      %3986 = vmatpush.msra.mxu0 %v3788
      %3987 = vmatpush.msra.mxu0 %v3787
      %3988 = vmatpush.msra.mxu0 %v3786
      %3989 = vmatpush.msra.mxu0 %v3785
      %3990 = vmatpush.msra.mxu0 %v3784
      %3991 = vmatpush.msra.mxu0 %v3783
      %3992 = vmatpush.msra.mxu0 %v3782
      %3993 = vmatpush.msra.mxu0 %v3781
      %3994 = vmatpush.msra.mxu0 %v3780
      %3995 = vmatpush.msra.mxu0 %v3779
      %3996 = vmatmul.f32.gmra.mxu0 %v3731
      %v3997 = vpop.f32.mrf.mxu0
      %v3998 = vadd.f32 %v3885, %v3997
      %3999 = vmatmul.f32.gmra.mxu0 %v3732
      %v4000 = vpop.f32.mrf.mxu0
      %v4001 = vadd.f32 %v3888, %v4000
      %4002 = vmatmul.f32.gmra.mxu0 %v3733
      %v4003 = vpop.f32.mrf.mxu0
      %v4004 = vadd.f32 %v3891, %v4003
      %4005 = vmatmul.f32.gmra.mxu0 %v3734
      %v4006 = vpop.f32.mrf.mxu0
      %v4007 = vadd.f32 %v3894, %v4006
      %4008 = vmatmul.f32.gmra.mxu0 %v3735
      %v4009 = vpop.f32.mrf.mxu0
      %v4010 = vadd.f32 %v3897, %v4009
      %4011 = vmatmul.f32.gmra.mxu0 %v3736
      %v4012 = vpop.f32.mrf.mxu0
      %v4013 = vadd.f32 %v3900, %v4012
      %4014 = vmatmul.f32.gmra.mxu0 %v3737
      %v4015 = vpop.f32.mrf.mxu0
      %v4016 = vadd.f32 %v3903, %v4015
      %4017 = vmatmul.f32.gmra.mxu0 %v3738
      %v4018 = vpop.f32.mrf.mxu0
      %v4019 = vadd.f32 %v3906, %v4018
      %4020 = vmatmul.f32.gmra.mxu0 %v3739
      %v4021 = vpop.f32.mrf.mxu0
      %v4022 = vadd.f32 %v3909, %v4021
      %4023 = vmatmul.f32.gmra.mxu0 %v3740
      %v4024 = vpop.f32.mrf.mxu0
      %v4025 = vadd.f32 %v3912, %v4024
      %4026 = vmatmul.f32.gmra.mxu0 %v3741
      %v4027 = vpop.f32.mrf.mxu0
      %v4028 = vadd.f32 %v3915, %v4027
      %4029 = vmatmul.f32.gmra.mxu0 %v3742
      %v4030 = vpop.f32.mrf.mxu0
      %v4031 = vadd.f32 %v3918, %v4030
      %4032 = vmatmul.f32.gmra.mxu0 %v3743
      %v4033 = vpop.f32.mrf.mxu0
      %v4034 = vadd.f32 %v3921, %v4033
      %4035 = vmatmul.f32.gmra.mxu0 %v3744
      %v4036 = vpop.f32.mrf.mxu0
      %v4037 = vadd.f32 %v3924, %v4036
      %4038 = vmatmul.f32.gmra.mxu0 %v3745
      %v4039 = vpop.f32.mrf.mxu0
      %v4040 = vadd.f32 %v3927, %v4039
      %4041 = vmatmul.f32.gmra.mxu0 %v3746
      %v4042 = vpop.f32.mrf.mxu0
      %v4043 = vadd.f32 %v3930, %v4042
      %4044 = vmatmul.f32.gmra.mxu0 %v3747
      %v4045 = vpop.f32.mrf.mxu0
      %v4046 = vadd.f32 %v3933, %v4045
      %4047 = vmatmul.f32.gmra.mxu0 %v3748
      %v4048 = vpop.f32.mrf.mxu0
      %v4049 = vadd.f32 %v3936, %v4048
      %4050 = vmatmul.f32.gmra.mxu0 %v3749
      %v4051 = vpop.f32.mrf.mxu0
      %v4052 = vadd.f32 %v3939, %v4051
      %4053 = vmatmul.f32.gmra.mxu0 %v3750
      %v4054 = vpop.f32.mrf.mxu0
      %v4055 = vadd.f32 %v3942, %v4054
      %4056 = vmatmul.f32.gmra.mxu0 %v3751
      %v4057 = vpop.f32.mrf.mxu0
      %v4058 = vadd.f32 %v3945, %v4057
      %4059 = vmatmul.f32.gmra.mxu0 %v3752
      %v4060 = vpop.f32.mrf.mxu0
      %v4061 = vadd.f32 %v3948, %v4060
      %4062 = vmatmul.f32.gmra.mxu0 %v3753
      %v4063 = vpop.f32.mrf.mxu0
      %v4064 = vadd.f32 %v3951, %v4063
      %4065 = vmatmul.f32.gmra.mxu0 %v3754
      %v4066 = vpop.f32.mrf.mxu0
      %v4067 = vadd.f32 %v3954, %v4066
      %4068 = vmatmul.f32.gmra.mxu0 %v3755
      %v4069 = vpop.f32.mrf.mxu0
      %v4070 = vadd.f32 %v3957, %v4069
      %4071 = vmatmul.f32.gmra.mxu0 %v3756
      %v4072 = vpop.f32.mrf.mxu0
      %v4073 = vadd.f32 %v3960, %v4072
      %4074 = vmatmul.f32.gmra.mxu0 %v3757
      %v4075 = vpop.f32.mrf.mxu0
      %v4076 = vadd.f32 %v3963, %v4075
      %4077 = vmatmul.f32.gmra.mxu0 %v3758
      %v4078 = vpop.f32.mrf.mxu0
      %v4079 = vadd.f32 %v3966, %v4078
      %4080 = vmatmul.f32.gmra.mxu0 %v3759
      %v4081 = vpop.f32.mrf.mxu0
      %v4082 = vadd.f32 %v3969, %v4081
      %4083 = vmatmul.f32.gmra.mxu0 %v3760
      %v4084 = vpop.f32.mrf.mxu0
      %v4085 = vadd.f32 %v3972, %v4084
      %4086 = vmatmul.f32.gmra.mxu0 %v3761
      %v4087 = vpop.f32.mrf.mxu0
      %v4088 = vadd.f32 %v3975, %v4087
      %4089 = vmatmul.f32.gmra.mxu0 %v3762
      %v4090 = vpop.f32.mrf.mxu0
      %v4091 = vadd.f32 %v3978, %v4090
      %4092 = vdwg.mxu0
      %4093 = vmatpush.msra.mxu0 0.0
      %4094 = vmatpush.msra.mxu0 0.0
      %4095 = vmatpush.msra.mxu0 0.0
      %4096 = vmatpush.msra.mxu0 0.0
      %4097 = vmatpush.msra.mxu0 0.0
      %4098 = vmatpush.msra.mxu0 0.0
      %4099 = vmatpush.msra.mxu0 0.0
      %4100 = vmatpush.msra.mxu0 0.0
      %4101 = vmatpush.msra.mxu0 0.0
      %4102 = vmatpush.msra.mxu0 0.0
      %4103 = vmatpush.msra.mxu0 0.0
      %4104 = vmatpush.msra.mxu0 0.0
      %4105 = vmatpush.msra.mxu0 %v3798
      %4106 = vmatpush.msra.mxu0 %v3797
      %4107 = vmatpush.msra.mxu0 %v3796
      %4108 = vmatpush.msra.mxu0 %v3795
      %4109 = vmatmul.f32.gmra.mxu0 %v3803
      %v4110 = vpop.f32.mrf.mxu0
      %v4111 = vadd.f32 %v3998, %v4110
      %4112 = vmatmul.f32.gmra.mxu0 %v3805
      %v4113 = vpop.f32.mrf.mxu0
      %v4114 = vadd.f32 %v4001, %v4113
      %4115 = vmatmul.f32.gmra.mxu0 %v3807
      %v4116 = vpop.f32.mrf.mxu0
      %v4117 = vadd.f32 %v4004, %v4116
      %4118 = vmatmul.f32.gmra.mxu0 %v3809
      %v4119 = vpop.f32.mrf.mxu0
      %v4120 = vadd.f32 %v4007, %v4119
      %4121 = vmatmul.f32.gmra.mxu0 %v3811
      %v4122 = vpop.f32.mrf.mxu0
      %v4123 = vadd.f32 %v4010, %v4122
      %4124 = vmatmul.f32.gmra.mxu0 %v3813
      %v4125 = vpop.f32.mrf.mxu0
      %v4126 = vadd.f32 %v4013, %v4125
      %4127 = vmatmul.f32.gmra.mxu0 %v3815
      %v4128 = vpop.f32.mrf.mxu0
      %v4129 = vadd.f32 %v4016, %v4128
      %4130 = vmatmul.f32.gmra.mxu0 %v3817
      %v4131 = vpop.f32.mrf.mxu0
      %v4132 = vadd.f32 %v4019, %v4131
      %4133 = vmatmul.f32.gmra.mxu0 %v3819
      %v4134 = vpop.f32.mrf.mxu0
      %v4135 = vadd.f32 %v4022, %v4134
      %4136 = vmatmul.f32.gmra.mxu0 %v3821
      %v4137 = vpop.f32.mrf.mxu0
      %v4138 = vadd.f32 %v4025, %v4137
      %4139 = vmatmul.f32.gmra.mxu0 %v3823
      %v4140 = vpop.f32.mrf.mxu0
      %v4141 = vadd.f32 %v4028, %v4140
      %4142 = vmatmul.f32.gmra.mxu0 %v3825
      %v4143 = vpop.f32.mrf.mxu0
      %v4144 = vadd.f32 %v4031, %v4143
      %4145 = vmatmul.f32.gmra.mxu0 %v3827
      %v4146 = vpop.f32.mrf.mxu0
      %v4147 = vadd.f32 %v4034, %v4146
      %4148 = vmatmul.f32.gmra.mxu0 %v3829
      %v4149 = vpop.f32.mrf.mxu0
      %v4150 = vadd.f32 %v4037, %v4149
      %4151 = vmatmul.f32.gmra.mxu0 %v3831
      %v4152 = vpop.f32.mrf.mxu0
      %v4153 = vadd.f32 %v4040, %v4152
      %4154 = vmatmul.f32.gmra.mxu0 %v3833
      %v4155 = vpop.f32.mrf.mxu0
      %v4156 = vadd.f32 %v4043, %v4155
      %4157 = vmatmul.f32.gmra.mxu0 %v3835
      %v4158 = vpop.f32.mrf.mxu0
      %v4159 = vadd.f32 %v4046, %v4158
      %4160 = vmatmul.f32.gmra.mxu0 %v3837
      %v4161 = vpop.f32.mrf.mxu0
      %v4162 = vadd.f32 %v4049, %v4161
      %4163 = vmatmul.f32.gmra.mxu0 %v3839
      %v4164 = vpop.f32.mrf.mxu0
      %v4165 = vadd.f32 %v4052, %v4164
      %4166 = vmatmul.f32.gmra.mxu0 %v3841
      %v4167 = vpop.f32.mrf.mxu0
      %v4168 = vadd.f32 %v4055, %v4167
      %4169 = vmatmul.f32.gmra.mxu0 %v3843
      %v4170 = vpop.f32.mrf.mxu0
      %v4171 = vadd.f32 %v4058, %v4170
      %4172 = vmatmul.f32.gmra.mxu0 %v3845
      %v4173 = vpop.f32.mrf.mxu0
      %v4174 = vadd.f32 %v4061, %v4173
      %4175 = vmatmul.f32.gmra.mxu0 %v3847
      %v4176 = vpop.f32.mrf.mxu0
      %v4177 = vadd.f32 %v4064, %v4176
      %4178 = vmatmul.f32.gmra.mxu0 %v3849
      %v4179 = vpop.f32.mrf.mxu0
      %v4180 = vadd.f32 %v4067, %v4179
      %4181 = vmatmul.f32.gmra.mxu0 %v3851
      %v4182 = vpop.f32.mrf.mxu0
      %v4183 = vadd.f32 %v4070, %v4182
      %4184 = vmatmul.f32.gmra.mxu0 %v3853
      %v4185 = vpop.f32.mrf.mxu0
      %v4186 = vadd.f32 %v4073, %v4185
      %4187 = vmatmul.f32.gmra.mxu0 %v3855
      %v4188 = vpop.f32.mrf.mxu0
      %v4189 = vadd.f32 %v4076, %v4188
      %4190 = vmatmul.f32.gmra.mxu0 %v3857
      %v4191 = vpop.f32.mrf.mxu0
      %v4192 = vadd.f32 %v4079, %v4191
      %4193 = vmatmul.f32.gmra.mxu0 %v3859
      %v4194 = vpop.f32.mrf.mxu0
      %v4195 = vadd.f32 %v4082, %v4194
      %4196 = vmatmul.f32.gmra.mxu0 %v3861
      %v4197 = vpop.f32.mrf.mxu0
      %v4198 = vadd.f32 %v4085, %v4197
      %4199 = vmatmul.f32.gmra.mxu0 %v3863
      %v4200 = vpop.f32.mrf.mxu0
      %v4201 = vadd.f32 %v4088, %v4200
      %4202 = vmatmul.f32.gmra.mxu0 %v3865
      %v4203 = vpop.f32.mrf.mxu0
      %v4204 = vadd.f32 %v4091, %v4203
      %4205 = vdwg.mxu0
      %v4206 = vmax.f32 %v4111, 0.0
      %v4207 = vmax.f32 %v4114, 0.0
      %v4208 = vmax.f32 %v4117, 0.0
      %v4209 = vmax.f32 %v4120, 0.0
      %v4210 = vmax.f32 %v4123, 0.0
      %v4211 = vmax.f32 %v4126, 0.0
      %v4212 = vmax.f32 %v4129, 0.0
      %v4213 = vmax.f32 %v4132, 0.0
      %v4214 = vmax.f32 %v4135, 0.0
      %v4215 = vmax.f32 %v4138, 0.0
      %v4216 = vmax.f32 %v4141, 0.0
      %v4217 = vmax.f32 %v4144, 0.0
      %v4218 = vmax.f32 %v4147, 0.0
      %v4219 = vmax.f32 %v4150, 0.0
      %v4220 = vmax.f32 %v4153, 0.0
      %v4221 = vmax.f32 %v4156, 0.0
      %v4222 = vmax.f32 %v4159, 0.0
      %v4223 = vmax.f32 %v4162, 0.0
      %v4224 = vmax.f32 %v4165, 0.0
      %v4225 = vmax.f32 %v4168, 0.0
      %v4226 = vmax.f32 %v4171, 0.0
      %v4227 = vmax.f32 %v4174, 0.0
      %v4228 = vmax.f32 %v4177, 0.0
      %v4229 = vmax.f32 %v4180, 0.0
      %v4230 = vmax.f32 %v4183, 0.0
      %v4231 = vmax.f32 %v4186, 0.0
      %v4232 = vmax.f32 %v4189, 0.0
      %v4233 = vmax.f32 %v4192, 0.0
      %v4234 = vmax.f32 %v4195, 0.0
      %v4235 = vmax.f32 %v4198, 0.0
      %v4236 = vmax.f32 %v4201, 0.0
      %v4237 = vmax.f32 %v4204, 0.0
      %v4238 = vmul.f32 %v4206, %v2362
      %v4239 = vmul.f32 %v4207, %v2367
      %v4240 = vmul.f32 %v4208, %v2372
      %v4241 = vmul.f32 %v4209, %v2377
      %v4242 = vmul.f32 %v4210, %v2382
      %v4243 = vmul.f32 %v4211, %v2387
      %v4244 = vmul.f32 %v4212, %v2392
      %v4245 = vmul.f32 %v4213, %v2397
      %v4246 = vmul.f32 %v4214, %v2402
      %v4247 = vmul.f32 %v4215, %v2407
      %v4248 = vmul.f32 %v4216, %v2412
      %v4249 = vmul.f32 %v4217, %v2417
      %v4250 = vmul.f32 %v4218, %v2422
      %v4251 = vmul.f32 %v4219, %v2427
      %v4252 = vmul.f32 %v4220, %v2432
      %v4253 = vmul.f32 %v4221, %v2437
      %v4254 = vmul.f32 %v4222, %v2442
      %v4255 = vmul.f32 %v4223, %v2447
      %v4256 = vmul.f32 %v4224, %v2452
      %v4257 = vmul.f32 %v4225, %v2457
      %v4258 = vmul.f32 %v4226, %v2462
      %v4259 = vmul.f32 %v4227, %v2467
      %v4260 = vmul.f32 %v4228, %v2472
      %v4261 = vmul.f32 %v4229, %v2477
      %v4262 = vmul.f32 %v4230, %v2482
      %v4263 = vmul.f32 %v4231, %v2487
      %v4264 = vmul.f32 %v4232, %v2492
      %v4265 = vmul.f32 %v4233, %v2497
      %v4266 = vmul.f32 %v4234, %v2502
      %v4267 = vmul.f32 %v4235, %v2507
      %v4268 = vmul.f32 %v4236, %v2512
      %v4269 = vmul.f32 %v4237, %v2517
      %4270 = vst.msk [vmem:[%s2638 + $0x1] sm:$0xff] %vm1089, %v4238
      %4271 = vst.msk [vmem:[%s2638 + $0x9] sm:$0xff] %vm1089, %v4239
      %4272 = vst.msk [vmem:[%s2638 + $0x19] sm:$0xff] %vm1089, %v4240
      %4273 = vst.msk [vmem:[%s2638 + $0x21] sm:$0xff] %vm1089, %v4241
      %4274 = vst.msk [vmem:[%s2638 + $0x31] sm:$0xff] %vm1089, %v4242
      %4275 = vst.msk [vmem:[%s2638 + $0x39] sm:$0xff] %vm1089, %v4243
      %4276 = vst.msk [vmem:[%s2638 + $0x49] sm:$0xff] %vm1089, %v4244
      %4277 = vst.msk [vmem:[%s2638 + $0x51] sm:$0xff] %vm1089, %v4245
      %4278 = vst.msk [vmem:[%s2638 + $0x61] sm:$0xff] %vm1089, %v4246
      %4279 = vst.msk [vmem:[%s2638 + $0x69] sm:$0xff] %vm1089, %v4247
      %4280 = vst.msk [vmem:[%s2638 + $0x79] sm:$0xff] %vm1089, %v4248
      %4281 = vst.msk [vmem:[%s2638 + $0x81] sm:$0xff] %vm1089, %v4249
      %4282 = vst.msk [vmem:[%s2638 + $0x91] sm:$0xff] %vm1089, %v4250
      %4283 = vst.msk [vmem:[%s2638 + $0x99] sm:$0xff] %vm1089, %v4251
      %4284 = vst.msk [vmem:[%s2638 + $0xa9] sm:$0xff] %vm1089, %v4252
      %4285 = vst.msk [vmem:[%s2638 + $0xb1] sm:$0xff] %vm1089, %v4253
      %4286 = vst.msk [vmem:[%s2638 + $0xc1] sm:$0xff] %vm1089, %v4254
      %4287 = vst.msk [vmem:[%s2638 + $0xc9] sm:$0xff] %vm1089, %v4255
      %4288 = vst.msk [vmem:[%s2638 + $0xd9] sm:$0xff] %vm1089, %v4256
      %4289 = vst.msk [vmem:[%s2638 + $0xe1] sm:$0xff] %vm1089, %v4257
      %4290 = vst.msk [vmem:[%s2638 + $0xf1] sm:$0xff] %vm1089, %v4258
      %4291 = vst.msk [vmem:[%s2638 + $0xf9] sm:$0xff] %vm1089, %v4259
      %4292 = vst.msk [vmem:[%s2638 + $0x109] sm:$0xff] %vm1089, %v4260
      %4293 = vst.msk [vmem:[%s2638 + $0x111] sm:$0xff] %vm1089, %v4261
      %4294 = vst.msk [vmem:[%s2638 + $0x121] sm:$0xff] %vm1089, %v4262
      %4295 = vst.msk [vmem:[%s2638 + $0x129] sm:$0xff] %vm1089, %v4263
      %4296 = vst.msk [vmem:[%s2638 + $0x139] sm:$0xff] %vm1089, %v4264
      %4297 = vst.msk [vmem:[%s2638 + $0x141] sm:$0xff] %vm1089, %v4265
      %4298 = vst.msk [vmem:[%s2638 + $0x151] sm:$0xff] %vm1089, %v4266
      %4299 = vst.msk [vmem:[%s2638 + $0x159] sm:$0xff] %vm1089, %v4267
      %4300 = vst.msk [vmem:[%s2638 + $0x169] sm:$0xff] %vm1089, %v4268
      %4301 = vst.msk [vmem:[%s2638 + $0x171] sm:$0xff] %vm1089, %v4269
      %v4302 = vld [vmem:[#allocation2] sm:$0xff]
      %v4303 = vld [vmem:[#allocation2 + $0x8] sm:$0xff]
      %v4304 = vld [vmem:[#allocation2 + $0x10] sm:$0x3]
      %v4305 = vld [vmem:[#allocation2 + $0x18] sm:$0xff]
      %v4306 = vld [vmem:[#allocation2 + $0x20] sm:$0xff]
      %v4307 = vld [vmem:[#allocation2 + $0x28] sm:$0x3]
      %v4308 = vld [vmem:[#allocation2 + $0x30] sm:$0xff]
      %v4309 = vld [vmem:[#allocation2 + $0x38] sm:$0xff]
      %v4310 = vld [vmem:[#allocation2 + $0x40] sm:$0x3]
      %v4311 = vld [vmem:[#allocation2 + $0x48] sm:$0xff]
      %v4312 = vld [vmem:[#allocation2 + $0x50] sm:$0xff]
      %v4313 = vld [vmem:[#allocation2 + $0x58] sm:$0x3]
      %v4314 = vld [vmem:[#allocation2 + $0x60] sm:$0xff]
      %v4315 = vld [vmem:[#allocation2 + $0x68] sm:$0xff]
      %v4316 = vld [vmem:[#allocation2 + $0x70] sm:$0x3]
      %v4317 = vld [vmem:[#allocation2 + $0x78] sm:$0xff]
      %v4318 = vld [vmem:[#allocation2 + $0x80] sm:$0xff]
      %v4319 = vld [vmem:[#allocation2 + $0x88] sm:$0x3]
      %v4320 = vld [vmem:[#allocation2 + $0x90] sm:$0xff]
      %v4321 = vld [vmem:[#allocation2 + $0x98] sm:$0xff]
      %v4322 = vld [vmem:[#allocation2 + $0xa0] sm:$0x3]
      %v4323 = vld [vmem:[#allocation2 + $0xa8] sm:$0xff]
      %v4324 = vld [vmem:[#allocation2 + $0xb0] sm:$0xff]
      %v4325 = vld [vmem:[#allocation2 + $0xb8] sm:$0x3]
      %v4326 = vld [vmem:[#allocation2 + $0xc0] sm:$0xff]
      %v4327 = vld [vmem:[#allocation2 + $0xc8] sm:$0xff]
      %v4328 = vld [vmem:[#allocation2 + $0xd0] sm:$0x3]
      %v4329 = vld [vmem:[#allocation2 + $0xd8] sm:$0xff]
      %v4330 = vld [vmem:[#allocation2 + $0xe0] sm:$0xff]
      %v4331 = vld [vmem:[#allocation2 + $0xe8] sm:$0x3]
      %v4332 = vld [vmem:[#allocation2 + $0xf0] sm:$0xff]
      %v4333 = vld [vmem:[#allocation2 + $0xf8] sm:$0xff]
      %v4334 = vld [vmem:[#allocation2 + $0x100] sm:$0x3]
      %v4335 = vld [vmem:[#allocation2 + $0x108] sm:$0xff]
      %v4336 = vld [vmem:[#allocation2 + $0x110] sm:$0xff]
      %v4337 = vld [vmem:[#allocation2 + $0x118] sm:$0x3]
      %v4338 = vld [vmem:[#allocation2 + $0x120] sm:$0xff]
      %v4339 = vld [vmem:[#allocation2 + $0x128] sm:$0xff]
      %v4340 = vld [vmem:[#allocation2 + $0x130] sm:$0x3]
      %v4341 = vld [vmem:[#allocation2 + $0x138] sm:$0xff]
      %v4342 = vld [vmem:[#allocation2 + $0x140] sm:$0xff]
      %v4343 = vld [vmem:[#allocation2 + $0x148] sm:$0x3]
      %v4344 = vld [vmem:[#allocation2 + $0x150] sm:$0xff]
      %v4345 = vld [vmem:[#allocation2 + $0x158] sm:$0xff]
      %v4346 = vld [vmem:[#allocation2 + $0x160] sm:$0x3]
      %v4347 = vld [vmem:[#allocation2 + $0x168] sm:$0xff]
      %v4348 = vld [vmem:[#allocation2 + $0x170] sm:$0xff]
      %v4349 = vld [vmem:[#allocation2 + $0x178] sm:$0x3]
      %v4350 = vld [vmem:[#allocation2 + $0x180] sm:$0xff]
      %v4351 = vld [vmem:[#allocation2 + $0x188] sm:$0xff]
      %v4352 = vld [vmem:[#allocation2 + $0x190] sm:$0x3]
      %v4353 = vld [vmem:[#allocation2 + $0x198] sm:$0xff]
      %v4354 = vld [vmem:[#allocation2 + $0x1a0] sm:$0xff]
      %v4355 = vld [vmem:[#allocation2 + $0x1a8] sm:$0x3]
      %v4404 = vrot.slane %v4302, 1
      %v4405 = vrot.slane %v4303, 1
      %v4406 = vsel %vm2773, %v4404, %v4405
      %v4407 = vrot.slane %v4304, 1
      %v4408 = vsel %vm2773, %v4405, %v4407
      %v4409 = vrot.slane %v4305, 1
      %v4410 = vrot.slane %v4306, 1
      %v4411 = vsel %vm2773, %v4409, %v4410
      %v4412 = vrot.slane %v4307, 1
      %v4413 = vsel %vm2773, %v4410, %v4412
      %v4414 = vrot.slane %v4308, 1
      %v4415 = vrot.slane %v4309, 1
      %v4416 = vsel %vm2773, %v4414, %v4415
      %v4417 = vrot.slane %v4310, 1
      %v4418 = vsel %vm2773, %v4415, %v4417
      %v4419 = vrot.slane %v4311, 1
      %v4420 = vrot.slane %v4312, 1
      %v4421 = vsel %vm2773, %v4419, %v4420
      %v4422 = vrot.slane %v4313, 1
      %v4423 = vsel %vm2773, %v4420, %v4422
      %v4424 = vrot.slane %v4314, 1
      %v4425 = vrot.slane %v4315, 1
      %v4426 = vsel %vm2773, %v4424, %v4425
      %v4427 = vrot.slane %v4316, 1
      %v4428 = vsel %vm2773, %v4425, %v4427
      %v4429 = vrot.slane %v4317, 1
      %v4430 = vrot.slane %v4318, 1
      %v4431 = vsel %vm2773, %v4429, %v4430
      %v4432 = vrot.slane %v4319, 1
      %v4433 = vsel %vm2773, %v4430, %v4432
      %v4434 = vrot.slane %v4320, 1
      %v4435 = vrot.slane %v4321, 1
      %v4436 = vsel %vm2773, %v4434, %v4435
      %v4437 = vrot.slane %v4322, 1
      %v4438 = vsel %vm2773, %v4435, %v4437
      %v4439 = vrot.slane %v4323, 1
      %v4440 = vrot.slane %v4324, 1
      %v4441 = vsel %vm2773, %v4439, %v4440
      %v4442 = vrot.slane %v4325, 1
      %v4443 = vsel %vm2773, %v4440, %v4442
      %v4444 = vrot.slane %v4326, 1
      %v4445 = vrot.slane %v4327, 1
      %v4446 = vsel %vm2773, %v4444, %v4445
      %v4447 = vrot.slane %v4328, 1
      %v4448 = vsel %vm2773, %v4445, %v4447
      %v4449 = vrot.slane %v4329, 1
      %v4450 = vrot.slane %v4330, 1
      %v4451 = vsel %vm2773, %v4449, %v4450
      %v4452 = vrot.slane %v4331, 1
      %v4453 = vsel %vm2773, %v4450, %v4452
      %v4454 = vrot.slane %v4332, 1
      %v4455 = vrot.slane %v4333, 1
      %v4456 = vsel %vm2773, %v4454, %v4455
      %v4457 = vrot.slane %v4334, 1
      %v4458 = vsel %vm2773, %v4455, %v4457
      %v4459 = vrot.slane %v4335, 1
      %v4460 = vrot.slane %v4336, 1
      %v4461 = vsel %vm2773, %v4459, %v4460
      %v4462 = vrot.slane %v4337, 1
      %v4463 = vsel %vm2773, %v4460, %v4462
      %v4464 = vrot.slane %v4338, 1
      %v4465 = vrot.slane %v4339, 1
      %v4466 = vsel %vm2773, %v4464, %v4465
      %v4467 = vrot.slane %v4340, 1
      %v4468 = vsel %vm2773, %v4465, %v4467
      %v4469 = vrot.slane %v4341, 1
      %v4470 = vrot.slane %v4342, 1
      %v4471 = vsel %vm2773, %v4469, %v4470
      %v4472 = vrot.slane %v4343, 1
      %v4473 = vsel %vm2773, %v4470, %v4472
      %v4474 = vrot.slane %v4344, 1
      %v4475 = vrot.slane %v4345, 1
      %v4476 = vsel %vm2773, %v4474, %v4475
      %v4477 = vrot.slane %v4346, 1
      %v4478 = vsel %vm2773, %v4475, %v4477
      %v4479 = vrot.slane %v4347, 1
      %v4480 = vrot.slane %v4348, 1
      %v4481 = vsel %vm2773, %v4479, %v4480
      %v4482 = vrot.slane %v4349, 1
      %v4483 = vsel %vm2773, %v4480, %v4482
      %v4484 = vrot.slane %v4302, 2
      %v4485 = vrot.slane %v4303, 2
      %v4486 = vsel %vm2854, %v4484, %v4485
      %v4487 = vrot.slane %v4304, 2
      %v4488 = vsel %vm2854, %v4485, %v4487
      %v4489 = vrot.slane %v4305, 2
      %v4490 = vrot.slane %v4306, 2
      %v4491 = vsel %vm2854, %v4489, %v4490
      %v4492 = vrot.slane %v4307, 2
      %v4493 = vsel %vm2854, %v4490, %v4492
      %v4494 = vrot.slane %v4308, 2
      %v4495 = vrot.slane %v4309, 2
      %v4496 = vsel %vm2854, %v4494, %v4495
      %v4497 = vrot.slane %v4310, 2
      %v4498 = vsel %vm2854, %v4495, %v4497
      %v4499 = vrot.slane %v4311, 2
      %v4500 = vrot.slane %v4312, 2
      %v4501 = vsel %vm2854, %v4499, %v4500
      %v4502 = vrot.slane %v4313, 2
      %v4503 = vsel %vm2854, %v4500, %v4502
      %v4504 = vrot.slane %v4314, 2
      %v4505 = vrot.slane %v4315, 2
      %v4506 = vsel %vm2854, %v4504, %v4505
      %v4507 = vrot.slane %v4316, 2
      %v4508 = vsel %vm2854, %v4505, %v4507
      %v4509 = vrot.slane %v4317, 2
      %v4510 = vrot.slane %v4318, 2
      %v4511 = vsel %vm2854, %v4509, %v4510
      %v4512 = vrot.slane %v4319, 2
      %v4513 = vsel %vm2854, %v4510, %v4512
      %v4514 = vrot.slane %v4320, 2
      %v4515 = vrot.slane %v4321, 2
      %v4516 = vsel %vm2854, %v4514, %v4515
      %v4517 = vrot.slane %v4322, 2
      %v4518 = vsel %vm2854, %v4515, %v4517
      %v4519 = vrot.slane %v4323, 2
      %v4520 = vrot.slane %v4324, 2
      %v4521 = vsel %vm2854, %v4519, %v4520
      %v4522 = vrot.slane %v4325, 2
      %v4523 = vsel %vm2854, %v4520, %v4522
      %v4524 = vrot.slane %v4326, 2
      %v4525 = vrot.slane %v4327, 2
      %v4526 = vsel %vm2854, %v4524, %v4525
      %v4527 = vrot.slane %v4328, 2
      %v4528 = vsel %vm2854, %v4525, %v4527
      %v4529 = vrot.slane %v4329, 2
      %v4530 = vrot.slane %v4330, 2
      %v4531 = vsel %vm2854, %v4529, %v4530
      %v4532 = vrot.slane %v4331, 2
      %v4533 = vsel %vm2854, %v4530, %v4532
      %v4534 = vrot.slane %v4332, 2
      %v4535 = vrot.slane %v4333, 2
      %v4536 = vsel %vm2854, %v4534, %v4535
      %v4537 = vrot.slane %v4334, 2
      %v4538 = vsel %vm2854, %v4535, %v4537
      %v4539 = vrot.slane %v4335, 2
      %v4540 = vrot.slane %v4336, 2
      %v4541 = vsel %vm2854, %v4539, %v4540
      %v4542 = vrot.slane %v4337, 2
      %v4543 = vsel %vm2854, %v4540, %v4542
      %v4544 = vrot.slane %v4338, 2
      %v4545 = vrot.slane %v4339, 2
      %v4546 = vsel %vm2854, %v4544, %v4545
      %v4547 = vrot.slane %v4340, 2
      %v4548 = vsel %vm2854, %v4545, %v4547
      %v4549 = vrot.slane %v4341, 2
      %v4550 = vrot.slane %v4342, 2
      %v4551 = vsel %vm2854, %v4549, %v4550
      %v4552 = vrot.slane %v4343, 2
      %v4553 = vsel %vm2854, %v4550, %v4552
      %v4554 = vrot.slane %v4344, 2
      %v4555 = vrot.slane %v4345, 2
      %v4556 = vsel %vm2854, %v4554, %v4555
      %v4557 = vrot.slane %v4346, 2
      %v4558 = vsel %vm2854, %v4555, %v4557
      %v4559 = vrot.slane %v4347, 2
      %v4560 = vrot.slane %v4348, 2
      %v4561 = vsel %vm2854, %v4559, %v4560
      %v4562 = vrot.slane %v4349, 2
      %v4563 = vsel %vm2854, %v4560, %v4562
      %v4567 = vrot.slane %v4350, 1
      %v4568 = vrot.slane %v4351, 1
      %v4569 = vsel %vm2773, %v4567, %v4568
      %v4570 = vrot.slane %v4352, 1
      %v4571 = vsel %vm2773, %v4568, %v4570
      %v4604 = vrot.slane %v4350, 2
      %v4605 = vrot.slane %v4351, 2
      %v4606 = vsel %vm2854, %v4604, %v4605
      %v4607 = vrot.slane %v4352, 2
      %v4608 = vsel %vm2854, %v4605, %v4607
      %v4612 = vrot.slane %v4353, 1
      %v4613 = vrot.slane %v4354, 1
      %v4614 = vsel %vm2773, %v4612, %v4613
      %v4615 = vrot.slane %v4355, 1
      %v4616 = vsel %vm2773, %v4613, %v4615
      %v4617 = vrot.slane %v4353, 2
      %v4618 = vrot.slane %v4354, 2
      %v4619 = vsel %vm2854, %v4617, %v4618
      %v4620 = vrot.slane %v4355, 2
      %v4621 = vsel %vm2854, %v4618, %v4620
      %4622 = vrot.lane.b32.xlu0 %v4406, 32
      %v4623 = vpop.permute.xlu0 %4622
      %4624 = vrot.lane.b32.xlu0 %v4408, 32
      %v4625 = vpop.permute.xlu0 %4624
      %4626 = vrot.lane.b32.xlu0 %v4411, 32
      %v4627 = vpop.permute.xlu0 %4626
      %4628 = vrot.lane.b32.xlu0 %v4413, 32
      %v4629 = vpop.permute.xlu0 %4628
      %4630 = vrot.lane.b32.xlu0 %v4416, 32
      %v4631 = vpop.permute.xlu0 %4630
      %4632 = vrot.lane.b32.xlu0 %v4418, 32
      %v4633 = vpop.permute.xlu0 %4632
      %4634 = vrot.lane.b32.xlu0 %v4421, 32
      %v4635 = vpop.permute.xlu0 %4634
      %4636 = vrot.lane.b32.xlu0 %v4423, 32
      %v4637 = vpop.permute.xlu0 %4636
      %4638 = vrot.lane.b32.xlu0 %v4426, 32
      %v4639 = vpop.permute.xlu0 %4638
      %4640 = vrot.lane.b32.xlu0 %v4428, 32
      %v4641 = vpop.permute.xlu0 %4640
      %4642 = vrot.lane.b32.xlu0 %v4431, 32
      %v4643 = vpop.permute.xlu0 %4642
      %4644 = vrot.lane.b32.xlu0 %v4433, 32
      %v4645 = vpop.permute.xlu0 %4644
      %4646 = vrot.lane.b32.xlu0 %v4436, 32
      %v4647 = vpop.permute.xlu0 %4646
      %4648 = vrot.lane.b32.xlu0 %v4438, 32
      %v4649 = vpop.permute.xlu0 %4648
      %4650 = vrot.lane.b32.xlu0 %v4441, 32
      %v4651 = vpop.permute.xlu0 %4650
      %4652 = vrot.lane.b32.xlu0 %v4443, 32
      %v4653 = vpop.permute.xlu0 %4652
      %4654 = vrot.lane.b32.xlu0 %v4446, 32
      %v4655 = vpop.permute.xlu0 %4654
      %4656 = vrot.lane.b32.xlu0 %v4448, 32
      %v4657 = vpop.permute.xlu0 %4656
      %4658 = vrot.lane.b32.xlu0 %v4451, 32
      %v4659 = vpop.permute.xlu0 %4658
      %4660 = vrot.lane.b32.xlu0 %v4453, 32
      %v4661 = vpop.permute.xlu0 %4660
      %4662 = vrot.lane.b32.xlu0 %v4456, 32
      %v4663 = vpop.permute.xlu0 %4662
      %4664 = vrot.lane.b32.xlu0 %v4458, 32
      %v4665 = vpop.permute.xlu0 %4664
      %4666 = vrot.lane.b32.xlu0 %v4461, 32
      %v4667 = vpop.permute.xlu0 %4666
      %4668 = vrot.lane.b32.xlu0 %v4463, 32
      %v4669 = vpop.permute.xlu0 %4668
      %4670 = vrot.lane.b32.xlu0 %v4466, 32
      %v4671 = vpop.permute.xlu0 %4670
      %4672 = vrot.lane.b32.xlu0 %v4468, 32
      %v4673 = vpop.permute.xlu0 %4672
      %4674 = vrot.lane.b32.xlu0 %v4471, 32
      %v4675 = vpop.permute.xlu0 %4674
      %4676 = vrot.lane.b32.xlu0 %v4473, 32
      %v4677 = vpop.permute.xlu0 %4676
      %4678 = vrot.lane.b32.xlu0 %v4476, 32
      %v4679 = vpop.permute.xlu0 %4678
      %4680 = vrot.lane.b32.xlu0 %v4478, 32
      %v4681 = vpop.permute.xlu0 %4680
      %4682 = vrot.lane.b32.xlu0 %v4481, 32
      %v4683 = vpop.permute.xlu0 %4682
      %4684 = vrot.lane.b32.xlu0 %v4483, 32
      %v4685 = vpop.permute.xlu0 %4684
      %4718 = vrot.lane.b32.xlu0 %v4486, 64
      %v4719 = vpop.permute.xlu0 %4718
      %4720 = vrot.lane.b32.xlu0 %v4488, 64
      %v4721 = vpop.permute.xlu0 %4720
      %4722 = vrot.lane.b32.xlu0 %v4491, 64
      %v4723 = vpop.permute.xlu0 %4722
      %4724 = vrot.lane.b32.xlu0 %v4493, 64
      %v4725 = vpop.permute.xlu0 %4724
      %4726 = vrot.lane.b32.xlu0 %v4496, 64
      %v4727 = vpop.permute.xlu0 %4726
      %4728 = vrot.lane.b32.xlu0 %v4498, 64
      %v4729 = vpop.permute.xlu0 %4728
      %4730 = vrot.lane.b32.xlu0 %v4501, 64
      %v4731 = vpop.permute.xlu0 %4730
      %4732 = vrot.lane.b32.xlu0 %v4503, 64
      %v4733 = vpop.permute.xlu0 %4732
      %4734 = vrot.lane.b32.xlu0 %v4506, 64
      %v4735 = vpop.permute.xlu0 %4734
      %4736 = vrot.lane.b32.xlu0 %v4508, 64
      %v4737 = vpop.permute.xlu0 %4736
      %4738 = vrot.lane.b32.xlu0 %v4511, 64
      %v4739 = vpop.permute.xlu0 %4738
      %4740 = vrot.lane.b32.xlu0 %v4513, 64
      %v4741 = vpop.permute.xlu0 %4740
      %4742 = vrot.lane.b32.xlu0 %v4516, 64
      %v4743 = vpop.permute.xlu0 %4742
      %4744 = vrot.lane.b32.xlu0 %v4518, 64
      %v4745 = vpop.permute.xlu0 %4744
      %4746 = vrot.lane.b32.xlu0 %v4521, 64
      %v4747 = vpop.permute.xlu0 %4746
      %4748 = vrot.lane.b32.xlu0 %v4523, 64
      %v4749 = vpop.permute.xlu0 %4748
      %4750 = vrot.lane.b32.xlu0 %v4526, 64
      %v4751 = vpop.permute.xlu0 %4750
      %4752 = vrot.lane.b32.xlu0 %v4528, 64
      %v4753 = vpop.permute.xlu0 %4752
      %4754 = vrot.lane.b32.xlu0 %v4531, 64
      %v4755 = vpop.permute.xlu0 %4754
      %4756 = vrot.lane.b32.xlu0 %v4533, 64
      %v4757 = vpop.permute.xlu0 %4756
      %4758 = vrot.lane.b32.xlu0 %v4536, 64
      %v4759 = vpop.permute.xlu0 %4758
      %4760 = vrot.lane.b32.xlu0 %v4538, 64
      %v4761 = vpop.permute.xlu0 %4760
      %4762 = vrot.lane.b32.xlu0 %v4541, 64
      %v4763 = vpop.permute.xlu0 %4762
      %4764 = vrot.lane.b32.xlu0 %v4543, 64
      %v4765 = vpop.permute.xlu0 %4764
      %4766 = vrot.lane.b32.xlu0 %v4546, 64
      %v4767 = vpop.permute.xlu0 %4766
      %4768 = vrot.lane.b32.xlu0 %v4548, 64
      %v4769 = vpop.permute.xlu0 %4768
      %4770 = vrot.lane.b32.xlu0 %v4551, 64
      %v4771 = vpop.permute.xlu0 %4770
      %4772 = vrot.lane.b32.xlu0 %v4553, 64
      %v4773 = vpop.permute.xlu0 %4772
      %4774 = vrot.lane.b32.xlu0 %v4556, 64
      %v4775 = vpop.permute.xlu0 %4774
      %4776 = vrot.lane.b32.xlu0 %v4558, 64
      %v4777 = vpop.permute.xlu0 %4776
      %4778 = vrot.lane.b32.xlu0 %v4561, 64
      %v4779 = vpop.permute.xlu0 %4778
      %4780 = vrot.lane.b32.xlu0 %v4563, 64
      %v4781 = vpop.permute.xlu0 %4780
      %4814 = vrot.lane.b32.xlu0 %v4305, 96
      %v4815 = vpop.permute.xlu0 %4814
      %4816 = vrot.lane.b32.xlu0 %v4306, 96
      %v4817 = vpop.permute.xlu0 %4816
      %4818 = vrot.lane.b32.xlu0 %v4308, 96
      %v4819 = vpop.permute.xlu0 %4818
      %4820 = vrot.lane.b32.xlu0 %v4309, 96
      %v4821 = vpop.permute.xlu0 %4820
      %4822 = vrot.lane.b32.xlu0 %v4311, 96
      %v4823 = vpop.permute.xlu0 %4822
      %4824 = vrot.lane.b32.xlu0 %v4312, 96
      %v4825 = vpop.permute.xlu0 %4824
      %4826 = vrot.lane.b32.xlu0 %v4314, 96
      %v4827 = vpop.permute.xlu0 %4826
      %4828 = vrot.lane.b32.xlu0 %v4315, 96
      %v4829 = vpop.permute.xlu0 %4828
      %4830 = vrot.lane.b32.xlu0 %v4317, 96
      %v4831 = vpop.permute.xlu0 %4830
      %4832 = vrot.lane.b32.xlu0 %v4318, 96
      %v4833 = vpop.permute.xlu0 %4832
      %4834 = vrot.lane.b32.xlu0 %v4320, 96
      %v4835 = vpop.permute.xlu0 %4834
      %4836 = vrot.lane.b32.xlu0 %v4321, 96
      %v4837 = vpop.permute.xlu0 %4836
      %4838 = vrot.lane.b32.xlu0 %v4323, 96
      %v4839 = vpop.permute.xlu0 %4838
      %4840 = vrot.lane.b32.xlu0 %v4324, 96
      %v4841 = vpop.permute.xlu0 %4840
      %4842 = vrot.lane.b32.xlu0 %v4326, 96
      %v4843 = vpop.permute.xlu0 %4842
      %4844 = vrot.lane.b32.xlu0 %v4327, 96
      %v4845 = vpop.permute.xlu0 %4844
      %4846 = vrot.lane.b32.xlu0 %v4329, 96
      %v4847 = vpop.permute.xlu0 %4846
      %4848 = vrot.lane.b32.xlu0 %v4330, 96
      %v4849 = vpop.permute.xlu0 %4848
      %4850 = vrot.lane.b32.xlu0 %v4332, 96
      %v4851 = vpop.permute.xlu0 %4850
      %4852 = vrot.lane.b32.xlu0 %v4333, 96
      %v4853 = vpop.permute.xlu0 %4852
      %4854 = vrot.lane.b32.xlu0 %v4335, 96
      %v4855 = vpop.permute.xlu0 %4854
      %4856 = vrot.lane.b32.xlu0 %v4336, 96
      %v4857 = vpop.permute.xlu0 %4856
      %4858 = vrot.lane.b32.xlu0 %v4338, 96
      %v4859 = vpop.permute.xlu0 %4858
      %4860 = vrot.lane.b32.xlu0 %v4339, 96
      %v4861 = vpop.permute.xlu0 %4860
      %4862 = vrot.lane.b32.xlu0 %v4341, 96
      %v4863 = vpop.permute.xlu0 %4862
      %4864 = vrot.lane.b32.xlu0 %v4342, 96
      %v4865 = vpop.permute.xlu0 %4864
      %4866 = vrot.lane.b32.xlu0 %v4344, 96
      %v4867 = vpop.permute.xlu0 %4866
      %4868 = vrot.lane.b32.xlu0 %v4345, 96
      %v4869 = vpop.permute.xlu0 %4868
      %4870 = vrot.lane.b32.xlu0 %v4347, 96
      %v4871 = vpop.permute.xlu0 %4870
      %4872 = vrot.lane.b32.xlu0 %v4348, 96
      %v4873 = vpop.permute.xlu0 %4872
      %4874 = vrot.lane.b32.xlu0 %v4350, 96
      %v4875 = vpop.permute.xlu0 %4874
      %4876 = vrot.lane.b32.xlu0 %v4351, 96
      %v4877 = vpop.permute.xlu0 %4876
      %4910 = vrot.lane.b32.xlu0 %v4491, 32
      %v4911 = vpop.permute.xlu0 %4910
      %4912 = vrot.lane.b32.xlu0 %v4493, 32
      %v4913 = vpop.permute.xlu0 %4912
      %4914 = vrot.lane.b32.xlu0 %v4496, 32
      %v4915 = vpop.permute.xlu0 %4914
      %4916 = vrot.lane.b32.xlu0 %v4498, 32
      %v4917 = vpop.permute.xlu0 %4916
      %4918 = vrot.lane.b32.xlu0 %v4501, 32
      %v4919 = vpop.permute.xlu0 %4918
      %4920 = vrot.lane.b32.xlu0 %v4503, 32
      %v4921 = vpop.permute.xlu0 %4920
      %4922 = vrot.lane.b32.xlu0 %v4506, 32
      %v4923 = vpop.permute.xlu0 %4922
      %4924 = vrot.lane.b32.xlu0 %v4508, 32
      %v4925 = vpop.permute.xlu0 %4924
      %4926 = vrot.lane.b32.xlu0 %v4511, 32
      %v4927 = vpop.permute.xlu0 %4926
      %4928 = vrot.lane.b32.xlu0 %v4513, 32
      %v4929 = vpop.permute.xlu0 %4928
      %4930 = vrot.lane.b32.xlu0 %v4516, 32
      %v4931 = vpop.permute.xlu0 %4930
      %4932 = vrot.lane.b32.xlu0 %v4518, 32
      %v4933 = vpop.permute.xlu0 %4932
      %4934 = vrot.lane.b32.xlu0 %v4521, 32
      %v4935 = vpop.permute.xlu0 %4934
      %4936 = vrot.lane.b32.xlu0 %v4523, 32
      %v4937 = vpop.permute.xlu0 %4936
      %4938 = vrot.lane.b32.xlu0 %v4526, 32
      %v4939 = vpop.permute.xlu0 %4938
      %4940 = vrot.lane.b32.xlu0 %v4528, 32
      %v4941 = vpop.permute.xlu0 %4940
      %4942 = vrot.lane.b32.xlu0 %v4531, 32
      %v4943 = vpop.permute.xlu0 %4942
      %4944 = vrot.lane.b32.xlu0 %v4533, 32
      %v4945 = vpop.permute.xlu0 %4944
      %4946 = vrot.lane.b32.xlu0 %v4536, 32
      %v4947 = vpop.permute.xlu0 %4946
      %4948 = vrot.lane.b32.xlu0 %v4538, 32
      %v4949 = vpop.permute.xlu0 %4948
      %4950 = vrot.lane.b32.xlu0 %v4541, 32
      %v4951 = vpop.permute.xlu0 %4950
      %4952 = vrot.lane.b32.xlu0 %v4543, 32
      %v4953 = vpop.permute.xlu0 %4952
      %4954 = vrot.lane.b32.xlu0 %v4546, 32
      %v4955 = vpop.permute.xlu0 %4954
      %4956 = vrot.lane.b32.xlu0 %v4548, 32
      %v4957 = vpop.permute.xlu0 %4956
      %4958 = vrot.lane.b32.xlu0 %v4551, 32
      %v4959 = vpop.permute.xlu0 %4958
      %4960 = vrot.lane.b32.xlu0 %v4553, 32
      %v4961 = vpop.permute.xlu0 %4960
      %4962 = vrot.lane.b32.xlu0 %v4556, 32
      %v4963 = vpop.permute.xlu0 %4962
      %4964 = vrot.lane.b32.xlu0 %v4558, 32
      %v4965 = vpop.permute.xlu0 %4964
      %4966 = vrot.lane.b32.xlu0 %v4561, 32
      %v4967 = vpop.permute.xlu0 %4966
      %4968 = vrot.lane.b32.xlu0 %v4563, 32
      %v4969 = vpop.permute.xlu0 %4968
      %4970 = vrot.lane.b32.xlu0 %v4606, 32
      %v4971 = vpop.permute.xlu0 %4970
      %4972 = vrot.lane.b32.xlu0 %v4608, 32
      %v4973 = vpop.permute.xlu0 %4972
      %5006 = vrot.lane.b32.xlu0 %v4308, 64
      %v5007 = vpop.permute.xlu0 %5006
      %5008 = vrot.lane.b32.xlu0 %v4309, 64
      %v5009 = vpop.permute.xlu0 %5008
      %5010 = vrot.lane.b32.xlu0 %v4311, 64
      %v5011 = vpop.permute.xlu0 %5010
      %5012 = vrot.lane.b32.xlu0 %v4312, 64
      %v5013 = vpop.permute.xlu0 %5012
      %5014 = vrot.lane.b32.xlu0 %v4314, 64
      %v5015 = vpop.permute.xlu0 %5014
      %5016 = vrot.lane.b32.xlu0 %v4315, 64
      %v5017 = vpop.permute.xlu0 %5016
      %5018 = vrot.lane.b32.xlu0 %v4317, 64
      %v5019 = vpop.permute.xlu0 %5018
      %5020 = vrot.lane.b32.xlu0 %v4318, 64
      %v5021 = vpop.permute.xlu0 %5020
      %5022 = vrot.lane.b32.xlu0 %v4320, 64
      %v5023 = vpop.permute.xlu0 %5022
      %5024 = vrot.lane.b32.xlu0 %v4321, 64
      %v5025 = vpop.permute.xlu0 %5024
      %5026 = vrot.lane.b32.xlu0 %v4323, 64
      %v5027 = vpop.permute.xlu0 %5026
      %5028 = vrot.lane.b32.xlu0 %v4324, 64
      %v5029 = vpop.permute.xlu0 %5028
      %5030 = vrot.lane.b32.xlu0 %v4326, 64
      %v5031 = vpop.permute.xlu0 %5030
      %5032 = vrot.lane.b32.xlu0 %v4327, 64
      %v5033 = vpop.permute.xlu0 %5032
      %5034 = vrot.lane.b32.xlu0 %v4329, 64
      %v5035 = vpop.permute.xlu0 %5034
      %5036 = vrot.lane.b32.xlu0 %v4330, 64
      %v5037 = vpop.permute.xlu0 %5036
      %5038 = vrot.lane.b32.xlu0 %v4332, 64
      %v5039 = vpop.permute.xlu0 %5038
      %5040 = vrot.lane.b32.xlu0 %v4333, 64
      %v5041 = vpop.permute.xlu0 %5040
      %5042 = vrot.lane.b32.xlu0 %v4335, 64
      %v5043 = vpop.permute.xlu0 %5042
      %5044 = vrot.lane.b32.xlu0 %v4336, 64
      %v5045 = vpop.permute.xlu0 %5044
      %5046 = vrot.lane.b32.xlu0 %v4338, 64
      %v5047 = vpop.permute.xlu0 %5046
      %5048 = vrot.lane.b32.xlu0 %v4339, 64
      %v5049 = vpop.permute.xlu0 %5048
      %5050 = vrot.lane.b32.xlu0 %v4341, 64
      %v5051 = vpop.permute.xlu0 %5050
      %5052 = vrot.lane.b32.xlu0 %v4342, 64
      %v5053 = vpop.permute.xlu0 %5052
      %5054 = vrot.lane.b32.xlu0 %v4344, 64
      %v5055 = vpop.permute.xlu0 %5054
      %5056 = vrot.lane.b32.xlu0 %v4345, 64
      %v5057 = vpop.permute.xlu0 %5056
      %5058 = vrot.lane.b32.xlu0 %v4347, 64
      %v5059 = vpop.permute.xlu0 %5058
      %5060 = vrot.lane.b32.xlu0 %v4348, 64
      %v5061 = vpop.permute.xlu0 %5060
      %5062 = vrot.lane.b32.xlu0 %v4350, 64
      %v5063 = vpop.permute.xlu0 %5062
      %5064 = vrot.lane.b32.xlu0 %v4351, 64
      %v5065 = vpop.permute.xlu0 %5064
      %5066 = vrot.lane.b32.xlu0 %v4353, 64
      %v5067 = vpop.permute.xlu0 %5066
      %5068 = vrot.lane.b32.xlu0 %v4354, 64
      %v5069 = vpop.permute.xlu0 %5068
      %5102 = vrot.lane.b32.xlu0 %v4416, 96
      %v5103 = vpop.permute.xlu0 %5102
      %5104 = vrot.lane.b32.xlu0 %v4418, 96
      %v5105 = vpop.permute.xlu0 %5104
      %5106 = vrot.lane.b32.xlu0 %v4421, 96
      %v5107 = vpop.permute.xlu0 %5106
      %5108 = vrot.lane.b32.xlu0 %v4423, 96
      %v5109 = vpop.permute.xlu0 %5108
      %5110 = vrot.lane.b32.xlu0 %v4426, 96
      %v5111 = vpop.permute.xlu0 %5110
      %5112 = vrot.lane.b32.xlu0 %v4428, 96
      %v5113 = vpop.permute.xlu0 %5112
      %5114 = vrot.lane.b32.xlu0 %v4431, 96
      %v5115 = vpop.permute.xlu0 %5114
      %5116 = vrot.lane.b32.xlu0 %v4433, 96
      %v5117 = vpop.permute.xlu0 %5116
      %5118 = vrot.lane.b32.xlu0 %v4436, 96
      %v5119 = vpop.permute.xlu0 %5118
      %5120 = vrot.lane.b32.xlu0 %v4438, 96
      %v5121 = vpop.permute.xlu0 %5120
      %5122 = vrot.lane.b32.xlu0 %v4441, 96
      %v5123 = vpop.permute.xlu0 %5122
      %5124 = vrot.lane.b32.xlu0 %v4443, 96
      %v5125 = vpop.permute.xlu0 %5124
      %5126 = vrot.lane.b32.xlu0 %v4446, 96
      %v5127 = vpop.permute.xlu0 %5126
      %5128 = vrot.lane.b32.xlu0 %v4448, 96
      %v5129 = vpop.permute.xlu0 %5128
      %5130 = vrot.lane.b32.xlu0 %v4451, 96
      %v5131 = vpop.permute.xlu0 %5130
      %5132 = vrot.lane.b32.xlu0 %v4453, 96
      %v5133 = vpop.permute.xlu0 %5132
      %5134 = vrot.lane.b32.xlu0 %v4456, 96
      %v5135 = vpop.permute.xlu0 %5134
      %5136 = vrot.lane.b32.xlu0 %v4458, 96
      %v5137 = vpop.permute.xlu0 %5136
      %5138 = vrot.lane.b32.xlu0 %v4461, 96
      %v5139 = vpop.permute.xlu0 %5138
      %5140 = vrot.lane.b32.xlu0 %v4463, 96
      %v5141 = vpop.permute.xlu0 %5140
      %5142 = vrot.lane.b32.xlu0 %v4466, 96
      %v5143 = vpop.permute.xlu0 %5142
      %5144 = vrot.lane.b32.xlu0 %v4468, 96
      %v5145 = vpop.permute.xlu0 %5144
      %5146 = vrot.lane.b32.xlu0 %v4471, 96
      %v5147 = vpop.permute.xlu0 %5146
      %5148 = vrot.lane.b32.xlu0 %v4473, 96
      %v5149 = vpop.permute.xlu0 %5148
      %5150 = vrot.lane.b32.xlu0 %v4476, 96
      %v5151 = vpop.permute.xlu0 %5150
      %5152 = vrot.lane.b32.xlu0 %v4478, 96
      %v5153 = vpop.permute.xlu0 %5152
      %5154 = vrot.lane.b32.xlu0 %v4481, 96
      %v5155 = vpop.permute.xlu0 %5154
      %5156 = vrot.lane.b32.xlu0 %v4483, 96
      %v5157 = vpop.permute.xlu0 %5156
      %5158 = vrot.lane.b32.xlu0 %v4569, 96
      %v5159 = vpop.permute.xlu0 %5158
      %5160 = vrot.lane.b32.xlu0 %v4571, 96
      %v5161 = vpop.permute.xlu0 %5160
      %5162 = vrot.lane.b32.xlu0 %v4614, 96
      %v5163 = vpop.permute.xlu0 %5162
      %5164 = vrot.lane.b32.xlu0 %v4616, 96
      %v5165 = vpop.permute.xlu0 %5164
      %v5198 = vsel %vm1089, %v4302, %v4623
      %v5199 = vsel %vm1089, %v4303, %v4625
      %v5200 = vsel %vm1089, %v4305, %v4627
      %v5201 = vsel %vm1089, %v4306, %v4629
      %v5202 = vsel %vm1089, %v4308, %v4631
      %v5203 = vsel %vm1089, %v4309, %v4633
      %v5204 = vsel %vm1089, %v4311, %v4635
      %v5205 = vsel %vm1089, %v4312, %v4637
      %v5206 = vsel %vm1089, %v4314, %v4639
      %v5207 = vsel %vm1089, %v4315, %v4641
      %v5208 = vsel %vm1089, %v4317, %v4643
      %v5209 = vsel %vm1089, %v4318, %v4645
      %v5210 = vsel %vm1089, %v4320, %v4647
      %v5211 = vsel %vm1089, %v4321, %v4649
      %v5212 = vsel %vm1089, %v4323, %v4651
      %v5213 = vsel %vm1089, %v4324, %v4653
      %v5214 = vsel %vm1089, %v4326, %v4655
      %v5215 = vsel %vm1089, %v4327, %v4657
      %v5216 = vsel %vm1089, %v4329, %v4659
      %v5217 = vsel %vm1089, %v4330, %v4661
      %v5218 = vsel %vm1089, %v4332, %v4663
      %v5219 = vsel %vm1089, %v4333, %v4665
      %v5220 = vsel %vm1089, %v4335, %v4667
      %v5221 = vsel %vm1089, %v4336, %v4669
      %v5222 = vsel %vm1089, %v4338, %v4671
      %v5223 = vsel %vm1089, %v4339, %v4673
      %v5224 = vsel %vm1089, %v4341, %v4675
      %v5225 = vsel %vm1089, %v4342, %v4677
      %v5226 = vsel %vm1089, %v4344, %v4679
      %v5227 = vsel %vm1089, %v4345, %v4681
      %v5228 = vsel %vm1089, %v4347, %v4683
      %v5229 = vsel %vm1089, %v4348, %v4685
      %v5230 = vsel %vm3601, %v5198, %v4719
      %v5231 = vsel %vm3601, %v5199, %v4721
      %v5232 = vsel %vm3601, %v5200, %v4723
      %v5233 = vsel %vm3601, %v5201, %v4725
      %v5234 = vsel %vm3601, %v5202, %v4727
      %v5235 = vsel %vm3601, %v5203, %v4729
      %v5236 = vsel %vm3601, %v5204, %v4731
      %v5237 = vsel %vm3601, %v5205, %v4733
      %v5238 = vsel %vm3601, %v5206, %v4735
      %v5239 = vsel %vm3601, %v5207, %v4737
      %v5240 = vsel %vm3601, %v5208, %v4739
      %v5241 = vsel %vm3601, %v5209, %v4741
      %v5242 = vsel %vm3601, %v5210, %v4743
      %v5243 = vsel %vm3601, %v5211, %v4745
      %v5244 = vsel %vm3601, %v5212, %v4747
      %v5245 = vsel %vm3601, %v5213, %v4749
      %v5246 = vsel %vm3601, %v5214, %v4751
      %v5247 = vsel %vm3601, %v5215, %v4753
      %v5248 = vsel %vm3601, %v5216, %v4755
      %v5249 = vsel %vm3601, %v5217, %v4757
      %v5250 = vsel %vm3601, %v5218, %v4759
      %v5251 = vsel %vm3601, %v5219, %v4761
      %v5252 = vsel %vm3601, %v5220, %v4763
      %v5253 = vsel %vm3601, %v5221, %v4765
      %v5254 = vsel %vm3601, %v5222, %v4767
      %v5255 = vsel %vm3601, %v5223, %v4769
      %v5256 = vsel %vm3601, %v5224, %v4771
      %v5257 = vsel %vm3601, %v5225, %v4773
      %v5258 = vsel %vm3601, %v5226, %v4775
      %v5259 = vsel %vm3601, %v5227, %v4777
      %v5260 = vsel %vm3601, %v5228, %v4779
      %v5261 = vsel %vm3601, %v5229, %v4781
      %v5262 = vsel %vm3634, %v5230, %v4815
      %v5263 = vsel %vm3634, %v5231, %v4817
      %v5264 = vsel %vm3634, %v5232, %v4819
      %v5265 = vsel %vm3634, %v5233, %v4821
      %v5266 = vsel %vm3634, %v5234, %v4823
      %v5267 = vsel %vm3634, %v5235, %v4825
      %v5268 = vsel %vm3634, %v5236, %v4827
      %v5269 = vsel %vm3634, %v5237, %v4829
      %v5270 = vsel %vm3634, %v5238, %v4831
      %v5271 = vsel %vm3634, %v5239, %v4833
      %v5272 = vsel %vm3634, %v5240, %v4835
      %v5273 = vsel %vm3634, %v5241, %v4837
      %v5274 = vsel %vm3634, %v5242, %v4839
      %v5275 = vsel %vm3634, %v5243, %v4841
      %v5276 = vsel %vm3634, %v5244, %v4843
      %v5277 = vsel %vm3634, %v5245, %v4845
      %v5278 = vsel %vm3634, %v5246, %v4847
      %v5279 = vsel %vm3634, %v5247, %v4849
      %v5280 = vsel %vm3634, %v5248, %v4851
      %v5281 = vsel %vm3634, %v5249, %v4853
      %v5282 = vsel %vm3634, %v5250, %v4855
      %v5283 = vsel %vm3634, %v5251, %v4857
      %v5284 = vsel %vm3634, %v5252, %v4859
      %v5285 = vsel %vm3634, %v5253, %v4861
      %v5286 = vsel %vm3634, %v5254, %v4863
      %v5287 = vsel %vm3634, %v5255, %v4865
      %v5288 = vsel %vm3634, %v5256, %v4867
      %v5289 = vsel %vm3634, %v5257, %v4869
      %v5290 = vsel %vm3634, %v5258, %v4871
      %v5291 = vsel %vm3634, %v5259, %v4873
      %v5292 = vsel %vm3634, %v5260, %v4875
      %v5293 = vsel %vm3634, %v5261, %v4877
      %v5294 = vsel %vm1089, %v4411, %v4911
      %v5295 = vsel %vm1089, %v4413, %v4913
      %v5296 = vsel %vm1089, %v4416, %v4915
      %v5297 = vsel %vm1089, %v4418, %v4917
      %v5298 = vsel %vm1089, %v4421, %v4919
      %v5299 = vsel %vm1089, %v4423, %v4921
      %v5300 = vsel %vm1089, %v4426, %v4923
      %v5301 = vsel %vm1089, %v4428, %v4925
      %v5302 = vsel %vm1089, %v4431, %v4927
      %v5303 = vsel %vm1089, %v4433, %v4929
      %v5304 = vsel %vm1089, %v4436, %v4931
      %v5305 = vsel %vm1089, %v4438, %v4933
      %v5306 = vsel %vm1089, %v4441, %v4935
      %v5307 = vsel %vm1089, %v4443, %v4937
      %v5308 = vsel %vm1089, %v4446, %v4939
      %v5309 = vsel %vm1089, %v4448, %v4941
      %v5310 = vsel %vm1089, %v4451, %v4943
      %v5311 = vsel %vm1089, %v4453, %v4945
      %v5312 = vsel %vm1089, %v4456, %v4947
      %v5313 = vsel %vm1089, %v4458, %v4949
      %v5314 = vsel %vm1089, %v4461, %v4951
      %v5315 = vsel %vm1089, %v4463, %v4953
      %v5316 = vsel %vm1089, %v4466, %v4955
      %v5317 = vsel %vm1089, %v4468, %v4957
      %v5318 = vsel %vm1089, %v4471, %v4959
      %v5319 = vsel %vm1089, %v4473, %v4961
      %v5320 = vsel %vm1089, %v4476, %v4963
      %v5321 = vsel %vm1089, %v4478, %v4965
      %v5322 = vsel %vm1089, %v4481, %v4967
      %v5323 = vsel %vm1089, %v4483, %v4969
      %v5324 = vsel %vm1089, %v4569, %v4971
      %v5325 = vsel %vm1089, %v4571, %v4973
      %v5326 = vsel %vm3601, %v5294, %v5007
      %v5327 = vsel %vm3601, %v5295, %v5009
      %v5328 = vsel %vm3601, %v5296, %v5011
      %v5329 = vsel %vm3601, %v5297, %v5013
      %v5330 = vsel %vm3601, %v5298, %v5015
      %v5331 = vsel %vm3601, %v5299, %v5017
      %v5332 = vsel %vm3601, %v5300, %v5019
      %v5333 = vsel %vm3601, %v5301, %v5021
      %v5334 = vsel %vm3601, %v5302, %v5023
      %v5335 = vsel %vm3601, %v5303, %v5025
      %v5336 = vsel %vm3601, %v5304, %v5027
      %v5337 = vsel %vm3601, %v5305, %v5029
      %v5338 = vsel %vm3601, %v5306, %v5031
      %v5339 = vsel %vm3601, %v5307, %v5033
      %v5340 = vsel %vm3601, %v5308, %v5035
      %v5341 = vsel %vm3601, %v5309, %v5037
      %v5342 = vsel %vm3601, %v5310, %v5039
      %v5343 = vsel %vm3601, %v5311, %v5041
      %v5344 = vsel %vm3601, %v5312, %v5043
      %v5345 = vsel %vm3601, %v5313, %v5045
      %v5346 = vsel %vm3601, %v5314, %v5047
      %v5347 = vsel %vm3601, %v5315, %v5049
      %v5348 = vsel %vm3601, %v5316, %v5051
      %v5349 = vsel %vm3601, %v5317, %v5053
      %v5350 = vsel %vm3601, %v5318, %v5055
      %v5351 = vsel %vm3601, %v5319, %v5057
      %v5352 = vsel %vm3601, %v5320, %v5059
      %v5353 = vsel %vm3601, %v5321, %v5061
      %v5354 = vsel %vm3601, %v5322, %v5063
      %v5355 = vsel %vm3601, %v5323, %v5065
      %v5356 = vsel %vm3601, %v5324, %v5067
      %v5357 = vsel %vm3601, %v5325, %v5069
      %v5358 = vsel %vm3634, %v5326, %v5103
      %v5359 = vsel %vm3634, %v5327, %v5105
      %v5360 = vsel %vm3634, %v5328, %v5107
      %v5361 = vsel %vm3634, %v5329, %v5109
      %v5362 = vsel %vm3634, %v5330, %v5111
      %v5363 = vsel %vm3634, %v5331, %v5113
      %v5364 = vsel %vm3634, %v5332, %v5115
      %v5365 = vsel %vm3634, %v5333, %v5117
      %v5366 = vsel %vm3634, %v5334, %v5119
      %v5367 = vsel %vm3634, %v5335, %v5121
      %v5368 = vsel %vm3634, %v5336, %v5123
      %v5369 = vsel %vm3634, %v5337, %v5125
      %v5370 = vsel %vm3634, %v5338, %v5127
      %v5371 = vsel %vm3634, %v5339, %v5129
      %v5372 = vsel %vm3634, %v5340, %v5131
      %v5373 = vsel %vm3634, %v5341, %v5133
      %v5374 = vsel %vm3634, %v5342, %v5135
      %v5375 = vsel %vm3634, %v5343, %v5137
      %v5376 = vsel %vm3634, %v5344, %v5139
      %v5377 = vsel %vm3634, %v5345, %v5141
      %v5378 = vsel %vm3634, %v5346, %v5143
      %v5379 = vsel %vm3634, %v5347, %v5145
      %v5380 = vsel %vm3634, %v5348, %v5147
      %v5381 = vsel %vm3634, %v5349, %v5149
      %v5382 = vsel %vm3634, %v5350, %v5151
      %v5383 = vsel %vm3634, %v5351, %v5153
      %v5384 = vsel %vm3634, %v5352, %v5155
      %v5385 = vsel %vm3634, %v5353, %v5157
      %v5386 = vsel %vm3634, %v5354, %v5159
      %v5387 = vsel %vm3634, %v5355, %v5161
      %v5388 = vsel %vm3634, %v5356, %v5163
      %v5389 = vsel %vm3634, %v5357, %v5165
      %s5390 = scalar_lea.vmem %s5, 288
      %v5391 = vld [vmem:[%s5390] sm:$0xff]
      %v5392 = vld [vmem:[%s5390 + $0x8] sm:$0xff]
      %v5393 = vld [vmem:[%s5390 + $0x10] sm:$0xff]
      %v5394 = vld [vmem:[%s5390 + $0x18] sm:$0xff]
      %v5395 = vld [vmem:[%s5390 + $0x20] sm:$0xff]
      %v5396 = vld [vmem:[%s5390 + $0x28] sm:$0xff]
      %v5397 = vld [vmem:[%s5390 + $0x30] sm:$0xff]
      %v5398 = vld [vmem:[%s5390 + $0x38] sm:$0xff]
      %v5399 = vld [vmem:[%s5390 + $0x40] sm:$0xff]
      %v5400 = vld [vmem:[%s5390 + $0x48] sm:$0xff]
      %v5401 = vld [vmem:[%s5390 + $0x50] sm:$0xff]
      %v5402 = vld [vmem:[%s5390 + $0x58] sm:$0xff]
      %v5403 = vld [vmem:[%s5390 + $0x60] sm:$0xff]
      %v5404 = vld [vmem:[%s5390 + $0x68] sm:$0xff]
      %v5405 = vld [vmem:[%s5390 + $0x70] sm:$0xff]
      %v5406 = vld [vmem:[%s5390 + $0x78] sm:$0xff]
      %v5407 = vld [vmem:[%s5390 + $0x80] sm:$0xff]
      %v5408 = vld [vmem:[%s5390 + $0x88] sm:$0xff]
      %v5409 = vld [vmem:[%s5390 + $0x90] sm:$0xff]
      %v5410 = vld [vmem:[%s5390 + $0x98] sm:$0xff]
      %v5411 = vld [vmem:[%s5390 + $0xa0] sm:$0xff]
      %v5412 = vld [vmem:[%s5390 + $0xa8] sm:$0xff]
      %v5413 = vld [vmem:[%s5390 + $0xb0] sm:$0xff]
      %v5414 = vld [vmem:[%s5390 + $0xb8] sm:$0xff]
      %v5415 = vld [vmem:[%s5390 + $0xc0] sm:$0xff]
      %v5416 = vld [vmem:[%s5390 + $0xc8] sm:$0xff]
      %v5417 = vld [vmem:[%s5390 + $0xd0] sm:$0xff]
      %v5418 = vld [vmem:[%s5390 + $0xd8] sm:$0xff]
      %v5419 = vld [vmem:[%s5390 + $0xe0] sm:$0xff]
      %v5420 = vld [vmem:[%s5390 + $0xe8] sm:$0xff]
      %v5421 = vld [vmem:[%s5390 + $0xf0] sm:$0xff]
      %v5422 = vld [vmem:[%s5390 + $0xf8] sm:$0xff]
      %v5423 = vld [vmem:[%s5390 + $0x100] sm:$0xff]
      %v5424 = vld [vmem:[%s5390 + $0x108] sm:$0xff]
      %v5425 = vld [vmem:[%s5390 + $0x110] sm:$0xff]
      %v5426 = vld [vmem:[%s5390 + $0x118] sm:$0xff]
      %s5427 = scalar_lea.vmem %s6, 1
      %v5428 = vld [vmem:[%s5427] sm:$0x1]
      %v5430 = vperm.slane %v5428, 0
      %v5432 = vsel %vm1089, %v4496, 0
      %v5434 = vsel %vm1089, %v4498, 0
      %v5436 = vsel %vm1089, %v4501, 0
      %v5438 = vsel %vm1089, %v4503, 0
      %v5440 = vsel %vm1089, %v4506, 0
      %v5442 = vsel %vm1089, %v4508, 0
      %v5444 = vsel %vm1089, %v4511, 0
      %v5446 = vsel %vm1089, %v4513, 0
      %v5448 = vsel %vm1089, %v4516, 0
      %v5450 = vsel %vm1089, %v4518, 0
      %v5452 = vsel %vm1089, %v4521, 0
      %v5454 = vsel %vm1089, %v4523, 0
      %v5456 = vsel %vm1089, %v4526, 0
      %v5458 = vsel %vm1089, %v4528, 0
      %v5460 = vsel %vm1089, %v4531, 0
      %v5462 = vsel %vm1089, %v4533, 0
      %v5464 = vsel %vm1089, %v4536, 0
      %v5466 = vsel %vm1089, %v4538, 0
      %v5468 = vsel %vm1089, %v4541, 0
      %v5470 = vsel %vm1089, %v4543, 0
      %v5472 = vsel %vm1089, %v4546, 0
      %v5474 = vsel %vm1089, %v4548, 0
      %v5476 = vsel %vm1089, %v4551, 0
      %v5478 = vsel %vm1089, %v4553, 0
      %v5480 = vsel %vm1089, %v4556, 0
      %v5482 = vsel %vm1089, %v4558, 0
      %v5484 = vsel %vm1089, %v4561, 0
      %v5486 = vsel %vm1089, %v4563, 0
      %v5488 = vsel %vm1089, %v4606, 0
      %v5490 = vsel %vm1089, %v4608, 0
      %v5492 = vsel %vm1089, %v4619, 0
      %v5494 = vsel %vm1089, %v4621, 0
      %5496 = vmatpush.msra.mxu0 %v5406
      %5497 = vmatpush.msra.mxu0 %v5405
      %5498 = vmatpush.msra.mxu0 %v5404
      %5499 = vmatpush.msra.mxu0 %v5403
      %5500 = vmatpush.msra.mxu0 %v5402
      %5501 = vmatpush.msra.mxu0 %v5401
      %5502 = vmatpush.msra.mxu0 %v5400
      %5503 = vmatpush.msra.mxu0 %v5399
      %5504 = vmatpush.msra.mxu0 %v5398
      %5505 = vmatpush.msra.mxu0 %v5397
      %5506 = vmatpush.msra.mxu0 %v5396
      %5507 = vmatpush.msra.mxu0 %v5395
      %5508 = vmatpush.msra.mxu0 %v5394
      %5509 = vmatpush.msra.mxu0 %v5393
      %5510 = vmatpush.msra.mxu0 %v5392
      %5511 = vmatpush.msra.mxu0 %v5391
      %5512 = vmatmul.f32.gmra.mxu0 %v5262
      %v5513 = vpop.f32.mrf.mxu0
      %v5514 = vadd.f32 %v5430, %v5513
      %5515 = vmatmul.f32.gmra.mxu0 %v5263
      %v5516 = vpop.f32.mrf.mxu0
      %v5517 = vadd.f32 %v5430, %v5516
      %5518 = vmatmul.f32.gmra.mxu0 %v5264
      %v5519 = vpop.f32.mrf.mxu0
      %v5520 = vadd.f32 %v5430, %v5519
      %5521 = vmatmul.f32.gmra.mxu0 %v5265
      %v5522 = vpop.f32.mrf.mxu0
      %v5523 = vadd.f32 %v5430, %v5522
      %5524 = vmatmul.f32.gmra.mxu0 %v5266
      %v5525 = vpop.f32.mrf.mxu0
      %v5526 = vadd.f32 %v5430, %v5525
      %5527 = vmatmul.f32.gmra.mxu0 %v5267
      %v5528 = vpop.f32.mrf.mxu0
      %v5529 = vadd.f32 %v5430, %v5528
      %5530 = vmatmul.f32.gmra.mxu0 %v5268
      %v5531 = vpop.f32.mrf.mxu0
      %v5532 = vadd.f32 %v5430, %v5531
      %5533 = vmatmul.f32.gmra.mxu0 %v5269
      %v5534 = vpop.f32.mrf.mxu0
      %v5535 = vadd.f32 %v5430, %v5534
      %5536 = vmatmul.f32.gmra.mxu0 %v5270
      %v5537 = vpop.f32.mrf.mxu0
      %v5538 = vadd.f32 %v5430, %v5537
      %5539 = vmatmul.f32.gmra.mxu0 %v5271
      %v5540 = vpop.f32.mrf.mxu0
      %v5541 = vadd.f32 %v5430, %v5540
      %5542 = vmatmul.f32.gmra.mxu0 %v5272
      %v5543 = vpop.f32.mrf.mxu0
      %v5544 = vadd.f32 %v5430, %v5543
      %5545 = vmatmul.f32.gmra.mxu0 %v5273
      %v5546 = vpop.f32.mrf.mxu0
      %v5547 = vadd.f32 %v5430, %v5546
      %5548 = vmatmul.f32.gmra.mxu0 %v5274
      %v5549 = vpop.f32.mrf.mxu0
      %v5550 = vadd.f32 %v5430, %v5549
      %5551 = vmatmul.f32.gmra.mxu0 %v5275
      %v5552 = vpop.f32.mrf.mxu0
      %v5553 = vadd.f32 %v5430, %v5552
      %5554 = vmatmul.f32.gmra.mxu0 %v5276
      %v5555 = vpop.f32.mrf.mxu0
      %v5556 = vadd.f32 %v5430, %v5555
      %5557 = vmatmul.f32.gmra.mxu0 %v5277
      %v5558 = vpop.f32.mrf.mxu0
      %v5559 = vadd.f32 %v5430, %v5558
      %5560 = vmatmul.f32.gmra.mxu0 %v5278
      %v5561 = vpop.f32.mrf.mxu0
      %v5562 = vadd.f32 %v5430, %v5561
      %5563 = vmatmul.f32.gmra.mxu0 %v5279
      %v5564 = vpop.f32.mrf.mxu0
      %v5565 = vadd.f32 %v5430, %v5564
      %5566 = vmatmul.f32.gmra.mxu0 %v5280
      %v5567 = vpop.f32.mrf.mxu0
      %v5568 = vadd.f32 %v5430, %v5567
      %5569 = vmatmul.f32.gmra.mxu0 %v5281
      %v5570 = vpop.f32.mrf.mxu0
      %v5571 = vadd.f32 %v5430, %v5570
      %5572 = vmatmul.f32.gmra.mxu0 %v5282
      %v5573 = vpop.f32.mrf.mxu0
      %v5574 = vadd.f32 %v5430, %v5573
      %5575 = vmatmul.f32.gmra.mxu0 %v5283
      %v5576 = vpop.f32.mrf.mxu0
      %v5577 = vadd.f32 %v5430, %v5576
      %5578 = vmatmul.f32.gmra.mxu0 %v5284
      %v5579 = vpop.f32.mrf.mxu0
      %v5580 = vadd.f32 %v5430, %v5579
      %5581 = vmatmul.f32.gmra.mxu0 %v5285
      %v5582 = vpop.f32.mrf.mxu0
      %v5583 = vadd.f32 %v5430, %v5582
      %5584 = vmatmul.f32.gmra.mxu0 %v5286
      %v5585 = vpop.f32.mrf.mxu0
      %v5586 = vadd.f32 %v5430, %v5585
      %5587 = vmatmul.f32.gmra.mxu0 %v5287
      %v5588 = vpop.f32.mrf.mxu0
      %v5589 = vadd.f32 %v5430, %v5588
      %5590 = vmatmul.f32.gmra.mxu0 %v5288
      %v5591 = vpop.f32.mrf.mxu0
      %v5592 = vadd.f32 %v5430, %v5591
      %5593 = vmatmul.f32.gmra.mxu0 %v5289
      %v5594 = vpop.f32.mrf.mxu0
      %v5595 = vadd.f32 %v5430, %v5594
      %5596 = vmatmul.f32.gmra.mxu0 %v5290
      %v5597 = vpop.f32.mrf.mxu0
      %v5598 = vadd.f32 %v5430, %v5597
      %5599 = vmatmul.f32.gmra.mxu0 %v5291
      %v5600 = vpop.f32.mrf.mxu0
      %v5601 = vadd.f32 %v5430, %v5600
      %5602 = vmatmul.f32.gmra.mxu0 %v5292
      %v5603 = vpop.f32.mrf.mxu0
      %v5604 = vadd.f32 %v5430, %v5603
      %5605 = vmatmul.f32.gmra.mxu0 %v5293
      %v5606 = vpop.f32.mrf.mxu0
      %v5607 = vadd.f32 %v5430, %v5606
      %5608 = vdwg.mxu0
      %5609 = vmatpush.msra.mxu0 %v5422
      %5610 = vmatpush.msra.mxu0 %v5421
      %5611 = vmatpush.msra.mxu0 %v5420
      %5612 = vmatpush.msra.mxu0 %v5419
      %5613 = vmatpush.msra.mxu0 %v5418
      %5614 = vmatpush.msra.mxu0 %v5417
      %5615 = vmatpush.msra.mxu0 %v5416
      %5616 = vmatpush.msra.mxu0 %v5415
      %5617 = vmatpush.msra.mxu0 %v5414
      %5618 = vmatpush.msra.mxu0 %v5413
      %5619 = vmatpush.msra.mxu0 %v5412
      %5620 = vmatpush.msra.mxu0 %v5411
      %5621 = vmatpush.msra.mxu0 %v5410
      %5622 = vmatpush.msra.mxu0 %v5409
      %5623 = vmatpush.msra.mxu0 %v5408
      %5624 = vmatpush.msra.mxu0 %v5407
      %5625 = vmatmul.f32.gmra.mxu0 %v5358
      %v5626 = vpop.f32.mrf.mxu0
      %v5627 = vadd.f32 %v5514, %v5626
      %5628 = vmatmul.f32.gmra.mxu0 %v5359
      %v5629 = vpop.f32.mrf.mxu0
      %v5630 = vadd.f32 %v5517, %v5629
      %5631 = vmatmul.f32.gmra.mxu0 %v5360
      %v5632 = vpop.f32.mrf.mxu0
      %v5633 = vadd.f32 %v5520, %v5632
      %5634 = vmatmul.f32.gmra.mxu0 %v5361
      %v5635 = vpop.f32.mrf.mxu0
      %v5636 = vadd.f32 %v5523, %v5635
      %5637 = vmatmul.f32.gmra.mxu0 %v5362
      %v5638 = vpop.f32.mrf.mxu0
      %v5639 = vadd.f32 %v5526, %v5638
      %5640 = vmatmul.f32.gmra.mxu0 %v5363
      %v5641 = vpop.f32.mrf.mxu0
      %v5642 = vadd.f32 %v5529, %v5641
      %5643 = vmatmul.f32.gmra.mxu0 %v5364
      %v5644 = vpop.f32.mrf.mxu0
      %v5645 = vadd.f32 %v5532, %v5644
      %5646 = vmatmul.f32.gmra.mxu0 %v5365
      %v5647 = vpop.f32.mrf.mxu0
      %v5648 = vadd.f32 %v5535, %v5647
      %5649 = vmatmul.f32.gmra.mxu0 %v5366
      %v5650 = vpop.f32.mrf.mxu0
      %v5651 = vadd.f32 %v5538, %v5650
      %5652 = vmatmul.f32.gmra.mxu0 %v5367
      %v5653 = vpop.f32.mrf.mxu0
      %v5654 = vadd.f32 %v5541, %v5653
      %5655 = vmatmul.f32.gmra.mxu0 %v5368
      %v5656 = vpop.f32.mrf.mxu0
      %v5657 = vadd.f32 %v5544, %v5656
      %5658 = vmatmul.f32.gmra.mxu0 %v5369
      %v5659 = vpop.f32.mrf.mxu0
      %v5660 = vadd.f32 %v5547, %v5659
      %5661 = vmatmul.f32.gmra.mxu0 %v5370
      %v5662 = vpop.f32.mrf.mxu0
      %v5663 = vadd.f32 %v5550, %v5662
      %5664 = vmatmul.f32.gmra.mxu0 %v5371
      %v5665 = vpop.f32.mrf.mxu0
      %v5666 = vadd.f32 %v5553, %v5665
      %5667 = vmatmul.f32.gmra.mxu0 %v5372
      %v5668 = vpop.f32.mrf.mxu0
      %v5669 = vadd.f32 %v5556, %v5668
      %5670 = vmatmul.f32.gmra.mxu0 %v5373
      %v5671 = vpop.f32.mrf.mxu0
      %v5672 = vadd.f32 %v5559, %v5671
      %5673 = vmatmul.f32.gmra.mxu0 %v5374
      %v5674 = vpop.f32.mrf.mxu0
      %v5675 = vadd.f32 %v5562, %v5674
      %5676 = vmatmul.f32.gmra.mxu0 %v5375
      %v5677 = vpop.f32.mrf.mxu0
      %v5678 = vadd.f32 %v5565, %v5677
      %5679 = vmatmul.f32.gmra.mxu0 %v5376
      %v5680 = vpop.f32.mrf.mxu0
      %v5681 = vadd.f32 %v5568, %v5680
      %5682 = vmatmul.f32.gmra.mxu0 %v5377
      %v5683 = vpop.f32.mrf.mxu0
      %v5684 = vadd.f32 %v5571, %v5683
      %5685 = vmatmul.f32.gmra.mxu0 %v5378
      %v5686 = vpop.f32.mrf.mxu0
      %v5687 = vadd.f32 %v5574, %v5686
      %5688 = vmatmul.f32.gmra.mxu0 %v5379
      %v5689 = vpop.f32.mrf.mxu0
      %v5690 = vadd.f32 %v5577, %v5689
      %5691 = vmatmul.f32.gmra.mxu0 %v5380
      %v5692 = vpop.f32.mrf.mxu0
      %v5693 = vadd.f32 %v5580, %v5692
      %5694 = vmatmul.f32.gmra.mxu0 %v5381
      %v5695 = vpop.f32.mrf.mxu0
      %v5696 = vadd.f32 %v5583, %v5695
      %5697 = vmatmul.f32.gmra.mxu0 %v5382
      %v5698 = vpop.f32.mrf.mxu0
      %v5699 = vadd.f32 %v5586, %v5698
      %5700 = vmatmul.f32.gmra.mxu0 %v5383
      %v5701 = vpop.f32.mrf.mxu0
      %v5702 = vadd.f32 %v5589, %v5701
      %5703 = vmatmul.f32.gmra.mxu0 %v5384
      %v5704 = vpop.f32.mrf.mxu0
      %v5705 = vadd.f32 %v5592, %v5704
      %5706 = vmatmul.f32.gmra.mxu0 %v5385
      %v5707 = vpop.f32.mrf.mxu0
      %v5708 = vadd.f32 %v5595, %v5707
      %5709 = vmatmul.f32.gmra.mxu0 %v5386
      %v5710 = vpop.f32.mrf.mxu0
      %v5711 = vadd.f32 %v5598, %v5710
      %5712 = vmatmul.f32.gmra.mxu0 %v5387
      %v5713 = vpop.f32.mrf.mxu0
      %v5714 = vadd.f32 %v5601, %v5713
      %5715 = vmatmul.f32.gmra.mxu0 %v5388
      %v5716 = vpop.f32.mrf.mxu0
      %v5717 = vadd.f32 %v5604, %v5716
      %5718 = vmatmul.f32.gmra.mxu0 %v5389
      %v5719 = vpop.f32.mrf.mxu0
      %v5720 = vadd.f32 %v5607, %v5719
      %5721 = vdwg.mxu0
      %5722 = vmatpush.msra.mxu0 0.0
      %5723 = vmatpush.msra.mxu0 0.0
      %5724 = vmatpush.msra.mxu0 0.0
      %5725 = vmatpush.msra.mxu0 0.0
      %5726 = vmatpush.msra.mxu0 0.0
      %5727 = vmatpush.msra.mxu0 0.0
      %5728 = vmatpush.msra.mxu0 0.0
      %5729 = vmatpush.msra.mxu0 0.0
      %5730 = vmatpush.msra.mxu0 0.0
      %5731 = vmatpush.msra.mxu0 0.0
      %5732 = vmatpush.msra.mxu0 0.0
      %5733 = vmatpush.msra.mxu0 0.0
      %5734 = vmatpush.msra.mxu0 %v5426
      %5735 = vmatpush.msra.mxu0 %v5425
      %5736 = vmatpush.msra.mxu0 %v5424
      %5737 = vmatpush.msra.mxu0 %v5423
      %5738 = vmatmul.f32.gmra.mxu0 %v5432
      %v5739 = vpop.f32.mrf.mxu0
      %v5740 = vadd.f32 %v5627, %v5739
      %5741 = vmatmul.f32.gmra.mxu0 %v5434
      %v5742 = vpop.f32.mrf.mxu0
      %v5743 = vadd.f32 %v5630, %v5742
      %5744 = vmatmul.f32.gmra.mxu0 %v5436
      %v5745 = vpop.f32.mrf.mxu0
      %v5746 = vadd.f32 %v5633, %v5745
      %5747 = vmatmul.f32.gmra.mxu0 %v5438
      %v5748 = vpop.f32.mrf.mxu0
      %v5749 = vadd.f32 %v5636, %v5748
      %5750 = vmatmul.f32.gmra.mxu0 %v5440
      %v5751 = vpop.f32.mrf.mxu0
      %v5752 = vadd.f32 %v5639, %v5751
      %5753 = vmatmul.f32.gmra.mxu0 %v5442
      %v5754 = vpop.f32.mrf.mxu0
      %v5755 = vadd.f32 %v5642, %v5754
      %5756 = vmatmul.f32.gmra.mxu0 %v5444
      %v5757 = vpop.f32.mrf.mxu0
      %v5758 = vadd.f32 %v5645, %v5757
      %5759 = vmatmul.f32.gmra.mxu0 %v5446
      %v5760 = vpop.f32.mrf.mxu0
      %v5761 = vadd.f32 %v5648, %v5760
      %5762 = vmatmul.f32.gmra.mxu0 %v5448
      %v5763 = vpop.f32.mrf.mxu0
      %v5764 = vadd.f32 %v5651, %v5763
      %5765 = vmatmul.f32.gmra.mxu0 %v5450
      %v5766 = vpop.f32.mrf.mxu0
      %v5767 = vadd.f32 %v5654, %v5766
      %5768 = vmatmul.f32.gmra.mxu0 %v5452
      %v5769 = vpop.f32.mrf.mxu0
      %v5770 = vadd.f32 %v5657, %v5769
      %5771 = vmatmul.f32.gmra.mxu0 %v5454
      %v5772 = vpop.f32.mrf.mxu0
      %v5773 = vadd.f32 %v5660, %v5772
      %5774 = vmatmul.f32.gmra.mxu0 %v5456
      %v5775 = vpop.f32.mrf.mxu0
      %v5776 = vadd.f32 %v5663, %v5775
      %5777 = vmatmul.f32.gmra.mxu0 %v5458
      %v5778 = vpop.f32.mrf.mxu0
      %v5779 = vadd.f32 %v5666, %v5778
      %5780 = vmatmul.f32.gmra.mxu0 %v5460
      %v5781 = vpop.f32.mrf.mxu0
      %v5782 = vadd.f32 %v5669, %v5781
      %5783 = vmatmul.f32.gmra.mxu0 %v5462
      %v5784 = vpop.f32.mrf.mxu0
      %v5785 = vadd.f32 %v5672, %v5784
      %5786 = vmatmul.f32.gmra.mxu0 %v5464
      %v5787 = vpop.f32.mrf.mxu0
      %v5788 = vadd.f32 %v5675, %v5787
      %5789 = vmatmul.f32.gmra.mxu0 %v5466
      %v5790 = vpop.f32.mrf.mxu0
      %v5791 = vadd.f32 %v5678, %v5790
      %5792 = vmatmul.f32.gmra.mxu0 %v5468
      %v5793 = vpop.f32.mrf.mxu0
      %v5794 = vadd.f32 %v5681, %v5793
      %5795 = vmatmul.f32.gmra.mxu0 %v5470
      %v5796 = vpop.f32.mrf.mxu0
      %v5797 = vadd.f32 %v5684, %v5796
      %5798 = vmatmul.f32.gmra.mxu0 %v5472
      %v5799 = vpop.f32.mrf.mxu0
      %v5800 = vadd.f32 %v5687, %v5799
      %5801 = vmatmul.f32.gmra.mxu0 %v5474
      %v5802 = vpop.f32.mrf.mxu0
      %v5803 = vadd.f32 %v5690, %v5802
      %5804 = vmatmul.f32.gmra.mxu0 %v5476
      %v5805 = vpop.f32.mrf.mxu0
      %v5806 = vadd.f32 %v5693, %v5805
      %5807 = vmatmul.f32.gmra.mxu0 %v5478
      %v5808 = vpop.f32.mrf.mxu0
      %v5809 = vadd.f32 %v5696, %v5808
      %5810 = vmatmul.f32.gmra.mxu0 %v5480
      %v5811 = vpop.f32.mrf.mxu0
      %v5812 = vadd.f32 %v5699, %v5811
      %5813 = vmatmul.f32.gmra.mxu0 %v5482
      %v5814 = vpop.f32.mrf.mxu0
      %v5815 = vadd.f32 %v5702, %v5814
      %5816 = vmatmul.f32.gmra.mxu0 %v5484
      %v5817 = vpop.f32.mrf.mxu0
      %v5818 = vadd.f32 %v5705, %v5817
      %5819 = vmatmul.f32.gmra.mxu0 %v5486
      %v5820 = vpop.f32.mrf.mxu0
      %v5821 = vadd.f32 %v5708, %v5820
      %5822 = vmatmul.f32.gmra.mxu0 %v5488
      %v5823 = vpop.f32.mrf.mxu0
      %v5824 = vadd.f32 %v5711, %v5823
      %5825 = vmatmul.f32.gmra.mxu0 %v5490
      %v5826 = vpop.f32.mrf.mxu0
      %v5827 = vadd.f32 %v5714, %v5826
      %5828 = vmatmul.f32.gmra.mxu0 %v5492
      %v5829 = vpop.f32.mrf.mxu0
      %v5830 = vadd.f32 %v5717, %v5829
      %5831 = vmatmul.f32.gmra.mxu0 %v5494
      %v5832 = vpop.f32.mrf.mxu0
      %v5833 = vadd.f32 %v5720, %v5832
      %5834 = vdwg.mxu0
      %v5835 = vmax.f32 %v5740, 0.0
      %v5836 = vmax.f32 %v5743, 0.0
      %v5837 = vmax.f32 %v5746, 0.0
      %v5838 = vmax.f32 %v5749, 0.0
      %v5839 = vmax.f32 %v5752, 0.0
      %v5840 = vmax.f32 %v5755, 0.0
      %v5841 = vmax.f32 %v5758, 0.0
      %v5842 = vmax.f32 %v5761, 0.0
      %v5843 = vmax.f32 %v5764, 0.0
      %v5844 = vmax.f32 %v5767, 0.0
      %v5845 = vmax.f32 %v5770, 0.0
      %v5846 = vmax.f32 %v5773, 0.0
      %v5847 = vmax.f32 %v5776, 0.0
      %v5848 = vmax.f32 %v5779, 0.0
      %v5849 = vmax.f32 %v5782, 0.0
      %v5850 = vmax.f32 %v5785, 0.0
      %v5851 = vmax.f32 %v5788, 0.0
      %v5852 = vmax.f32 %v5791, 0.0
      %v5853 = vmax.f32 %v5794, 0.0
      %v5854 = vmax.f32 %v5797, 0.0
      %v5855 = vmax.f32 %v5800, 0.0
      %v5856 = vmax.f32 %v5803, 0.0
      %v5857 = vmax.f32 %v5806, 0.0
      %v5858 = vmax.f32 %v5809, 0.0
      %v5859 = vmax.f32 %v5812, 0.0
      %v5860 = vmax.f32 %v5815, 0.0
      %v5861 = vmax.f32 %v5818, 0.0
      %v5862 = vmax.f32 %v5821, 0.0
      %v5863 = vmax.f32 %v5824, 0.0
      %v5864 = vmax.f32 %v5827, 0.0
      %v5865 = vmax.f32 %v5830, 0.0
      %v5866 = vmax.f32 %v5833, 0.0
      %v5867 = vld [vmem:[%s7] sm:$0x1]
      %v5869 = vperm.slane %v5867, 0
      %v5871 = vmul.f32 %v5835, %v5869
      %v5872 = vmul.f32 %v5836, %v5869
      %v5873 = vmul.f32 %v5837, %v5869
      %v5874 = vmul.f32 %v5838, %v5869
      %v5875 = vmul.f32 %v5839, %v5869
      %v5876 = vmul.f32 %v5840, %v5869
      %v5877 = vmul.f32 %v5841, %v5869
      %v5878 = vmul.f32 %v5842, %v5869
      %v5879 = vmul.f32 %v5843, %v5869
      %v5880 = vmul.f32 %v5844, %v5869
      %v5881 = vmul.f32 %v5845, %v5869
      %v5882 = vmul.f32 %v5846, %v5869
      %v5883 = vmul.f32 %v5847, %v5869
      %v5884 = vmul.f32 %v5848, %v5869
      %v5885 = vmul.f32 %v5849, %v5869
      %v5886 = vmul.f32 %v5850, %v5869
      %v5887 = vmul.f32 %v5851, %v5869
      %v5888 = vmul.f32 %v5852, %v5869
      %v5889 = vmul.f32 %v5853, %v5869
      %v5890 = vmul.f32 %v5854, %v5869
      %v5891 = vmul.f32 %v5855, %v5869
      %v5892 = vmul.f32 %v5856, %v5869
      %v5893 = vmul.f32 %v5857, %v5869
      %v5894 = vmul.f32 %v5858, %v5869
      %v5895 = vmul.f32 %v5859, %v5869
      %v5896 = vmul.f32 %v5860, %v5869
      %v5897 = vmul.f32 %v5861, %v5869
      %v5898 = vmul.f32 %v5862, %v5869
      %v5899 = vmul.f32 %v5863, %v5869
      %v5900 = vmul.f32 %v5864, %v5869
      %v5901 = vmul.f32 %v5865, %v5869
      %v5902 = vmul.f32 %v5866, %v5869
      %v5903 = vsel %vm1089, %v5871, 0.0
      %5904 = vadd.xlane.f32.xlu0 %v5903
      %v5905 = vpop.xlane.xlu0 %5904
      %v5906 = vsel %vm1089, %v5872, 0.0
      %5907 = vadd.xlane.f32.xlu0 %v5906
      %v5908 = vpop.xlane.xlu0 %5907
      %v5909 = vsel %vm1089, %v5873, 0.0
      %5910 = vadd.xlane.f32.xlu0 %v5909
      %v5911 = vpop.xlane.xlu0 %5910
      %v5912 = vsel %vm1089, %v5874, 0.0
      %5913 = vadd.xlane.f32.xlu0 %v5912
      %v5914 = vpop.xlane.xlu0 %5913
      %v5915 = vsel %vm1089, %v5875, 0.0
      %5916 = vadd.xlane.f32.xlu0 %v5915
      %v5917 = vpop.xlane.xlu0 %5916
      %v5918 = vsel %vm1089, %v5876, 0.0
      %5919 = vadd.xlane.f32.xlu0 %v5918
      %v5920 = vpop.xlane.xlu0 %5919
      %v5921 = vsel %vm1089, %v5877, 0.0
      %5922 = vadd.xlane.f32.xlu0 %v5921
      %v5923 = vpop.xlane.xlu0 %5922
      %v5924 = vsel %vm1089, %v5878, 0.0
      %5925 = vadd.xlane.f32.xlu0 %v5924
      %v5926 = vpop.xlane.xlu0 %5925
      %v5927 = vsel %vm1089, %v5879, 0.0
      %5928 = vadd.xlane.f32.xlu0 %v5927
      %v5929 = vpop.xlane.xlu0 %5928
      %v5930 = vsel %vm1089, %v5880, 0.0
      %5931 = vadd.xlane.f32.xlu0 %v5930
      %v5932 = vpop.xlane.xlu0 %5931
      %v5933 = vsel %vm1089, %v5881, 0.0
      %5934 = vadd.xlane.f32.xlu0 %v5933
      %v5935 = vpop.xlane.xlu0 %5934
      %v5936 = vsel %vm1089, %v5882, 0.0
      %5937 = vadd.xlane.f32.xlu0 %v5936
      %v5938 = vpop.xlane.xlu0 %5937
      %v5939 = vsel %vm1089, %v5883, 0.0
      %5940 = vadd.xlane.f32.xlu0 %v5939
      %v5941 = vpop.xlane.xlu0 %5940
      %v5942 = vsel %vm1089, %v5884, 0.0
      %5943 = vadd.xlane.f32.xlu0 %v5942
      %v5944 = vpop.xlane.xlu0 %5943
      %v5945 = vsel %vm1089, %v5885, 0.0
      %5946 = vadd.xlane.f32.xlu0 %v5945
      %v5947 = vpop.xlane.xlu0 %5946
      %v5948 = vsel %vm1089, %v5886, 0.0
      %5949 = vadd.xlane.f32.xlu0 %v5948
      %v5950 = vpop.xlane.xlu0 %5949
      %v5951 = vsel %vm1089, %v5887, 0.0
      %5952 = vadd.xlane.f32.xlu0 %v5951
      %v5953 = vpop.xlane.xlu0 %5952
      %v5954 = vsel %vm1089, %v5888, 0.0
      %5955 = vadd.xlane.f32.xlu0 %v5954
      %v5956 = vpop.xlane.xlu0 %5955
      %v5957 = vsel %vm1089, %v5889, 0.0
      %5958 = vadd.xlane.f32.xlu0 %v5957
      %v5959 = vpop.xlane.xlu0 %5958
      %v5960 = vsel %vm1089, %v5890, 0.0
      %5961 = vadd.xlane.f32.xlu0 %v5960
      %v5962 = vpop.xlane.xlu0 %5961
      %v5963 = vsel %vm1089, %v5891, 0.0
      %5964 = vadd.xlane.f32.xlu0 %v5963
      %v5965 = vpop.xlane.xlu0 %5964
      %v5966 = vsel %vm1089, %v5892, 0.0
      %5967 = vadd.xlane.f32.xlu0 %v5966
      %v5968 = vpop.xlane.xlu0 %5967
      %v5969 = vsel %vm1089, %v5893, 0.0
      %5970 = vadd.xlane.f32.xlu0 %v5969
      %v5971 = vpop.xlane.xlu0 %5970
      %v5972 = vsel %vm1089, %v5894, 0.0
      %5973 = vadd.xlane.f32.xlu0 %v5972
      %v5974 = vpop.xlane.xlu0 %5973
      %v5975 = vsel %vm1089, %v5895, 0.0
      %5976 = vadd.xlane.f32.xlu0 %v5975
      %v5977 = vpop.xlane.xlu0 %5976
      %v5978 = vsel %vm1089, %v5896, 0.0
      %5979 = vadd.xlane.f32.xlu0 %v5978
      %v5980 = vpop.xlane.xlu0 %5979
      %v5981 = vsel %vm1089, %v5897, 0.0
      %5982 = vadd.xlane.f32.xlu0 %v5981
      %v5983 = vpop.xlane.xlu0 %5982
      %v5984 = vsel %vm1089, %v5898, 0.0
      %5985 = vadd.xlane.f32.xlu0 %v5984
      %v5986 = vpop.xlane.xlu0 %5985
      %v5987 = vsel %vm1089, %v5899, 0.0
      %5988 = vadd.xlane.f32.xlu0 %v5987
      %v5989 = vpop.xlane.xlu0 %5988
      %v5990 = vsel %vm1089, %v5900, 0.0
      %5991 = vadd.xlane.f32.xlu0 %v5990
      %v5992 = vpop.xlane.xlu0 %5991
      %v5993 = vsel %vm1089, %v5901, 0.0
      %5994 = vadd.xlane.f32.xlu0 %v5993
      %v5995 = vpop.xlane.xlu0 %5994
      %v5996 = vsel %vm1089, %v5902, 0.0
      %5997 = vadd.xlane.f32.xlu0 %v5996
      %v5998 = vpop.xlane.xlu0 %5997
      %v5999 = vld [vmem:[#allocation3] sm:$0x1]
      %v6001 = vperm.slane %v5999, 0
      %v6003 = vadd.f32 %v5905, %v6001
      %v6004 = vadd.f32 %v5908, %v6001
      %v6005 = vadd.f32 %v5911, %v6001
      %v6006 = vadd.f32 %v5914, %v6001
      %v6007 = vadd.f32 %v5917, %v6001
      %v6008 = vadd.f32 %v5920, %v6001
      %v6009 = vadd.f32 %v5923, %v6001
      %v6010 = vadd.f32 %v5926, %v6001
      %v6011 = vadd.f32 %v5929, %v6001
      %v6012 = vadd.f32 %v5932, %v6001
      %v6013 = vadd.f32 %v5935, %v6001
      %v6014 = vadd.f32 %v5938, %v6001
      %v6015 = vadd.f32 %v5941, %v6001
      %v6016 = vadd.f32 %v5944, %v6001
      %v6017 = vadd.f32 %v5947, %v6001
      %v6018 = vadd.f32 %v5950, %v6001
      %v6019 = vadd.f32 %v5953, %v6001
      %v6020 = vadd.f32 %v5956, %v6001
      %v6021 = vadd.f32 %v5959, %v6001
      %v6022 = vadd.f32 %v5962, %v6001
      %v6023 = vadd.f32 %v5965, %v6001
      %v6024 = vadd.f32 %v5968, %v6001
      %v6025 = vadd.f32 %v5971, %v6001
      %v6026 = vadd.f32 %v5974, %v6001
      %v6027 = vadd.f32 %v5977, %v6001
      %v6028 = vadd.f32 %v5980, %v6001
      %v6029 = vadd.f32 %v5983, %v6001
      %v6030 = vadd.f32 %v5986, %v6001
      %v6031 = vadd.f32 %v5989, %v6001
      %v6032 = vadd.f32 %v5992, %v6001
      %v6033 = vadd.f32 %v5995, %v6001
      %v6034 = vadd.f32 %v5998, %v6001
      %v6035 = vmul.f32 %v6003, %v371
      %v6036 = vmul.f32 %v6004, %v372
      %v6037 = vmul.f32 %v6005, %v373
      %v6038 = vmul.f32 %v6006, %v374
      %v6039 = vmul.f32 %v6007, %v375
      %v6040 = vmul.f32 %v6008, %v376
      %v6041 = vmul.f32 %v6009, %v377
      %v6042 = vmul.f32 %v6010, %v378
      %v6043 = vmul.f32 %v6011, %v379
      %v6044 = vmul.f32 %v6012, %v380
      %v6045 = vmul.f32 %v6013, %v381
      %v6046 = vmul.f32 %v6014, %v382
      %v6047 = vmul.f32 %v6015, %v383
      %v6048 = vmul.f32 %v6016, %v384
      %v6049 = vmul.f32 %v6017, %v385
      %v6050 = vmul.f32 %v6018, %v386
      %v6051 = vmul.f32 %v6019, %v387
      %v6052 = vmul.f32 %v6020, %v388
      %v6053 = vmul.f32 %v6021, %v389
      %v6054 = vmul.f32 %v6022, %v390
      %v6055 = vmul.f32 %v6023, %v391
      %v6056 = vmul.f32 %v6024, %v392
      %v6057 = vmul.f32 %v6025, %v393
      %v6058 = vmul.f32 %v6026, %v394
      %v6059 = vmul.f32 %v6027, %v395
      %v6060 = vmul.f32 %v6028, %v396
      %v6061 = vmul.f32 %v6029, %v397
      %v6062 = vmul.f32 %v6030, %v398
      %v6063 = vmul.f32 %v6031, %v399
      %v6064 = vmul.f32 %v6032, %v400
      %v6065 = vmul.f32 %v6033, %v401
      %v6066 = vmul.f32 %v6034, %v402
      %vm6067 = vcmask 7168
      %6068 = vst.msk [vmem:[%s368] sm:$0xff] %vm6067, %v6035
      %6069 = vst.msk [vmem:[%s368 + $0x8] sm:$0xff] %vm6067, %v6036
      %6070 = vst.msk [vmem:[%s368 + $0x10] sm:$0xff] %vm6067, %v6037
      %6071 = vst.msk [vmem:[%s368 + $0x18] sm:$0xff] %vm6067, %v6038
      %6072 = vst.msk [vmem:[%s368 + $0x20] sm:$0xff] %vm6067, %v6039
      %6073 = vst.msk [vmem:[%s368 + $0x28] sm:$0xff] %vm6067, %v6040
      %6074 = vst.msk [vmem:[%s368 + $0x30] sm:$0xff] %vm6067, %v6041
      %6075 = vst.msk [vmem:[%s368 + $0x38] sm:$0xff] %vm6067, %v6042
      %6076 = vst.msk [vmem:[%s368 + $0x40] sm:$0xff] %vm6067, %v6043
      %6077 = vst.msk [vmem:[%s368 + $0x48] sm:$0xff] %vm6067, %v6044
      %6078 = vst.msk [vmem:[%s368 + $0x50] sm:$0xff] %vm6067, %v6045
      %6079 = vst.msk [vmem:[%s368 + $0x58] sm:$0xff] %vm6067, %v6046
      %6080 = vst.msk [vmem:[%s368 + $0x60] sm:$0xff] %vm6067, %v6047
      %6081 = vst.msk [vmem:[%s368 + $0x68] sm:$0xff] %vm6067, %v6048
      %6082 = vst.msk [vmem:[%s368 + $0x70] sm:$0xff] %vm6067, %v6049
      %6083 = vst.msk [vmem:[%s368 + $0x78] sm:$0xff] %vm6067, %v6050
      %6084 = vst.msk [vmem:[%s368 + $0x80] sm:$0xff] %vm6067, %v6051
      %6085 = vst.msk [vmem:[%s368 + $0x88] sm:$0xff] %vm6067, %v6052
      %6086 = vst.msk [vmem:[%s368 + $0x90] sm:$0xff] %vm6067, %v6053
      %6087 = vst.msk [vmem:[%s368 + $0x98] sm:$0xff] %vm6067, %v6054
      %6088 = vst.msk [vmem:[%s368 + $0xa0] sm:$0xff] %vm6067, %v6055
      %6089 = vst.msk [vmem:[%s368 + $0xa8] sm:$0xff] %vm6067, %v6056
      %6090 = vst.msk [vmem:[%s368 + $0xb0] sm:$0xff] %vm6067, %v6057
      %6091 = vst.msk [vmem:[%s368 + $0xb8] sm:$0xff] %vm6067, %v6058
      %6092 = vst.msk [vmem:[%s368 + $0xc0] sm:$0xff] %vm6067, %v6059
      %6093 = vst.msk [vmem:[%s368 + $0xc8] sm:$0xff] %vm6067, %v6060
      %6094 = vst.msk [vmem:[%s368 + $0xd0] sm:$0xff] %vm6067, %v6061
      %6095 = vst.msk [vmem:[%s368 + $0xd8] sm:$0xff] %vm6067, %v6062
      %6096 = vst.msk [vmem:[%s368 + $0xe0] sm:$0xff] %vm6067, %v6063
      %6097 = vst.msk [vmem:[%s368 + $0xe8] sm:$0xff] %vm6067, %v6064
      %6098 = vst.msk [vmem:[%s368 + $0xf0] sm:$0xff] %vm6067, %v6065
      %6099 = vst.msk [vmem:[%s368 + $0xf8] sm:$0xff] %vm6067, %v6066
      %p6100 = scmp.lt.s32.totalorder %s22, 1
      %s6101 = scalar_select %p6100, %s22, 1
      %s6102 = smul.addr %s6101, 32
      %s6103 = smul.addr %s6102, 8
      %s6104 = scalar_lea.vmem %s9, %s6103
      // Predicated region
      $region57: #{multiscale_tan_forward.6} parent=55 // pred_check
        %p6105 = pneg %p244
      $region58: #{multiscale_tan_forward.6} parent=55 // pred_check_branch
        %6107 = sbr.rel (%p6105) target = $region60
      $region59: #{multiscale_tan_forward.6} parent=55 // pred_region
        _
      $region60: #{multiscale_tan_forward.6} parent=55 // pred_fallthru
        _
    $region56: #{multiscale_tan_forward.6} parent=5 // pred_fallthru
      _
    %p6108 = scmp.le.s32.totalorder 2, %s17
    // Predicated region
    $region61: #{multiscale_tan_forward.6} parent=5 // pred_check
      %p6109 = pneg %p6108
    $region62: #{multiscale_tan_forward.6} parent=5 // pred_check_branch
      %6111 = sbr.rel (%p6109) target = $region64
    $region63: #{multiscale_tan_forward.6} parent=5 // pred_region
      %s6112 = ssub.s32 %s17, 2
      // Predicated region
      $region65: #{multiscale_tan_forward.6} parent=63 // pred_check
        %p6113 = pneg %p250
      $region66: #{multiscale_tan_forward.6} parent=63 // pred_check_branch
        %6115 = sbr.rel (%p6113) target = $region68
      $region67: #{multiscale_tan_forward.6} parent=63 // pred_region
        %p6116 = scmp.lt.s32.totalorder %s23, 1
        %s6117 = scalar_select %p6116, %s23, 1
        %s6118 = smul.addr %s6117, 32
        %s6119 = smul.addr %s6118, 8
        %s6120 = scalar_lea.vmem %s9, %s6119
      $region68: #{multiscale_tan_forward.6} parent=63 // pred_fallthru
        _
    $region64: #{multiscale_tan_forward.6} parent=5 // pred_fallthru
      _
  $region6: #{multiscale_tan_forward.6} parent=0 // loop_footer
    %s21 = sadd.s32 1, %s17
  $region7: #{multiscale_tan_forward.6} parent=0 // loop_footer_branch
    %16 = sbr.rel target = $region3
  $region8: #{multiscale_tan_forward.6} parent=0 // loop_exit
    _

// kernel: multiscale_tan_forward.7
$region0: #{multiscale_tan_forward.7}
  #allocation0 [shape = 'u32[]', space=smem, size = 0x4, offset = 0x4, fixed_abs, tag = 'smem constant byte address 0x4 - core index']
  #allocation1 [shape = 'u32[72,128]{1,0:T(1,128)}', space=vmem, size = 0x9000, scoped, tag = 'internal scratch']
  #allocation2 [shape = 'f32[10,10,32]{2,1,0:T(8,128)}', space=vmem, size = 0x14000, scoped, tag = 'scratch operand']
  #allocation3 [shape = 'f32[1,1]{1,0:T(1,128)S(1)}', space=vmem, size = 0x200, scoped, tag = 'scoped memory for multiscale_tan_forward.7']
  %s0 = inlined_call_operand.vmem [shape: f32[2,8,32], index: 0, kind: input, shape index: {}]
  %s1 = inlined_call_operand.vmem [shape: f32[2,8,8,1], index: 1, kind: input, shape index: {}]
  %s2 = inlined_call_operand.vmem [shape: f32[2,1,32], index: 2, kind: input, shape index: {}]
  %s3 = inlined_call_operand.vmem [shape: f32[32,32], index: 3, kind: input, shape index: {}]
  %s4 = inlined_call_operand.vmem [shape: f32[1,32], index: 4, kind: input, shape index: {}]
  %s5 = inlined_call_operand.vmem [shape: f32[2,288,32], index: 5, kind: input, shape index: {}]
  %s6 = inlined_call_operand.vmem [shape: f32[2,1,32], index: 6, kind: input, shape index: {}]
  %s7 = inlined_call_operand.vmem [shape: f32[1,32], index: 7, kind: input, shape index: {}]
  %s8 = inlined_call_operand.<no memory space> [shape: f32[1,1], index: 8, kind: input, shape index: {}]
  %s9 = inlined_call_operand.vmem [shape: f32[2,8,8,1], index: 9, kind: output, shape index: {}]
  %s10 = sld [smem:[#allocation0]]
  $region69: #{multiscale_tan_forward.7} parent=0
    _
  %s12 = ssub.s32 1, %s10
  %s13 = scalar_select 0, %s12, %s10
  %v14 = vstv %s8
  %15 = vst [vmem:[#allocation3] sm:$0x1] %v14
  loop: start=0, step=1, limit=4
  $region2: #{multiscale_tan_forward.7} parent=0 // loop_pre_header
    _
  $region3: #{multiscale_tan_forward.7} parent=0 // loop_header
    %s17 = sphi 0, %s21
    %p18 = scmp.ge.s32.totalorder %s17, 4
    %s27 = sphi 0, %s29
    %s30 = sphi 0, %s27
    %s31 = sphi 0, %s30
    %s47 = sphi 0, %s31
    %s53 = sphi 0, %s55
    %s56 = sphi 0, %s53
    %s57 = sphi 0, %s56
    %s73 = sphi 0, %s57
    %s79 = sphi 0, %s81
    %s82 = sphi 0, %s79
    %s83 = sphi 0, %s82
    %s99 = sphi 0, %s83
    %s103 = sphi 0, %s103
    %s105 = sphi 0, %s103
    %s106 = sphi 0, %s105
    %s120 = sphi 0, %s106
    %s124 = sphi 0, %s124
    %s126 = sphi 0, %s124
    %s127 = sphi 0, %s126
    %s141 = sphi 0, %s127
    %s145 = sphi 0, %s145
    %s147 = sphi 0, %s145
    %s148 = sphi 0, %s147
    %s162 = sphi 0, %s148
    %s166 = sphi 0, %s166
    %s168 = sphi 0, %s166
    %s169 = sphi 0, %s168
    %s183 = sphi 0, %s169
    %s187 = sphi 0, %s187
    %s189 = sphi 0, %s187
    %s190 = sphi 0, %s189
    %s204 = sphi 0, %s190
    %s208 = sphi 0, %s208
    %s210 = sphi 0, %s208
    %s211 = sphi 0, %s210
    %s225 = sphi 0, %s211
    %s231 = sphi 0, %s233
    %s234 = sphi 0, %s231
    %s235 = sphi 0, %s234
    %s251 = sphi 0, %s235
  $region4: #{multiscale_tan_forward.7} parent=0 // loop_header_branch
    %20 = sbr.rel (%p18) target = $region8
  $region5: #{multiscale_tan_forward.7} parent=0 // loop_body
    %s22 = ssub.s32 %s17, 1
    %s23 = ssub.s32 %s17, 2
    %s24 = sadd.s32 %s17, 1
    %s25 = ssub.s32 %s17, %s24
    %p26 = scmp.eq.s32.totalorder %s25, 0
    %s28 = sadd.s32 %s27, 1
    %s29 = scalar_select %p26, %s27, %s28
    %p32 = pneg %p26
    %p33 = scmp.eq.s32.totalorder %s17, 1
    %p34 = por %p32, %p33
    %p35 = scmp.ne.s32.totalorder %s27, %s30
    %p36 = scmp.eq.s32.totalorder %s17, 0
    %p37 = por %p35, %p36
    %p38 = scmp.ne.s32.totalorder %s27, %s30
    %p39 = scmp.eq.s32.totalorder %s22, 1
    %p40 = por %p38, %p39
    %p41 = scmp.ne.s32.totalorder %s30, %s31
    %p42 = scmp.eq.s32.totalorder %s22, 0
    %p43 = por %p41, %p42
    %p44 = scmp.ne.s32.totalorder %s30, %s31
    %p45 = scmp.eq.s32.totalorder %s23, 1
    %p46 = por %p44, %p45
    %p48 = scmp.ne.s32.totalorder %s31, %s47
    %p49 = scmp.eq.s32.totalorder %s23, 0
    %p50 = por %p48, %p49
    %s51 = ssub.s32 %s17, %s24
    %p52 = scmp.eq.s32.totalorder %s51, 0
    %s54 = sadd.s32 %s53, 1
    %s55 = scalar_select %p52, %s53, %s54
    %p58 = pneg %p52
    %p59 = scmp.eq.s32.totalorder %s17, 1
    %p60 = por %p58, %p59
    %p61 = scmp.ne.s32.totalorder %s53, %s56
    %p62 = scmp.eq.s32.totalorder %s17, 0
    %p63 = por %p61, %p62
    %p64 = scmp.ne.s32.totalorder %s53, %s56
    %p65 = scmp.eq.s32.totalorder %s22, 1
    %p66 = por %p64, %p65
    %p67 = scmp.ne.s32.totalorder %s56, %s57
    %p68 = scmp.eq.s32.totalorder %s22, 0
    %p69 = por %p67, %p68
    %p70 = scmp.ne.s32.totalorder %s56, %s57
    %p71 = scmp.eq.s32.totalorder %s23, 1
    %p72 = por %p70, %p71
    %p74 = scmp.ne.s32.totalorder %s57, %s73
    %p75 = scmp.eq.s32.totalorder %s23, 0
    %p76 = por %p74, %p75
    %s77 = ssub.s32 %s17, %s24
    %p78 = scmp.eq.s32.totalorder %s77, 0
    %s80 = sadd.s32 %s79, 1
    %s81 = scalar_select %p78, %s79, %s80
    %p84 = pneg %p78
    %p85 = scmp.eq.s32.totalorder %s17, 1
    %p86 = por %p84, %p85
    %p87 = scmp.ne.s32.totalorder %s79, %s82
    %p88 = scmp.eq.s32.totalorder %s17, 0
    %p89 = por %p87, %p88
    %p90 = scmp.ne.s32.totalorder %s79, %s82
    %p91 = scmp.eq.s32.totalorder %s22, 1
    %p92 = por %p90, %p91
    %p93 = scmp.ne.s32.totalorder %s82, %s83
    %p94 = scmp.eq.s32.totalorder %s22, 0
    %p95 = por %p93, %p94
    %p96 = scmp.ne.s32.totalorder %s82, %s83
    %p97 = scmp.eq.s32.totalorder %s23, 1
    %p98 = por %p96, %p97
    %p100 = scmp.ne.s32.totalorder %s83, %s99
    %p101 = scmp.eq.s32.totalorder %s23, 0
    %p102 = por %p100, %p101
    %s104 = sadd.s32 %s103, 1
    %p107 = scmp.eq.s32.totalorder %s17, 1
    %p108 = scmp.ne.s32.totalorder %s103, %s105
    %p109 = scmp.eq.s32.totalorder %s17, 0
    %p110 = por %p108, %p109
    %p111 = scmp.ne.s32.totalorder %s103, %s105
    %p112 = scmp.eq.s32.totalorder %s22, 1
    %p113 = por %p111, %p112
    %p114 = scmp.ne.s32.totalorder %s105, %s106
    %p115 = scmp.eq.s32.totalorder %s22, 0
    %p116 = por %p114, %p115
    %p117 = scmp.ne.s32.totalorder %s105, %s106
    %p118 = scmp.eq.s32.totalorder %s23, 1
    %p119 = por %p117, %p118
    %p121 = scmp.ne.s32.totalorder %s106, %s120
    %p122 = scmp.eq.s32.totalorder %s23, 0
    %p123 = por %p121, %p122
    %s125 = sadd.s32 %s124, 1
    %p128 = scmp.eq.s32.totalorder %s17, 1
    %p129 = scmp.ne.s32.totalorder %s124, %s126
    %p130 = scmp.eq.s32.totalorder %s17, 0
    %p131 = por %p129, %p130
    %p132 = scmp.ne.s32.totalorder %s124, %s126
    %p133 = scmp.eq.s32.totalorder %s22, 1
    %p134 = por %p132, %p133
    %p135 = scmp.ne.s32.totalorder %s126, %s127
    %p136 = scmp.eq.s32.totalorder %s22, 0
    %p137 = por %p135, %p136
    %p138 = scmp.ne.s32.totalorder %s126, %s127
    %p139 = scmp.eq.s32.totalorder %s23, 1
    %p140 = por %p138, %p139
    %p142 = scmp.ne.s32.totalorder %s127, %s141
    %p143 = scmp.eq.s32.totalorder %s23, 0
    %p144 = por %p142, %p143
    %s146 = sadd.s32 %s145, 1
    %p149 = scmp.eq.s32.totalorder %s17, 1
    %p150 = scmp.ne.s32.totalorder %s145, %s147
    %p151 = scmp.eq.s32.totalorder %s17, 0
    %p152 = por %p150, %p151
    %p153 = scmp.ne.s32.totalorder %s145, %s147
    %p154 = scmp.eq.s32.totalorder %s22, 1
    %p155 = por %p153, %p154
    %p156 = scmp.ne.s32.totalorder %s147, %s148
    %p157 = scmp.eq.s32.totalorder %s22, 0
    %p158 = por %p156, %p157
    %p159 = scmp.ne.s32.totalorder %s147, %s148
    %p160 = scmp.eq.s32.totalorder %s23, 1
    %p161 = por %p159, %p160
    %p163 = scmp.ne.s32.totalorder %s148, %s162
    %p164 = scmp.eq.s32.totalorder %s23, 0
    %p165 = por %p163, %p164
    %s167 = sadd.s32 %s166, 1
    %p170 = scmp.eq.s32.totalorder %s17, 1
    %p171 = scmp.ne.s32.totalorder %s166, %s168
    %p172 = scmp.eq.s32.totalorder %s17, 0
    %p173 = por %p171, %p172
    %p174 = scmp.ne.s32.totalorder %s166, %s168
    %p175 = scmp.eq.s32.totalorder %s22, 1
    %p176 = por %p174, %p175
    %p177 = scmp.ne.s32.totalorder %s168, %s169
    %p178 = scmp.eq.s32.totalorder %s22, 0
    %p179 = por %p177, %p178
    %p180 = scmp.ne.s32.totalorder %s168, %s169
    %p181 = scmp.eq.s32.totalorder %s23, 1
    %p182 = por %p180, %p181
    %p184 = scmp.ne.s32.totalorder %s169, %s183
    %p185 = scmp.eq.s32.totalorder %s23, 0
    %p186 = por %p184, %p185
    %s188 = sadd.s32 %s187, 1
    %p191 = scmp.eq.s32.totalorder %s17, 1
    %p192 = scmp.ne.s32.totalorder %s187, %s189
    %p193 = scmp.eq.s32.totalorder %s17, 0
    %p194 = por %p192, %p193
    %p195 = scmp.ne.s32.totalorder %s187, %s189
    %p196 = scmp.eq.s32.totalorder %s22, 1
    %p197 = por %p195, %p196
    %p198 = scmp.ne.s32.totalorder %s189, %s190
    %p199 = scmp.eq.s32.totalorder %s22, 0
    %p200 = por %p198, %p199
    %p201 = scmp.ne.s32.totalorder %s189, %s190
    %p202 = scmp.eq.s32.totalorder %s23, 1
    %p203 = por %p201, %p202
    %p205 = scmp.ne.s32.totalorder %s190, %s204
    %p206 = scmp.eq.s32.totalorder %s23, 0
    %p207 = por %p205, %p206
    %s209 = sadd.s32 %s208, 1
    %p212 = scmp.eq.s32.totalorder %s17, 1
    %p213 = scmp.ne.s32.totalorder %s208, %s210
    %p214 = scmp.eq.s32.totalorder %s17, 0
    %p215 = por %p213, %p214
    %p216 = scmp.ne.s32.totalorder %s208, %s210
    %p217 = scmp.eq.s32.totalorder %s22, 1
    %p218 = por %p216, %p217
    %p219 = scmp.ne.s32.totalorder %s210, %s211
    %p220 = scmp.eq.s32.totalorder %s22, 0
    %p221 = por %p219, %p220
    %p222 = scmp.ne.s32.totalorder %s210, %s211
    %p223 = scmp.eq.s32.totalorder %s23, 1
    %p224 = por %p222, %p223
    %p226 = scmp.ne.s32.totalorder %s211, %s225
    %p227 = scmp.eq.s32.totalorder %s23, 0
    %p228 = por %p226, %p227
    %s229 = ssub.s32 %s17, %s24
    %p230 = scmp.eq.s32.totalorder %s229, 0
    %s232 = sadd.s32 %s231, 1
    %s233 = scalar_select %p230, %s231, %s232
    %p236 = pneg %p230
    %p237 = scmp.eq.s32.totalorder %s17, 1
    %p238 = por %p236, %p237
    %p239 = scmp.ne.s32.totalorder %s231, %s234
    %p240 = scmp.eq.s32.totalorder %s17, 0
    %p241 = por %p239, %p240
    %p242 = scmp.ne.s32.totalorder %s231, %s234
    %p243 = scmp.eq.s32.totalorder %s22, 1
    %p244 = por %p242, %p243
    %p245 = scmp.ne.s32.totalorder %s234, %s235
    %p246 = scmp.eq.s32.totalorder %s22, 0
    %p247 = por %p245, %p246
    %p248 = scmp.ne.s32.totalorder %s234, %s235
    %p249 = scmp.eq.s32.totalorder %s23, 1
    %p250 = por %p248, %p249
    %p252 = scmp.ne.s32.totalorder %s235, %s251
    %p253 = scmp.eq.s32.totalorder %s23, 0
    %p254 = por %p252, %p253
    %p255 = scmp.le.s32.totalorder 1, %s17
    %p256 = scmp.lt.s32.totalorder %s17, 3
    %p257 = pnand %p255, %p256
    %p258 = pneg %p257
    // Predicated region
    $region9: #{multiscale_tan_forward.7} parent=5 // pred_check
      _
    $region10: #{multiscale_tan_forward.7} parent=5 // pred_check_branch
      %260 = sbr.rel (%p257) target = $region12
    $region11: #{multiscale_tan_forward.7} parent=5 // pred_region
      %s261 = ssub.s32 %s17, 1
      // Predicated region
      $region13: #{multiscale_tan_forward.7} parent=11 // pred_check
        %p262 = pneg %p116
      $region14: #{multiscale_tan_forward.7} parent=11 // pred_check_branch
        %264 = sbr.rel (%p262) target = $region16
      $region15: #{multiscale_tan_forward.7} parent=11 // pred_region
        _
      $region16: #{multiscale_tan_forward.7} parent=11 // pred_fallthru
        _
      // Predicated region
      $region17: #{multiscale_tan_forward.7} parent=11 // pred_check
        %p265 = pneg %p137
      $region18: #{multiscale_tan_forward.7} parent=11 // pred_check_branch
        %267 = sbr.rel (%p265) target = $region20
      $region19: #{multiscale_tan_forward.7} parent=11 // pred_region
        _
      $region20: #{multiscale_tan_forward.7} parent=11 // pred_fallthru
        _
      // Predicated region
      $region21: #{multiscale_tan_forward.7} parent=11 // pred_check
        %p268 = pneg %p158
      $region22: #{multiscale_tan_forward.7} parent=11 // pred_check_branch
        %270 = sbr.rel (%p268) target = $region24
      $region23: #{multiscale_tan_forward.7} parent=11 // pred_region
        _
      $region24: #{multiscale_tan_forward.7} parent=11 // pred_fallthru
        _
      // Predicated region
      $region25: #{multiscale_tan_forward.7} parent=11 // pred_check
        %p271 = pneg %p179
      $region26: #{multiscale_tan_forward.7} parent=11 // pred_check_branch
        %273 = sbr.rel (%p271) target = $region28
      $region27: #{multiscale_tan_forward.7} parent=11 // pred_region
        _
      $region28: #{multiscale_tan_forward.7} parent=11 // pred_fallthru
        _
      // Predicated region
      $region29: #{multiscale_tan_forward.7} parent=11 // pred_check
        %p274 = pneg %p200
      $region30: #{multiscale_tan_forward.7} parent=11 // pred_check_branch
        %276 = sbr.rel (%p274) target = $region32
      $region31: #{multiscale_tan_forward.7} parent=11 // pred_region
        _
      $region32: #{multiscale_tan_forward.7} parent=11 // pred_fallthru
        _
      // Predicated region
      $region33: #{multiscale_tan_forward.7} parent=11 // pred_check
        %p277 = pneg %p221
      $region34: #{multiscale_tan_forward.7} parent=11 // pred_check_branch
        %279 = sbr.rel (%p277) target = $region36
      $region35: #{multiscale_tan_forward.7} parent=11 // pred_region
        _
      $region36: #{multiscale_tan_forward.7} parent=11 // pred_fallthru
        _
    $region12: #{multiscale_tan_forward.7} parent=5 // pred_fallthru
      _
    %p280 = scmp.lt.s32.totalorder %s17, 2
    // Predicated region
    $region37: #{multiscale_tan_forward.7} parent=5 // pred_check
      %p281 = pneg %p280
    $region38: #{multiscale_tan_forward.7} parent=5 // pred_check_branch
      %283 = sbr.rel (%p281) target = $region40
    $region39: #{multiscale_tan_forward.7} parent=5 // pred_region
      // Predicated region
      $region41: #{multiscale_tan_forward.7} parent=39 // pred_check
        %p284 = pneg %p37
      $region42: #{multiscale_tan_forward.7} parent=39 // pred_check_branch
        %286 = sbr.rel (%p284) target = $region44
      $region43: #{multiscale_tan_forward.7} parent=39 // pred_region
        %p287 = scmp.lt.s32.totalorder %s17, 1
        %s288 = scalar_select %p287, %s17, 1
        %s289 = smul.addr %s288, 8
        %s290 = scalar_lea.vmem %s0, %s289
      $region44: #{multiscale_tan_forward.7} parent=39 // pred_fallthru
        _
      // Predicated region
      $region45: #{multiscale_tan_forward.7} parent=39 // pred_check
        %p291 = pneg %p63
      $region46: #{multiscale_tan_forward.7} parent=39 // pred_check_branch
        %293 = sbr.rel (%p291) target = $region48
      $region47: #{multiscale_tan_forward.7} parent=39 // pred_region
        %p294 = scmp.lt.s32.totalorder %s17, 1
        %s295 = scalar_select %p294, %s17, 1
        %s296 = smul.addr %s295, 8
        %s297 = smul.addr %s296, 8
        %s298 = scalar_lea.vmem %s1, %s297
      $region48: #{multiscale_tan_forward.7} parent=39 // pred_fallthru
        _
      // Predicated region
      $region49: #{multiscale_tan_forward.7} parent=39 // pred_check
        %p299 = pneg %p89
      $region50: #{multiscale_tan_forward.7} parent=39 // pred_check_branch
        %301 = sbr.rel (%p299) target = $region52
      $region51: #{multiscale_tan_forward.7} parent=39 // pred_region
        %p302 = scmp.lt.s32.totalorder %s17, 1
        %s303 = scalar_select %p302, %s17, 1
        %s304 = scalar_lea.vmem %s2, %s303
      $region52: #{multiscale_tan_forward.7} parent=39 // pred_fallthru
        _
    $region40: #{multiscale_tan_forward.7} parent=5 // pred_fallthru
      _
    %p305 = scmp.le.s32.totalorder 1, %s17
    %p306 = scmp.lt.s32.totalorder %s17, 3
    %p307 = pnand %p305, %p306
    %p308 = pneg %p307
    // Predicated region
    $region53: #{multiscale_tan_forward.7} parent=5 // pred_check
      _
    $region54: #{multiscale_tan_forward.7} parent=5 // pred_check_branch
      %310 = sbr.rel (%p307) target = $region56
    $region55: #{multiscale_tan_forward.7} parent=5 // pred_region
      %s311 = ssub.s32 %s17, 1
      %p312 = scmp.lt.s32.totalorder %s22, 1
      %s313 = scalar_select %p312, %s22, 1
      %s314 = smul.addr %s313, 8
      %s315 = scalar_lea.vmem %s0, %s314
      %p316 = pneg %p43
      %p317 = pneg %p40
      %p318 = scmp.lt.s32.totalorder %s22, 1
      %s319 = scalar_select %p318, %s22, 1
      %s320 = smul.addr %s319, 8
      %s321 = smul.addr %s320, 8
      %s322 = scalar_lea.vmem %s1, %s321
      %p323 = pneg %p69
      %p324 = pneg %p66
      %p325 = scmp.lt.s32.totalorder %s22, 1
      %s326 = scalar_select %p325, %s22, 1
      %s327 = scalar_lea.vmem %s2, %s326
      %p328 = pneg %p95
      %p329 = pneg %p92
      %p330 = pneg %p116
      %p331 = pneg %p113
      %p332 = pneg %p137
      %p333 = pneg %p134
      %p334 = pneg %p158
      %p335 = pneg %p155
      %p336 = pneg %p179
      %p337 = pneg %p176
      %p338 = pneg %p200
      %p339 = pneg %p197
      %p340 = pneg %p221
      %p341 = pneg %p218
      %p342 = pneg %p247
      %p343 = pneg %p244
      %p344 = scmp.lt.s32.totalorder %s22, 1
      %s345 = scalar_select %p344, %s22, 1
      %s346 = smul.addr %s345, 8
      %s347 = smul.addr %s346, 8
      %s348 = scalar_lea.vmem %s9, %s347
      %p349 = scmp.lt.s32.totalorder %s22, 1
      %s350 = scalar_select %p349, %s22, 1
      %s351 = smul.addr %s350, 8
      %s352 = scalar_lea.vmem %s0, %s351
      %p353 = scmp.lt.s32.totalorder %s22, 1
      %s354 = scalar_select %p353, %s22, 1
      %s355 = smul.addr %s354, 8
      %s356 = smul.addr %s355, 8
      %s357 = scalar_lea.vmem %s1, %s356
      %p358 = scmp.lt.s32.totalorder %s22, 1
      %s359 = scalar_select %p358, %s22, 1
      %s360 = scalar_lea.vmem %s2, %s359
      %p361 = scmp.lt.s32.totalorder %s22, 1
      %s362 = scalar_select %p361, %s22, 1
      %s363 = smul.addr %s362, 8
      %s364 = smul.addr %s363, 8
      %s365 = scalar_lea.vmem %s9, %s364
      %v366 = vld [vmem:[%s352] sm:$0xff]
      %v367 = vld [vmem:[%s357] sm:$0xff]
      %v368 = vld [vmem:[%s357 + $0x8] sm:$0xff]
      %v369 = vld [vmem:[%s357 + $0x10] sm:$0xff]
      %v370 = vld [vmem:[%s357 + $0x18] sm:$0xff]
      %v371 = vld [vmem:[%s357 + $0x20] sm:$0xff]
      %v372 = vld [vmem:[%s357 + $0x28] sm:$0xff]
      %v373 = vld [vmem:[%s357 + $0x30] sm:$0xff]
      %v374 = vld [vmem:[%s357 + $0x38] sm:$0xff]
      %v375 = vlaneseq
      %v376 = vshrl.u32 %v375, 7
      %vm377 = vcmp.ge.s32.totalorder %v376, 0
      %vm378 = vcmp.ge.s32.totalorder %v376, 1
      %vm379 = vcmp.ge.s32.totalorder %v376, 2
      %vm380 = vcmp.ge.s32.totalorder %v376, 3
      %vm381 = vcmp.ge.s32.totalorder %v376, 4
      %vm382 = vcmp.ge.s32.totalorder %v376, 5
      %vm383 = vcmp.ge.s32.totalorder %v376, 6
      %vm384 = vcmp.ge.s32.totalorder %v376, 7
      %v385 = vsel %vm377, 1, 0
      %v386 = vsel %vm378, 1, 0
      %v387 = vsel %vm379, 1, 0
      %v388 = vsel %vm380, 1, 0
      %v389 = vsel %vm381, 1, 0
      %v390 = vsel %vm382, 1, 0
      %v391 = vsel %vm383, 1, 0
      %v392 = vsel %vm384, 1, 0
      %vm393 = vcmp.eq.s32.totalorder %v385, 1
      %vm394 = vcmp.eq.s32.totalorder %v386, 1
      %vm395 = vcmp.eq.s32.totalorder %v387, 1
      %vm396 = vcmp.eq.s32.totalorder %v388, 1
      %vm397 = vcmp.eq.s32.totalorder %v389, 1
      %vm398 = vcmp.eq.s32.totalorder %v390, 1
      %vm399 = vcmp.eq.s32.totalorder %v391, 1
      %vm400 = vcmp.eq.s32.totalorder %v392, 1
      %v401 = vsel %vm393, %v366, -1e+30
      %v402 = vsel %vm394, %v366, -1e+30
      %v403 = vsel %vm395, %v366, -1e+30
      %v404 = vsel %vm396, %v366, -1e+30
      %v405 = vsel %vm397, %v366, -1e+30
      %v406 = vsel %vm398, %v366, -1e+30
      %v407 = vsel %vm399, %v366, -1e+30
      %v408 = vsel %vm400, %v366, -1e+30
      %v417 = vrot.slane %v401, 7
      %v418 = vrot.slane %v402, 7
      %v419 = vrot.slane %v403, 7
      %v420 = vrot.slane %v404, 7
      %v421 = vrot.slane %v405, 7
      %v422 = vrot.slane %v406, 7
      %v423 = vrot.slane %v407, 7
      %v424 = vrot.slane %v408, 7
      %vm433 = vcmask 1040384
      %v434 = vsel %vm433, -1e+30, %v417
      %v435 = vsel %vm433, -1e+30, %v418
      %v436 = vsel %vm433, -1e+30, %v419
      %v437 = vsel %vm433, -1e+30, %v420
      %v438 = vsel %vm433, -1e+30, %v421
      %v439 = vsel %vm433, -1e+30, %v422
      %v440 = vsel %vm433, -1e+30, %v423
      %v441 = vsel %vm433, -1e+30, %v424
      %v442 = vmax.f32 %v401, %v434
      %v443 = vmax.f32 %v402, %v435
      %v444 = vmax.f32 %v403, %v436
      %v445 = vmax.f32 %v404, %v437
      %v446 = vmax.f32 %v405, %v438
      %v447 = vmax.f32 %v406, %v439
      %v448 = vmax.f32 %v407, %v440
      %v449 = vmax.f32 %v408, %v441
      %v458 = vrot.slane %v442, 6
      %v459 = vrot.slane %v443, 6
      %v460 = vrot.slane %v444, 6
      %v461 = vrot.slane %v445, 6
      %v462 = vrot.slane %v446, 6
      %v463 = vrot.slane %v447, 6
      %v464 = vrot.slane %v448, 6
      %v465 = vrot.slane %v449, 6
      %vm474 = vcmask 1041408
      %v475 = vsel %vm474, -1e+30, %v458
      %v476 = vsel %vm474, -1e+30, %v459
      %v477 = vsel %vm474, -1e+30, %v460
      %v478 = vsel %vm474, -1e+30, %v461
      %v479 = vsel %vm474, -1e+30, %v462
      %v480 = vsel %vm474, -1e+30, %v463
      %v481 = vsel %vm474, -1e+30, %v464
      %v482 = vsel %vm474, -1e+30, %v465
      %v483 = vmax.f32 %v442, %v475
      %v484 = vmax.f32 %v443, %v476
      %v485 = vmax.f32 %v444, %v477
      %v486 = vmax.f32 %v445, %v478
      %v487 = vmax.f32 %v446, %v479
      %v488 = vmax.f32 %v447, %v480
      %v489 = vmax.f32 %v448, %v481
      %v490 = vmax.f32 %v449, %v482
      %v499 = vrot.slane %v483, 4
      %v500 = vrot.slane %v484, 4
      %v501 = vrot.slane %v485, 4
      %v502 = vrot.slane %v486, 4
      %v503 = vrot.slane %v487, 4
      %v504 = vrot.slane %v488, 4
      %v505 = vrot.slane %v489, 4
      %v506 = vrot.slane %v490, 4
      %vm515 = vcmask 1043456
      %v516 = vsel %vm515, -1e+30, %v499
      %v517 = vsel %vm515, -1e+30, %v500
      %v518 = vsel %vm515, -1e+30, %v501
      %v519 = vsel %vm515, -1e+30, %v502
      %v520 = vsel %vm515, -1e+30, %v503
      %v521 = vsel %vm515, -1e+30, %v504
      %v522 = vsel %vm515, -1e+30, %v505
      %v523 = vsel %vm515, -1e+30, %v506
      %v524 = vmax.f32 %v483, %v516
      %v525 = vmax.f32 %v484, %v517
      %v526 = vmax.f32 %v485, %v518
      %v527 = vmax.f32 %v486, %v519
      %v528 = vmax.f32 %v487, %v520
      %v529 = vmax.f32 %v488, %v521
      %v530 = vmax.f32 %v489, %v522
      %v531 = vmax.f32 %v490, %v523
      %v532 = vsel %vm393, %v524, 0.0
      %v533 = vsel %vm394, %v525, 0.0
      %v534 = vsel %vm395, %v526, 0.0
      %v535 = vsel %vm396, %v527, 0.0
      %v536 = vsel %vm397, %v528, 0.0
      %v537 = vsel %vm398, %v529, 0.0
      %v538 = vsel %vm399, %v530, 0.0
      %v539 = vsel %vm400, %v531, 0.0
      %v540 = vld [vmem:[%s3] sm:$0xff]
      %v541 = vld [vmem:[%s3 + $0x8] sm:$0xff]
      %v542 = vld [vmem:[%s3 + $0x10] sm:$0xff]
      %v543 = vld [vmem:[%s3 + $0x18] sm:$0xff]
      %v544 = vld [vmem:[%s4] sm:$0x1]
      %v546 = vperm.slane %v544, 0
      %vm548 = vcmask 261120
      %v550 = vsel %vm548, %v532, 0
      %v553 = vsel %vm548, %v533, 0
      %v556 = vsel %vm548, %v534, 0
      %v559 = vsel %vm548, %v535, 0
      %v562 = vsel %vm548, %v536, 0
      %v565 = vsel %vm548, %v537, 0
      %v568 = vsel %vm548, %v538, 0
      %v571 = vsel %vm548, %v539, 0
      %573 = vmatpush.msra.mxu0 0.0
      %574 = vmatpush.msra.mxu0 0.0
      %575 = vmatpush.msra.mxu0 0.0
      %576 = vmatpush.msra.mxu0 0.0
      %577 = vmatpush.msra.mxu0 0.0
      %578 = vmatpush.msra.mxu0 0.0
      %579 = vmatpush.msra.mxu0 0.0
      %580 = vmatpush.msra.mxu0 0.0
      %581 = vmatpush.msra.mxu0 0.0
      %582 = vmatpush.msra.mxu0 0.0
      %583 = vmatpush.msra.mxu0 0.0
      %584 = vmatpush.msra.mxu0 0.0
      %585 = vmatpush.msra.mxu0 %v543
      %586 = vmatpush.msra.mxu0 %v542
      %587 = vmatpush.msra.mxu0 %v541
      %588 = vmatpush.msra.mxu0 %v540
      %589 = vmatmul.f32.gmra.mxu0 %v550
      %v590 = vpop.f32.mrf.mxu0
      %v591 = vadd.f32 %v546, %v590
      %592 = vmatmul.f32.gmra.mxu0 %v553
      %v593 = vpop.f32.mrf.mxu0
      %v594 = vadd.f32 %v546, %v593
      %595 = vmatmul.f32.gmra.mxu0 %v556
      %v596 = vpop.f32.mrf.mxu0
      %v597 = vadd.f32 %v546, %v596
      %598 = vmatmul.f32.gmra.mxu0 %v559
      %v599 = vpop.f32.mrf.mxu0
      %v600 = vadd.f32 %v546, %v599
      %601 = vmatmul.f32.gmra.mxu0 %v562
      %v602 = vpop.f32.mrf.mxu0
      %v603 = vadd.f32 %v546, %v602
      %604 = vmatmul.f32.gmra.mxu0 %v565
      %v605 = vpop.f32.mrf.mxu0
      %v606 = vadd.f32 %v546, %v605
      %607 = vmatmul.f32.gmra.mxu0 %v568
      %v608 = vpop.f32.mrf.mxu0
      %v609 = vadd.f32 %v546, %v608
      %610 = vmatmul.f32.gmra.mxu0 %v571
      %v611 = vpop.f32.mrf.mxu0
      %v612 = vadd.f32 %v546, %v611
      %613 = vdwg.mxu0
      %v614 = vld [vmem:[%s360] sm:$0x1]
      %v616 = vperm.slane %v614, 0
      %v618 = vmul.f32 %v591, %v616
      %v619 = vmul.f32 %v594, %v616
      %v620 = vmul.f32 %v597, %v616
      %v621 = vmul.f32 %v600, %v616
      %v622 = vmul.f32 %v603, %v616
      %v623 = vmul.f32 %v606, %v616
      %v624 = vmul.f32 %v609, %v616
      %v625 = vmul.f32 %v612, %v616
      %v626 = vmul.f32 %v618, %v618
      %v627 = vmul.f32 %v619, %v619
      %v628 = vmul.f32 %v620, %v620
      %v629 = vmul.f32 %v621, %v621
      %v630 = vmul.f32 %v622, %v622
      %v631 = vmul.f32 %v623, %v623
      %v632 = vmul.f32 %v624, %v624
      %v633 = vmul.f32 %v625, %v625
      %v634 = vsel %vm548, %v626, 0.0
      %635 = vadd.xlane.f32.xlu0 %v634
      %v636 = vpop.xlane.xlu0 %635
      %v637 = vsel %vm548, %v627, 0.0
      %638 = vadd.xlane.f32.xlu0 %v637
      %v639 = vpop.xlane.xlu0 %638
      %v640 = vsel %vm548, %v628, 0.0
      %641 = vadd.xlane.f32.xlu0 %v640
      %v642 = vpop.xlane.xlu0 %641
      %v643 = vsel %vm548, %v629, 0.0
      %644 = vadd.xlane.f32.xlu0 %v643
      %v645 = vpop.xlane.xlu0 %644
      %v646 = vsel %vm548, %v630, 0.0
      %647 = vadd.xlane.f32.xlu0 %v646
      %v648 = vpop.xlane.xlu0 %647
      %v649 = vsel %vm548, %v631, 0.0
      %650 = vadd.xlane.f32.xlu0 %v649
      %v651 = vpop.xlane.xlu0 %650
      %v652 = vsel %vm548, %v632, 0.0
      %653 = vadd.xlane.f32.xlu0 %v652
      %v654 = vpop.xlane.xlu0 %653
      %v655 = vsel %vm548, %v633, 0.0
      %656 = vadd.xlane.f32.xlu0 %v655
      %v657 = vpop.xlane.xlu0 %656
      %v658 = vrsqrt.pop %v636
      %v659 = vmul.f32 %v658, %v636
      %v660 = vmul.f32 %v659, %v658
      %v661 = vmul.f32 0.5, %v660
      %v662 = vsub.f32 1.5, %v661
      %v663 = vmul.f32 %v658, %v662
      %v664 = vmul.f32 %v636, %v663
      %vm665 = vcmp.eq.f32.partialorder %v636, inf
      %v666 = vsel %vm665, %v636, %v664
      %vm667 = vcmp.eq.f32.partialorder %v636, 0.0
      %v668 = vand.u32 %v636, 2147483648
      %v669 = vsel %vm667, %v668, %v666
      %v670 = vrsqrt.pop %v639
      %v671 = vmul.f32 %v670, %v639
      %v672 = vmul.f32 %v671, %v670
      %v673 = vmul.f32 0.5, %v672
      %v674 = vsub.f32 1.5, %v673
      %v675 = vmul.f32 %v670, %v674
      %v676 = vmul.f32 %v639, %v675
      %vm677 = vcmp.eq.f32.partialorder %v639, inf
      %v678 = vsel %vm677, %v639, %v676
      %vm679 = vcmp.eq.f32.partialorder %v639, 0.0
      %v680 = vand.u32 %v639, 2147483648
      %v681 = vsel %vm679, %v680, %v678
      %v682 = vrsqrt.pop %v642
      %v683 = vmul.f32 %v682, %v642
      %v684 = vmul.f32 %v683, %v682
      %v685 = vmul.f32 0.5, %v684
      %v686 = vsub.f32 1.5, %v685
      %v687 = vmul.f32 %v682, %v686
      %v688 = vmul.f32 %v642, %v687
      %vm689 = vcmp.eq.f32.partialorder %v642, inf
      %v690 = vsel %vm689, %v642, %v688
      %vm691 = vcmp.eq.f32.partialorder %v642, 0.0
      %v692 = vand.u32 %v642, 2147483648
      %v693 = vsel %vm691, %v692, %v690
      %v694 = vrsqrt.pop %v645
      %v695 = vmul.f32 %v694, %v645
      %v696 = vmul.f32 %v695, %v694
      %v697 = vmul.f32 0.5, %v696
      %v698 = vsub.f32 1.5, %v697
      %v699 = vmul.f32 %v694, %v698
      %v700 = vmul.f32 %v645, %v699
      %vm701 = vcmp.eq.f32.partialorder %v645, inf
      %v702 = vsel %vm701, %v645, %v700
      %vm703 = vcmp.eq.f32.partialorder %v645, 0.0
      %v704 = vand.u32 %v645, 2147483648
      %v705 = vsel %vm703, %v704, %v702
      %v706 = vrsqrt.pop %v648
      %v707 = vmul.f32 %v706, %v648
      %v708 = vmul.f32 %v707, %v706
      %v709 = vmul.f32 0.5, %v708
      %v710 = vsub.f32 1.5, %v709
      %v711 = vmul.f32 %v706, %v710
      %v712 = vmul.f32 %v648, %v711
      %vm713 = vcmp.eq.f32.partialorder %v648, inf
      %v714 = vsel %vm713, %v648, %v712
      %vm715 = vcmp.eq.f32.partialorder %v648, 0.0
      %v716 = vand.u32 %v648, 2147483648
      %v717 = vsel %vm715, %v716, %v714
      %v718 = vrsqrt.pop %v651
      %v719 = vmul.f32 %v718, %v651
      %v720 = vmul.f32 %v719, %v718
      %v721 = vmul.f32 0.5, %v720
      %v722 = vsub.f32 1.5, %v721
      %v723 = vmul.f32 %v718, %v722
      %v724 = vmul.f32 %v651, %v723
      %vm725 = vcmp.eq.f32.partialorder %v651, inf
      %v726 = vsel %vm725, %v651, %v724
      %vm727 = vcmp.eq.f32.partialorder %v651, 0.0
      %v728 = vand.u32 %v651, 2147483648
      %v729 = vsel %vm727, %v728, %v726
      %v730 = vrsqrt.pop %v654
      %v731 = vmul.f32 %v730, %v654
      %v732 = vmul.f32 %v731, %v730
      %v733 = vmul.f32 0.5, %v732
      %v734 = vsub.f32 1.5, %v733
      %v735 = vmul.f32 %v730, %v734
      %v736 = vmul.f32 %v654, %v735
      %vm737 = vcmp.eq.f32.partialorder %v654, inf
      %v738 = vsel %vm737, %v654, %v736
      %vm739 = vcmp.eq.f32.partialorder %v654, 0.0
      %v740 = vand.u32 %v654, 2147483648
      %v741 = vsel %vm739, %v740, %v738
      %v742 = vrsqrt.pop %v657
      %v743 = vmul.f32 %v742, %v657
      %v744 = vmul.f32 %v743, %v742
      %v745 = vmul.f32 0.5, %v744
      %v746 = vsub.f32 1.5, %v745
      %v747 = vmul.f32 %v742, %v746
      %v748 = vmul.f32 %v657, %v747
      %vm749 = vcmp.eq.f32.partialorder %v657, inf
      %v750 = vsel %vm749, %v657, %v748
      %vm751 = vcmp.eq.f32.partialorder %v657, 0.0
      %v752 = vand.u32 %v657, 2147483648
      %v753 = vsel %vm751, %v752, %v750
      %v754 = vmax.f32 %v669, 1e-12
      %v755 = vmax.f32 %v681, 1e-12
      %v756 = vmax.f32 %v693, 1e-12
      %v757 = vmax.f32 %v705, 1e-12
      %v758 = vmax.f32 %v717, 1e-12
      %v759 = vmax.f32 %v729, 1e-12
      %v760 = vmax.f32 %v741, 1e-12
      %v761 = vmax.f32 %v753, 1e-12
      %v762 = vrcp.pop %v754
      %v763 = vmul.f32 %v754, %v762
      %v764 = vsub.f32 1.0, %v763
      %v765 = vmul.f32 %v762, %v764
      %v766 = vadd.f32 %v762, %v765
      %vm767 = vweird.f32 %v754
      %vm768 = vweird.f32 %v762
      %vm769 = vmor %vm767, %vm768
      %v770 = vsel %vm769, %v762, %v766
      %v771 = vand.u32 2147483647, %v754
      %vm772 = vcmp.eq.f32.partialorder %v771, 8.507059e+37
      %v773 = vand.u32 %v754, 2147483648
      %v774 = vor.u32 1.1754944e-38, %v773
      %v775 = vsel %vm772, %v774, %v770
      %v776 = vmul.f32 %v618, %v775
      %v777 = vrcp.pop %v755
      %v778 = vmul.f32 %v755, %v777
      %v779 = vsub.f32 1.0, %v778
      %v780 = vmul.f32 %v777, %v779
      %v781 = vadd.f32 %v777, %v780
      %vm782 = vweird.f32 %v755
      %vm783 = vweird.f32 %v777
      %vm784 = vmor %vm782, %vm783
      %v785 = vsel %vm784, %v777, %v781
      %v786 = vand.u32 2147483647, %v755
      %vm787 = vcmp.eq.f32.partialorder %v786, 8.507059e+37
      %v788 = vand.u32 %v755, 2147483648
      %v789 = vor.u32 1.1754944e-38, %v788
      %v790 = vsel %vm787, %v789, %v785
      %v791 = vmul.f32 %v619, %v790
      %v792 = vrcp.pop %v756
      %v793 = vmul.f32 %v756, %v792
      %v794 = vsub.f32 1.0, %v793
      %v795 = vmul.f32 %v792, %v794
      %v796 = vadd.f32 %v792, %v795
      %vm797 = vweird.f32 %v756
      %vm798 = vweird.f32 %v792
      %vm799 = vmor %vm797, %vm798
      %v800 = vsel %vm799, %v792, %v796
      %v801 = vand.u32 2147483647, %v756
      %vm802 = vcmp.eq.f32.partialorder %v801, 8.507059e+37
      %v803 = vand.u32 %v756, 2147483648
      %v804 = vor.u32 1.1754944e-38, %v803
      %v805 = vsel %vm802, %v804, %v800
      %v806 = vmul.f32 %v620, %v805
      %v807 = vrcp.pop %v757
      %v808 = vmul.f32 %v757, %v807
      %v809 = vsub.f32 1.0, %v808
      %v810 = vmul.f32 %v807, %v809
      %v811 = vadd.f32 %v807, %v810
      %vm812 = vweird.f32 %v757
      %vm813 = vweird.f32 %v807
      %vm814 = vmor %vm812, %vm813
      %v815 = vsel %vm814, %v807, %v811
      %v816 = vand.u32 2147483647, %v757
      %vm817 = vcmp.eq.f32.partialorder %v816, 8.507059e+37
      %v818 = vand.u32 %v757, 2147483648
      %v819 = vor.u32 1.1754944e-38, %v818
      %v820 = vsel %vm817, %v819, %v815
      %v821 = vmul.f32 %v621, %v820
      %v822 = vrcp.pop %v758
      %v823 = vmul.f32 %v758, %v822
      %v824 = vsub.f32 1.0, %v823
      %v825 = vmul.f32 %v822, %v824
      %v826 = vadd.f32 %v822, %v825
      %vm827 = vweird.f32 %v758
      %vm828 = vweird.f32 %v822
      %vm829 = vmor %vm827, %vm828
      %v830 = vsel %vm829, %v822, %v826
      %v831 = vand.u32 2147483647, %v758
      %vm832 = vcmp.eq.f32.partialorder %v831, 8.507059e+37
      %v833 = vand.u32 %v758, 2147483648
      %v834 = vor.u32 1.1754944e-38, %v833
      %v835 = vsel %vm832, %v834, %v830
      %v836 = vmul.f32 %v622, %v835
      %v837 = vrcp.pop %v759
      %v838 = vmul.f32 %v759, %v837
      %v839 = vsub.f32 1.0, %v838
      %v840 = vmul.f32 %v837, %v839
      %v841 = vadd.f32 %v837, %v840
      %vm842 = vweird.f32 %v759
      %vm843 = vweird.f32 %v837
      %vm844 = vmor %vm842, %vm843
      %v845 = vsel %vm844, %v837, %v841
      %v846 = vand.u32 2147483647, %v759
      %vm847 = vcmp.eq.f32.partialorder %v846, 8.507059e+37
      %v848 = vand.u32 %v759, 2147483648
      %v849 = vor.u32 1.1754944e-38, %v848
      %v850 = vsel %vm847, %v849, %v845
      %v851 = vmul.f32 %v623, %v850
      %v852 = vrcp.pop %v760
      %v853 = vmul.f32 %v760, %v852
      %v854 = vsub.f32 1.0, %v853
      %v855 = vmul.f32 %v852, %v854
      %v856 = vadd.f32 %v852, %v855
      %vm857 = vweird.f32 %v760
      %vm858 = vweird.f32 %v852
      %vm859 = vmor %vm857, %vm858
      %v860 = vsel %vm859, %v852, %v856
      %v861 = vand.u32 2147483647, %v760
      %vm862 = vcmp.eq.f32.partialorder %v861, 8.507059e+37
      %v863 = vand.u32 %v760, 2147483648
      %v864 = vor.u32 1.1754944e-38, %v863
      %v865 = vsel %vm862, %v864, %v860
      %v866 = vmul.f32 %v624, %v865
      %v867 = vrcp.pop %v761
      %v868 = vmul.f32 %v761, %v867
      %v869 = vsub.f32 1.0, %v868
      %v870 = vmul.f32 %v867, %v869
      %v871 = vadd.f32 %v867, %v870
      %vm872 = vweird.f32 %v761
      %vm873 = vweird.f32 %v867
      %vm874 = vmor %vm872, %vm873
      %v875 = vsel %vm874, %v867, %v871
      %v876 = vand.u32 2147483647, %v761
      %vm877 = vcmp.eq.f32.partialorder %v876, 8.507059e+37
      %v878 = vand.u32 %v761, 2147483648
      %v879 = vor.u32 1.1754944e-38, %v878
      %v880 = vsel %vm877, %v879, %v875
      %v881 = vmul.f32 %v625, %v880
      %883 = vset.pattern.permute.xlu0 0
      %884 = vperm.xlu0 %883, %v367
      %v885 = vpop.permute.xlu0 %884
      %888 = vset.pattern.permute.xlu0 0
      %889 = vperm.xlu0 %888, %v368
      %v890 = vpop.permute.xlu0 %889
      %893 = vset.pattern.permute.xlu0 0
      %894 = vperm.xlu0 %893, %v369
      %v895 = vpop.permute.xlu0 %894
      %898 = vset.pattern.permute.xlu0 0
      %899 = vperm.xlu0 %898, %v370
      %v900 = vpop.permute.xlu0 %899
      %903 = vset.pattern.permute.xlu0 0
      %904 = vperm.xlu0 %903, %v371
      %v905 = vpop.permute.xlu0 %904
      %908 = vset.pattern.permute.xlu0 0
      %909 = vperm.xlu0 %908, %v372
      %v910 = vpop.permute.xlu0 %909
      %913 = vset.pattern.permute.xlu0 0
      %914 = vperm.xlu0 %913, %v373
      %v915 = vpop.permute.xlu0 %914
      %918 = vset.pattern.permute.xlu0 0
      %919 = vperm.xlu0 %918, %v374
      %v920 = vpop.permute.xlu0 %919
      %v922 = vmul.f32 %v776, %v885
      %v923 = vmul.f32 %v791, %v890
      %v924 = vmul.f32 %v806, %v895
      %v925 = vmul.f32 %v821, %v900
      %v926 = vmul.f32 %v836, %v905
      %v927 = vmul.f32 %v851, %v910
      %v928 = vmul.f32 %v866, %v915
      %v929 = vmul.f32 %v881, %v920
      %930 = vst.msk [vmem:[#allocation2] sm:$0xff] %vm548, 0.0
      %vm931 = vcmask 254976
      %932 = vst.msk [vmem:[#allocation2 + $0x8] sm:$0x3] %vm931, 0.0
      %933 = vst.msk [vmem:[#allocation2 + $0x10] sm:$0xff] %vm548, 0.0
      %934 = vst.msk [vmem:[#allocation2 + $0x18] sm:$0x3] %vm931, 0.0
      %935 = vst.msk [vmem:[#allocation2 + $0x20] sm:$0xff] %vm548, 0.0
      %936 = vst.msk [vmem:[#allocation2 + $0x28] sm:$0x3] %vm931, 0.0
      %937 = vst.msk [vmem:[#allocation2 + $0x30] sm:$0xff] %vm548, 0.0
      %938 = vst.msk [vmem:[#allocation2 + $0x38] sm:$0x3] %vm931, 0.0
      %939 = vst.msk [vmem:[#allocation2 + $0x40] sm:$0xff] %vm548, 0.0
      %940 = vst.msk [vmem:[#allocation2 + $0x48] sm:$0x3] %vm931, 0.0
      %941 = vst.msk [vmem:[#allocation2 + $0x50] sm:$0xff] %vm548, 0.0
      %942 = vst.msk [vmem:[#allocation2 + $0x58] sm:$0x3] %vm931, 0.0
      %943 = vst.msk [vmem:[#allocation2 + $0x60] sm:$0xff] %vm548, 0.0
      %944 = vst.msk [vmem:[#allocation2 + $0x68] sm:$0x3] %vm931, 0.0
      %945 = vst.msk [vmem:[#allocation2 + $0x70] sm:$0xff] %vm548, 0.0
      %946 = vst.msk [vmem:[#allocation2 + $0x78] sm:$0x3] %vm931, 0.0
      %947 = vst.msk [vmem:[#allocation2 + $0x80] sm:$0xff] %vm548, 0.0
      %948 = vst.msk [vmem:[#allocation2 + $0x88] sm:$0x3] %vm931, 0.0
      %949 = vst.msk [vmem:[#allocation2 + $0x90] sm:$0xff] %vm548, 0.0
      %950 = vst.msk [vmem:[#allocation2 + $0x98] sm:$0x3] %vm931, 0.0
      %v951 = vmul.f32 %v922, %v885
      %v952 = vmul.f32 %v923, %v890
      %v953 = vmul.f32 %v924, %v895
      %v954 = vmul.f32 %v925, %v900
      %v955 = vmul.f32 %v926, %v905
      %v956 = vmul.f32 %v927, %v910
      %v957 = vmul.f32 %v928, %v915
      %v958 = vmul.f32 %v929, %v920
      %s959 = scalar_lea.vmem [#allocation2], 16
      %960 = vst.msk [vmem:[%s959 + $0x1] sm:$0xff] %vm548, %v951
      %961 = vst.msk [vmem:[%s959 + $0x11] sm:$0xff] %vm548, %v952
      %962 = vst.msk [vmem:[%s959 + $0x21] sm:$0xff] %vm548, %v953
      %963 = vst.msk [vmem:[%s959 + $0x31] sm:$0xff] %vm548, %v954
      %964 = vst.msk [vmem:[%s959 + $0x41] sm:$0xff] %vm548, %v955
      %965 = vst.msk [vmem:[%s959 + $0x51] sm:$0xff] %vm548, %v956
      %966 = vst.msk [vmem:[%s959 + $0x61] sm:$0xff] %vm548, %v957
      %967 = vst.msk [vmem:[%s959 + $0x71] sm:$0xff] %vm548, %v958
      %v968 = vld [vmem:[#allocation2] sm:$0xff]
      %v969 = vld [vmem:[#allocation2 + $0x8] sm:$0x3]
      %v970 = vld [vmem:[#allocation2 + $0x10] sm:$0xff]
      %v971 = vld [vmem:[#allocation2 + $0x18] sm:$0x3]
      %v972 = vld [vmem:[#allocation2 + $0x20] sm:$0xff]
      %v973 = vld [vmem:[#allocation2 + $0x28] sm:$0x3]
      %v974 = vld [vmem:[#allocation2 + $0x30] sm:$0xff]
      %v975 = vld [vmem:[#allocation2 + $0x38] sm:$0x3]
      %v976 = vld [vmem:[#allocation2 + $0x40] sm:$0xff]
      %v977 = vld [vmem:[#allocation2 + $0x48] sm:$0x3]
      %v978 = vld [vmem:[#allocation2 + $0x50] sm:$0xff]
      %v979 = vld [vmem:[#allocation2 + $0x58] sm:$0x3]
      %v980 = vld [vmem:[#allocation2 + $0x60] sm:$0xff]
      %v981 = vld [vmem:[#allocation2 + $0x68] sm:$0x3]
      %v982 = vld [vmem:[#allocation2 + $0x70] sm:$0xff]
      %v983 = vld [vmem:[#allocation2 + $0x78] sm:$0x3]
      %v984 = vld [vmem:[#allocation2 + $0x80] sm:$0xff]
      %v985 = vld [vmem:[#allocation2 + $0x88] sm:$0x3]
      %v986 = vld [vmem:[#allocation2 + $0x90] sm:$0xff]
      %v987 = vld [vmem:[#allocation2 + $0x98] sm:$0x3]
      %vm1004 = vcmask 1046528
      %v1005 = vrot.slane %v968, 1
      %v1006 = vrot.slane %v969, 1
      %v1007 = vsel %vm1004, %v1005, %v1006
      %v1008 = vrot.slane %v970, 1
      %v1009 = vrot.slane %v971, 1
      %v1010 = vsel %vm1004, %v1008, %v1009
      %v1011 = vrot.slane %v972, 1
      %v1012 = vrot.slane %v973, 1
      %v1013 = vsel %vm1004, %v1011, %v1012
      %v1014 = vrot.slane %v974, 1
      %v1015 = vrot.slane %v975, 1
      %v1016 = vsel %vm1004, %v1014, %v1015
      %v1017 = vrot.slane %v976, 1
      %v1018 = vrot.slane %v977, 1
      %v1019 = vsel %vm1004, %v1017, %v1018
      %v1020 = vrot.slane %v978, 1
      %v1021 = vrot.slane %v979, 1
      %v1022 = vsel %vm1004, %v1020, %v1021
      %v1023 = vrot.slane %v980, 1
      %v1024 = vrot.slane %v981, 1
      %v1025 = vsel %vm1004, %v1023, %v1024
      %v1026 = vrot.slane %v982, 1
      %v1027 = vrot.slane %v983, 1
      %v1028 = vsel %vm1004, %v1026, %v1027
      %vm1029 = vcmask 1045504
      %v1030 = vrot.slane %v968, 2
      %v1031 = vrot.slane %v969, 2
      %v1032 = vsel %vm1029, %v1030, %v1031
      %v1033 = vrot.slane %v970, 2
      %v1034 = vrot.slane %v971, 2
      %v1035 = vsel %vm1029, %v1033, %v1034
      %v1036 = vrot.slane %v972, 2
      %v1037 = vrot.slane %v973, 2
      %v1038 = vsel %vm1029, %v1036, %v1037
      %v1039 = vrot.slane %v974, 2
      %v1040 = vrot.slane %v975, 2
      %v1041 = vsel %vm1029, %v1039, %v1040
      %v1042 = vrot.slane %v976, 2
      %v1043 = vrot.slane %v977, 2
      %v1044 = vsel %vm1029, %v1042, %v1043
      %v1045 = vrot.slane %v978, 2
      %v1046 = vrot.slane %v979, 2
      %v1047 = vsel %vm1029, %v1045, %v1046
      %v1048 = vrot.slane %v980, 2
      %v1049 = vrot.slane %v981, 2
      %v1050 = vsel %vm1029, %v1048, %v1049
      %v1051 = vrot.slane %v982, 2
      %v1052 = vrot.slane %v983, 2
      %v1053 = vsel %vm1029, %v1051, %v1052
      %v1056 = vrot.slane %v984, 1
      %v1057 = vrot.slane %v985, 1
      %v1058 = vsel %vm1004, %v1056, %v1057
      %v1067 = vrot.slane %v984, 2
      %v1068 = vrot.slane %v985, 2
      %v1069 = vsel %vm1029, %v1067, %v1068
      %v1072 = vrot.slane %v986, 1
      %v1073 = vrot.slane %v987, 1
      %v1074 = vsel %vm1004, %v1072, %v1073
      %v1075 = vrot.slane %v986, 2
      %v1076 = vrot.slane %v987, 2
      %v1077 = vsel %vm1029, %v1075, %v1076
      %1078 = vrot.lane.b32.xlu0 %v1007, 32
      %v1079 = vpop.permute.xlu0 %1078
      %1080 = vrot.lane.b32.xlu0 %v1010, 32
      %v1081 = vpop.permute.xlu0 %1080
      %1082 = vrot.lane.b32.xlu0 %v1013, 32
      %v1083 = vpop.permute.xlu0 %1082
      %1084 = vrot.lane.b32.xlu0 %v1016, 32
      %v1085 = vpop.permute.xlu0 %1084
      %1086 = vrot.lane.b32.xlu0 %v1019, 32
      %v1087 = vpop.permute.xlu0 %1086
      %1088 = vrot.lane.b32.xlu0 %v1022, 32
      %v1089 = vpop.permute.xlu0 %1088
      %1090 = vrot.lane.b32.xlu0 %v1025, 32
      %v1091 = vpop.permute.xlu0 %1090
      %1092 = vrot.lane.b32.xlu0 %v1028, 32
      %v1093 = vpop.permute.xlu0 %1092
      %1102 = vrot.lane.b32.xlu0 %v1032, 64
      %v1103 = vpop.permute.xlu0 %1102
      %1104 = vrot.lane.b32.xlu0 %v1035, 64
      %v1105 = vpop.permute.xlu0 %1104
      %1106 = vrot.lane.b32.xlu0 %v1038, 64
      %v1107 = vpop.permute.xlu0 %1106
      %1108 = vrot.lane.b32.xlu0 %v1041, 64
      %v1109 = vpop.permute.xlu0 %1108
      %1110 = vrot.lane.b32.xlu0 %v1044, 64
      %v1111 = vpop.permute.xlu0 %1110
      %1112 = vrot.lane.b32.xlu0 %v1047, 64
      %v1113 = vpop.permute.xlu0 %1112
      %1114 = vrot.lane.b32.xlu0 %v1050, 64
      %v1115 = vpop.permute.xlu0 %1114
      %1116 = vrot.lane.b32.xlu0 %v1053, 64
      %v1117 = vpop.permute.xlu0 %1116
      %1126 = vrot.lane.b32.xlu0 %v970, 96
      %v1127 = vpop.permute.xlu0 %1126
      %1128 = vrot.lane.b32.xlu0 %v972, 96
      %v1129 = vpop.permute.xlu0 %1128
      %1130 = vrot.lane.b32.xlu0 %v974, 96
      %v1131 = vpop.permute.xlu0 %1130
      %1132 = vrot.lane.b32.xlu0 %v976, 96
      %v1133 = vpop.permute.xlu0 %1132
      %1134 = vrot.lane.b32.xlu0 %v978, 96
      %v1135 = vpop.permute.xlu0 %1134
      %1136 = vrot.lane.b32.xlu0 %v980, 96
      %v1137 = vpop.permute.xlu0 %1136
      %1138 = vrot.lane.b32.xlu0 %v982, 96
      %v1139 = vpop.permute.xlu0 %1138
      %1140 = vrot.lane.b32.xlu0 %v984, 96
      %v1141 = vpop.permute.xlu0 %1140
      %1150 = vrot.lane.b32.xlu0 %v1035, 32
      %v1151 = vpop.permute.xlu0 %1150
      %1152 = vrot.lane.b32.xlu0 %v1038, 32
      %v1153 = vpop.permute.xlu0 %1152
      %1154 = vrot.lane.b32.xlu0 %v1041, 32
      %v1155 = vpop.permute.xlu0 %1154
      %1156 = vrot.lane.b32.xlu0 %v1044, 32
      %v1157 = vpop.permute.xlu0 %1156
      %1158 = vrot.lane.b32.xlu0 %v1047, 32
      %v1159 = vpop.permute.xlu0 %1158
      %1160 = vrot.lane.b32.xlu0 %v1050, 32
      %v1161 = vpop.permute.xlu0 %1160
      %1162 = vrot.lane.b32.xlu0 %v1053, 32
      %v1163 = vpop.permute.xlu0 %1162
      %1164 = vrot.lane.b32.xlu0 %v1069, 32
      %v1165 = vpop.permute.xlu0 %1164
      %1174 = vrot.lane.b32.xlu0 %v972, 64
      %v1175 = vpop.permute.xlu0 %1174
      %1176 = vrot.lane.b32.xlu0 %v974, 64
      %v1177 = vpop.permute.xlu0 %1176
      %1178 = vrot.lane.b32.xlu0 %v976, 64
      %v1179 = vpop.permute.xlu0 %1178
      %1180 = vrot.lane.b32.xlu0 %v978, 64
      %v1181 = vpop.permute.xlu0 %1180
      %1182 = vrot.lane.b32.xlu0 %v980, 64
      %v1183 = vpop.permute.xlu0 %1182
      %1184 = vrot.lane.b32.xlu0 %v982, 64
      %v1185 = vpop.permute.xlu0 %1184
      %1186 = vrot.lane.b32.xlu0 %v984, 64
      %v1187 = vpop.permute.xlu0 %1186
      %1188 = vrot.lane.b32.xlu0 %v986, 64
      %v1189 = vpop.permute.xlu0 %1188
      %1198 = vrot.lane.b32.xlu0 %v1013, 96
      %v1199 = vpop.permute.xlu0 %1198
      %1200 = vrot.lane.b32.xlu0 %v1016, 96
      %v1201 = vpop.permute.xlu0 %1200
      %1202 = vrot.lane.b32.xlu0 %v1019, 96
      %v1203 = vpop.permute.xlu0 %1202
      %1204 = vrot.lane.b32.xlu0 %v1022, 96
      %v1205 = vpop.permute.xlu0 %1204
      %1206 = vrot.lane.b32.xlu0 %v1025, 96
      %v1207 = vpop.permute.xlu0 %1206
      %1208 = vrot.lane.b32.xlu0 %v1028, 96
      %v1209 = vpop.permute.xlu0 %1208
      %1210 = vrot.lane.b32.xlu0 %v1058, 96
      %v1211 = vpop.permute.xlu0 %1210
      %1212 = vrot.lane.b32.xlu0 %v1074, 96
      %v1213 = vpop.permute.xlu0 %1212
      %v1222 = vsel %vm548, %v968, %v1079
      %v1223 = vsel %vm548, %v970, %v1081
      %v1224 = vsel %vm548, %v972, %v1083
      %v1225 = vsel %vm548, %v974, %v1085
      %v1226 = vsel %vm548, %v976, %v1087
      %v1227 = vsel %vm548, %v978, %v1089
      %v1228 = vsel %vm548, %v980, %v1091
      %v1229 = vsel %vm548, %v982, %v1093
      %vm1230 = vcmask 523264
      %v1231 = vsel %vm1230, %v1222, %v1103
      %v1232 = vsel %vm1230, %v1223, %v1105
      %v1233 = vsel %vm1230, %v1224, %v1107
      %v1234 = vsel %vm1230, %v1225, %v1109
      %v1235 = vsel %vm1230, %v1226, %v1111
      %v1236 = vsel %vm1230, %v1227, %v1113
      %v1237 = vsel %vm1230, %v1228, %v1115
      %v1238 = vsel %vm1230, %v1229, %v1117
      %vm1239 = vcmask 785408
      %v1240 = vsel %vm1239, %v1231, %v1127
      %v1241 = vsel %vm1239, %v1232, %v1129
      %v1242 = vsel %vm1239, %v1233, %v1131
      %v1243 = vsel %vm1239, %v1234, %v1133
      %v1244 = vsel %vm1239, %v1235, %v1135
      %v1245 = vsel %vm1239, %v1236, %v1137
      %v1246 = vsel %vm1239, %v1237, %v1139
      %v1247 = vsel %vm1239, %v1238, %v1141
      %v1248 = vsel %vm548, %v1010, %v1151
      %v1249 = vsel %vm548, %v1013, %v1153
      %v1250 = vsel %vm548, %v1016, %v1155
      %v1251 = vsel %vm548, %v1019, %v1157
      %v1252 = vsel %vm548, %v1022, %v1159
      %v1253 = vsel %vm548, %v1025, %v1161
      %v1254 = vsel %vm548, %v1028, %v1163
      %v1255 = vsel %vm548, %v1058, %v1165
      %v1256 = vsel %vm1230, %v1248, %v1175
      %v1257 = vsel %vm1230, %v1249, %v1177
      %v1258 = vsel %vm1230, %v1250, %v1179
      %v1259 = vsel %vm1230, %v1251, %v1181
      %v1260 = vsel %vm1230, %v1252, %v1183
      %v1261 = vsel %vm1230, %v1253, %v1185
      %v1262 = vsel %vm1230, %v1254, %v1187
      %v1263 = vsel %vm1230, %v1255, %v1189
      %v1264 = vsel %vm1239, %v1256, %v1199
      %v1265 = vsel %vm1239, %v1257, %v1201
      %v1266 = vsel %vm1239, %v1258, %v1203
      %v1267 = vsel %vm1239, %v1259, %v1205
      %v1268 = vsel %vm1239, %v1260, %v1207
      %v1269 = vsel %vm1239, %v1261, %v1209
      %v1270 = vsel %vm1239, %v1262, %v1211
      %v1271 = vsel %vm1239, %v1263, %v1213
      %v1272 = vld [vmem:[%s5] sm:$0xff]
      %v1273 = vld [vmem:[%s5 + $0x8] sm:$0xff]
      %v1274 = vld [vmem:[%s5 + $0x10] sm:$0xff]
      %v1275 = vld [vmem:[%s5 + $0x18] sm:$0xff]
      %v1276 = vld [vmem:[%s5 + $0x20] sm:$0xff]
      %v1277 = vld [vmem:[%s5 + $0x28] sm:$0xff]
      %v1278 = vld [vmem:[%s5 + $0x30] sm:$0xff]
      %v1279 = vld [vmem:[%s5 + $0x38] sm:$0xff]
      %v1280 = vld [vmem:[%s5 + $0x40] sm:$0xff]
      %v1281 = vld [vmem:[%s5 + $0x48] sm:$0xff]
      %v1282 = vld [vmem:[%s5 + $0x50] sm:$0xff]
      %v1283 = vld [vmem:[%s5 + $0x58] sm:$0xff]
      %v1284 = vld [vmem:[%s5 + $0x60] sm:$0xff]
      %v1285 = vld [vmem:[%s5 + $0x68] sm:$0xff]
      %v1286 = vld [vmem:[%s5 + $0x70] sm:$0xff]
      %v1287 = vld [vmem:[%s5 + $0x78] sm:$0xff]
      %v1288 = vld [vmem:[%s5 + $0x80] sm:$0xff]
      %v1289 = vld [vmem:[%s5 + $0x88] sm:$0xff]
      %v1290 = vld [vmem:[%s5 + $0x90] sm:$0xff]
      %v1291 = vld [vmem:[%s5 + $0x98] sm:$0xff]
      %v1292 = vld [vmem:[%s5 + $0xa0] sm:$0xff]
      %v1293 = vld [vmem:[%s5 + $0xa8] sm:$0xff]
      %v1294 = vld [vmem:[%s5 + $0xb0] sm:$0xff]
      %v1295 = vld [vmem:[%s5 + $0xb8] sm:$0xff]
      %v1296 = vld [vmem:[%s5 + $0xc0] sm:$0xff]
      %v1297 = vld [vmem:[%s5 + $0xc8] sm:$0xff]
      %v1298 = vld [vmem:[%s5 + $0xd0] sm:$0xff]
      %v1299 = vld [vmem:[%s5 + $0xd8] sm:$0xff]
      %v1300 = vld [vmem:[%s5 + $0xe0] sm:$0xff]
      %v1301 = vld [vmem:[%s5 + $0xe8] sm:$0xff]
      %v1302 = vld [vmem:[%s5 + $0xf0] sm:$0xff]
      %v1303 = vld [vmem:[%s5 + $0xf8] sm:$0xff]
      %v1304 = vld [vmem:[%s5 + $0x100] sm:$0xff]
      %v1305 = vld [vmem:[%s5 + $0x108] sm:$0xff]
      %v1306 = vld [vmem:[%s5 + $0x110] sm:$0xff]
      %v1307 = vld [vmem:[%s5 + $0x118] sm:$0xff]
      %v1308 = vld [vmem:[%s6] sm:$0x1]
      %v1310 = vperm.slane %v1308, 0
      %v1312 = vsel %vm548, %v1038, 0
      %v1314 = vsel %vm548, %v1041, 0
      %v1316 = vsel %vm548, %v1044, 0
      %v1318 = vsel %vm548, %v1047, 0
      %v1320 = vsel %vm548, %v1050, 0
      %v1322 = vsel %vm548, %v1053, 0
      %v1324 = vsel %vm548, %v1069, 0
      %v1326 = vsel %vm548, %v1077, 0
      %1328 = vmatpush.msra.mxu0 %v1287
      %1329 = vmatpush.msra.mxu0 %v1286
      %1330 = vmatpush.msra.mxu0 %v1285
      %1331 = vmatpush.msra.mxu0 %v1284
      %1332 = vmatpush.msra.mxu0 %v1283
      %1333 = vmatpush.msra.mxu0 %v1282
      %1334 = vmatpush.msra.mxu0 %v1281
      %1335 = vmatpush.msra.mxu0 %v1280
      %1336 = vmatpush.msra.mxu0 %v1279
      %1337 = vmatpush.msra.mxu0 %v1278
      %1338 = vmatpush.msra.mxu0 %v1277
      %1339 = vmatpush.msra.mxu0 %v1276
      %1340 = vmatpush.msra.mxu0 %v1275
      %1341 = vmatpush.msra.mxu0 %v1274
      %1342 = vmatpush.msra.mxu0 %v1273
      %1343 = vmatpush.msra.mxu0 %v1272
      %1344 = vmatmul.f32.gmra.mxu0 %v1240
      %v1345 = vpop.f32.mrf.mxu0
      %v1346 = vadd.f32 %v1310, %v1345
      %1347 = vmatmul.f32.gmra.mxu0 %v1241
      %v1348 = vpop.f32.mrf.mxu0
      %v1349 = vadd.f32 %v1310, %v1348
      %1350 = vmatmul.f32.gmra.mxu0 %v1242
      %v1351 = vpop.f32.mrf.mxu0
      %v1352 = vadd.f32 %v1310, %v1351
      %1353 = vmatmul.f32.gmra.mxu0 %v1243
      %v1354 = vpop.f32.mrf.mxu0
      %v1355 = vadd.f32 %v1310, %v1354
      %1356 = vmatmul.f32.gmra.mxu0 %v1244
      %v1357 = vpop.f32.mrf.mxu0
      %v1358 = vadd.f32 %v1310, %v1357
      %1359 = vmatmul.f32.gmra.mxu0 %v1245
      %v1360 = vpop.f32.mrf.mxu0
      %v1361 = vadd.f32 %v1310, %v1360
      %1362 = vmatmul.f32.gmra.mxu0 %v1246
      %v1363 = vpop.f32.mrf.mxu0
      %v1364 = vadd.f32 %v1310, %v1363
      %1365 = vmatmul.f32.gmra.mxu0 %v1247
      %v1366 = vpop.f32.mrf.mxu0
      %v1367 = vadd.f32 %v1310, %v1366
      %1368 = vdwg.mxu0
      %1369 = vmatpush.msra.mxu0 %v1303
      %1370 = vmatpush.msra.mxu0 %v1302
      %1371 = vmatpush.msra.mxu0 %v1301
      %1372 = vmatpush.msra.mxu0 %v1300
      %1373 = vmatpush.msra.mxu0 %v1299
      %1374 = vmatpush.msra.mxu0 %v1298
      %1375 = vmatpush.msra.mxu0 %v1297
      %1376 = vmatpush.msra.mxu0 %v1296
      %1377 = vmatpush.msra.mxu0 %v1295
      %1378 = vmatpush.msra.mxu0 %v1294
      %1379 = vmatpush.msra.mxu0 %v1293
      %1380 = vmatpush.msra.mxu0 %v1292
      %1381 = vmatpush.msra.mxu0 %v1291
      %1382 = vmatpush.msra.mxu0 %v1290
      %1383 = vmatpush.msra.mxu0 %v1289
      %1384 = vmatpush.msra.mxu0 %v1288
      %1385 = vmatmul.f32.gmra.mxu0 %v1264
      %v1386 = vpop.f32.mrf.mxu0
      %v1387 = vadd.f32 %v1346, %v1386
      %1388 = vmatmul.f32.gmra.mxu0 %v1265
      %v1389 = vpop.f32.mrf.mxu0
      %v1390 = vadd.f32 %v1349, %v1389
      %1391 = vmatmul.f32.gmra.mxu0 %v1266
      %v1392 = vpop.f32.mrf.mxu0
      %v1393 = vadd.f32 %v1352, %v1392
      %1394 = vmatmul.f32.gmra.mxu0 %v1267
      %v1395 = vpop.f32.mrf.mxu0
      %v1396 = vadd.f32 %v1355, %v1395
      %1397 = vmatmul.f32.gmra.mxu0 %v1268
      %v1398 = vpop.f32.mrf.mxu0
      %v1399 = vadd.f32 %v1358, %v1398
      %1400 = vmatmul.f32.gmra.mxu0 %v1269
      %v1401 = vpop.f32.mrf.mxu0
      %v1402 = vadd.f32 %v1361, %v1401
      %1403 = vmatmul.f32.gmra.mxu0 %v1270
      %v1404 = vpop.f32.mrf.mxu0
      %v1405 = vadd.f32 %v1364, %v1404
      %1406 = vmatmul.f32.gmra.mxu0 %v1271
      %v1407 = vpop.f32.mrf.mxu0
      %v1408 = vadd.f32 %v1367, %v1407
      %1409 = vdwg.mxu0
      %1410 = vmatpush.msra.mxu0 0.0
      %1411 = vmatpush.msra.mxu0 0.0
      %1412 = vmatpush.msra.mxu0 0.0
      %1413 = vmatpush.msra.mxu0 0.0
      %1414 = vmatpush.msra.mxu0 0.0
      %1415 = vmatpush.msra.mxu0 0.0
      %1416 = vmatpush.msra.mxu0 0.0
      %1417 = vmatpush.msra.mxu0 0.0
      %1418 = vmatpush.msra.mxu0 0.0
      %1419 = vmatpush.msra.mxu0 0.0
      %1420 = vmatpush.msra.mxu0 0.0
      %1421 = vmatpush.msra.mxu0 0.0
      %1422 = vmatpush.msra.mxu0 %v1307
      %1423 = vmatpush.msra.mxu0 %v1306
      %1424 = vmatpush.msra.mxu0 %v1305
      %1425 = vmatpush.msra.mxu0 %v1304
      %1426 = vmatmul.f32.gmra.mxu0 %v1312
      %v1427 = vpop.f32.mrf.mxu0
      %v1428 = vadd.f32 %v1387, %v1427
      %1429 = vmatmul.f32.gmra.mxu0 %v1314
      %v1430 = vpop.f32.mrf.mxu0
      %v1431 = vadd.f32 %v1390, %v1430
      %1432 = vmatmul.f32.gmra.mxu0 %v1316
      %v1433 = vpop.f32.mrf.mxu0
      %v1434 = vadd.f32 %v1393, %v1433
      %1435 = vmatmul.f32.gmra.mxu0 %v1318
      %v1436 = vpop.f32.mrf.mxu0
      %v1437 = vadd.f32 %v1396, %v1436
      %1438 = vmatmul.f32.gmra.mxu0 %v1320
      %v1439 = vpop.f32.mrf.mxu0
      %v1440 = vadd.f32 %v1399, %v1439
      %1441 = vmatmul.f32.gmra.mxu0 %v1322
      %v1442 = vpop.f32.mrf.mxu0
      %v1443 = vadd.f32 %v1402, %v1442
      %1444 = vmatmul.f32.gmra.mxu0 %v1324
      %v1445 = vpop.f32.mrf.mxu0
      %v1446 = vadd.f32 %v1405, %v1445
      %1447 = vmatmul.f32.gmra.mxu0 %v1326
      %v1448 = vpop.f32.mrf.mxu0
      %v1449 = vadd.f32 %v1408, %v1448
      %1450 = vdwg.mxu0
      %v1451 = vmax.f32 %v1428, 0.0
      %v1452 = vmax.f32 %v1431, 0.0
      %v1453 = vmax.f32 %v1434, 0.0
      %v1454 = vmax.f32 %v1437, 0.0
      %v1455 = vmax.f32 %v1440, 0.0
      %v1456 = vmax.f32 %v1443, 0.0
      %v1457 = vmax.f32 %v1446, 0.0
      %v1458 = vmax.f32 %v1449, 0.0
      %v1459 = vmul.f32 %v1451, %v885
      %v1460 = vmul.f32 %v1452, %v890
      %v1461 = vmul.f32 %v1453, %v895
      %v1462 = vmul.f32 %v1454, %v900
      %v1463 = vmul.f32 %v1455, %v905
      %v1464 = vmul.f32 %v1456, %v910
      %v1465 = vmul.f32 %v1457, %v915
      %v1466 = vmul.f32 %v1458, %v920
      %1467 = vst.msk [vmem:[%s959 + $0x1] sm:$0xff] %vm548, %v1459
      %1468 = vst.msk [vmem:[%s959 + $0x11] sm:$0xff] %vm548, %v1460
      %1469 = vst.msk [vmem:[%s959 + $0x21] sm:$0xff] %vm548, %v1461
      %1470 = vst.msk [vmem:[%s959 + $0x31] sm:$0xff] %vm548, %v1462
      %1471 = vst.msk [vmem:[%s959 + $0x41] sm:$0xff] %vm548, %v1463
      %1472 = vst.msk [vmem:[%s959 + $0x51] sm:$0xff] %vm548, %v1464
      %1473 = vst.msk [vmem:[%s959 + $0x61] sm:$0xff] %vm548, %v1465
      %1474 = vst.msk [vmem:[%s959 + $0x71] sm:$0xff] %vm548, %v1466
      %v1475 = vld [vmem:[#allocation2] sm:$0xff]
      %v1476 = vld [vmem:[#allocation2 + $0x8] sm:$0x3]
      %v1477 = vld [vmem:[#allocation2 + $0x10] sm:$0xff]
      %v1478 = vld [vmem:[#allocation2 + $0x18] sm:$0x3]
      %v1479 = vld [vmem:[#allocation2 + $0x20] sm:$0xff]
      %v1480 = vld [vmem:[#allocation2 + $0x28] sm:$0x3]
      %v1481 = vld [vmem:[#allocation2 + $0x30] sm:$0xff]
      %v1482 = vld [vmem:[#allocation2 + $0x38] sm:$0x3]
      %v1483 = vld [vmem:[#allocation2 + $0x40] sm:$0xff]
      %v1484 = vld [vmem:[#allocation2 + $0x48] sm:$0x3]
      %v1485 = vld [vmem:[#allocation2 + $0x50] sm:$0xff]
      %v1486 = vld [vmem:[#allocation2 + $0x58] sm:$0x3]
      %v1487 = vld [vmem:[#allocation2 + $0x60] sm:$0xff]
      %v1488 = vld [vmem:[#allocation2 + $0x68] sm:$0x3]
      %v1489 = vld [vmem:[#allocation2 + $0x70] sm:$0xff]
      %v1490 = vld [vmem:[#allocation2 + $0x78] sm:$0x3]
      %v1491 = vld [vmem:[#allocation2 + $0x80] sm:$0xff]
      %v1492 = vld [vmem:[#allocation2 + $0x88] sm:$0x3]
      %v1493 = vld [vmem:[#allocation2 + $0x90] sm:$0xff]
      %v1494 = vld [vmem:[#allocation2 + $0x98] sm:$0x3]
      %v1511 = vrot.slane %v1475, 1
      %v1512 = vrot.slane %v1476, 1
      %v1513 = vsel %vm1004, %v1511, %v1512
      %v1514 = vrot.slane %v1477, 1
      %v1515 = vrot.slane %v1478, 1
      %v1516 = vsel %vm1004, %v1514, %v1515
      %v1517 = vrot.slane %v1479, 1
      %v1518 = vrot.slane %v1480, 1
      %v1519 = vsel %vm1004, %v1517, %v1518
      %v1520 = vrot.slane %v1481, 1
      %v1521 = vrot.slane %v1482, 1
      %v1522 = vsel %vm1004, %v1520, %v1521
      %v1523 = vrot.slane %v1483, 1
      %v1524 = vrot.slane %v1484, 1
      %v1525 = vsel %vm1004, %v1523, %v1524
      %v1526 = vrot.slane %v1485, 1
      %v1527 = vrot.slane %v1486, 1
      %v1528 = vsel %vm1004, %v1526, %v1527
      %v1529 = vrot.slane %v1487, 1
      %v1530 = vrot.slane %v1488, 1
      %v1531 = vsel %vm1004, %v1529, %v1530
      %v1532 = vrot.slane %v1489, 1
      %v1533 = vrot.slane %v1490, 1
      %v1534 = vsel %vm1004, %v1532, %v1533
      %v1535 = vrot.slane %v1475, 2
      %v1536 = vrot.slane %v1476, 2
      %v1537 = vsel %vm1029, %v1535, %v1536
      %v1538 = vrot.slane %v1477, 2
      %v1539 = vrot.slane %v1478, 2
      %v1540 = vsel %vm1029, %v1538, %v1539
      %v1541 = vrot.slane %v1479, 2
      %v1542 = vrot.slane %v1480, 2
      %v1543 = vsel %vm1029, %v1541, %v1542
      %v1544 = vrot.slane %v1481, 2
      %v1545 = vrot.slane %v1482, 2
      %v1546 = vsel %vm1029, %v1544, %v1545
      %v1547 = vrot.slane %v1483, 2
      %v1548 = vrot.slane %v1484, 2
      %v1549 = vsel %vm1029, %v1547, %v1548
      %v1550 = vrot.slane %v1485, 2
      %v1551 = vrot.slane %v1486, 2
      %v1552 = vsel %vm1029, %v1550, %v1551
      %v1553 = vrot.slane %v1487, 2
      %v1554 = vrot.slane %v1488, 2
      %v1555 = vsel %vm1029, %v1553, %v1554
      %v1556 = vrot.slane %v1489, 2
      %v1557 = vrot.slane %v1490, 2
      %v1558 = vsel %vm1029, %v1556, %v1557
      %v1561 = vrot.slane %v1491, 1
      %v1562 = vrot.slane %v1492, 1
      %v1563 = vsel %vm1004, %v1561, %v1562
      %v1572 = vrot.slane %v1491, 2
      %v1573 = vrot.slane %v1492, 2
      %v1574 = vsel %vm1029, %v1572, %v1573
      %v1577 = vrot.slane %v1493, 1
      %v1578 = vrot.slane %v1494, 1
      %v1579 = vsel %vm1004, %v1577, %v1578
      %v1580 = vrot.slane %v1493, 2
      %v1581 = vrot.slane %v1494, 2
      %v1582 = vsel %vm1029, %v1580, %v1581
      %1583 = vrot.lane.b32.xlu0 %v1513, 32
      %v1584 = vpop.permute.xlu0 %1583
      %1585 = vrot.lane.b32.xlu0 %v1516, 32
      %v1586 = vpop.permute.xlu0 %1585
      %1587 = vrot.lane.b32.xlu0 %v1519, 32
      %v1588 = vpop.permute.xlu0 %1587
      %1589 = vrot.lane.b32.xlu0 %v1522, 32
      %v1590 = vpop.permute.xlu0 %1589
      %1591 = vrot.lane.b32.xlu0 %v1525, 32
      %v1592 = vpop.permute.xlu0 %1591
      %1593 = vrot.lane.b32.xlu0 %v1528, 32
      %v1594 = vpop.permute.xlu0 %1593
      %1595 = vrot.lane.b32.xlu0 %v1531, 32
      %v1596 = vpop.permute.xlu0 %1595
      %1597 = vrot.lane.b32.xlu0 %v1534, 32
      %v1598 = vpop.permute.xlu0 %1597
      %1607 = vrot.lane.b32.xlu0 %v1537, 64
      %v1608 = vpop.permute.xlu0 %1607
      %1609 = vrot.lane.b32.xlu0 %v1540, 64
      %v1610 = vpop.permute.xlu0 %1609
      %1611 = vrot.lane.b32.xlu0 %v1543, 64
      %v1612 = vpop.permute.xlu0 %1611
      %1613 = vrot.lane.b32.xlu0 %v1546, 64
      %v1614 = vpop.permute.xlu0 %1613
      %1615 = vrot.lane.b32.xlu0 %v1549, 64
      %v1616 = vpop.permute.xlu0 %1615
      %1617 = vrot.lane.b32.xlu0 %v1552, 64
      %v1618 = vpop.permute.xlu0 %1617
      %1619 = vrot.lane.b32.xlu0 %v1555, 64
      %v1620 = vpop.permute.xlu0 %1619
      %1621 = vrot.lane.b32.xlu0 %v1558, 64
      %v1622 = vpop.permute.xlu0 %1621
      %1631 = vrot.lane.b32.xlu0 %v1477, 96
      %v1632 = vpop.permute.xlu0 %1631
      %1633 = vrot.lane.b32.xlu0 %v1479, 96
      %v1634 = vpop.permute.xlu0 %1633
      %1635 = vrot.lane.b32.xlu0 %v1481, 96
      %v1636 = vpop.permute.xlu0 %1635
      %1637 = vrot.lane.b32.xlu0 %v1483, 96
      %v1638 = vpop.permute.xlu0 %1637
      %1639 = vrot.lane.b32.xlu0 %v1485, 96
      %v1640 = vpop.permute.xlu0 %1639
      %1641 = vrot.lane.b32.xlu0 %v1487, 96
      %v1642 = vpop.permute.xlu0 %1641
      %1643 = vrot.lane.b32.xlu0 %v1489, 96
      %v1644 = vpop.permute.xlu0 %1643
      %1645 = vrot.lane.b32.xlu0 %v1491, 96
      %v1646 = vpop.permute.xlu0 %1645
      %1655 = vrot.lane.b32.xlu0 %v1540, 32
      %v1656 = vpop.permute.xlu0 %1655
      %1657 = vrot.lane.b32.xlu0 %v1543, 32
      %v1658 = vpop.permute.xlu0 %1657
      %1659 = vrot.lane.b32.xlu0 %v1546, 32
      %v1660 = vpop.permute.xlu0 %1659
      %1661 = vrot.lane.b32.xlu0 %v1549, 32
      %v1662 = vpop.permute.xlu0 %1661
      %1663 = vrot.lane.b32.xlu0 %v1552, 32
      %v1664 = vpop.permute.xlu0 %1663
      %1665 = vrot.lane.b32.xlu0 %v1555, 32
      %v1666 = vpop.permute.xlu0 %1665
      %1667 = vrot.lane.b32.xlu0 %v1558, 32
      %v1668 = vpop.permute.xlu0 %1667
      %1669 = vrot.lane.b32.xlu0 %v1574, 32
      %v1670 = vpop.permute.xlu0 %1669
      %1679 = vrot.lane.b32.xlu0 %v1479, 64
      %v1680 = vpop.permute.xlu0 %1679
      %1681 = vrot.lane.b32.xlu0 %v1481, 64
      %v1682 = vpop.permute.xlu0 %1681
      %1683 = vrot.lane.b32.xlu0 %v1483, 64
      %v1684 = vpop.permute.xlu0 %1683
      %1685 = vrot.lane.b32.xlu0 %v1485, 64
      %v1686 = vpop.permute.xlu0 %1685
      %1687 = vrot.lane.b32.xlu0 %v1487, 64
      %v1688 = vpop.permute.xlu0 %1687
      %1689 = vrot.lane.b32.xlu0 %v1489, 64
      %v1690 = vpop.permute.xlu0 %1689
      %1691 = vrot.lane.b32.xlu0 %v1491, 64
      %v1692 = vpop.permute.xlu0 %1691
      %1693 = vrot.lane.b32.xlu0 %v1493, 64
      %v1694 = vpop.permute.xlu0 %1693
      %1703 = vrot.lane.b32.xlu0 %v1519, 96
      %v1704 = vpop.permute.xlu0 %1703
      %1705 = vrot.lane.b32.xlu0 %v1522, 96
      %v1706 = vpop.permute.xlu0 %1705
      %1707 = vrot.lane.b32.xlu0 %v1525, 96
      %v1708 = vpop.permute.xlu0 %1707
      %1709 = vrot.lane.b32.xlu0 %v1528, 96
      %v1710 = vpop.permute.xlu0 %1709
      %1711 = vrot.lane.b32.xlu0 %v1531, 96
      %v1712 = vpop.permute.xlu0 %1711
      %1713 = vrot.lane.b32.xlu0 %v1534, 96
      %v1714 = vpop.permute.xlu0 %1713
      %1715 = vrot.lane.b32.xlu0 %v1563, 96
      %v1716 = vpop.permute.xlu0 %1715
      %1717 = vrot.lane.b32.xlu0 %v1579, 96
      %v1718 = vpop.permute.xlu0 %1717
      %v1727 = vsel %vm548, %v1475, %v1584
      %v1728 = vsel %vm548, %v1477, %v1586
      %v1729 = vsel %vm548, %v1479, %v1588
      %v1730 = vsel %vm548, %v1481, %v1590
      %v1731 = vsel %vm548, %v1483, %v1592
      %v1732 = vsel %vm548, %v1485, %v1594
      %v1733 = vsel %vm548, %v1487, %v1596
      %v1734 = vsel %vm548, %v1489, %v1598
      %v1735 = vsel %vm1230, %v1727, %v1608
      %v1736 = vsel %vm1230, %v1728, %v1610
      %v1737 = vsel %vm1230, %v1729, %v1612
      %v1738 = vsel %vm1230, %v1730, %v1614
      %v1739 = vsel %vm1230, %v1731, %v1616
      %v1740 = vsel %vm1230, %v1732, %v1618
      %v1741 = vsel %vm1230, %v1733, %v1620
      %v1742 = vsel %vm1230, %v1734, %v1622
      %v1743 = vsel %vm1239, %v1735, %v1632
      %v1744 = vsel %vm1239, %v1736, %v1634
      %v1745 = vsel %vm1239, %v1737, %v1636
      %v1746 = vsel %vm1239, %v1738, %v1638
      %v1747 = vsel %vm1239, %v1739, %v1640
      %v1748 = vsel %vm1239, %v1740, %v1642
      %v1749 = vsel %vm1239, %v1741, %v1644
      %v1750 = vsel %vm1239, %v1742, %v1646
      %v1751 = vsel %vm548, %v1516, %v1656
      %v1752 = vsel %vm548, %v1519, %v1658
      %v1753 = vsel %vm548, %v1522, %v1660
      %v1754 = vsel %vm548, %v1525, %v1662
      %v1755 = vsel %vm548, %v1528, %v1664
      %v1756 = vsel %vm548, %v1531, %v1666
      %v1757 = vsel %vm548, %v1534, %v1668
      %v1758 = vsel %vm548, %v1563, %v1670
      %v1759 = vsel %vm1230, %v1751, %v1680
      %v1760 = vsel %vm1230, %v1752, %v1682
      %v1761 = vsel %vm1230, %v1753, %v1684
      %v1762 = vsel %vm1230, %v1754, %v1686
      %v1763 = vsel %vm1230, %v1755, %v1688
      %v1764 = vsel %vm1230, %v1756, %v1690
      %v1765 = vsel %vm1230, %v1757, %v1692
      %v1766 = vsel %vm1230, %v1758, %v1694
      %v1767 = vsel %vm1239, %v1759, %v1704
      %v1768 = vsel %vm1239, %v1760, %v1706
      %v1769 = vsel %vm1239, %v1761, %v1708
      %v1770 = vsel %vm1239, %v1762, %v1710
      %v1771 = vsel %vm1239, %v1763, %v1712
      %v1772 = vsel %vm1239, %v1764, %v1714
      %v1773 = vsel %vm1239, %v1765, %v1716
      %v1774 = vsel %vm1239, %v1766, %v1718
      %s1775 = scalar_lea.vmem %s5, 288
      %v1776 = vld [vmem:[%s1775] sm:$0xff]
      %v1777 = vld [vmem:[%s1775 + $0x8] sm:$0xff]
      %v1778 = vld [vmem:[%s1775 + $0x10] sm:$0xff]
      %v1779 = vld [vmem:[%s1775 + $0x18] sm:$0xff]
      %v1780 = vld [vmem:[%s1775 + $0x20] sm:$0xff]
      %v1781 = vld [vmem:[%s1775 + $0x28] sm:$0xff]
      %v1782 = vld [vmem:[%s1775 + $0x30] sm:$0xff]
      %v1783 = vld [vmem:[%s1775 + $0x38] sm:$0xff]
      %v1784 = vld [vmem:[%s1775 + $0x40] sm:$0xff]
      %v1785 = vld [vmem:[%s1775 + $0x48] sm:$0xff]
      %v1786 = vld [vmem:[%s1775 + $0x50] sm:$0xff]
      %v1787 = vld [vmem:[%s1775 + $0x58] sm:$0xff]
      %v1788 = vld [vmem:[%s1775 + $0x60] sm:$0xff]
      %v1789 = vld [vmem:[%s1775 + $0x68] sm:$0xff]
      %v1790 = vld [vmem:[%s1775 + $0x70] sm:$0xff]
      %v1791 = vld [vmem:[%s1775 + $0x78] sm:$0xff]
      %v1792 = vld [vmem:[%s1775 + $0x80] sm:$0xff]
      %v1793 = vld [vmem:[%s1775 + $0x88] sm:$0xff]
      %v1794 = vld [vmem:[%s1775 + $0x90] sm:$0xff]
      %v1795 = vld [vmem:[%s1775 + $0x98] sm:$0xff]
      %v1796 = vld [vmem:[%s1775 + $0xa0] sm:$0xff]
      %v1797 = vld [vmem:[%s1775 + $0xa8] sm:$0xff]
      %v1798 = vld [vmem:[%s1775 + $0xb0] sm:$0xff]
      %v1799 = vld [vmem:[%s1775 + $0xb8] sm:$0xff]
      %v1800 = vld [vmem:[%s1775 + $0xc0] sm:$0xff]
      %v1801 = vld [vmem:[%s1775 + $0xc8] sm:$0xff]
      %v1802 = vld [vmem:[%s1775 + $0xd0] sm:$0xff]
      %v1803 = vld [vmem:[%s1775 + $0xd8] sm:$0xff]
      %v1804 = vld [vmem:[%s1775 + $0xe0] sm:$0xff]
      %v1805 = vld [vmem:[%s1775 + $0xe8] sm:$0xff]
      %v1806 = vld [vmem:[%s1775 + $0xf0] sm:$0xff]
      %v1807 = vld [vmem:[%s1775 + $0xf8] sm:$0xff]
      %v1808 = vld [vmem:[%s1775 + $0x100] sm:$0xff]
      %v1809 = vld [vmem:[%s1775 + $0x108] sm:$0xff]
      %v1810 = vld [vmem:[%s1775 + $0x110] sm:$0xff]
      %v1811 = vld [vmem:[%s1775 + $0x118] sm:$0xff]
      %s1812 = scalar_lea.vmem %s6, 1
      %v1813 = vld [vmem:[%s1812] sm:$0x1]
      %v1815 = vperm.slane %v1813, 0
      %v1817 = vsel %vm548, %v1543, 0
      %v1819 = vsel %vm548, %v1546, 0
      %v1821 = vsel %vm548, %v1549, 0
      %v1823 = vsel %vm548, %v1552, 0
      %v1825 = vsel %vm548, %v1555, 0
      %v1827 = vsel %vm548, %v1558, 0
      %v1829 = vsel %vm548, %v1574, 0
      %v1831 = vsel %vm548, %v1582, 0
      %1833 = vmatpush.msra.mxu0 %v1791
      %1834 = vmatpush.msra.mxu0 %v1790
      %1835 = vmatpush.msra.mxu0 %v1789
      %1836 = vmatpush.msra.mxu0 %v1788
      %1837 = vmatpush.msra.mxu0 %v1787
      %1838 = vmatpush.msra.mxu0 %v1786
      %1839 = vmatpush.msra.mxu0 %v1785
      %1840 = vmatpush.msra.mxu0 %v1784
      %1841 = vmatpush.msra.mxu0 %v1783
      %1842 = vmatpush.msra.mxu0 %v1782
      %1843 = vmatpush.msra.mxu0 %v1781
      %1844 = vmatpush.msra.mxu0 %v1780
      %1845 = vmatpush.msra.mxu0 %v1779
      %1846 = vmatpush.msra.mxu0 %v1778
      %1847 = vmatpush.msra.mxu0 %v1777
      %1848 = vmatpush.msra.mxu0 %v1776
      %1849 = vmatmul.f32.gmra.mxu0 %v1743
      %v1850 = vpop.f32.mrf.mxu0
      %v1851 = vadd.f32 %v1815, %v1850
      %1852 = vmatmul.f32.gmra.mxu0 %v1744
      %v1853 = vpop.f32.mrf.mxu0
      %v1854 = vadd.f32 %v1815, %v1853
      %1855 = vmatmul.f32.gmra.mxu0 %v1745
      %v1856 = vpop.f32.mrf.mxu0
      %v1857 = vadd.f32 %v1815, %v1856
      %1858 = vmatmul.f32.gmra.mxu0 %v1746
      %v1859 = vpop.f32.mrf.mxu0
      %v1860 = vadd.f32 %v1815, %v1859
      %1861 = vmatmul.f32.gmra.mxu0 %v1747
      %v1862 = vpop.f32.mrf.mxu0
      %v1863 = vadd.f32 %v1815, %v1862
      %1864 = vmatmul.f32.gmra.mxu0 %v1748
      %v1865 = vpop.f32.mrf.mxu0
      %v1866 = vadd.f32 %v1815, %v1865
      %1867 = vmatmul.f32.gmra.mxu0 %v1749
      %v1868 = vpop.f32.mrf.mxu0
      %v1869 = vadd.f32 %v1815, %v1868
      %1870 = vmatmul.f32.gmra.mxu0 %v1750
      %v1871 = vpop.f32.mrf.mxu0
      %v1872 = vadd.f32 %v1815, %v1871
      %1873 = vdwg.mxu0
      %1874 = vmatpush.msra.mxu0 %v1807
      %1875 = vmatpush.msra.mxu0 %v1806
      %1876 = vmatpush.msra.mxu0 %v1805
      %1877 = vmatpush.msra.mxu0 %v1804
      %1878 = vmatpush.msra.mxu0 %v1803
      %1879 = vmatpush.msra.mxu0 %v1802
      %1880 = vmatpush.msra.mxu0 %v1801
      %1881 = vmatpush.msra.mxu0 %v1800
      %1882 = vmatpush.msra.mxu0 %v1799
      %1883 = vmatpush.msra.mxu0 %v1798
      %1884 = vmatpush.msra.mxu0 %v1797
      %1885 = vmatpush.msra.mxu0 %v1796
      %1886 = vmatpush.msra.mxu0 %v1795
      %1887 = vmatpush.msra.mxu0 %v1794
      %1888 = vmatpush.msra.mxu0 %v1793
      %1889 = vmatpush.msra.mxu0 %v1792
      %1890 = vmatmul.f32.gmra.mxu0 %v1767
      %v1891 = vpop.f32.mrf.mxu0
      %v1892 = vadd.f32 %v1851, %v1891
      %1893 = vmatmul.f32.gmra.mxu0 %v1768
      %v1894 = vpop.f32.mrf.mxu0
      %v1895 = vadd.f32 %v1854, %v1894
      %1896 = vmatmul.f32.gmra.mxu0 %v1769
      %v1897 = vpop.f32.mrf.mxu0
      %v1898 = vadd.f32 %v1857, %v1897
      %1899 = vmatmul.f32.gmra.mxu0 %v1770
      %v1900 = vpop.f32.mrf.mxu0
      %v1901 = vadd.f32 %v1860, %v1900
      %1902 = vmatmul.f32.gmra.mxu0 %v1771
      %v1903 = vpop.f32.mrf.mxu0
      %v1904 = vadd.f32 %v1863, %v1903
      %1905 = vmatmul.f32.gmra.mxu0 %v1772
      %v1906 = vpop.f32.mrf.mxu0
      %v1907 = vadd.f32 %v1866, %v1906
      %1908 = vmatmul.f32.gmra.mxu0 %v1773
      %v1909 = vpop.f32.mrf.mxu0
      %v1910 = vadd.f32 %v1869, %v1909
      %1911 = vmatmul.f32.gmra.mxu0 %v1774
      %v1912 = vpop.f32.mrf.mxu0
      %v1913 = vadd.f32 %v1872, %v1912
      %1914 = vdwg.mxu0
      %1915 = vmatpush.msra.mxu0 0.0
      %1916 = vmatpush.msra.mxu0 0.0
      %1917 = vmatpush.msra.mxu0 0.0
      %1918 = vmatpush.msra.mxu0 0.0
      %1919 = vmatpush.msra.mxu0 0.0
      %1920 = vmatpush.msra.mxu0 0.0
      %1921 = vmatpush.msra.mxu0 0.0
      %1922 = vmatpush.msra.mxu0 0.0
      %1923 = vmatpush.msra.mxu0 0.0
      %1924 = vmatpush.msra.mxu0 0.0
      %1925 = vmatpush.msra.mxu0 0.0
      %1926 = vmatpush.msra.mxu0 0.0
      %1927 = vmatpush.msra.mxu0 %v1811
      %1928 = vmatpush.msra.mxu0 %v1810
      %1929 = vmatpush.msra.mxu0 %v1809
      %1930 = vmatpush.msra.mxu0 %v1808
      %1931 = vmatmul.f32.gmra.mxu0 %v1817
      %v1932 = vpop.f32.mrf.mxu0
      %v1933 = vadd.f32 %v1892, %v1932
      %1934 = vmatmul.f32.gmra.mxu0 %v1819
      %v1935 = vpop.f32.mrf.mxu0
      %v1936 = vadd.f32 %v1895, %v1935
      %1937 = vmatmul.f32.gmra.mxu0 %v1821
      %v1938 = vpop.f32.mrf.mxu0
      %v1939 = vadd.f32 %v1898, %v1938
      %1940 = vmatmul.f32.gmra.mxu0 %v1823
      %v1941 = vpop.f32.mrf.mxu0
      %v1942 = vadd.f32 %v1901, %v1941
      %1943 = vmatmul.f32.gmra.mxu0 %v1825
      %v1944 = vpop.f32.mrf.mxu0
      %v1945 = vadd.f32 %v1904, %v1944
      %1946 = vmatmul.f32.gmra.mxu0 %v1827
      %v1947 = vpop.f32.mrf.mxu0
      %v1948 = vadd.f32 %v1907, %v1947
      %1949 = vmatmul.f32.gmra.mxu0 %v1829
      %v1950 = vpop.f32.mrf.mxu0
      %v1951 = vadd.f32 %v1910, %v1950
      %1952 = vmatmul.f32.gmra.mxu0 %v1831
      %v1953 = vpop.f32.mrf.mxu0
      %v1954 = vadd.f32 %v1913, %v1953
      %1955 = vdwg.mxu0
      %v1956 = vmax.f32 %v1933, 0.0
      %v1957 = vmax.f32 %v1936, 0.0
      %v1958 = vmax.f32 %v1939, 0.0
      %v1959 = vmax.f32 %v1942, 0.0
      %v1960 = vmax.f32 %v1945, 0.0
      %v1961 = vmax.f32 %v1948, 0.0
      %v1962 = vmax.f32 %v1951, 0.0
      %v1963 = vmax.f32 %v1954, 0.0
      %v1964 = vld [vmem:[%s7] sm:$0x1]
      %v1966 = vperm.slane %v1964, 0
      %v1968 = vmul.f32 %v1956, %v1966
      %v1969 = vmul.f32 %v1957, %v1966
      %v1970 = vmul.f32 %v1958, %v1966
      %v1971 = vmul.f32 %v1959, %v1966
      %v1972 = vmul.f32 %v1960, %v1966
      %v1973 = vmul.f32 %v1961, %v1966
      %v1974 = vmul.f32 %v1962, %v1966
      %v1975 = vmul.f32 %v1963, %v1966
      %v1976 = vsel %vm548, %v1968, 0.0
      %1977 = vadd.xlane.f32.xlu0 %v1976
      %v1978 = vpop.xlane.xlu0 %1977
      %v1979 = vsel %vm548, %v1969, 0.0
      %1980 = vadd.xlane.f32.xlu0 %v1979
      %v1981 = vpop.xlane.xlu0 %1980
      %v1982 = vsel %vm548, %v1970, 0.0
      %1983 = vadd.xlane.f32.xlu0 %v1982
      %v1984 = vpop.xlane.xlu0 %1983
      %v1985 = vsel %vm548, %v1971, 0.0
      %1986 = vadd.xlane.f32.xlu0 %v1985
      %v1987 = vpop.xlane.xlu0 %1986
      %v1988 = vsel %vm548, %v1972, 0.0
      %1989 = vadd.xlane.f32.xlu0 %v1988
      %v1990 = vpop.xlane.xlu0 %1989
      %v1991 = vsel %vm548, %v1973, 0.0
      %1992 = vadd.xlane.f32.xlu0 %v1991
      %v1993 = vpop.xlane.xlu0 %1992
      %v1994 = vsel %vm548, %v1974, 0.0
      %1995 = vadd.xlane.f32.xlu0 %v1994
      %v1996 = vpop.xlane.xlu0 %1995
      %v1997 = vsel %vm548, %v1975, 0.0
      %1998 = vadd.xlane.f32.xlu0 %v1997
      %v1999 = vpop.xlane.xlu0 %1998
      %v2000 = vld [vmem:[#allocation3] sm:$0x1]
      %v2002 = vperm.slane %v2000, 0
      %v2004 = vadd.f32 %v1978, %v2002
      %v2005 = vadd.f32 %v1981, %v2002
      %v2006 = vadd.f32 %v1984, %v2002
      %v2007 = vadd.f32 %v1987, %v2002
      %v2008 = vadd.f32 %v1990, %v2002
      %v2009 = vadd.f32 %v1993, %v2002
      %v2010 = vadd.f32 %v1996, %v2002
      %v2011 = vadd.f32 %v1999, %v2002
      %v2012 = vmul.f32 %v2004, %v367
      %v2013 = vmul.f32 %v2005, %v368
      %v2014 = vmul.f32 %v2006, %v369
      %v2015 = vmul.f32 %v2007, %v370
      %v2016 = vmul.f32 %v2008, %v371
      %v2017 = vmul.f32 %v2009, %v372
      %v2018 = vmul.f32 %v2010, %v373
      %v2019 = vmul.f32 %v2011, %v374
      %vm2020 = vcmask 7168
      %2021 = vst.msk [vmem:[%s365] sm:$0xff] %vm2020, %v2012
      %2022 = vst.msk [vmem:[%s365 + $0x8] sm:$0xff] %vm2020, %v2013
      %2023 = vst.msk [vmem:[%s365 + $0x10] sm:$0xff] %vm2020, %v2014
      %2024 = vst.msk [vmem:[%s365 + $0x18] sm:$0xff] %vm2020, %v2015
      %2025 = vst.msk [vmem:[%s365 + $0x20] sm:$0xff] %vm2020, %v2016
      %2026 = vst.msk [vmem:[%s365 + $0x28] sm:$0xff] %vm2020, %v2017
      %2027 = vst.msk [vmem:[%s365 + $0x30] sm:$0xff] %vm2020, %v2018
      %2028 = vst.msk [vmem:[%s365 + $0x38] sm:$0xff] %vm2020, %v2019
      %p2029 = scmp.lt.s32.totalorder %s22, 1
      %s2030 = scalar_select %p2029, %s22, 1
      %s2031 = smul.addr %s2030, 8
      %s2032 = smul.addr %s2031, 8
      %s2033 = scalar_lea.vmem %s9, %s2032
      // Predicated region
      $region57: #{multiscale_tan_forward.7} parent=55 // pred_check
        %p2034 = pneg %p244
      $region58: #{multiscale_tan_forward.7} parent=55 // pred_check_branch
        %2036 = sbr.rel (%p2034) target = $region60
      $region59: #{multiscale_tan_forward.7} parent=55 // pred_region
        _
      $region60: #{multiscale_tan_forward.7} parent=55 // pred_fallthru
        _
    $region56: #{multiscale_tan_forward.7} parent=5 // pred_fallthru
      _
    %p2037 = scmp.le.s32.totalorder 2, %s17
    // Predicated region
    $region61: #{multiscale_tan_forward.7} parent=5 // pred_check
      %p2038 = pneg %p2037
    $region62: #{multiscale_tan_forward.7} parent=5 // pred_check_branch
      %2040 = sbr.rel (%p2038) target = $region64
    $region63: #{multiscale_tan_forward.7} parent=5 // pred_region
      %s2041 = ssub.s32 %s17, 2
      // Predicated region
      $region65: #{multiscale_tan_forward.7} parent=63 // pred_check
        %p2042 = pneg %p250
      $region66: #{multiscale_tan_forward.7} parent=63 // pred_check_branch
        %2044 = sbr.rel (%p2042) target = $region68
      $region67: #{multiscale_tan_forward.7} parent=63 // pred_region
        %p2045 = scmp.lt.s32.totalorder %s23, 1
        %s2046 = scalar_select %p2045, %s23, 1
        %s2047 = smul.addr %s2046, 8
        %s2048 = smul.addr %s2047, 8
        %s2049 = scalar_lea.vmem %s9, %s2048
      $region68: #{multiscale_tan_forward.7} parent=63 // pred_fallthru
        _
    $region64: #{multiscale_tan_forward.7} parent=5 // pred_fallthru
      _
  $region6: #{multiscale_tan_forward.7} parent=0 // loop_footer
    %s21 = sadd.s32 1, %s17
  $region7: #{multiscale_tan_forward.7} parent=0 // loop_footer_branch
    %16 = sbr.rel target = $region3
  $region8: #{multiscale_tan_forward.7} parent=0 // loop_exit
    _

</llo_original>
